<compile_context>
chip_gen: v7x
topology: tpu7x:2x2x1
jax: 0.10.0
libtpu: 0.0.40
codegen_flags: <defaults>
</compile_context>

<pallas_src>
import math

import jax
import jax.numpy as jnp
from jax.experimental import pallas as pl
from jax.experimental.pallas import tpu as pltpu

LANE = 128
_POOL_K = {"max": 2, "avg": 4}


def round_up(x, m):
    return ((x + m - 1) // m) * m


_VMEM_LIMIT_CACHE = [None]


def _vmem_limit_bytes():
    """~3/4 of physical VMEM (96 MiB on v5e/v6e, 48 MiB on v7x); conservative
    48 MiB fallback if the hardware query is unavailable."""
    if _VMEM_LIMIT_CACHE[0] is None:
        try:
            cap = int(pltpu.get_tpu_info().vmem_capacity_bytes)
        except Exception:
            cap = 64 * 1024 * 1024
        _VMEM_LIMIT_CACHE[0] = int(min(cap * 3 // 4, 96 * 1024 * 1024))
    return _VMEM_LIMIT_CACHE[0]


def _pick_row_tile(h, w, multiple=1, target=1024):
    """Smallest divisor of h that is a multiple of `multiple` and yields at
    least `target` pixels per tile (falls back to the largest valid divisor)."""
    best = None
    for d in range(1, h + 1):
        if h % d == 0 and d % multiple == 0:
            best = d
            if d * w >= target:
                return d
    return best if best is not None else h


def _can_fuse_pool(h, w, pool_op):
    if pool_op is None:
        return False
    k = _POOL_K[pool_op]
    # need whole pooling windows inside a row tile, and W a multiple of 8 so
    # the in-kernel (TR*W,C)->(TR/k,k,W,C) row split is sublane-tile preserving
    return h % k == 0 and w % k == 0 and w % 8 == 0


# -----------------------------------------------------------------------------
# In-kernel helpers
# -----------------------------------------------------------------------------
def _fused_pool(y, pscr_ref, tr, wd, k, op):
    """Pool a (TR*W, C) f32 activation tile with a k x k window, stride k.

    H direction: split rows into (TR/k, k) leading dims (layout-preserving
    because W % 8 == 0) and combine the k row slabs.
    W direction: store the H-pooled slab to a small VMEM scratch and combine k
    sublane-strided reads (ref[pl.ds(dx, Wo, stride=k)]).
    """
    c = y.shape[-1]
    wo = wd // k
    yh = y.reshape(tr // k, k, wd, c)
    acc = yh[:, 0]
    for dy in range(1, k):
        v = yh[:, dy]
        acc = jnp.maximum(acc, v) if op == "max" else acc + v
    pscr_ref[...] = acc                                   # (TR/k, W, C) f32
    out = pscr_ref[:, pl.ds(0, wo, stride=k), :]
    for dx in range(1, k):
        v = pscr_ref[:, pl.ds(dx, wo, stride=k), :]
        out = jnp.maximum(out, v) if op == "max" else out + v
    if op == "avg":
        out = out * (1.0 / float(k * k))
    return out                                            # (TR/k, Wo, C) f32


def _conv_epilogue(acc, shift, outs, pscr_ref, tr, wd, pool_k, pool_op,
                   emit_conv):
    """Folded-BN shift + ReLU, then store the conv tile and/or the fused-pool tile."""
    y = jnp.maximum(acc + shift, 0.0)                     # f32
    idx = 0
    if emit_conv:
        outs[idx][0] = y.astype(outs[idx].dtype)
        idx += 1
    if pool_k:
        p = _fused_pool(y, pscr_ref, tr, wd, pool_k, pool_op)
        outs[idx][0] = p.astype(outs[idx].dtype)


# -----------------------------------------------------------------------------
# Kernels
# -----------------------------------------------------------------------------
def make_conv3x3_kernel(tr, wd, cin, pool_k, pool_op, emit_conv, tiled_cout):
    """3x3 conv via in-kernel im2col + single matmul (+BN shift+ReLU, +pool)."""
    trw = tr * wd

    def kernel(xp_ref, w_ref, shift_ref, *rest):
        # xp_ref:    (1, H+2, W+2, Cin) bf16 padded image, resident per batch
        # w_ref:     (9*Cin, TC)        bf16 BN-scale-folded weights
        # shift_ref: (1, TC)            f32 folded BN shift
        # outputs:   conv (1, TR*W, TC) and/or pooled (1, TR/k, Wo, TC)
        # scratch:   xcol (TR*W, 9*Cin) bf16 [, pscr (TR/k, W, TC) f32]
        if pool_k:
            outs, xcol_ref, pscr_ref = rest[:-2], rest[-2], rest[-1]
        else:
            outs, xcol_ref, pscr_ref = rest[:-1], rest[-1], None
        row0 = pl.program_id(1) * tr

        def im2col():
            for ky in range(3):
                for kx in range(3):
                    t = xp_ref[0, pl.ds(row0 + ky, tr), pl.ds(kx, wd), :]
                    xcol_ref[:, pl.ds((3 * ky + kx) * cin, cin)] = (
                        t.reshape(trw, cin))

        if tiled_cout:
            # im2col does not depend on the Cout tile -> do it once per (b, r).
            @pl.when(pl.program_id(2) == 0)
            def _():
                im2col()
        else:
            im2col()

        acc = jnp.dot(xcol_ref[...], w_ref[...],
                      preferred_element_type=jnp.float32)
        _conv_epilogue(acc, shift_ref[...], outs, pscr_ref, tr, wd,
                       pool_k, pool_op, emit_conv)

    return kernel


def make_gemm_kernel(tr, wd, pool_k, pool_op, emit_conv):
    """conv1 path: pre-packed im2col (K small) matmul + BN shift + ReLU (+pool)."""

    def kernel(x_ref, w_ref, shift_ref, *rest):
        if pool_k:
            outs, pscr_ref = rest[:-1], rest[-1]
        else:
            outs, pscr_ref = rest, None
        acc = jnp.dot(x_ref[0], w_ref[...], preferred_element_type=jnp.float32)
        _conv_epilogue(acc, shift_ref[...], outs, pscr_ref, tr, wd,
                       pool_k, pool_op, emit_conv)

    return kernel


def make_pool_kernel(k, op, c):
    inv = 1.0 / float(k * k)

    def pool_kernel(x_ref, o_ref):
        # x_ref: (1, TRo, k, Wo, k*C) ; o_ref: (1, TRo, Wo, C)
        acc = None
        for dy in range(k):
            for dx in range(k):
                v = x_ref[0, :, dy, :, pl.ds(dx * c, c)]          # (TRo, Wo, C)
                if op == "avg":
                    v = v.astype(jnp.float32)
                acc = v if acc is None else (
                    jnp.maximum(acc, v) if op == "max" else acc + v)
        if op == "avg":
            acc = acc * inv
        o_ref[0] = acc.astype(o_ref.dtype)

    return pool_kernel


def linear_kernel(x_ref, w_ref, b_ref, o_ref):
    o_ref[...] = (jnp.dot(x_ref[...], w_ref[...],
                          preferred_element_type=jnp.float32)
                  + b_ref[...]).astype(o_ref.dtype)


# -----------------------------------------------------------------------------
# Pallas wrappers
# -----------------------------------------------------------------------------
def conv_bn_relu(x, w, shift, pool_op=None):
    """3x3 conv (pad 1) + folded BN + ReLU, optionally fused with the following
    2x2 max / 4x4 avg pool.

    x: (N,H,W,Cin_p) bf16 NHWC, Cin_p % 128 == 0; w: (9*Cin_p, Cout_p) bf16.
    Returns (conv_out (N,H,W,Cout_p) bf16, pooled_out (N,H/k,W/k,Cout_p) bf16
    or None).
    """
    n, h, wd, cin = x.shape
    k9, cout_p = w.shape
    pool_k = _POOL_K[pool_op] if pool_op else 0

    xp = jnp.pad(x, ((0, 0), (1, 1), (1, 1), (0, 0)))      # (N, H+2, W+2, Cin)
    tr = _pick_row_tile(h, wd, multiple=max(pool_k, 1), target=1024)
    trw = tr * wd
    p = h * wd
    ho, wo = (h // pool_k, wd // pool_k) if pool_k else (0, 0)

    # Cout kept un-tiled (single wide matmul, weights fetched once) unless huge.
    tiled_cout = cout_p > 512
    tc = cout_p if not tiled_cout else (256 if cout_p % 256 == 0 else 128)

    if tiled_cout:
        grid = (n, h // tr, cout_p // tc)
        semantics = ("parallel", "parallel", "arbitrary")   # im2col reused over c
        im_spec = pl.BlockSpec((1, h + 2, wd + 2, cin),
                               lambda b, r, c: (b, 0, 0, 0))
        w_spec = pl.BlockSpec((k9, tc), lambda b, r, c: (0, c))
        s_spec = pl.BlockSpec((1, tc), lambda b, r, c: (0, c))
        conv_spec = pl.BlockSpec((1, trw, tc), lambda b, r, c: (b, r, c))
        pool_spec = (pl.BlockSpec((1, tr // pool_k, wo, tc),
                                  lambda b, r, c: (b, r, 0, c))
                     if pool_k else None)
    else:
        grid = (n, h // tr)
        semantics = ("parallel", "parallel")
        im_spec = pl.BlockSpec((1, h + 2, wd + 2, cin),
                               lambda b, r: (b, 0, 0, 0))
        w_spec = pl.BlockSpec((k9, tc), lambda b, r: (0, 0))
        s_spec = pl.BlockSpec((1, tc), lambda b, r: (0, 0))
        conv_spec = pl.BlockSpec((1, trw, tc), lambda b, r: (b, r, 0))
        pool_spec = (pl.BlockSpec((1, tr // pool_k, wo, tc),
                                  lambda b, r: (b, r, 0, 0))
                     if pool_k else None)

    out_shapes = [jax.ShapeDtypeStruct((n, p, cout_p), jnp.bfloat16)]
    out_specs = [conv_spec]
    if pool_k:
        out_shapes.append(jax.ShapeDtypeStruct((n, ho, wo, cout_p), jnp.bfloat16))
        out_specs.append(pool_spec)

    scratch = [pltpu.VMEM((trw, k9), jnp.bfloat16)]
    if pool_k:
        scratch.append(pltpu.VMEM((tr // pool_k, wd, tc), jnp.float32))

    outs = pl.pallas_call(
        make_conv3x3_kernel(tr, wd, cin, pool_k, pool_op,
                            emit_conv=True, tiled_cout=tiled_cout),
        out_shape=tuple(out_shapes),
        grid=grid,
        in_specs=[im_spec, w_spec, s_spec],
        out_specs=tuple(out_specs),
        scratch_shapes=scratch,
        compiler_params=pltpu.CompilerParams(
            dimension_semantics=semantics,
            vmem_limit_bytes=_vmem_limit_bytes()),
    )(xp, w, shift)
    conv_out = outs[0].reshape(n, h, wd, cout_p)
    pool_out = outs[1] if pool_k else None
    return conv_out, pool_out


def conv1_bn_relu(x_nhwc, w, shift, pool_op=None):
    """First conv (Cin=3): wrapper-side im2col to K=32, BN/ReLU and optionally
    the following pool fused in the kernel.  When the pool is fused only the
    pooled map is returned (the stem output is not in the PyTorch feature list)."""
    n, h, wd, cin = x_nhwc.shape
    kp, cout_p = w.shape
    p = h * wd
    pool_k = _POOL_K[pool_op] if pool_op else 0
    emit_conv = pool_k == 0

    xb = x_nhwc.astype(jnp.bfloat16)
    xp = jnp.pad(xb, ((0, 0), (1, 1), (1, 1), (0, 0)))
    cols = [xp[:, ky:ky + h, kx:kx + wd, :].reshape(n, p, cin)
            for ky in range(3) for kx in range(3)]
    xcol = jnp.concatenate(cols, axis=-1)                     # (N, P, 27) bf16
    xcol = jnp.pad(xcol, ((0, 0), (0, 0), (0, kp - 9 * cin)))  # pad K to 32

    tr = _pick_row_tile(h, wd, multiple=max(pool_k, 1), target=1024)
    trw = tr * wd
    ho, wo = (h // pool_k, wd // pool_k) if pool_k else (0, 0)

    in_specs = [
        pl.BlockSpec((1, trw, kp), lambda b, r: (b, r, 0)),
        pl.BlockSpec((kp, cout_p), lambda b, r: (0, 0)),
        pl.BlockSpec((1, cout_p), lambda b, r: (0, 0)),
    ]
    out_shapes, out_specs, scratch = [], [], []
    if emit_conv:
        out_shapes.append(jax.ShapeDtypeStruct((n, p, cout_p), jnp.bfloat16))
        out_specs.append(pl.BlockSpec((1, trw, cout_p), lambda b, r: (b, r, 0)))
    if pool_k:
        out_shapes.append(jax.ShapeDtypeStruct((n, ho, wo, cout_p), jnp.bfloat16))
        out_specs.append(pl.BlockSpec((1, tr // pool_k, wo, cout_p),
                                      lambda b, r: (b, r, 0, 0)))
        scratch.append(pltpu.VMEM((tr // pool_k, wd, cout_p), jnp.float32))

    outs = pl.pallas_call(
        make_gemm_kernel(tr, wd, pool_k, pool_op, emit_conv),
        out_shape=tuple(out_shapes),
        grid=(n, h // tr),
        in_specs=in_specs,
        out_specs=tuple(out_specs),
        scratch_shapes=scratch,
        compiler_params=pltpu.CompilerParams(
            dimension_semantics=("parallel", "parallel"),
            vmem_limit_bytes=_vmem_limit_bytes()),
    )(xcol, w, shift)
    if emit_conv:
        return outs[0].reshape(n, h, wd, cout_p)
    return outs[0]


def pool2d(x, k, op):
    """Standalone MaxPool2d(2,2)/AvgPool2d(4) fallback (only used when the pool
    could not be fused into the preceding conv, e.g. back-to-back pools)."""
    n, h, wd, c = x.shape
    ho, wo = h // k, wd // k
    xr = x.reshape(n, ho, k, wo, k * c)        # free row-major reshape in XLA
    tro = _pick_row_tile(ho, wo, multiple=1, target=512)
    return pl.pallas_call(
        make_pool_kernel(k, op, c),
        out_shape=jax.ShapeDtypeStruct((n, ho, wo, c), x.dtype),
        grid=(n, ho // tro),
        in_specs=[pl.BlockSpec((1, tro, k, wo, k * c),
                               lambda b, r: (b, r, 0, 0, 0))],
        out_specs=pl.BlockSpec((1, tro, wo, c), lambda b, r: (b, r, 0, 0)),
        compiler_params=pltpu.CompilerParams(
            dimension_semantics=("parallel", "parallel"),
            vmem_limit_bytes=_vmem_limit_bytes()),
    )(xr)


def linear(x, w, b, ncls):
    """x: (N,F) bf16; w: (F, ncls_p) bf16; b: (1, ncls_p) f32 -> (N, ncls) f32.
    Rows padded to 8 and classes padded to a 128 multiple (dense vst), sliced here."""
    n, f = x.shape
    ncls_p = w.shape[-1]
    n_p = round_up(n, 8)
    if n_p != n:
        x = jnp.pad(x, ((0, n_p - n), (0, 0)))
    out = pl.pallas_call(
        linear_kernel,
        out_shape=jax.ShapeDtypeStruct((n_p, ncls_p), jnp.float32),
        grid=(1,),
        in_specs=[
            pl.BlockSpec((n_p, f), lambda i: (0, 0)),
            pl.BlockSpec((f, ncls_p), lambda i: (0, 0)),
            pl.BlockSpec((1, ncls_p), lambda i: (0, 0)),
        ],
        out_specs=pl.BlockSpec((n_p, ncls_p), lambda i: (0, 0)),
        compiler_params=pltpu.CompilerParams(
            vmem_limit_bytes=_vmem_limit_bytes()),
    )(x, w, b)
    return out[:n, :ncls]


# -----------------------------------------------------------------------------
# VGG forward (mirrors the PyTorch module's forward)
# -----------------------------------------------------------------------------
def vgg_forward(x_nchw, kparams, cfg):
    # NCHW (PyTorch) -> NHWC (kernel layout)
    x = jnp.transpose(x_nchw, (0, 2, 3, 1)).astype(jnp.float32)

    feats = []                      # (NHWC bf16 padded array, real channel count)
    real_c = kparams["conv1_real_cout"]

    # stem: conv1 + bn1 + relu (output NOT in the PyTorch feature list); if the
    # first cfg entry is a pool, it is fused and its map becomes feature[0].
    i = 0
    nxt = cfg[0] if len(cfg) else None
    pool_op = {"M": "max", "A": "avg"}.get(nxt)
    if pool_op is not None and _can_fuse_pool(x.shape[1], x.shape[2], pool_op):
        x = conv1_bn_relu(x, kparams["conv1_w"], kparams["conv1_shift"], pool_op)
        feats.append((x, real_c))
        i = 1
    else:
        x = conv1_bn_relu(x, kparams["conv1_w"], kparams["conv1_shift"])

    blk = 0
    while i < len(cfg):
        v = cfg[i]
        if v == "M" or v == "A":
            op = "max" if v == "M" else "avg"
            x = pool2d(x, _POOL_K[op], op)
            feats.append((x, real_c))
            i += 1
            continue
        w = kparams[f"blk{blk}_w"]
        shift = kparams[f"blk{blk}_shift"]
        nxt = cfg[i + 1] if i + 1 < len(cfg) else None
        pool_op = {"M": "max", "A": "avg"}.get(nxt)
        if pool_op is not None and _can_fuse_pool(x.shape[1], x.shape[2], pool_op):
            conv_out, pool_out = conv_bn_relu(x, w, shift, pool_op)
            feats.append((conv_out, v))          # Basic_block output
            feats.append((pool_out, v))          # following pool-block output
            x = pool_out
            i += 2
        else:
            conv_out, _ = conv_bn_relu(x, w, shift)
            feats.append((conv_out, v))
            x = conv_out
            i += 1
        real_c = v
        blk += 1

    # PyTorch feature list: NCHW, real (un-padded) channels, f32
    features = [jnp.transpose(f[..., :c], (0, 3, 1, 2)).astype(jnp.float32)
                for f, c in feats]

    # flatten in PyTorch NCHW order: x.view(N, C*H*W)
    x_flat = jnp.transpose(x[..., :real_c], (0, 3, 1, 2)).reshape(x.shape[0], -1)
    logits = linear(x_flat.astype(jnp.bfloat16), kparams["fc_w"],
                    kparams["fc_b"], kparams["num_classes"])
    return logits, features


# -----------------------------------------------------------------------------
# Parameters: PyTorch-like raw init, then BN-fold / pad / bf16-cast preparation
# -----------------------------------------------------------------------------
def default_bn(c):
    # PyTorch BatchNorm2d defaults: gamma=1, beta=0, running_mean=0, running_var=1
    return dict(gamma=jnp.ones((c,), jnp.float32),
                beta=jnp.zeros((c,), jnp.float32),
                mean=jnp.zeros((c,), jnp.float32),
                var=jnp.ones((c,), jnp.float32))


def init_params(key, cfg, num_classes=10, h=32, w=32):
    params = {}
    key, k1 = jax.random.split(key)
    params["conv1_w"] = (jax.random.normal(k1, (3, 3, 3, 64), jnp.float32)
                         / math.sqrt(3 * 9))
    params["bn1"] = default_bn(64)

    in_c = 64
    blk = 0
    for v in cfg:
        if v == "M":
            h, w = h // 2, w // 2
        elif v == "A":
            h, w = h // 4, w // 4
        else:
            key, kc = jax.random.split(key)
            params[f"blk{blk}_w"] = (
                jax.random.normal(kc, (3, 3, in_c, v), jnp.float32)
                / math.sqrt(in_c * 9))
            params[f"blk{blk}_bn"] = default_bn(v)
            in_c = v
            blk += 1

    feat_c = cfg[-2] if cfg[-1] in ("A", "M") else cfg[-1]
    f = feat_c * h * w
    key, kw, kb = jax.random.split(key, 3)
    params["fc_w"] = (jax.random.normal(kw, (f, num_classes), jnp.float32)
                      / math.sqrt(f))
    params["fc_b"] = jax.random.normal(kb, (num_classes,), jnp.float32) * 0.01
    return params


def _fold_bn(w_hwio, bn, eps=1e-5):
    scale = bn["gamma"] / jnp.sqrt(bn["var"] + eps)
    shift = bn["beta"] - bn["mean"] * scale
    return w_hwio * scale, shift        # scale broadcasts over the Cout axis


def prepare_params(raw, cfg):
    """Fold BN scale into weights, pad channels to 128, reshape to im2col-K."""
    kp = {}
    # conv1: Cin stays 3; K = 27 padded to 32; Cout padded to 128.
    w, shift = _fold_bn(raw["conv1_w"], raw["bn1"])
    cout = w.shape[-1]
    cout_p = round_up(cout, LANE)
    w = jnp.pad(w, ((0, 0), (0, 0), (0, 0), (0, cout_p - cout))).reshape(27, cout_p)
    kp["conv1_w"] = jnp.pad(w, ((0, 32 - 27), (0, 0))).astype(jnp.bfloat16)
    kp["conv1_shift"] = jnp.pad(shift, (0, cout_p - cout)).reshape(1, cout_p)
    kp["conv1_real_cout"] = cout
    prev_pad = cout_p

    blk = 0
    for v in cfg:
        if v in ("M", "A"):
            continue
        w, shift = _fold_bn(raw[f"blk{blk}_w"], raw[f"blk{blk}_bn"])
        cin, cout = w.shape[2], w.shape[3]
        cin_p, cout_p = prev_pad, round_up(cout, LANE)
        w = jnp.pad(w, ((0, 0), (0, 0), (0, cin_p - cin), (0, cout_p - cout)))
        kp[f"blk{blk}_w"] = w.reshape(9 * cin_p, cout_p).astype(jnp.bfloat16)
        kp[f"blk{blk}_shift"] = jnp.pad(shift, (0, cout_p - cout)).reshape(1, cout_p)
        prev_pad = cout_p
        blk += 1

    ncls = raw["fc_b"].shape[-1]
    ncls_p = round_up(ncls, LANE)
    kp["fc_w"] = jnp.pad(raw["fc_w"],
                         ((0, 0), (0, ncls_p - ncls))).astype(jnp.bfloat16)
    kp["fc_b"] = jnp.pad(raw["fc_b"],
                         (0, ncls_p - ncls)).reshape(1, ncls_p).astype(jnp.float32)
    kp["num_classes"] = int(ncls)
    return kp


# -----------------------------------------------------------------------------
if __name__ == "__main__":
    # dataset='cifar10' => 32x32 input, 10 classes; small cfg exercising
    # Basic_block, MaxPool ('M'), and AvgPool ('A').
    cfg = ["M", 64, "A"]          # 32x32 -> M:16x16 -> conv(64) -> A:4x4
    num_classes = 10

    key = jax.random.PRNGKey(0)
    key, kp_, kx = jax.random.split(key, 3)
    raw_params = init_params(kp_, cfg, num_classes=num_classes, h=32, w=32)
    kparams = prepare_params(raw_params, cfg)

    x = jax.random.normal(kx, (2, 3, 32, 32), jnp.float32)  # NCHW like PyTorch

    fwd = jax.jit(lambda xx: vgg_forward(xx, kparams, cfg))
    logits, features = fwd(x)
    logits = jax.block_until_ready(logits)
    for f in features:
        jax.block_until_ready(f)

    assert logits.shape == (2, num_classes)
    assert features[0].shape == (2, 64, 16, 16)   # after 'M'
    assert features[1].shape == (2, 64, 16, 16)   # after Basic_block(64)
    assert features[2].shape == (2, 64, 4, 4)     # after 'A'
    print("KERNEL_OK")
</pallas_src>

<mosaic_0001>
module attributes {stable_mosaic.version = 11 : i64} {
  func.func @kernel(%arg0: i32, %arg1: i32, %arg2: memref<1x1024x32xbf16, #tpu.memory_space<vmem>>, %arg3: memref<32x128xbf16, #tpu.memory_space<vmem>>, %arg4: memref<1x128xf32, #tpu.memory_space<vmem>>, %arg5: memref<1x16x16x128xbf16, #tpu.memory_space<vmem>>, %arg6: memref<16x32x128xf32, #tpu.memory_space<vmem>>) attributes {dimension_semantics = [#tpu.dimension_semantics<parallel>, #tpu.dimension_semantics<parallel>], iteration_bounds = array<i64: 2, 1>, scalar_prefetch = 0 : i64, scratch_operands = 1 : i64, tpu.core_type = #tpu.core_type<tc>, window_params = [{transform_indices = @transform_0, window_bounds = array<i64: 1, 1024, 32>}, {pipeline_mode = #tpu.pipeline_mode<synchronous>, transform_indices = @transform_1, window_bounds = array<i64: 32, 128>}, {pipeline_mode = #tpu.pipeline_mode<synchronous>, transform_indices = @transform_2, window_bounds = array<i64: 1, 128>}, {transform_indices = @transform_3, window_bounds = array<i64: 1, 16, 16, 128>}]} {
    %c0 = arith.constant 0 : index
    %c0_0 = arith.constant 0 : index
    %c0_1 = arith.constant 0 : index
    %0 = vector.load %arg2[%c0, %c0_0, %c0_1] : memref<1x1024x32xbf16, #tpu.memory_space<vmem>>, vector<1x1024x32xbf16>
    %1 = vector.shape_cast %0 : vector<1x1024x32xbf16> to vector<1024x32xbf16>
    %c0_2 = arith.constant 0 : index
    %c0_3 = arith.constant 0 : index
    %2 = vector.load %arg3[%c0_2, %c0_3] : memref<32x128xbf16, #tpu.memory_space<vmem>>, vector<32x128xbf16>
    %cst = arith.constant dense<0.000000e+00> : vector<1024x128xf32>
    %3 = tpu.matmul %1, %2, %cst {dimension_numbers = #tpu.dot_dimension_numbers<[1], [0], [0], [1], [0, 0, 1, 1], [], []>} : vector<1024x32xbf16>, vector<32x128xbf16>, vector<1024x128xf32> -> vector<1024x128xf32>
    %c0_4 = arith.constant 0 : index
    %c0_5 = arith.constant 0 : index
    %4 = vector.load %arg4[%c0_4, %c0_5] : memref<1x128xf32, #tpu.memory_space<vmem>>, vector<1x128xf32>
    %5 = vector.broadcast %4 : vector<1x128xf32> to vector<1024x128xf32>
    %6 = arith.addf %3, %5 : vector<1024x128xf32>
    %cst_6 = arith.constant 0.000000e+00 : f32
    %7 = vector.broadcast %cst_6 : f32 to vector<1024x128xf32>
    %8 = arith.maximumf %6, %7 : vector<1024x128xf32>
    %9 = vector.shape_cast %8 : vector<1024x128xf32> to vector<16x2x32x128xf32>
    %10 = vector.extract_strided_slice %9 {offsets = [0, 0, 0, 0], sizes = [16, 1, 32, 128], strides = [1, 1, 1, 1]} : vector<16x2x32x128xf32> to vector<16x1x32x128xf32>
    %11 = vector.shape_cast %10 : vector<16x1x32x128xf32> to vector<16x32x128xf32>
    %12 = vector.extract_strided_slice %9 {offsets = [0, 1, 0, 0], sizes = [16, 1, 32, 128], strides = [1, 1, 1, 1]} : vector<16x2x32x128xf32> to vector<16x1x32x128xf32>
    %13 = vector.shape_cast %12 : vector<16x1x32x128xf32> to vector<16x32x128xf32>
    %14 = arith.maximumf %11, %13 : vector<16x32x128xf32>
    %c0_7 = arith.constant 0 : index
    %c0_8 = arith.constant 0 : index
    %c0_9 = arith.constant 0 : index
    %15 = vector.load %arg6[%c0_7, %c0_8, %c0_9] : memref<16x32x128xf32, #tpu.memory_space<vmem>>, vector<16x32x128xf32>
    tpu.vector_store %arg6[%c0_7, %c0_8, %c0_9], %14 {strides = array<i32>} : memref<16x32x128xf32, #tpu.memory_space<vmem>>, vector<16x32x128xf32>,
    %c0_10 = arith.constant 0 : index
    %c0_11 = arith.constant 0 : index
    %c0_12 = arith.constant 0 : index
    %16 = tpu.strided_load %arg6[%c0_10, %c0_11, %c0_12] {strides = array<i32: 1, 2, 1>} : memref<16x32x128xf32, #tpu.memory_space<vmem>>, vector<16x16x128xf32>
    %c0_13 = arith.constant 0 : index
    %c1 = arith.constant 1 : index
    %c0_14 = arith.constant 0 : index
    %17 = tpu.strided_load %arg6[%c0_13, %c1, %c0_14] {strides = array<i32: 1, 2, 1>} : memref<16x32x128xf32, #tpu.memory_space<vmem>>, vector<16x16x128xf32>
    %18 = arith.maximumf %16, %17 : vector<16x16x128xf32>
    %19 = arith.truncf %18 : vector<16x16x128xf32> to vector<16x16x128xbf16>
    %c0_15 = arith.constant 0 : index
    %c0_16 = arith.constant 0 : index
    %c0_17 = arith.constant 0 : index
    %c0_18 = arith.constant 0 : index
    %20 = vector.load %arg5[%c0_15, %c0_16, %c0_17, %c0_18] : memref<1x16x16x128xbf16, #tpu.memory_space<vmem>>, vector<1x16x16x128xbf16>
    %21 = vector.shape_cast %20 : vector<1x16x16x128xbf16> to vector<16x16x128xbf16>
    %22 = vector.shape_cast %19 : vector<16x16x128xbf16> to vector<1x16x16x128xbf16>
    tpu.vector_store %arg5[%c0_15, %c0_16, %c0_17, %c0_18], %22 {strides = array<i32>} : memref<1x16x16x128xbf16, #tpu.memory_space<vmem>>, vector<1x16x16x128xbf16>,
    return
  }
  func.func @transform_0(%arg0: i32, %arg1: i32) -> (i32, i32, i32) {
    %c0_i32 = arith.constant 0 : i32
    %c0_i32_0 = arith.constant 0 : i32
    return %arg0, %arg1, %c0_i32 : i32, i32, i32
  }
  func.func @transform_1(%arg0: i32, %arg1: i32) -> (i32, i32) {
    %c0_i32 = arith.constant 0 : i32
    %c0_i32_0 = arith.constant 0 : i32
    %c0_i32_1 = arith.constant 0 : i32
    return %c0_i32, %c0_i32_0 : i32, i32
  }
  func.func @transform_2(%arg0: i32, %arg1: i32) -> (i32, i32) {
    %c0_i32 = arith.constant 0 : i32
    %c0_i32_0 = arith.constant 0 : i32
    %c0_i32_1 = arith.constant 0 : i32
    return %c0_i32, %c0_i32_0 : i32, i32
  }
  func.func @transform_3(%arg0: i32, %arg1: i32) -> (i32, i32, i32, i32) {
    %c0_i32 = arith.constant 0 : i32
    %c0_i32_0 = arith.constant 0 : i32
    %c0_i32_1 = arith.constant 0 : i32
    return %arg0, %arg1, %c0_i32, %c0_i32_0 : i32, i32, i32, i32
  }
}

module attributes {stable_mosaic.version = 11 : i64} {
  func.func @kernel(%arg0: i32, %arg1: i32, %arg2: memref<1x18x18x128xbf16, #tpu.memory_space<vmem>>, %arg3: memref<1152x128xbf16, #tpu.memory_space<vmem>>, %arg4: memref<1x128xf32, #tpu.memory_space<vmem>>, %arg5: memref<1x256x128xbf16, #tpu.memory_space<vmem>>, %arg6: memref<1x4x4x128xbf16, #tpu.memory_space<vmem>>, %arg7: memref<256x1152xbf16, #tpu.memory_space<vmem>>, %arg8: memref<4x16x128xf32, #tpu.memory_space<vmem>>) attributes {dimension_semantics = [#tpu.dimension_semantics<parallel>, #tpu.dimension_semantics<parallel>], iteration_bounds = array<i64: 2, 1>, scalar_prefetch = 0 : i64, scratch_operands = 2 : i64, tpu.core_type = #tpu.core_type<tc>, window_params = [{transform_indices = @transform_0, window_bounds = array<i64: 1, 18, 18, 128>}, {pipeline_mode = #tpu.pipeline_mode<synchronous>, transform_indices = @transform_1, window_bounds = array<i64: 1152, 128>}, {pipeline_mode = #tpu.pipeline_mode<synchronous>, transform_indices = @transform_2, window_bounds = array<i64: 1, 128>}, {transform_indices = @transform_3, window_bounds = array<i64: 1, 256, 128>}, {transform_indices = @transform_4, window_bounds = array<i64: 1, 4, 4, 128>}]} {
    %c16_i32 = arith.constant 16 : i32
    %0 = arith.muli %arg1, %c16_i32 : i32
    %c0_i32 = arith.constant 0 : i32
    %1 = arith.addi %0, %c0_i32 : i32
    %c0 = arith.constant 0 : index
    %2 = arith.index_cast %1 : i32 to index
    %c0_0 = arith.constant 0 : index
    %c0_1 = arith.constant 0 : index
    %3 = vector.load %arg2[%c0, %2, %c0_0, %c0_1] : memref<1x18x18x128xbf16, #tpu.memory_space<vmem>>, vector<1x16x16x128xbf16>
    %4 = vector.shape_cast %3 : vector<1x16x16x128xbf16> to vector<16x16x128xbf16>
    %5 = vector.shape_cast %4 : vector<16x16x128xbf16> to vector<256x128xbf16>
    %c0_2 = arith.constant 0 : index
    %c0_3 = arith.constant 0 : index
    %6 = vector.load %arg7[%c0_2, %c0_3] : memref<256x1152xbf16, #tpu.memory_space<vmem>>, vector<256x128xbf16>
    tpu.vector_store %arg7[%c0_2, %c0_3], %5 {strides = array<i32>} : memref<256x1152xbf16, #tpu.memory_space<vmem>>, vector<256x128xbf16>,
    %c0_i32_4 = arith.constant 0 : i32
    %7 = arith.addi %0, %c0_i32_4 : i32
    %c0_5 = arith.constant 0 : index
    %8 = arith.index_cast %7 : i32 to index
    %c1 = arith.constant 1 : index
    %c0_6 = arith.constant 0 : index
    %9 = vector.load %arg2[%c0_5, %8, %c1, %c0_6] : memref<1x18x18x128xbf16, #tpu.memory_space<vmem>>, vector<1x16x16x128xbf16>
    %10 = vector.shape_cast %9 : vector<1x16x16x128xbf16> to vector<16x16x128xbf16>
    %11 = vector.shape_cast %10 : vector<16x16x128xbf16> to vector<256x128xbf16>
    %c0_7 = arith.constant 0 : index
    %c128 = arith.constant 128 : index
    %12 = vector.load %arg7[%c0_7, %c128] : memref<256x1152xbf16, #tpu.memory_space<vmem>>, vector<256x128xbf16>
    tpu.vector_store %arg7[%c0_7, %c128], %11 {strides = array<i32>} : memref<256x1152xbf16, #tpu.memory_space<vmem>>, vector<256x128xbf16>,
    %c0_i32_8 = arith.constant 0 : i32
    %13 = arith.addi %0, %c0_i32_8 : i32
    %c0_9 = arith.constant 0 : index
    %14 = arith.index_cast %13 : i32 to index
    %c2 = arith.constant 2 : index
    %c0_10 = arith.constant 0 : index
    %15 = vector.load %arg2[%c0_9, %14, %c2, %c0_10] : memref<1x18x18x128xbf16, #tpu.memory_space<vmem>>, vector<1x16x16x128xbf16>
    %16 = vector.shape_cast %15 : vector<1x16x16x128xbf16> to vector<16x16x128xbf16>
    %17 = vector.shape_cast %16 : vector<16x16x128xbf16> to vector<256x128xbf16>
    %c0_11 = arith.constant 0 : index
    %c256 = arith.constant 256 : index
    %18 = vector.load %arg7[%c0_11, %c256] : memref<256x1152xbf16, #tpu.memory_space<vmem>>, vector<256x128xbf16>
    tpu.vector_store %arg7[%c0_11, %c256], %17 {strides = array<i32>} : memref<256x1152xbf16, #tpu.memory_space<vmem>>, vector<256x128xbf16>,
    %c1_i32 = arith.constant 1 : i32
    %19 = arith.addi %0, %c1_i32 : i32
    %c0_12 = arith.constant 0 : index
    %20 = arith.index_cast %19 : i32 to index
    %c0_13 = arith.constant 0 : index
    %c0_14 = arith.constant 0 : index
    %21 = vector.load %arg2[%c0_12, %20, %c0_13, %c0_14] : memref<1x18x18x128xbf16, #tpu.memory_space<vmem>>, vector<1x16x16x128xbf16>
    %22 = vector.shape_cast %21 : vector<1x16x16x128xbf16> to vector<16x16x128xbf16>
    %23 = vector.shape_cast %22 : vector<16x16x128xbf16> to vector<256x128xbf16>
    %c0_15 = arith.constant 0 : index
    %c384 = arith.constant 384 : index
    %24 = vector.load %arg7[%c0_15, %c384] : memref<256x1152xbf16, #tpu.memory_space<vmem>>, vector<256x128xbf16>
    tpu.vector_store %arg7[%c0_15, %c384], %23 {strides = array<i32>} : memref<256x1152xbf16, #tpu.memory_space<vmem>>, vector<256x128xbf16>,
    %c1_i32_16 = arith.constant 1 : i32
    %25 = arith.addi %0, %c1_i32_16 : i32
    %c0_17 = arith.constant 0 : index
    %26 = arith.index_cast %25 : i32 to index
    %c1_18 = arith.constant 1 : index
    %c0_19 = arith.constant 0 : index
    %27 = vector.load %arg2[%c0_17, %26, %c1_18, %c0_19] : memref<1x18x18x128xbf16, #tpu.memory_space<vmem>>, vector<1x16x16x128xbf16>
    %28 = vector.shape_cast %27 : vector<1x16x16x128xbf16> to vector<16x16x128xbf16>
    %29 = vector.shape_cast %28 : vector<16x16x128xbf16> to vector<256x128xbf16>
    %c0_20 = arith.constant 0 : index
    %c512 = arith.constant 512 : index
    %30 = vector.load %arg7[%c0_20, %c512] : memref<256x1152xbf16, #tpu.memory_space<vmem>>, vector<256x128xbf16>
    tpu.vector_store %arg7[%c0_20, %c512], %29 {strides = array<i32>} : memref<256x1152xbf16, #tpu.memory_space<vmem>>, vector<256x128xbf16>,
    %c1_i32_21 = arith.constant 1 : i32
    %31 = arith.addi %0, %c1_i32_21 : i32
    %c0_22 = arith.constant 0 : index
    %32 = arith.index_cast %31 : i32 to index
    %c2_23 = arith.constant 2 : index
    %c0_24 = arith.constant 0 : index
    %33 = vector.load %arg2[%c0_22, %32, %c2_23, %c0_24] : memref<1x18x18x128xbf16, #tpu.memory_space<vmem>>, vector<1x16x16x128xbf16>
    %34 = vector.shape_cast %33 : vector<1x16x16x128xbf16> to vector<16x16x128xbf16>
    %35 = vector.shape_cast %34 : vector<16x16x128xbf16> to vector<256x128xbf16>
    %c0_25 = arith.constant 0 : index
    %c640 = arith.constant 640 : index
    %36 = vector.load %arg7[%c0_25, %c640] : memref<256x1152xbf16, #tpu.memory_space<vmem>>, vector<256x128xbf16>
    tpu.vector_store %arg7[%c0_25, %c640], %35 {strides = array<i32>} : memref<256x1152xbf16, #tpu.memory_space<vmem>>, vector<256x128xbf16>,
    %c2_i32 = arith.constant 2 : i32
    %37 = arith.addi %0, %c2_i32 : i32
    %c0_26 = arith.constant 0 : index
    %38 = arith.index_cast %37 : i32 to index
    %c0_27 = arith.constant 0 : index
    %c0_28 = arith.constant 0 : index
    %39 = vector.load %arg2[%c0_26, %38, %c0_27, %c0_28] : memref<1x18x18x128xbf16, #tpu.memory_space<vmem>>, vector<1x16x16x128xbf16>
    %40 = vector.shape_cast %39 : vector<1x16x16x128xbf16> to vector<16x16x128xbf16>
    %41 = vector.shape_cast %40 : vector<16x16x128xbf16> to vector<256x128xbf16>
    %c0_29 = arith.constant 0 : index
    %c768 = arith.constant 768 : index
    %42 = vector.load %arg7[%c0_29, %c768] : memref<256x1152xbf16, #tpu.memory_space<vmem>>, vector<256x128xbf16>
    tpu.vector_store %arg7[%c0_29, %c768], %41 {strides = array<i32>} : memref<256x1152xbf16, #tpu.memory_space<vmem>>, vector<256x128xbf16>,
    %c2_i32_30 = arith.constant 2 : i32
    %43 = arith.addi %0, %c2_i32_30 : i32
    %c0_31 = arith.constant 0 : index
    %44 = arith.index_cast %43 : i32 to index
    %c1_32 = arith.constant 1 : index
    %c0_33 = arith.constant 0 : index
    %45 = vector.load %arg2[%c0_31, %44, %c1_32, %c0_33] : memref<1x18x18x128xbf16, #tpu.memory_space<vmem>>, vector<1x16x16x128xbf16>
    %46 = vector.shape_cast %45 : vector<1x16x16x128xbf16> to vector<16x16x128xbf16>
    %47 = vector.shape_cast %46 : vector<16x16x128xbf16> to vector<256x128xbf16>
    %c0_34 = arith.constant 0 : index
    %c896 = arith.constant 896 : index
    %48 = vector.load %arg7[%c0_34, %c896] : memref<256x1152xbf16, #tpu.memory_space<vmem>>, vector<256x128xbf16>
    tpu.vector_store %arg7[%c0_34, %c896], %47 {strides = array<i32>} : memref<256x1152xbf16, #tpu.memory_space<vmem>>, vector<256x128xbf16>,
    %c2_i32_35 = arith.constant 2 : i32
    %49 = arith.addi %0, %c2_i32_35 : i32
    %c0_36 = arith.constant 0 : index
    %50 = arith.index_cast %49 : i32 to index
    %c2_37 = arith.constant 2 : index
    %c0_38 = arith.constant 0 : index
    %51 = vector.load %arg2[%c0_36, %50, %c2_37, %c0_38] : memref<1x18x18x128xbf16, #tpu.memory_space<vmem>>, vector<1x16x16x128xbf16>
    %52 = vector.shape_cast %51 : vector<1x16x16x128xbf16> to vector<16x16x128xbf16>
    %53 = vector.shape_cast %52 : vector<16x16x128xbf16> to vector<256x128xbf16>
    %c0_39 = arith.constant 0 : index
    %c1024 = arith.constant 1024 : index
    %54 = vector.load %arg7[%c0_39, %c1024] : memref<256x1152xbf16, #tpu.memory_space<vmem>>, vector<256x128xbf16>
    tpu.vector_store %arg7[%c0_39, %c1024], %53 {strides = array<i32>} : memref<256x1152xbf16, #tpu.memory_space<vmem>>, vector<256x128xbf16>,
    %c0_40 = arith.constant 0 : index
    %c0_41 = arith.constant 0 : index
    %55 = vector.load %arg7[%c0_40, %c0_41] : memref<256x1152xbf16, #tpu.memory_space<vmem>>, vector<256x1152xbf16>
    %c0_42 = arith.constant 0 : index
    %c0_43 = arith.constant 0 : index
    %56 = vector.load %arg3[%c0_42, %c0_43] : memref<1152x128xbf16, #tpu.memory_space<vmem>>, vector<1152x128xbf16>
    %cst = arith.constant dense<0.000000e+00> : vector<256x128xf32>
    %57 = tpu.matmul %55, %56, %cst {dimension_numbers = #tpu.dot_dimension_numbers<[1], [0], [0], [1], [0, 0, 1, 1], [], []>} : vector<256x1152xbf16>, vector<1152x128xbf16>, vector<256x128xf32> -> vector<256x128xf32>
    %c0_44 = arith.constant 0 : index
    %c0_45 = arith.constant 0 : index
    %58 = vector.load %arg4[%c0_44, %c0_45] : memref<1x128xf32, #tpu.memory_space<vmem>>, vector<1x128xf32>
    %59 = vector.broadcast %58 : vector<1x128xf32> to vector<256x128xf32>
    %60 = arith.addf %57, %59 : vector<256x128xf32>
    %cst_46 = arith.constant 0.000000e+00 : f32
    %61 = vector.broadcast %cst_46 : f32 to vector<256x128xf32>
    %62 = arith.maximumf %60, %61 : vector<256x128xf32>
    %63 = arith.truncf %62 : vector<256x128xf32> to vector<256x128xbf16>
    %c0_47 = arith.constant 0 : index
    %c0_48 = arith.constant 0 : index
    %c0_49 = arith.constant 0 : index
    %64 = vector.load %arg5[%c0_47, %c0_48, %c0_49] : memref<1x256x128xbf16, #tpu.memory_space<vmem>>, vector<1x256x128xbf16>
    %65 = vector.shape_cast %64 : vector<1x256x128xbf16> to vector<256x128xbf16>
    %66 = vector.shape_cast %63 : vector<256x128xbf16> to vector<1x256x128xbf16>
    tpu.vector_store %arg5[%c0_47, %c0_48, %c0_49], %66 {strides = array<i32>} : memref<1x256x128xbf16, #tpu.memory_space<vmem>>, vector<1x256x128xbf16>,
    %67 = vector.shape_cast %62 : vector<256x128xf32> to vector<4x4x16x128xf32>
    %68 = vector.extract_strided_slice %67 {offsets = [0, 0, 0, 0], sizes = [4, 1, 16, 128], strides = [1, 1, 1, 1]} : vector<4x4x16x128xf32> to vector<4x1x16x128xf32>
    %69 = vector.shape_cast %68 : vector<4x1x16x128xf32> to vector<4x16x128xf32>
    %70 = vector.extract_strided_slice %67 {offsets = [0, 1, 0, 0], sizes = [4, 1, 16, 128], strides = [1, 1, 1, 1]} : vector<4x4x16x128xf32> to vector<4x1x16x128xf32>
    %71 = vector.shape_cast %70 : vector<4x1x16x128xf32> to vector<4x16x128xf32>
    %72 = arith.addf %69, %71 : vector<4x16x128xf32>
    %73 = vector.extract_strided_slice %67 {offsets = [0, 2, 0, 0], sizes = [4, 1, 16, 128], strides = [1, 1, 1, 1]} : vector<4x4x16x128xf32> to vector<4x1x16x128xf32>
    %74 = vector.shape_cast %73 : vector<4x1x16x128xf32> to vector<4x16x128xf32>
    %75 = arith.addf %72, %74 : vector<4x16x128xf32>
    %76 = vector.extract_strided_slice %67 {offsets = [0, 3, 0, 0], sizes = [4, 1, 16, 128], strides = [1, 1, 1, 1]} : vector<4x4x16x128xf32> to vector<4x1x16x128xf32>
    %77 = vector.shape_cast %76 : vector<4x1x16x128xf32> to vector<4x16x128xf32>
    %78 = arith.addf %75, %77 : vector<4x16x128xf32>
    %c0_50 = arith.constant 0 : index
    %c0_51 = arith.constant 0 : index
    %c0_52 = arith.constant 0 : index
    %79 = vector.load %arg8[%c0_50, %c0_51, %c0_52] : memref<4x16x128xf32, #tpu.memory_space<vmem>>, vector<4x16x128xf32>
    tpu.vector_store %arg8[%c0_50, %c0_51, %c0_52], %78 {strides = array<i32>} : memref<4x16x128xf32, #tpu.memory_space<vmem>>, vector<4x16x128xf32>,
    %c0_53 = arith.constant 0 : index
    %c0_54 = arith.constant 0 : index
    %c0_55 = arith.constant 0 : index
    %80 = tpu.strided_load %arg8[%c0_53, %c0_54, %c0_55] {strides = array<i32: 1, 4, 1>} : memref<4x16x128xf32, #tpu.memory_space<vmem>>, vector<4x4x128xf32>
    %c0_56 = arith.constant 0 : index
    %c1_57 = arith.constant 1 : index
    %c0_58 = arith.constant 0 : index
    %81 = tpu.strided_load %arg8[%c0_56, %c1_57, %c0_58] {strides = array<i32: 1, 4, 1>} : memref<4x16x128xf32, #tpu.memory_space<vmem>>, vector<4x4x128xf32>
    %82 = arith.addf %80, %81 : vector<4x4x128xf32>
    %c0_59 = arith.constant 0 : index
    %c2_60 = arith.constant 2 : index
    %c0_61 = arith.constant 0 : index
    %83 = tpu.strided_load %arg8[%c0_59, %c2_60, %c0_61] {strides = array<i32: 1, 4, 1>} : memref<4x16x128xf32, #tpu.memory_space<vmem>>, vector<4x4x128xf32>
    %84 = arith.addf %82, %83 : vector<4x4x128xf32>
    %c0_62 = arith.constant 0 : index
    %c3 = arith.constant 3 : index
    %c0_63 = arith.constant 0 : index
    %85 = tpu.strided_load %arg8[%c0_62, %c3, %c0_63] {strides = array<i32: 1, 4, 1>} : memref<4x16x128xf32, #tpu.memory_space<vmem>>, vector<4x4x128xf32>
    %86 = arith.addf %84, %85 : vector<4x4x128xf32>
    %cst_64 = arith.constant 6.250000e-02 : f32
    %87 = vector.broadcast %cst_64 : f32 to vector<4x4x128xf32>
    %88 = arith.mulf %86, %87 : vector<4x4x128xf32>
    %89 = arith.truncf %88 : vector<4x4x128xf32> to vector<4x4x128xbf16>
    %c0_65 = arith.constant 0 : index
    %c0_66 = arith.constant 0 : index
    %c0_67 = arith.constant 0 : index
    %c0_68 = arith.constant 0 : index
    %90 = vector.load %arg6[%c0_65, %c0_66, %c0_67, %c0_68] : memref<1x4x4x128xbf16, #tpu.memory_space<vmem>>, vector<1x4x4x128xbf16>
    %91 = vector.shape_cast %90 : vector<1x4x4x128xbf16> to vector<4x4x128xbf16>
    %92 = vector.shape_cast %89 : vector<4x4x128xbf16> to vector<1x4x4x128xbf16>
    tpu.vector_store %arg6[%c0_65, %c0_66, %c0_67, %c0_68], %92 {strides = array<i32>} : memref<1x4x4x128xbf16, #tpu.memory_space<vmem>>, vector<1x4x4x128xbf16>,
    return
  }
  func.func @transform_0(%arg0: i32, %arg1: i32) -> (i32, i32, i32, i32) {
    %c0_i32 = arith.constant 0 : i32
    %c0_i32_0 = arith.constant 0 : i32
    %c0_i32_1 = arith.constant 0 : i32
    %c0_i32_2 = arith.constant 0 : i32
    return %arg0, %c0_i32, %c0_i32_0, %c0_i32_1 : i32, i32, i32, i32
  }
  func.func @transform_1(%arg0: i32, %arg1: i32) -> (i32, i32) {
    %c0_i32 = arith.constant 0 : i32
    %c0_i32_0 = arith.constant 0 : i32
    %c0_i32_1 = arith.constant 0 : i32
    return %c0_i32, %c0_i32_0 : i32, i32
  }
  func.func @transform_2(%arg0: i32, %arg1: i32) -> (i32, i32) {
    %c0_i32 = arith.constant 0 : i32
    %c0_i32_0 = arith.constant 0 : i32
    %c0_i32_1 = arith.constant 0 : i32
    return %c0_i32, %c0_i32_0 : i32, i32
  }
  func.func @transform_3(%arg0: i32, %arg1: i32) -> (i32, i32, i32) {
    %c0_i32 = arith.constant 0 : i32
    %c0_i32_0 = arith.constant 0 : i32
    return %arg0, %arg1, %c0_i32 : i32, i32, i32
  }
  func.func @transform_4(%arg0: i32, %arg1: i32) -> (i32, i32, i32, i32) {
    %c0_i32 = arith.constant 0 : i32
    %c0_i32_0 = arith.constant 0 : i32
    %c0_i32_1 = arith.constant 0 : i32
    return %arg0, %arg1, %c0_i32, %c0_i32_0 : i32, i32, i32, i32
  }
}

module attributes {stable_mosaic.version = 11 : i64} {
  func.func @linear_kernel(%arg0: i32, %arg1: memref<8x1024xbf16, #tpu.memory_space<vmem>>, %arg2: memref<1024x128xbf16, #tpu.memory_space<vmem>>, %arg3: memref<1x128xf32, #tpu.memory_space<vmem>>, %arg4: memref<8x128xf32, #tpu.memory_space<vmem>>) attributes {dimension_semantics = [#tpu.dimension_semantics<arbitrary>], iteration_bounds = array<i64: 1>, scalar_prefetch = 0 : i64, scratch_operands = 0 : i64, tpu.core_type = #tpu.core_type<tc>, window_params = [{pipeline_mode = #tpu.pipeline_mode<synchronous>, transform_indices = @transform_0, window_bounds = array<i64: 8, 1024>}, {pipeline_mode = #tpu.pipeline_mode<synchronous>, transform_indices = @transform_1, window_bounds = array<i64: 1024, 128>}, {pipeline_mode = #tpu.pipeline_mode<synchronous>, transform_indices = @transform_2, window_bounds = array<i64: 1, 128>}, {pipeline_mode = #tpu.pipeline_mode<synchronous>, transform_indices = @transform_3, window_bounds = array<i64: 8, 128>}]} {
    %c0 = arith.constant 0 : index
    %c0_0 = arith.constant 0 : index
    %0 = vector.load %arg1[%c0, %c0_0] : memref<8x1024xbf16, #tpu.memory_space<vmem>>, vector<8x1024xbf16>
    %c0_1 = arith.constant 0 : index
    %c0_2 = arith.constant 0 : index
    %1 = vector.load %arg2[%c0_1, %c0_2] : memref<1024x128xbf16, #tpu.memory_space<vmem>>, vector<1024x128xbf16>
    %cst = arith.constant dense<0.000000e+00> : vector<8x128xf32>
    %2 = tpu.matmul %0, %1, %cst {dimension_numbers = #tpu.dot_dimension_numbers<[1], [0], [0], [1], [0, 0, 1, 1], [], []>} : vector<8x1024xbf16>, vector<1024x128xbf16>, vector<8x128xf32> -> vector<8x128xf32>
    %c0_3 = arith.constant 0 : index
    %c0_4 = arith.constant 0 : index
    %3 = vector.load %arg3[%c0_3, %c0_4] : memref<1x128xf32, #tpu.memory_space<vmem>>, vector<1x128xf32>
    %4 = vector.broadcast %3 : vector<1x128xf32> to vector<8x128xf32>
    %5 = arith.addf %2, %4 : vector<8x128xf32>
    %c0_5 = arith.constant 0 : index
    %c0_6 = arith.constant 0 : index
    %6 = vector.load %arg4[%c0_5, %c0_6] : memref<8x128xf32, #tpu.memory_space<vmem>>, vector<8x128xf32>
    tpu.vector_store %arg4[%c0_5, %c0_6], %5 {strides = array<i32>} : memref<8x128xf32, #tpu.memory_space<vmem>>, vector<8x128xf32>,
    return
  }
  func.func @transform_0(%arg0: i32) -> (i32, i32) {
    %c0_i32 = arith.constant 0 : i32
    %c0_i32_0 = arith.constant 0 : i32
    %c0_i32_1 = arith.constant 0 : i32
    return %c0_i32, %c0_i32_0 : i32, i32
  }
  func.func @transform_1(%arg0: i32) -> (i32, i32) {
    %c0_i32 = arith.constant 0 : i32
    %c0_i32_0 = arith.constant 0 : i32
    %c0_i32_1 = arith.constant 0 : i32
    return %c0_i32, %c0_i32_0 : i32, i32
  }
  func.func @transform_2(%arg0: i32) -> (i32, i32) {
    %c0_i32 = arith.constant 0 : i32
    %c0_i32_0 = arith.constant 0 : i32
    %c0_i32_1 = arith.constant 0 : i32
    return %c0_i32, %c0_i32_0 : i32, i32
  }
  func.func @transform_3(%arg0: i32) -> (i32, i32) {
    %c0_i32 = arith.constant 0 : i32
    %c0_i32_0 = arith.constant 0 : i32
    %c0_i32_1 = arith.constant 0 : i32
    return %c0_i32, %c0_i32_0 : i32, i32
  }
}

</mosaic_0001>

<llo_original>
// kernel: _lambda_.3
$region0: #{_lambda_.3}
  #allocation0 [shape = 'u32[]', space=smem, size = 0x4, offset = 0x4, fixed_abs, tag = 'smem constant byte address 0x4 - core index']
  #allocation1 [shape = 'u32[144,128]{1,0:T(1,128)}', space=vmem, size = 0x12000, scoped, tag = 'internal scratch']
  #allocation2 [shape = 'f32[16,32,128]{2,1,0:T(8,128)}', space=vmem, size = 0x40000, scoped, tag = 'scratch operand']
  %s0 = inlined_call_operand.vmem [shape: bf16[2,1024,32], index: 0, kind: input, shape index: {}]
  %s1 = inlined_call_operand.vmem [shape: bf16[32,128], index: 1, kind: input, shape index: {}]
  %s2 = inlined_call_operand.vmem [shape: f32[1,128], index: 2, kind: input, shape index: {}]
  %s3 = inlined_call_operand.vmem [shape: bf16[2,16,16,128], index: 3, kind: output, shape index: {}]
  %s4 = sld [smem:[#allocation0]]
  $region45: #{_lambda_.3} parent=0
    _
  %s6 = ssub.s32 1, %s4
  %s7 = scalar_select 0, %s6, %s4
  loop: start=0, step=1, limit=4
  $region2: #{_lambda_.3} parent=0 // loop_pre_header
    _
  $region3: #{_lambda_.3} parent=0 // loop_header
    %s9 = sphi 0, %s13
    %p10 = scmp.ge.s32.totalorder %s9, 4
    %s16 = sphi 0, %s28
    %s17 = sphi 0, %s24
    %s18 = sphi 0, %s16
    %s19 = sphi 0, %s17
    %s20 = sphi 0, %s18
    %s21 = sphi 0, %s19
    %s33 = sphi 0, %s35
    %s36 = sphi 0, %s33
    %s37 = sphi 0, %s36
    %s53 = sphi 0, %s37
    %s57 = sphi 0, %s57
    %s59 = sphi 0, %s57
    %s60 = sphi 0, %s59
    %s74 = sphi 0, %s60
    %s78 = sphi 0, %s78
    %s80 = sphi 0, %s78
    %s81 = sphi 0, %s80
    %s95 = sphi 0, %s81
    %s103 = sphi 0, %s105
    %s106 = sphi 0, %s103
    %s107 = sphi 0, %s106
    %s123 = sphi 0, %s107
  $region4: #{_lambda_.3} parent=0 // loop_header_branch
    %12 = sbr.rel (%p10) target = $region8
  $region5: #{_lambda_.3} parent=0 // loop_body
    %s14 = ssub.s32 %s9, 1
    %s15 = ssub.s32 %s9, 2
    %s22 = sadd.s32 1, %s17
    %p23 = scmp.ge.s32.totalorder %s22, 1
    %s24 = scalar_select %p23, 0, %s22
    %s25 = sadd.s32 1, %s16
    %s26 = scalar_select %p23, %s25, %s16
    %p27 = scmp.ge.s32.totalorder %s26, 2
    %s28 = scalar_select %p27, 0, %s26
    %s29 = ssub.s32 %s16, %s28
    %s30 = ssub.s32 %s17, %s24
    %s31 = sor.u32 %s29, %s30
    %p32 = scmp.eq.s32.totalorder %s31, 0
    %s34 = sadd.s32 %s33, 1
    %s35 = scalar_select %p32, %s33, %s34
    %p38 = pneg %p32
    %p39 = scmp.eq.s32.totalorder %s9, 1
    %p40 = por %p38, %p39
    %p41 = scmp.ne.s32.totalorder %s33, %s36
    %p42 = scmp.eq.s32.totalorder %s9, 0
    %p43 = por %p41, %p42
    %p44 = scmp.ne.s32.totalorder %s33, %s36
    %p45 = scmp.eq.s32.totalorder %s14, 1
    %p46 = por %p44, %p45
    %p47 = scmp.ne.s32.totalorder %s36, %s37
    %p48 = scmp.eq.s32.totalorder %s14, 0
    %p49 = por %p47, %p48
    %p50 = scmp.ne.s32.totalorder %s36, %s37
    %p51 = scmp.eq.s32.totalorder %s15, 1
    %p52 = por %p50, %p51
    %p54 = scmp.ne.s32.totalorder %s37, %s53
    %p55 = scmp.eq.s32.totalorder %s15, 0
    %p56 = por %p54, %p55
    %s58 = sadd.s32 %s57, 1
    %p61 = scmp.eq.s32.totalorder %s9, 1
    %p62 = scmp.ne.s32.totalorder %s57, %s59
    %p63 = scmp.eq.s32.totalorder %s9, 0
    %p64 = por %p62, %p63
    %p65 = scmp.ne.s32.totalorder %s57, %s59
    %p66 = scmp.eq.s32.totalorder %s14, 1
    %p67 = por %p65, %p66
    %p68 = scmp.ne.s32.totalorder %s59, %s60
    %p69 = scmp.eq.s32.totalorder %s14, 0
    %p70 = por %p68, %p69
    %p71 = scmp.ne.s32.totalorder %s59, %s60
    %p72 = scmp.eq.s32.totalorder %s15, 1
    %p73 = por %p71, %p72
    %p75 = scmp.ne.s32.totalorder %s60, %s74
    %p76 = scmp.eq.s32.totalorder %s15, 0
    %p77 = por %p75, %p76
    %s79 = sadd.s32 %s78, 1
    %p82 = scmp.eq.s32.totalorder %s9, 1
    %p83 = scmp.ne.s32.totalorder %s78, %s80
    %p84 = scmp.eq.s32.totalorder %s9, 0
    %p85 = por %p83, %p84
    %p86 = scmp.ne.s32.totalorder %s78, %s80
    %p87 = scmp.eq.s32.totalorder %s14, 1
    %p88 = por %p86, %p87
    %p89 = scmp.ne.s32.totalorder %s80, %s81
    %p90 = scmp.eq.s32.totalorder %s14, 0
    %p91 = por %p89, %p90
    %p92 = scmp.ne.s32.totalorder %s80, %s81
    %p93 = scmp.eq.s32.totalorder %s15, 1
    %p94 = por %p92, %p93
    %p96 = scmp.ne.s32.totalorder %s81, %s95
    %p97 = scmp.eq.s32.totalorder %s15, 0
    %p98 = por %p96, %p97
    %s99 = ssub.s32 %s16, %s28
    %s100 = ssub.s32 %s17, %s24
    %s101 = sor.u32 %s99, %s100
    %p102 = scmp.eq.s32.totalorder %s101, 0
    %s104 = sadd.s32 %s103, 1
    %s105 = scalar_select %p102, %s103, %s104
    %p108 = pneg %p102
    %p109 = scmp.eq.s32.totalorder %s9, 1
    %p110 = por %p108, %p109
    %p111 = scmp.ne.s32.totalorder %s103, %s106
    %p112 = scmp.eq.s32.totalorder %s9, 0
    %p113 = por %p111, %p112
    %p114 = scmp.ne.s32.totalorder %s103, %s106
    %p115 = scmp.eq.s32.totalorder %s14, 1
    %p116 = por %p114, %p115
    %p117 = scmp.ne.s32.totalorder %s106, %s107
    %p118 = scmp.eq.s32.totalorder %s14, 0
    %p119 = por %p117, %p118
    %p120 = scmp.ne.s32.totalorder %s106, %s107
    %p121 = scmp.eq.s32.totalorder %s15, 1
    %p122 = por %p120, %p121
    %p124 = scmp.ne.s32.totalorder %s107, %s123
    %p125 = scmp.eq.s32.totalorder %s15, 0
    %p126 = por %p124, %p125
    %p127 = scmp.le.s32.totalorder 1, %s9
    %p128 = scmp.lt.s32.totalorder %s9, 3
    %p129 = pnand %p127, %p128
    %p130 = pneg %p129
    // Predicated region
    $region9: #{_lambda_.3} parent=5 // pred_check
      _
    $region10: #{_lambda_.3} parent=5 // pred_check_branch
      %132 = sbr.rel (%p129) target = $region12
    $region11: #{_lambda_.3} parent=5 // pred_region
      %s133 = ssub.s32 %s9, 1
      // Predicated region
      $region13: #{_lambda_.3} parent=11 // pred_check
        %p134 = pneg %p70
      $region14: #{_lambda_.3} parent=11 // pred_check_branch
        %136 = sbr.rel (%p134) target = $region16
      $region15: #{_lambda_.3} parent=11 // pred_region
        _
      $region16: #{_lambda_.3} parent=11 // pred_fallthru
        _
      // Predicated region
      $region17: #{_lambda_.3} parent=11 // pred_check
        %p137 = pneg %p91
      $region18: #{_lambda_.3} parent=11 // pred_check_branch
        %139 = sbr.rel (%p137) target = $region20
      $region19: #{_lambda_.3} parent=11 // pred_region
        _
      $region20: #{_lambda_.3} parent=11 // pred_fallthru
        _
    $region12: #{_lambda_.3} parent=5 // pred_fallthru
      _
    %p140 = scmp.lt.s32.totalorder %s9, 2
    // Predicated region
    $region21: #{_lambda_.3} parent=5 // pred_check
      %p141 = pneg %p140
    $region22: #{_lambda_.3} parent=5 // pred_check_branch
      %143 = sbr.rel (%p141) target = $region24
    $region23: #{_lambda_.3} parent=5 // pred_region
      // Predicated region
      $region25: #{_lambda_.3} parent=23 // pred_check
        %p144 = pneg %p43
      $region26: #{_lambda_.3} parent=23 // pred_check_branch
        %146 = sbr.rel (%p144) target = $region28
      $region27: #{_lambda_.3} parent=23 // pred_region
        %s147 = smul.u32 128, %s17
        %p148 = scmp.lt.s32.totalorder %s16, 1
        %s149 = scalar_select %p148, %s16, 1
        %p150 = scmp.lt.s32.totalorder %s147, 127
        %s151 = scalar_select %p150, %s147, 127
        %s152 = smul.addr %s149, 128
        %s153 = sadd.s32 %s151, %s152
        %s154 = smul.addr %s153, 4
        %s155 = scalar_lea.vmem %s0, %s154
        %s156 = smul.u32 128, %s17
      $region28: #{_lambda_.3} parent=23 // pred_fallthru
        _
    $region24: #{_lambda_.3} parent=5 // pred_fallthru
      _
    %p157 = scmp.le.s32.totalorder 1, %s9
    %p158 = scmp.lt.s32.totalorder %s9, 3
    %p159 = pnand %p157, %p158
    %p160 = pneg %p159
    // Predicated region
    $region29: #{_lambda_.3} parent=5 // pred_check
      _
    $region30: #{_lambda_.3} parent=5 // pred_check_branch
      %162 = sbr.rel (%p159) target = $region32
    $region31: #{_lambda_.3} parent=5 // pred_region
      %s163 = ssub.s32 %s9, 1
      %s164 = smul.u32 128, %s19
      %p165 = scmp.lt.s32.totalorder %s18, 1
      %s166 = scalar_select %p165, %s18, 1
      %p167 = scmp.lt.s32.totalorder %s164, 127
      %s168 = scalar_select %p167, %s164, 127
      %s169 = smul.addr %s166, 128
      %s170 = sadd.s32 %s168, %s169
      %s171 = smul.addr %s170, 4
      %s172 = scalar_lea.vmem %s0, %s171
      %p173 = pneg %p49
      %p174 = pneg %p46
      %p175 = pneg %p70
      %p176 = pneg %p67
      %p177 = pneg %p91
      %p178 = pneg %p88
      %p179 = pneg %p119
      %p180 = pneg %p116
      %s181 = smul.u32 16, %s19
      %p182 = scmp.lt.s32.totalorder %s18, 1
      %s183 = scalar_select %p182, %s18, 1
      %p184 = scmp.lt.s32.totalorder %s181, 15
      %s185 = scalar_select %p184, %s181, 15
      %s186 = smul.addr %s185, 2
      %s187 = smul.addr %s183, 32
      %s188 = sadd.s32 %s186, %s187
      %s189 = smul.addr %s188, 4
      %s190 = scalar_lea.vmem %s3, %s189
      %s191 = smul.u32 128, %s19
      %p192 = scmp.lt.s32.totalorder %s18, 1
      %s193 = scalar_select %p192, %s18, 1
      %p194 = scmp.lt.s32.totalorder %s191, 127
      %s195 = scalar_select %p194, %s191, 127
      %s196 = smul.addr %s193, 128
      %s197 = sadd.s32 %s195, %s196
      %s198 = smul.addr %s197, 4
      %s199 = scalar_lea.vmem %s0, %s198
      %s200 = smul.u32 128, %s19
      %s201 = smul.u32 16, %s19
      %p202 = scmp.lt.s32.totalorder %s18, 1
      %s203 = scalar_select %p202, %s18, 1
      %p204 = scmp.lt.s32.totalorder %s201, 15
      %s205 = scalar_select %p204, %s201, 15
      %s206 = smul.addr %s205, 2
      %s207 = smul.addr %s203, 32
      %s208 = sadd.s32 %s206, %s207
      %s209 = smul.addr %s208, 4
      %s210 = scalar_lea.vmem %s3, %s209
      %s211 = smul.u32 16, %s19
      %v213 = vld [vmem:[%s199] sm:$0xf]
      %v214 = vld [vmem:[%s199 + $0x4] sm:$0xf]
      %v215 = vld [vmem:[%s199 + $0x8] sm:$0xf]
      %v216 = vld [vmem:[%s199 + $0xc] sm:$0xf]
      %v217 = vld [vmem:[%s199 + $0x10] sm:$0xf]
      %v218 = vld [vmem:[%s199 + $0x14] sm:$0xf]
      %v219 = vld [vmem:[%s199 + $0x18] sm:$0xf]
      %v220 = vld [vmem:[%s199 + $0x1c] sm:$0xf]
      %v221 = vld [vmem:[%s199 + $0x20] sm:$0xf]
      %v222 = vld [vmem:[%s199 + $0x24] sm:$0xf]
      %v223 = vld [vmem:[%s199 + $0x28] sm:$0xf]
      %v224 = vld [vmem:[%s199 + $0x2c] sm:$0xf]
      %v225 = vld [vmem:[%s199 + $0x30] sm:$0xf]
      %v226 = vld [vmem:[%s199 + $0x34] sm:$0xf]
      %v227 = vld [vmem:[%s199 + $0x38] sm:$0xf]
      %v228 = vld [vmem:[%s199 + $0x3c] sm:$0xf]
      %v229 = vld [vmem:[%s199 + $0x40] sm:$0xf]
      %v230 = vld [vmem:[%s199 + $0x44] sm:$0xf]
      %v231 = vld [vmem:[%s199 + $0x48] sm:$0xf]
      %v232 = vld [vmem:[%s199 + $0x4c] sm:$0xf]
      %v233 = vld [vmem:[%s199 + $0x50] sm:$0xf]
      %v234 = vld [vmem:[%s199 + $0x54] sm:$0xf]
      %v235 = vld [vmem:[%s199 + $0x58] sm:$0xf]
      %v236 = vld [vmem:[%s199 + $0x5c] sm:$0xf]
      %v237 = vld [vmem:[%s199 + $0x60] sm:$0xf]
      %v238 = vld [vmem:[%s199 + $0x64] sm:$0xf]
      %v239 = vld [vmem:[%s199 + $0x68] sm:$0xf]
      %v240 = vld [vmem:[%s199 + $0x6c] sm:$0xf]
      %v241 = vld [vmem:[%s199 + $0x70] sm:$0xf]
      %v242 = vld [vmem:[%s199 + $0x74] sm:$0xf]
      %v243 = vld [vmem:[%s199 + $0x78] sm:$0xf]
      %v244 = vld [vmem:[%s199 + $0x7c] sm:$0xf]
      %v245 = vld [vmem:[%s199 + $0x80] sm:$0xf]
      %v246 = vld [vmem:[%s199 + $0x84] sm:$0xf]
      %v247 = vld [vmem:[%s199 + $0x88] sm:$0xf]
      %v248 = vld [vmem:[%s199 + $0x8c] sm:$0xf]
      %v249 = vld [vmem:[%s199 + $0x90] sm:$0xf]
      %v250 = vld [vmem:[%s199 + $0x94] sm:$0xf]
      %v251 = vld [vmem:[%s199 + $0x98] sm:$0xf]
      %v252 = vld [vmem:[%s199 + $0x9c] sm:$0xf]
      %v253 = vld [vmem:[%s199 + $0xa0] sm:$0xf]
      %v254 = vld [vmem:[%s199 + $0xa4] sm:$0xf]
      %v255 = vld [vmem:[%s199 + $0xa8] sm:$0xf]
      %v256 = vld [vmem:[%s199 + $0xac] sm:$0xf]
      %v257 = vld [vmem:[%s199 + $0xb0] sm:$0xf]
      %v258 = vld [vmem:[%s199 + $0xb4] sm:$0xf]
      %v259 = vld [vmem:[%s199 + $0xb8] sm:$0xf]
      %v260 = vld [vmem:[%s199 + $0xbc] sm:$0xf]
      %v261 = vld [vmem:[%s199 + $0xc0] sm:$0xf]
      %v262 = vld [vmem:[%s199 + $0xc4] sm:$0xf]
      %v263 = vld [vmem:[%s199 + $0xc8] sm:$0xf]
      %v264 = vld [vmem:[%s199 + $0xcc] sm:$0xf]
      %v265 = vld [vmem:[%s199 + $0xd0] sm:$0xf]
      %v266 = vld [vmem:[%s199 + $0xd4] sm:$0xf]
      %v267 = vld [vmem:[%s199 + $0xd8] sm:$0xf]
      %v268 = vld [vmem:[%s199 + $0xdc] sm:$0xf]
      %v269 = vld [vmem:[%s199 + $0xe0] sm:$0xf]
      %v270 = vld [vmem:[%s199 + $0xe4] sm:$0xf]
      %v271 = vld [vmem:[%s199 + $0xe8] sm:$0xf]
      %v272 = vld [vmem:[%s199 + $0xec] sm:$0xf]
      %v273 = vld [vmem:[%s199 + $0xf0] sm:$0xf]
      %v274 = vld [vmem:[%s199 + $0xf4] sm:$0xf]
      %v275 = vld [vmem:[%s199 + $0xf8] sm:$0xf]
      %v276 = vld [vmem:[%s199 + $0xfc] sm:$0xf]
      %v277 = vld [vmem:[%s199 + $0x100] sm:$0xf]
      %v278 = vld [vmem:[%s199 + $0x104] sm:$0xf]
      %v279 = vld [vmem:[%s199 + $0x108] sm:$0xf]
      %v280 = vld [vmem:[%s199 + $0x10c] sm:$0xf]
      %v281 = vld [vmem:[%s199 + $0x110] sm:$0xf]
      %v282 = vld [vmem:[%s199 + $0x114] sm:$0xf]
      %v283 = vld [vmem:[%s199 + $0x118] sm:$0xf]
      %v284 = vld [vmem:[%s199 + $0x11c] sm:$0xf]
      %v285 = vld [vmem:[%s199 + $0x120] sm:$0xf]
      %v286 = vld [vmem:[%s199 + $0x124] sm:$0xf]
      %v287 = vld [vmem:[%s199 + $0x128] sm:$0xf]
      %v288 = vld [vmem:[%s199 + $0x12c] sm:$0xf]
      %v289 = vld [vmem:[%s199 + $0x130] sm:$0xf]
      %v290 = vld [vmem:[%s199 + $0x134] sm:$0xf]
      %v291 = vld [vmem:[%s199 + $0x138] sm:$0xf]
      %v292 = vld [vmem:[%s199 + $0x13c] sm:$0xf]
      %v293 = vld [vmem:[%s199 + $0x140] sm:$0xf]
      %v294 = vld [vmem:[%s199 + $0x144] sm:$0xf]
      %v295 = vld [vmem:[%s199 + $0x148] sm:$0xf]
      %v296 = vld [vmem:[%s199 + $0x14c] sm:$0xf]
      %v297 = vld [vmem:[%s199 + $0x150] sm:$0xf]
      %v298 = vld [vmem:[%s199 + $0x154] sm:$0xf]
      %v299 = vld [vmem:[%s199 + $0x158] sm:$0xf]
      %v300 = vld [vmem:[%s199 + $0x15c] sm:$0xf]
      %v301 = vld [vmem:[%s199 + $0x160] sm:$0xf]
      %v302 = vld [vmem:[%s199 + $0x164] sm:$0xf]
      %v303 = vld [vmem:[%s199 + $0x168] sm:$0xf]
      %v304 = vld [vmem:[%s199 + $0x16c] sm:$0xf]
      %v305 = vld [vmem:[%s199 + $0x170] sm:$0xf]
      %v306 = vld [vmem:[%s199 + $0x174] sm:$0xf]
      %v307 = vld [vmem:[%s199 + $0x178] sm:$0xf]
      %v308 = vld [vmem:[%s199 + $0x17c] sm:$0xf]
      %v309 = vld [vmem:[%s199 + $0x180] sm:$0xf]
      %v310 = vld [vmem:[%s199 + $0x184] sm:$0xf]
      %v311 = vld [vmem:[%s199 + $0x188] sm:$0xf]
      %v312 = vld [vmem:[%s199 + $0x18c] sm:$0xf]
      %v313 = vld [vmem:[%s199 + $0x190] sm:$0xf]
      %v314 = vld [vmem:[%s199 + $0x194] sm:$0xf]
      %v315 = vld [vmem:[%s199 + $0x198] sm:$0xf]
      %v316 = vld [vmem:[%s199 + $0x19c] sm:$0xf]
      %v317 = vld [vmem:[%s199 + $0x1a0] sm:$0xf]
      %v318 = vld [vmem:[%s199 + $0x1a4] sm:$0xf]
      %v319 = vld [vmem:[%s199 + $0x1a8] sm:$0xf]
      %v320 = vld [vmem:[%s199 + $0x1ac] sm:$0xf]
      %v321 = vld [vmem:[%s199 + $0x1b0] sm:$0xf]
      %v322 = vld [vmem:[%s199 + $0x1b4] sm:$0xf]
      %v323 = vld [vmem:[%s199 + $0x1b8] sm:$0xf]
      %v324 = vld [vmem:[%s199 + $0x1bc] sm:$0xf]
      %v325 = vld [vmem:[%s199 + $0x1c0] sm:$0xf]
      %v326 = vld [vmem:[%s199 + $0x1c4] sm:$0xf]
      %v327 = vld [vmem:[%s199 + $0x1c8] sm:$0xf]
      %v328 = vld [vmem:[%s199 + $0x1cc] sm:$0xf]
      %v329 = vld [vmem:[%s199 + $0x1d0] sm:$0xf]
      %v330 = vld [vmem:[%s199 + $0x1d4] sm:$0xf]
      %v331 = vld [vmem:[%s199 + $0x1d8] sm:$0xf]
      %v332 = vld [vmem:[%s199 + $0x1dc] sm:$0xf]
      %v333 = vld [vmem:[%s199 + $0x1e0] sm:$0xf]
      %v334 = vld [vmem:[%s199 + $0x1e4] sm:$0xf]
      %v335 = vld [vmem:[%s199 + $0x1e8] sm:$0xf]
      %v336 = vld [vmem:[%s199 + $0x1ec] sm:$0xf]
      %v337 = vld [vmem:[%s199 + $0x1f0] sm:$0xf]
      %v338 = vld [vmem:[%s199 + $0x1f4] sm:$0xf]
      %v339 = vld [vmem:[%s199 + $0x1f8] sm:$0xf]
      %v340 = vld [vmem:[%s199 + $0x1fc] sm:$0xf]
      %v341 = vld [vmem:[%s1] sm:$0xf]
      %v342 = vld [vmem:[%s1 + $0x4] sm:$0xf]
      %v343 = vld [vmem:[%s1 + $0x8] sm:$0xf]
      %v344 = vld [vmem:[%s1 + $0xc] sm:$0xf]
      %v345 = vld [vmem:[%s2] sm:$0x1]
      %v347 = vlaneseq
      %v348 = vshrl.u32 %v347, 7
      %v349 = vsub.s32 0, %v348
      %v350 = vrot.slane %v345, %v349
      %v480 = vunpack.c.l.b16 %v213
      %v481 = vunpack.c.l.b16 %v214
      %v482 = vunpack.c.l.b16 %v215
      %v483 = vunpack.c.l.b16 %v216
      %v484 = vunpack.c.l.b16 %v217
      %v485 = vunpack.c.l.b16 %v218
      %v486 = vunpack.c.l.b16 %v219
      %v487 = vunpack.c.l.b16 %v220
      %v488 = vunpack.c.l.b16 %v221
      %v489 = vunpack.c.l.b16 %v222
      %v490 = vunpack.c.l.b16 %v223
      %v491 = vunpack.c.l.b16 %v224
      %v492 = vunpack.c.l.b16 %v225
      %v493 = vunpack.c.l.b16 %v226
      %v494 = vunpack.c.l.b16 %v227
      %v495 = vunpack.c.l.b16 %v228
      %v496 = vunpack.c.l.b16 %v229
      %v497 = vunpack.c.l.b16 %v230
      %v498 = vunpack.c.l.b16 %v231
      %v499 = vunpack.c.l.b16 %v232
      %v500 = vunpack.c.l.b16 %v233
      %v501 = vunpack.c.l.b16 %v234
      %v502 = vunpack.c.l.b16 %v235
      %v503 = vunpack.c.l.b16 %v236
      %v504 = vunpack.c.l.b16 %v237
      %v505 = vunpack.c.l.b16 %v238
      %v506 = vunpack.c.l.b16 %v239
      %v507 = vunpack.c.l.b16 %v240
      %v508 = vunpack.c.l.b16 %v241
      %v509 = vunpack.c.l.b16 %v242
      %v510 = vunpack.c.l.b16 %v243
      %v511 = vunpack.c.l.b16 %v244
      %v512 = vunpack.c.l.b16 %v245
      %v513 = vunpack.c.l.b16 %v246
      %v514 = vunpack.c.l.b16 %v247
      %v515 = vunpack.c.l.b16 %v248
      %v516 = vunpack.c.l.b16 %v249
      %v517 = vunpack.c.l.b16 %v250
      %v518 = vunpack.c.l.b16 %v251
      %v519 = vunpack.c.l.b16 %v252
      %v520 = vunpack.c.l.b16 %v253
      %v521 = vunpack.c.l.b16 %v254
      %v522 = vunpack.c.l.b16 %v255
      %v523 = vunpack.c.l.b16 %v256
      %v524 = vunpack.c.l.b16 %v257
      %v525 = vunpack.c.l.b16 %v258
      %v526 = vunpack.c.l.b16 %v259
      %v527 = vunpack.c.l.b16 %v260
      %v528 = vunpack.c.l.b16 %v261
      %v529 = vunpack.c.l.b16 %v262
      %v530 = vunpack.c.l.b16 %v263
      %v531 = vunpack.c.l.b16 %v264
      %v532 = vunpack.c.l.b16 %v265
      %v533 = vunpack.c.l.b16 %v266
      %v534 = vunpack.c.l.b16 %v267
      %v535 = vunpack.c.l.b16 %v268
      %v536 = vunpack.c.l.b16 %v269
      %v537 = vunpack.c.l.b16 %v270
      %v538 = vunpack.c.l.b16 %v271
      %v539 = vunpack.c.l.b16 %v272
      %v540 = vunpack.c.l.b16 %v273
      %v541 = vunpack.c.l.b16 %v274
      %v542 = vunpack.c.l.b16 %v275
      %v543 = vunpack.c.l.b16 %v276
      %v544 = vunpack.c.l.b16 %v277
      %v545 = vunpack.c.l.b16 %v278
      %v546 = vunpack.c.l.b16 %v279
      %v547 = vunpack.c.l.b16 %v280
      %v548 = vunpack.c.l.b16 %v281
      %v549 = vunpack.c.l.b16 %v282
      %v550 = vunpack.c.l.b16 %v283
      %v551 = vunpack.c.l.b16 %v284
      %v552 = vunpack.c.l.b16 %v285
      %v553 = vunpack.c.l.b16 %v286
      %v554 = vunpack.c.l.b16 %v287
      %v555 = vunpack.c.l.b16 %v288
      %v556 = vunpack.c.l.b16 %v289
      %v557 = vunpack.c.l.b16 %v290
      %v558 = vunpack.c.l.b16 %v291
      %v559 = vunpack.c.l.b16 %v292
      %v560 = vunpack.c.l.b16 %v293
      %v561 = vunpack.c.l.b16 %v294
      %v562 = vunpack.c.l.b16 %v295
      %v563 = vunpack.c.l.b16 %v296
      %v564 = vunpack.c.l.b16 %v297
      %v565 = vunpack.c.l.b16 %v298
      %v566 = vunpack.c.l.b16 %v299
      %v567 = vunpack.c.l.b16 %v300
      %v568 = vunpack.c.l.b16 %v301
      %v569 = vunpack.c.l.b16 %v302
      %v570 = vunpack.c.l.b16 %v303
      %v571 = vunpack.c.l.b16 %v304
      %v572 = vunpack.c.l.b16 %v305
      %v573 = vunpack.c.l.b16 %v306
      %v574 = vunpack.c.l.b16 %v307
      %v575 = vunpack.c.l.b16 %v308
      %v576 = vunpack.c.l.b16 %v309
      %v577 = vunpack.c.l.b16 %v310
      %v578 = vunpack.c.l.b16 %v311
      %v579 = vunpack.c.l.b16 %v312
      %v580 = vunpack.c.l.b16 %v313
      %v581 = vunpack.c.l.b16 %v314
      %v582 = vunpack.c.l.b16 %v315
      %v583 = vunpack.c.l.b16 %v316
      %v584 = vunpack.c.l.b16 %v317
      %v585 = vunpack.c.l.b16 %v318
      %v586 = vunpack.c.l.b16 %v319
      %v587 = vunpack.c.l.b16 %v320
      %v588 = vunpack.c.l.b16 %v321
      %v589 = vunpack.c.l.b16 %v322
      %v590 = vunpack.c.l.b16 %v323
      %v591 = vunpack.c.l.b16 %v324
      %v592 = vunpack.c.l.b16 %v325
      %v593 = vunpack.c.l.b16 %v326
      %v594 = vunpack.c.l.b16 %v327
      %v595 = vunpack.c.l.b16 %v328
      %v596 = vunpack.c.l.b16 %v329
      %v597 = vunpack.c.l.b16 %v330
      %v598 = vunpack.c.l.b16 %v331
      %v599 = vunpack.c.l.b16 %v332
      %v600 = vunpack.c.l.b16 %v333
      %v601 = vunpack.c.l.b16 %v334
      %v602 = vunpack.c.l.b16 %v335
      %v603 = vunpack.c.l.b16 %v336
      %v604 = vunpack.c.l.b16 %v337
      %v605 = vunpack.c.l.b16 %v338
      %v606 = vunpack.c.l.b16 %v339
      %v607 = vunpack.c.l.b16 %v340
      %v608 = vpack.c.b16 %v481, %v480
      %v609 = vpack.c.b16 %v483, %v482
      %v610 = vpack.c.b16 %v485, %v484
      %v611 = vpack.c.b16 %v487, %v486
      %v612 = vpack.c.b16 %v489, %v488
      %v613 = vpack.c.b16 %v491, %v490
      %v614 = vpack.c.b16 %v493, %v492
      %v615 = vpack.c.b16 %v495, %v494
      %v616 = vpack.c.b16 %v497, %v496
      %v617 = vpack.c.b16 %v499, %v498
      %v618 = vpack.c.b16 %v501, %v500
      %v619 = vpack.c.b16 %v503, %v502
      %v620 = vpack.c.b16 %v505, %v504
      %v621 = vpack.c.b16 %v507, %v506
      %v622 = vpack.c.b16 %v509, %v508
      %v623 = vpack.c.b16 %v511, %v510
      %v624 = vpack.c.b16 %v513, %v512
      %v625 = vpack.c.b16 %v515, %v514
      %v626 = vpack.c.b16 %v517, %v516
      %v627 = vpack.c.b16 %v519, %v518
      %v628 = vpack.c.b16 %v521, %v520
      %v629 = vpack.c.b16 %v523, %v522
      %v630 = vpack.c.b16 %v525, %v524
      %v631 = vpack.c.b16 %v527, %v526
      %v632 = vpack.c.b16 %v529, %v528
      %v633 = vpack.c.b16 %v531, %v530
      %v634 = vpack.c.b16 %v533, %v532
      %v635 = vpack.c.b16 %v535, %v534
      %v636 = vpack.c.b16 %v537, %v536
      %v637 = vpack.c.b16 %v539, %v538
      %v638 = vpack.c.b16 %v541, %v540
      %v639 = vpack.c.b16 %v543, %v542
      %v640 = vpack.c.b16 %v545, %v544
      %v641 = vpack.c.b16 %v547, %v546
      %v642 = vpack.c.b16 %v549, %v548
      %v643 = vpack.c.b16 %v551, %v550
      %v644 = vpack.c.b16 %v553, %v552
      %v645 = vpack.c.b16 %v555, %v554
      %v646 = vpack.c.b16 %v557, %v556
      %v647 = vpack.c.b16 %v559, %v558
      %v648 = vpack.c.b16 %v561, %v560
      %v649 = vpack.c.b16 %v563, %v562
      %v650 = vpack.c.b16 %v565, %v564
      %v651 = vpack.c.b16 %v567, %v566
      %v652 = vpack.c.b16 %v569, %v568
      %v653 = vpack.c.b16 %v571, %v570
      %v654 = vpack.c.b16 %v573, %v572
      %v655 = vpack.c.b16 %v575, %v574
      %v656 = vpack.c.b16 %v577, %v576
      %v657 = vpack.c.b16 %v579, %v578
      %v658 = vpack.c.b16 %v581, %v580
      %v659 = vpack.c.b16 %v583, %v582
      %v660 = vpack.c.b16 %v585, %v584
      %v661 = vpack.c.b16 %v587, %v586
      %v662 = vpack.c.b16 %v589, %v588
      %v663 = vpack.c.b16 %v591, %v590
      %v664 = vpack.c.b16 %v593, %v592
      %v665 = vpack.c.b16 %v595, %v594
      %v666 = vpack.c.b16 %v597, %v596
      %v667 = vpack.c.b16 %v599, %v598
      %v668 = vpack.c.b16 %v601, %v600
      %v669 = vpack.c.b16 %v603, %v602
      %v670 = vpack.c.b16 %v605, %v604
      %v671 = vpack.c.b16 %v607, %v606
      %v676 = vunpack.c.l.b16 %v341
      %v677 = vunpack.c.l.b16 %v342
      %v678 = vunpack.c.l.b16 %v343
      %v679 = vunpack.c.l.b16 %v344
      %v680 = vpack.c.b16 %v677, %v676
      %v681 = vpack.c.b16 %v679, %v678
      %vm684 = vcmask 261120
      %v686 = vsel %vm684, %v608, 0
      %v689 = vsel %vm684, %v609, 0
      %v692 = vsel %vm684, %v610, 0
      %v695 = vsel %vm684, %v611, 0
      %v698 = vsel %vm684, %v612, 0
      %v701 = vsel %vm684, %v613, 0
      %v704 = vsel %vm684, %v614, 0
      %v707 = vsel %vm684, %v615, 0
      %v710 = vsel %vm684, %v616, 0
      %v713 = vsel %vm684, %v617, 0
      %v716 = vsel %vm684, %v618, 0
      %v719 = vsel %vm684, %v619, 0
      %v722 = vsel %vm684, %v620, 0
      %v725 = vsel %vm684, %v621, 0
      %v728 = vsel %vm684, %v622, 0
      %v731 = vsel %vm684, %v623, 0
      %v734 = vsel %vm684, %v624, 0
      %v737 = vsel %vm684, %v625, 0
      %v740 = vsel %vm684, %v626, 0
      %v743 = vsel %vm684, %v627, 0
      %v746 = vsel %vm684, %v628, 0
      %v749 = vsel %vm684, %v629, 0
      %v752 = vsel %vm684, %v630, 0
      %v755 = vsel %vm684, %v631, 0
      %v758 = vsel %vm684, %v632, 0
      %v761 = vsel %vm684, %v633, 0
      %v764 = vsel %vm684, %v634, 0
      %v767 = vsel %vm684, %v635, 0
      %v770 = vsel %vm684, %v636, 0
      %v773 = vsel %vm684, %v637, 0
      %v776 = vsel %vm684, %v638, 0
      %v779 = vsel %vm684, %v639, 0
      %v782 = vsel %vm684, %v640, 0
      %v785 = vsel %vm684, %v641, 0
      %v788 = vsel %vm684, %v642, 0
      %v791 = vsel %vm684, %v643, 0
      %v794 = vsel %vm684, %v644, 0
      %v797 = vsel %vm684, %v645, 0
      %v800 = vsel %vm684, %v646, 0
      %v803 = vsel %vm684, %v647, 0
      %v806 = vsel %vm684, %v648, 0
      %v809 = vsel %vm684, %v649, 0
      %v812 = vsel %vm684, %v650, 0
      %v815 = vsel %vm684, %v651, 0
      %v818 = vsel %vm684, %v652, 0
      %v821 = vsel %vm684, %v653, 0
      %v824 = vsel %vm684, %v654, 0
      %v827 = vsel %vm684, %v655, 0
      %v830 = vsel %vm684, %v656, 0
      %v833 = vsel %vm684, %v657, 0
      %v836 = vsel %vm684, %v658, 0
      %v839 = vsel %vm684, %v659, 0
      %v842 = vsel %vm684, %v660, 0
      %v845 = vsel %vm684, %v661, 0
      %v848 = vsel %vm684, %v662, 0
      %v851 = vsel %vm684, %v663, 0
      %v854 = vsel %vm684, %v664, 0
      %v857 = vsel %vm684, %v665, 0
      %v860 = vsel %vm684, %v666, 0
      %v863 = vsel %vm684, %v667, 0
      %v866 = vsel %vm684, %v668, 0
      %v869 = vsel %vm684, %v669, 0
      %v872 = vsel %vm684, %v670, 0
      %v875 = vsel %vm684, %v671, 0
      %877 = vmatprep.subr.bf16.mxu0 0
      %878 = vmatpush1.bf16.msra.mxu0 %v680
      %879 = vmatprep.subr.bf16.mxu0 0
      %880 = vmatpush1.bf16.msra.mxu0 %v681
      %881 = vmatprep.subr.bf16.mxu0 0
      %882 = vmatpush1.bf16.msra.mxu0 0
      %883 = vmatprep.subr.bf16.mxu0 0
      %884 = vmatpush1.bf16.msra.mxu0 0
      %885 = vmatprep.subr.bf16.mxu0 0
      %886 = vmatpush1.bf16.msra.mxu0 0
      %887 = vmatprep.subr.bf16.mxu0 0
      %888 = vmatpush1.bf16.msra.mxu0 0
      %889 = vmatprep.subr.bf16.mxu0 0
      %890 = vmatpush1.bf16.msra.mxu0 0
      %891 = vmatprep.subr.bf16.mxu0 0
      %892 = vmatpush1.bf16.msra.mxu0 0
      %893 = vmatprep.subr.bf16.mxu0 0
      %894 = vmatpush1.bf16.msra.mxu0 0
      %895 = vmatprep.subr.bf16.mxu0 0
      %896 = vmatpush1.bf16.msra.mxu0 0
      %897 = vmatprep.subr.bf16.mxu0 0
      %898 = vmatpush1.bf16.msra.mxu0 0
      %899 = vmatprep.subr.bf16.mxu0 0
      %900 = vmatpush1.bf16.msra.mxu0 0
      %901 = vmatprep.subr.bf16.mxu0 0
      %902 = vmatpush1.bf16.msra.mxu0 0
      %903 = vmatprep.subr.bf16.mxu0 0
      %904 = vmatpush1.bf16.msra.mxu0 0
      %905 = vmatprep.subr.bf16.mxu0 0
      %906 = vmatpush1.bf16.msra.mxu0 0
      %907 = vmatprep.subr.bf16.mxu0 0
      %908 = vmatpush1.bf16.msra.mxu0 0
      %909 = vmatprep.mubr.bf16.mxu0 0
      %910 = vmatmul.mubr.bf16.gmra.mrb[0].mxu0 %v686
      %v911 = vpop.f32.mrb[0].mxu0
      %v912 = vadd.f32 %v350, %v911
      %v913 = vpop.f32.mrb[0].mxu0
      %v914 = vpop.f32.mrb[0].mxu0
      %v915 = vadd.f32 %v350, %v914
      %v916 = vpop.f32.mrb[0].mxu0
      %917 = vmatprep.mubr.bf16.mxu0 0
      %918 = vmatmul.mubr.bf16.gmra.mrb[0].mxu0 %v689
      %v919 = vpop.f32.mrb[0].mxu0
      %v920 = vadd.f32 %v350, %v919
      %v921 = vpop.f32.mrb[0].mxu0
      %v922 = vpop.f32.mrb[0].mxu0
      %v923 = vadd.f32 %v350, %v922
      %v924 = vpop.f32.mrb[0].mxu0
      %925 = vmatprep.mubr.bf16.mxu0 0
      %926 = vmatmul.mubr.bf16.gmra.mrb[0].mxu0 %v692
      %v927 = vpop.f32.mrb[0].mxu0
      %v928 = vadd.f32 %v350, %v927
      %v929 = vpop.f32.mrb[0].mxu0
      %v930 = vpop.f32.mrb[0].mxu0
      %v931 = vadd.f32 %v350, %v930
      %v932 = vpop.f32.mrb[0].mxu0
      %933 = vmatprep.mubr.bf16.mxu0 0
      %934 = vmatmul.mubr.bf16.gmra.mrb[0].mxu0 %v695
      %v935 = vpop.f32.mrb[0].mxu0
      %v936 = vadd.f32 %v350, %v935
      %v937 = vpop.f32.mrb[0].mxu0
      %v938 = vpop.f32.mrb[0].mxu0
      %v939 = vadd.f32 %v350, %v938
      %v940 = vpop.f32.mrb[0].mxu0
      %941 = vmatprep.mubr.bf16.mxu0 0
      %942 = vmatmul.mubr.bf16.gmra.mrb[0].mxu0 %v698
      %v943 = vpop.f32.mrb[0].mxu0
      %v944 = vadd.f32 %v350, %v943
      %v945 = vpop.f32.mrb[0].mxu0
      %v946 = vpop.f32.mrb[0].mxu0
      %v947 = vadd.f32 %v350, %v946
      %v948 = vpop.f32.mrb[0].mxu0
      %949 = vmatprep.mubr.bf16.mxu0 0
      %950 = vmatmul.mubr.bf16.gmra.mrb[0].mxu0 %v701
      %v951 = vpop.f32.mrb[0].mxu0
      %v952 = vadd.f32 %v350, %v951
      %v953 = vpop.f32.mrb[0].mxu0
      %v954 = vpop.f32.mrb[0].mxu0
      %v955 = vadd.f32 %v350, %v954
      %v956 = vpop.f32.mrb[0].mxu0
      %957 = vmatprep.mubr.bf16.mxu0 0
      %958 = vmatmul.mubr.bf16.gmra.mrb[0].mxu0 %v704
      %v959 = vpop.f32.mrb[0].mxu0
      %v960 = vadd.f32 %v350, %v959
      %v961 = vpop.f32.mrb[0].mxu0
      %v962 = vpop.f32.mrb[0].mxu0
      %v963 = vadd.f32 %v350, %v962
      %v964 = vpop.f32.mrb[0].mxu0
      %965 = vmatprep.mubr.bf16.mxu0 0
      %966 = vmatmul.mubr.bf16.gmra.mrb[0].mxu0 %v707
      %v967 = vpop.f32.mrb[0].mxu0
      %v968 = vadd.f32 %v350, %v967
      %v969 = vpop.f32.mrb[0].mxu0
      %v970 = vpop.f32.mrb[0].mxu0
      %v971 = vadd.f32 %v350, %v970
      %v972 = vpop.f32.mrb[0].mxu0
      %973 = vmatprep.mubr.bf16.mxu0 0
      %974 = vmatmul.mubr.bf16.gmra.mrb[0].mxu0 %v710
      %v975 = vpop.f32.mrb[0].mxu0
      %v976 = vadd.f32 %v350, %v975
      %v977 = vpop.f32.mrb[0].mxu0
      %v978 = vpop.f32.mrb[0].mxu0
      %v979 = vadd.f32 %v350, %v978
      %v980 = vpop.f32.mrb[0].mxu0
      %981 = vmatprep.mubr.bf16.mxu0 0
      %982 = vmatmul.mubr.bf16.gmra.mrb[0].mxu0 %v713
      %v983 = vpop.f32.mrb[0].mxu0
      %v984 = vadd.f32 %v350, %v983
      %v985 = vpop.f32.mrb[0].mxu0
      %v986 = vpop.f32.mrb[0].mxu0
      %v987 = vadd.f32 %v350, %v986
      %v988 = vpop.f32.mrb[0].mxu0
      %989 = vmatprep.mubr.bf16.mxu0 0
      %990 = vmatmul.mubr.bf16.gmra.mrb[0].mxu0 %v716
      %v991 = vpop.f32.mrb[0].mxu0
      %v992 = vadd.f32 %v350, %v991
      %v993 = vpop.f32.mrb[0].mxu0
      %v994 = vpop.f32.mrb[0].mxu0
      %v995 = vadd.f32 %v350, %v994
      %v996 = vpop.f32.mrb[0].mxu0
      %997 = vmatprep.mubr.bf16.mxu0 0
      %998 = vmatmul.mubr.bf16.gmra.mrb[0].mxu0 %v719
      %v999 = vpop.f32.mrb[0].mxu0
      %v1000 = vadd.f32 %v350, %v999
      %v1001 = vpop.f32.mrb[0].mxu0
      %v1002 = vpop.f32.mrb[0].mxu0
      %v1003 = vadd.f32 %v350, %v1002
      %v1004 = vpop.f32.mrb[0].mxu0
      %1005 = vmatprep.mubr.bf16.mxu0 0
      %1006 = vmatmul.mubr.bf16.gmra.mrb[0].mxu0 %v722
      %v1007 = vpop.f32.mrb[0].mxu0
      %v1008 = vadd.f32 %v350, %v1007
      %v1009 = vpop.f32.mrb[0].mxu0
      %v1010 = vpop.f32.mrb[0].mxu0
      %v1011 = vadd.f32 %v350, %v1010
      %v1012 = vpop.f32.mrb[0].mxu0
      %1013 = vmatprep.mubr.bf16.mxu0 0
      %1014 = vmatmul.mubr.bf16.gmra.mrb[0].mxu0 %v725
      %v1015 = vpop.f32.mrb[0].mxu0
      %v1016 = vadd.f32 %v350, %v1015
      %v1017 = vpop.f32.mrb[0].mxu0
      %v1018 = vpop.f32.mrb[0].mxu0
      %v1019 = vadd.f32 %v350, %v1018
      %v1020 = vpop.f32.mrb[0].mxu0
      %1021 = vmatprep.mubr.bf16.mxu0 0
      %1022 = vmatmul.mubr.bf16.gmra.mrb[0].mxu0 %v728
      %v1023 = vpop.f32.mrb[0].mxu0
      %v1024 = vadd.f32 %v350, %v1023
      %v1025 = vpop.f32.mrb[0].mxu0
      %v1026 = vpop.f32.mrb[0].mxu0
      %v1027 = vadd.f32 %v350, %v1026
      %v1028 = vpop.f32.mrb[0].mxu0
      %1029 = vmatprep.mubr.bf16.mxu0 0
      %1030 = vmatmul.mubr.bf16.gmra.mrb[0].mxu0 %v731
      %v1031 = vpop.f32.mrb[0].mxu0
      %v1032 = vadd.f32 %v350, %v1031
      %v1033 = vpop.f32.mrb[0].mxu0
      %v1034 = vpop.f32.mrb[0].mxu0
      %v1035 = vadd.f32 %v350, %v1034
      %v1036 = vpop.f32.mrb[0].mxu0
      %1037 = vmatprep.mubr.bf16.mxu0 0
      %1038 = vmatmul.mubr.bf16.gmra.mrb[0].mxu0 %v734
      %v1039 = vpop.f32.mrb[0].mxu0
      %v1040 = vadd.f32 %v350, %v1039
      %v1041 = vpop.f32.mrb[0].mxu0
      %v1042 = vpop.f32.mrb[0].mxu0
      %v1043 = vadd.f32 %v350, %v1042
      %v1044 = vpop.f32.mrb[0].mxu0
      %1045 = vmatprep.mubr.bf16.mxu0 0
      %1046 = vmatmul.mubr.bf16.gmra.mrb[0].mxu0 %v737
      %v1047 = vpop.f32.mrb[0].mxu0
      %v1048 = vadd.f32 %v350, %v1047
      %v1049 = vpop.f32.mrb[0].mxu0
      %v1050 = vpop.f32.mrb[0].mxu0
      %v1051 = vadd.f32 %v350, %v1050
      %v1052 = vpop.f32.mrb[0].mxu0
      %1053 = vmatprep.mubr.bf16.mxu0 0
      %1054 = vmatmul.mubr.bf16.gmra.mrb[0].mxu0 %v740
      %v1055 = vpop.f32.mrb[0].mxu0
      %v1056 = vadd.f32 %v350, %v1055
      %v1057 = vpop.f32.mrb[0].mxu0
      %v1058 = vpop.f32.mrb[0].mxu0
      %v1059 = vadd.f32 %v350, %v1058
      %v1060 = vpop.f32.mrb[0].mxu0
      %1061 = vmatprep.mubr.bf16.mxu0 0
      %1062 = vmatmul.mubr.bf16.gmra.mrb[0].mxu0 %v743
      %v1063 = vpop.f32.mrb[0].mxu0
      %v1064 = vadd.f32 %v350, %v1063
      %v1065 = vpop.f32.mrb[0].mxu0
      %v1066 = vpop.f32.mrb[0].mxu0
      %v1067 = vadd.f32 %v350, %v1066
      %v1068 = vpop.f32.mrb[0].mxu0
      %1069 = vmatprep.mubr.bf16.mxu0 0
      %1070 = vmatmul.mubr.bf16.gmra.mrb[0].mxu0 %v746
      %v1071 = vpop.f32.mrb[0].mxu0
      %v1072 = vadd.f32 %v350, %v1071
      %v1073 = vpop.f32.mrb[0].mxu0
      %v1074 = vpop.f32.mrb[0].mxu0
      %v1075 = vadd.f32 %v350, %v1074
      %v1076 = vpop.f32.mrb[0].mxu0
      %1077 = vmatprep.mubr.bf16.mxu0 0
      %1078 = vmatmul.mubr.bf16.gmra.mrb[0].mxu0 %v749
      %v1079 = vpop.f32.mrb[0].mxu0
      %v1080 = vadd.f32 %v350, %v1079
      %v1081 = vpop.f32.mrb[0].mxu0
      %v1082 = vpop.f32.mrb[0].mxu0
      %v1083 = vadd.f32 %v350, %v1082
      %v1084 = vpop.f32.mrb[0].mxu0
      %1085 = vmatprep.mubr.bf16.mxu0 0
      %1086 = vmatmul.mubr.bf16.gmra.mrb[0].mxu0 %v752
      %v1087 = vpop.f32.mrb[0].mxu0
      %v1088 = vadd.f32 %v350, %v1087
      %v1089 = vpop.f32.mrb[0].mxu0
      %v1090 = vpop.f32.mrb[0].mxu0
      %v1091 = vadd.f32 %v350, %v1090
      %v1092 = vpop.f32.mrb[0].mxu0
      %1093 = vmatprep.mubr.bf16.mxu0 0
      %1094 = vmatmul.mubr.bf16.gmra.mrb[0].mxu0 %v755
      %v1095 = vpop.f32.mrb[0].mxu0
      %v1096 = vadd.f32 %v350, %v1095
      %v1097 = vpop.f32.mrb[0].mxu0
      %v1098 = vpop.f32.mrb[0].mxu0
      %v1099 = vadd.f32 %v350, %v1098
      %v1100 = vpop.f32.mrb[0].mxu0
      %1101 = vmatprep.mubr.bf16.mxu0 0
      %1102 = vmatmul.mubr.bf16.gmra.mrb[0].mxu0 %v758
      %v1103 = vpop.f32.mrb[0].mxu0
      %v1104 = vadd.f32 %v350, %v1103
      %v1105 = vpop.f32.mrb[0].mxu0
      %v1106 = vpop.f32.mrb[0].mxu0
      %v1107 = vadd.f32 %v350, %v1106
      %v1108 = vpop.f32.mrb[0].mxu0
      %1109 = vmatprep.mubr.bf16.mxu0 0
      %1110 = vmatmul.mubr.bf16.gmra.mrb[0].mxu0 %v761
      %v1111 = vpop.f32.mrb[0].mxu0
      %v1112 = vadd.f32 %v350, %v1111
      %v1113 = vpop.f32.mrb[0].mxu0
      %v1114 = vpop.f32.mrb[0].mxu0
      %v1115 = vadd.f32 %v350, %v1114
      %v1116 = vpop.f32.mrb[0].mxu0
      %1117 = vmatprep.mubr.bf16.mxu0 0
      %1118 = vmatmul.mubr.bf16.gmra.mrb[0].mxu0 %v764
      %v1119 = vpop.f32.mrb[0].mxu0
      %v1120 = vadd.f32 %v350, %v1119
      %v1121 = vpop.f32.mrb[0].mxu0
      %v1122 = vpop.f32.mrb[0].mxu0
      %v1123 = vadd.f32 %v350, %v1122
      %v1124 = vpop.f32.mrb[0].mxu0
      %1125 = vmatprep.mubr.bf16.mxu0 0
      %1126 = vmatmul.mubr.bf16.gmra.mrb[0].mxu0 %v767
      %v1127 = vpop.f32.mrb[0].mxu0
      %v1128 = vadd.f32 %v350, %v1127
      %v1129 = vpop.f32.mrb[0].mxu0
      %v1130 = vpop.f32.mrb[0].mxu0
      %v1131 = vadd.f32 %v350, %v1130
      %v1132 = vpop.f32.mrb[0].mxu0
      %1133 = vmatprep.mubr.bf16.mxu0 0
      %1134 = vmatmul.mubr.bf16.gmra.mrb[0].mxu0 %v770
      %v1135 = vpop.f32.mrb[0].mxu0
      %v1136 = vadd.f32 %v350, %v1135
      %v1137 = vpop.f32.mrb[0].mxu0
      %v1138 = vpop.f32.mrb[0].mxu0
      %v1139 = vadd.f32 %v350, %v1138
      %v1140 = vpop.f32.mrb[0].mxu0
      %1141 = vmatprep.mubr.bf16.mxu0 0
      %1142 = vmatmul.mubr.bf16.gmra.mrb[0].mxu0 %v773
      %v1143 = vpop.f32.mrb[0].mxu0
      %v1144 = vadd.f32 %v350, %v1143
      %v1145 = vpop.f32.mrb[0].mxu0
      %v1146 = vpop.f32.mrb[0].mxu0
      %v1147 = vadd.f32 %v350, %v1146
      %v1148 = vpop.f32.mrb[0].mxu0
      %1149 = vmatprep.mubr.bf16.mxu0 0
      %1150 = vmatmul.mubr.bf16.gmra.mrb[0].mxu0 %v776
      %v1151 = vpop.f32.mrb[0].mxu0
      %v1152 = vadd.f32 %v350, %v1151
      %v1153 = vpop.f32.mrb[0].mxu0
      %v1154 = vpop.f32.mrb[0].mxu0
      %v1155 = vadd.f32 %v350, %v1154
      %v1156 = vpop.f32.mrb[0].mxu0
      %1157 = vmatprep.mubr.bf16.mxu0 0
      %1158 = vmatmul.mubr.bf16.gmra.mrb[0].mxu0 %v779
      %v1159 = vpop.f32.mrb[0].mxu0
      %v1160 = vadd.f32 %v350, %v1159
      %v1161 = vpop.f32.mrb[0].mxu0
      %v1162 = vpop.f32.mrb[0].mxu0
      %v1163 = vadd.f32 %v350, %v1162
      %v1164 = vpop.f32.mrb[0].mxu0
      %1165 = vmatprep.mubr.bf16.mxu0 0
      %1166 = vmatmul.mubr.bf16.gmra.mrb[0].mxu0 %v782
      %v1167 = vpop.f32.mrb[0].mxu0
      %v1168 = vadd.f32 %v350, %v1167
      %v1169 = vpop.f32.mrb[0].mxu0
      %v1170 = vpop.f32.mrb[0].mxu0
      %v1171 = vadd.f32 %v350, %v1170
      %v1172 = vpop.f32.mrb[0].mxu0
      %1173 = vmatprep.mubr.bf16.mxu0 0
      %1174 = vmatmul.mubr.bf16.gmra.mrb[0].mxu0 %v785
      %v1175 = vpop.f32.mrb[0].mxu0
      %v1176 = vadd.f32 %v350, %v1175
      %v1177 = vpop.f32.mrb[0].mxu0
      %v1178 = vpop.f32.mrb[0].mxu0
      %v1179 = vadd.f32 %v350, %v1178
      %v1180 = vpop.f32.mrb[0].mxu0
      %1181 = vmatprep.mubr.bf16.mxu0 0
      %1182 = vmatmul.mubr.bf16.gmra.mrb[0].mxu0 %v788
      %v1183 = vpop.f32.mrb[0].mxu0
      %v1184 = vadd.f32 %v350, %v1183
      %v1185 = vpop.f32.mrb[0].mxu0
      %v1186 = vpop.f32.mrb[0].mxu0
      %v1187 = vadd.f32 %v350, %v1186
      %v1188 = vpop.f32.mrb[0].mxu0
      %1189 = vmatprep.mubr.bf16.mxu0 0
      %1190 = vmatmul.mubr.bf16.gmra.mrb[0].mxu0 %v791
      %v1191 = vpop.f32.mrb[0].mxu0
      %v1192 = vadd.f32 %v350, %v1191
      %v1193 = vpop.f32.mrb[0].mxu0
      %v1194 = vpop.f32.mrb[0].mxu0
      %v1195 = vadd.f32 %v350, %v1194
      %v1196 = vpop.f32.mrb[0].mxu0
      %1197 = vmatprep.mubr.bf16.mxu0 0
      %1198 = vmatmul.mubr.bf16.gmra.mrb[0].mxu0 %v794
      %v1199 = vpop.f32.mrb[0].mxu0
      %v1200 = vadd.f32 %v350, %v1199
      %v1201 = vpop.f32.mrb[0].mxu0
      %v1202 = vpop.f32.mrb[0].mxu0
      %v1203 = vadd.f32 %v350, %v1202
      %v1204 = vpop.f32.mrb[0].mxu0
      %1205 = vmatprep.mubr.bf16.mxu0 0
      %1206 = vmatmul.mubr.bf16.gmra.mrb[0].mxu0 %v797
      %v1207 = vpop.f32.mrb[0].mxu0
      %v1208 = vadd.f32 %v350, %v1207
      %v1209 = vpop.f32.mrb[0].mxu0
      %v1210 = vpop.f32.mrb[0].mxu0
      %v1211 = vadd.f32 %v350, %v1210
      %v1212 = vpop.f32.mrb[0].mxu0
      %1213 = vmatprep.mubr.bf16.mxu0 0
      %1214 = vmatmul.mubr.bf16.gmra.mrb[0].mxu0 %v800
      %v1215 = vpop.f32.mrb[0].mxu0
      %v1216 = vadd.f32 %v350, %v1215
      %v1217 = vpop.f32.mrb[0].mxu0
      %v1218 = vpop.f32.mrb[0].mxu0
      %v1219 = vadd.f32 %v350, %v1218
      %v1220 = vpop.f32.mrb[0].mxu0
      %1221 = vmatprep.mubr.bf16.mxu0 0
      %1222 = vmatmul.mubr.bf16.gmra.mrb[0].mxu0 %v803
      %v1223 = vpop.f32.mrb[0].mxu0
      %v1224 = vadd.f32 %v350, %v1223
      %v1225 = vpop.f32.mrb[0].mxu0
      %v1226 = vpop.f32.mrb[0].mxu0
      %v1227 = vadd.f32 %v350, %v1226
      %v1228 = vpop.f32.mrb[0].mxu0
      %1229 = vmatprep.mubr.bf16.mxu0 0
      %1230 = vmatmul.mubr.bf16.gmra.mrb[0].mxu0 %v806
      %v1231 = vpop.f32.mrb[0].mxu0
      %v1232 = vadd.f32 %v350, %v1231
      %v1233 = vpop.f32.mrb[0].mxu0
      %v1234 = vpop.f32.mrb[0].mxu0
      %v1235 = vadd.f32 %v350, %v1234
      %v1236 = vpop.f32.mrb[0].mxu0
      %1237 = vmatprep.mubr.bf16.mxu0 0
      %1238 = vmatmul.mubr.bf16.gmra.mrb[0].mxu0 %v809
      %v1239 = vpop.f32.mrb[0].mxu0
      %v1240 = vadd.f32 %v350, %v1239
      %v1241 = vpop.f32.mrb[0].mxu0
      %v1242 = vpop.f32.mrb[0].mxu0
      %v1243 = vadd.f32 %v350, %v1242
      %v1244 = vpop.f32.mrb[0].mxu0
      %1245 = vmatprep.mubr.bf16.mxu0 0
      %1246 = vmatmul.mubr.bf16.gmra.mrb[0].mxu0 %v812
      %v1247 = vpop.f32.mrb[0].mxu0
      %v1248 = vadd.f32 %v350, %v1247
      %v1249 = vpop.f32.mrb[0].mxu0
      %v1250 = vpop.f32.mrb[0].mxu0
      %v1251 = vadd.f32 %v350, %v1250
      %v1252 = vpop.f32.mrb[0].mxu0
      %1253 = vmatprep.mubr.bf16.mxu0 0
      %1254 = vmatmul.mubr.bf16.gmra.mrb[0].mxu0 %v815
      %v1255 = vpop.f32.mrb[0].mxu0
      %v1256 = vadd.f32 %v350, %v1255
      %v1257 = vpop.f32.mrb[0].mxu0
      %v1258 = vpop.f32.mrb[0].mxu0
      %v1259 = vadd.f32 %v350, %v1258
      %v1260 = vpop.f32.mrb[0].mxu0
      %1261 = vmatprep.mubr.bf16.mxu0 0
      %1262 = vmatmul.mubr.bf16.gmra.mrb[0].mxu0 %v818
      %v1263 = vpop.f32.mrb[0].mxu0
      %v1264 = vadd.f32 %v350, %v1263
      %v1265 = vpop.f32.mrb[0].mxu0
      %v1266 = vpop.f32.mrb[0].mxu0
      %v1267 = vadd.f32 %v350, %v1266
      %v1268 = vpop.f32.mrb[0].mxu0
      %1269 = vmatprep.mubr.bf16.mxu0 0
      %1270 = vmatmul.mubr.bf16.gmra.mrb[0].mxu0 %v821
      %v1271 = vpop.f32.mrb[0].mxu0
      %v1272 = vadd.f32 %v350, %v1271
      %v1273 = vpop.f32.mrb[0].mxu0
      %v1274 = vpop.f32.mrb[0].mxu0
      %v1275 = vadd.f32 %v350, %v1274
      %v1276 = vpop.f32.mrb[0].mxu0
      %1277 = vmatprep.mubr.bf16.mxu0 0
      %1278 = vmatmul.mubr.bf16.gmra.mrb[0].mxu0 %v824
      %v1279 = vpop.f32.mrb[0].mxu0
      %v1280 = vadd.f32 %v350, %v1279
      %v1281 = vpop.f32.mrb[0].mxu0
      %v1282 = vpop.f32.mrb[0].mxu0
      %v1283 = vadd.f32 %v350, %v1282
      %v1284 = vpop.f32.mrb[0].mxu0
      %1285 = vmatprep.mubr.bf16.mxu0 0
      %1286 = vmatmul.mubr.bf16.gmra.mrb[0].mxu0 %v827
      %v1287 = vpop.f32.mrb[0].mxu0
      %v1288 = vadd.f32 %v350, %v1287
      %v1289 = vpop.f32.mrb[0].mxu0
      %v1290 = vpop.f32.mrb[0].mxu0
      %v1291 = vadd.f32 %v350, %v1290
      %v1292 = vpop.f32.mrb[0].mxu0
      %1293 = vmatprep.mubr.bf16.mxu0 0
      %1294 = vmatmul.mubr.bf16.gmra.mrb[0].mxu0 %v830
      %v1295 = vpop.f32.mrb[0].mxu0
      %v1296 = vadd.f32 %v350, %v1295
      %v1297 = vpop.f32.mrb[0].mxu0
      %v1298 = vpop.f32.mrb[0].mxu0
      %v1299 = vadd.f32 %v350, %v1298
      %v1300 = vpop.f32.mrb[0].mxu0
      %1301 = vmatprep.mubr.bf16.mxu0 0
      %1302 = vmatmul.mubr.bf16.gmra.mrb[0].mxu0 %v833
      %v1303 = vpop.f32.mrb[0].mxu0
      %v1304 = vadd.f32 %v350, %v1303
      %v1305 = vpop.f32.mrb[0].mxu0
      %v1306 = vpop.f32.mrb[0].mxu0
      %v1307 = vadd.f32 %v350, %v1306
      %v1308 = vpop.f32.mrb[0].mxu0
      %1309 = vmatprep.mubr.bf16.mxu0 0
      %1310 = vmatmul.mubr.bf16.gmra.mrb[0].mxu0 %v836
      %v1311 = vpop.f32.mrb[0].mxu0
      %v1312 = vadd.f32 %v350, %v1311
      %v1313 = vpop.f32.mrb[0].mxu0
      %v1314 = vpop.f32.mrb[0].mxu0
      %v1315 = vadd.f32 %v350, %v1314
      %v1316 = vpop.f32.mrb[0].mxu0
      %1317 = vmatprep.mubr.bf16.mxu0 0
      %1318 = vmatmul.mubr.bf16.gmra.mrb[0].mxu0 %v839
      %v1319 = vpop.f32.mrb[0].mxu0
      %v1320 = vadd.f32 %v350, %v1319
      %v1321 = vpop.f32.mrb[0].mxu0
      %v1322 = vpop.f32.mrb[0].mxu0
      %v1323 = vadd.f32 %v350, %v1322
      %v1324 = vpop.f32.mrb[0].mxu0
      %1325 = vmatprep.mubr.bf16.mxu0 0
      %1326 = vmatmul.mubr.bf16.gmra.mrb[0].mxu0 %v842
      %v1327 = vpop.f32.mrb[0].mxu0
      %v1328 = vadd.f32 %v350, %v1327
      %v1329 = vpop.f32.mrb[0].mxu0
      %v1330 = vpop.f32.mrb[0].mxu0
      %v1331 = vadd.f32 %v350, %v1330
      %v1332 = vpop.f32.mrb[0].mxu0
      %1333 = vmatprep.mubr.bf16.mxu0 0
      %1334 = vmatmul.mubr.bf16.gmra.mrb[0].mxu0 %v845
      %v1335 = vpop.f32.mrb[0].mxu0
      %v1336 = vadd.f32 %v350, %v1335
      %v1337 = vpop.f32.mrb[0].mxu0
      %v1338 = vpop.f32.mrb[0].mxu0
      %v1339 = vadd.f32 %v350, %v1338
      %v1340 = vpop.f32.mrb[0].mxu0
      %1341 = vmatprep.mubr.bf16.mxu0 0
      %1342 = vmatmul.mubr.bf16.gmra.mrb[0].mxu0 %v848
      %v1343 = vpop.f32.mrb[0].mxu0
      %v1344 = vadd.f32 %v350, %v1343
      %v1345 = vpop.f32.mrb[0].mxu0
      %v1346 = vpop.f32.mrb[0].mxu0
      %v1347 = vadd.f32 %v350, %v1346
      %v1348 = vpop.f32.mrb[0].mxu0
      %1349 = vmatprep.mubr.bf16.mxu0 0
      %1350 = vmatmul.mubr.bf16.gmra.mrb[0].mxu0 %v851
      %v1351 = vpop.f32.mrb[0].mxu0
      %v1352 = vadd.f32 %v350, %v1351
      %v1353 = vpop.f32.mrb[0].mxu0
      %v1354 = vpop.f32.mrb[0].mxu0
      %v1355 = vadd.f32 %v350, %v1354
      %v1356 = vpop.f32.mrb[0].mxu0
      %1357 = vmatprep.mubr.bf16.mxu0 0
      %1358 = vmatmul.mubr.bf16.gmra.mrb[0].mxu0 %v854
      %v1359 = vpop.f32.mrb[0].mxu0
      %v1360 = vadd.f32 %v350, %v1359
      %v1361 = vpop.f32.mrb[0].mxu0
      %v1362 = vpop.f32.mrb[0].mxu0
      %v1363 = vadd.f32 %v350, %v1362
      %v1364 = vpop.f32.mrb[0].mxu0
      %1365 = vmatprep.mubr.bf16.mxu0 0
      %1366 = vmatmul.mubr.bf16.gmra.mrb[0].mxu0 %v857
      %v1367 = vpop.f32.mrb[0].mxu0
      %v1368 = vadd.f32 %v350, %v1367
      %v1369 = vpop.f32.mrb[0].mxu0
      %v1370 = vpop.f32.mrb[0].mxu0
      %v1371 = vadd.f32 %v350, %v1370
      %v1372 = vpop.f32.mrb[0].mxu0
      %1373 = vmatprep.mubr.bf16.mxu0 0
      %1374 = vmatmul.mubr.bf16.gmra.mrb[0].mxu0 %v860
      %v1375 = vpop.f32.mrb[0].mxu0
      %v1376 = vadd.f32 %v350, %v1375
      %v1377 = vpop.f32.mrb[0].mxu0
      %v1378 = vpop.f32.mrb[0].mxu0
      %v1379 = vadd.f32 %v350, %v1378
      %v1380 = vpop.f32.mrb[0].mxu0
      %1381 = vmatprep.mubr.bf16.mxu0 0
      %1382 = vmatmul.mubr.bf16.gmra.mrb[0].mxu0 %v863
      %v1383 = vpop.f32.mrb[0].mxu0
      %v1384 = vadd.f32 %v350, %v1383
      %v1385 = vpop.f32.mrb[0].mxu0
      %v1386 = vpop.f32.mrb[0].mxu0
      %v1387 = vadd.f32 %v350, %v1386
      %v1388 = vpop.f32.mrb[0].mxu0
      %1389 = vmatprep.mubr.bf16.mxu0 0
      %1390 = vmatmul.mubr.bf16.gmra.mrb[0].mxu0 %v866
      %v1391 = vpop.f32.mrb[0].mxu0
      %v1392 = vadd.f32 %v350, %v1391
      %v1393 = vpop.f32.mrb[0].mxu0
      %v1394 = vpop.f32.mrb[0].mxu0
      %v1395 = vadd.f32 %v350, %v1394
      %v1396 = vpop.f32.mrb[0].mxu0
      %1397 = vmatprep.mubr.bf16.mxu0 0
      %1398 = vmatmul.mubr.bf16.gmra.mrb[0].mxu0 %v869
      %v1399 = vpop.f32.mrb[0].mxu0
      %v1400 = vadd.f32 %v350, %v1399
      %v1401 = vpop.f32.mrb[0].mxu0
      %v1402 = vpop.f32.mrb[0].mxu0
      %v1403 = vadd.f32 %v350, %v1402
      %v1404 = vpop.f32.mrb[0].mxu0
      %1405 = vmatprep.mubr.bf16.mxu0 0
      %1406 = vmatmul.mubr.bf16.gmra.mrb[0].mxu0 %v872
      %v1407 = vpop.f32.mrb[0].mxu0
      %v1408 = vadd.f32 %v350, %v1407
      %v1409 = vpop.f32.mrb[0].mxu0
      %v1410 = vpop.f32.mrb[0].mxu0
      %v1411 = vadd.f32 %v350, %v1410
      %v1412 = vpop.f32.mrb[0].mxu0
      %1413 = vmatprep.mubr.bf16.mxu0 0
      %1414 = vmatmul.mubr.bf16.gmra.mrb[0].mxu0 %v875
      %v1415 = vpop.f32.mrb[0].mxu0
      %v1416 = vadd.f32 %v350, %v1415
      %v1417 = vpop.f32.mrb[0].mxu0
      %v1418 = vpop.f32.mrb[0].mxu0
      %v1419 = vadd.f32 %v350, %v1418
      %v1420 = vpop.f32.mrb[0].mxu0
      %1421 = vdwg.mxu0
      %v1422 = vmax.f32 %v912, 0.0
      %v1423 = vmax.f32 %v915, 0.0
      %v1424 = vmax.f32 %v920, 0.0
      %v1425 = vmax.f32 %v923, 0.0
      %v1426 = vmax.f32 %v928, 0.0
      %v1427 = vmax.f32 %v931, 0.0
      %v1428 = vmax.f32 %v936, 0.0
      %v1429 = vmax.f32 %v939, 0.0
      %v1430 = vmax.f32 %v944, 0.0
      %v1431 = vmax.f32 %v947, 0.0
      %v1432 = vmax.f32 %v952, 0.0
      %v1433 = vmax.f32 %v955, 0.0
      %v1434 = vmax.f32 %v960, 0.0
      %v1435 = vmax.f32 %v963, 0.0
      %v1436 = vmax.f32 %v968, 0.0
      %v1437 = vmax.f32 %v971, 0.0
      %v1438 = vmax.f32 %v976, 0.0
      %v1439 = vmax.f32 %v979, 0.0
      %v1440 = vmax.f32 %v984, 0.0
      %v1441 = vmax.f32 %v987, 0.0
      %v1442 = vmax.f32 %v992, 0.0
      %v1443 = vmax.f32 %v995, 0.0
      %v1444 = vmax.f32 %v1000, 0.0
      %v1445 = vmax.f32 %v1003, 0.0
      %v1446 = vmax.f32 %v1008, 0.0
      %v1447 = vmax.f32 %v1011, 0.0
      %v1448 = vmax.f32 %v1016, 0.0
      %v1449 = vmax.f32 %v1019, 0.0
      %v1450 = vmax.f32 %v1024, 0.0
      %v1451 = vmax.f32 %v1027, 0.0
      %v1452 = vmax.f32 %v1032, 0.0
      %v1453 = vmax.f32 %v1035, 0.0
      %v1454 = vmax.f32 %v1040, 0.0
      %v1455 = vmax.f32 %v1043, 0.0
      %v1456 = vmax.f32 %v1048, 0.0
      %v1457 = vmax.f32 %v1051, 0.0
      %v1458 = vmax.f32 %v1056, 0.0
      %v1459 = vmax.f32 %v1059, 0.0
      %v1460 = vmax.f32 %v1064, 0.0
      %v1461 = vmax.f32 %v1067, 0.0
      %v1462 = vmax.f32 %v1072, 0.0
      %v1463 = vmax.f32 %v1075, 0.0
      %v1464 = vmax.f32 %v1080, 0.0
      %v1465 = vmax.f32 %v1083, 0.0
      %v1466 = vmax.f32 %v1088, 0.0
      %v1467 = vmax.f32 %v1091, 0.0
      %v1468 = vmax.f32 %v1096, 0.0
      %v1469 = vmax.f32 %v1099, 0.0
      %v1470 = vmax.f32 %v1104, 0.0
      %v1471 = vmax.f32 %v1107, 0.0
      %v1472 = vmax.f32 %v1112, 0.0
      %v1473 = vmax.f32 %v1115, 0.0
      %v1474 = vmax.f32 %v1120, 0.0
      %v1475 = vmax.f32 %v1123, 0.0
      %v1476 = vmax.f32 %v1128, 0.0
      %v1477 = vmax.f32 %v1131, 0.0
      %v1478 = vmax.f32 %v1136, 0.0
      %v1479 = vmax.f32 %v1139, 0.0
      %v1480 = vmax.f32 %v1144, 0.0
      %v1481 = vmax.f32 %v1147, 0.0
      %v1482 = vmax.f32 %v1152, 0.0
      %v1483 = vmax.f32 %v1155, 0.0
      %v1484 = vmax.f32 %v1160, 0.0
      %v1485 = vmax.f32 %v1163, 0.0
      %v1486 = vmax.f32 %v1168, 0.0
      %v1487 = vmax.f32 %v1171, 0.0
      %v1488 = vmax.f32 %v1176, 0.0
      %v1489 = vmax.f32 %v1179, 0.0
      %v1490 = vmax.f32 %v1184, 0.0
      %v1491 = vmax.f32 %v1187, 0.0
      %v1492 = vmax.f32 %v1192, 0.0
      %v1493 = vmax.f32 %v1195, 0.0
      %v1494 = vmax.f32 %v1200, 0.0
      %v1495 = vmax.f32 %v1203, 0.0
      %v1496 = vmax.f32 %v1208, 0.0
      %v1497 = vmax.f32 %v1211, 0.0
      %v1498 = vmax.f32 %v1216, 0.0
      %v1499 = vmax.f32 %v1219, 0.0
      %v1500 = vmax.f32 %v1224, 0.0
      %v1501 = vmax.f32 %v1227, 0.0
      %v1502 = vmax.f32 %v1232, 0.0
      %v1503 = vmax.f32 %v1235, 0.0
      %v1504 = vmax.f32 %v1240, 0.0
      %v1505 = vmax.f32 %v1243, 0.0
      %v1506 = vmax.f32 %v1248, 0.0
      %v1507 = vmax.f32 %v1251, 0.0
      %v1508 = vmax.f32 %v1256, 0.0
      %v1509 = vmax.f32 %v1259, 0.0
      %v1510 = vmax.f32 %v1264, 0.0
      %v1511 = vmax.f32 %v1267, 0.0
      %v1512 = vmax.f32 %v1272, 0.0
      %v1513 = vmax.f32 %v1275, 0.0
      %v1514 = vmax.f32 %v1280, 0.0
      %v1515 = vmax.f32 %v1283, 0.0
      %v1516 = vmax.f32 %v1288, 0.0
      %v1517 = vmax.f32 %v1291, 0.0
      %v1518 = vmax.f32 %v1296, 0.0
      %v1519 = vmax.f32 %v1299, 0.0
      %v1520 = vmax.f32 %v1304, 0.0
      %v1521 = vmax.f32 %v1307, 0.0
      %v1522 = vmax.f32 %v1312, 0.0
      %v1523 = vmax.f32 %v1315, 0.0
      %v1524 = vmax.f32 %v1320, 0.0
      %v1525 = vmax.f32 %v1323, 0.0
      %v1526 = vmax.f32 %v1328, 0.0
      %v1527 = vmax.f32 %v1331, 0.0
      %v1528 = vmax.f32 %v1336, 0.0
      %v1529 = vmax.f32 %v1339, 0.0
      %v1530 = vmax.f32 %v1344, 0.0
      %v1531 = vmax.f32 %v1347, 0.0
      %v1532 = vmax.f32 %v1352, 0.0
      %v1533 = vmax.f32 %v1355, 0.0
      %v1534 = vmax.f32 %v1360, 0.0
      %v1535 = vmax.f32 %v1363, 0.0
      %v1536 = vmax.f32 %v1368, 0.0
      %v1537 = vmax.f32 %v1371, 0.0
      %v1538 = vmax.f32 %v1376, 0.0
      %v1539 = vmax.f32 %v1379, 0.0
      %v1540 = vmax.f32 %v1384, 0.0
      %v1541 = vmax.f32 %v1387, 0.0
      %v1542 = vmax.f32 %v1392, 0.0
      %v1543 = vmax.f32 %v1395, 0.0
      %v1544 = vmax.f32 %v1400, 0.0
      %v1545 = vmax.f32 %v1403, 0.0
      %v1546 = vmax.f32 %v1408, 0.0
      %v1547 = vmax.f32 %v1411, 0.0
      %v1548 = vmax.f32 %v1416, 0.0
      %v1549 = vmax.f32 %v1419, 0.0
      %v1550 = vmax.f32 %v1422, %v1426
      %v1551 = vmax.f32 %v1423, %v1427
      %v1552 = vmax.f32 %v1424, %v1428
      %v1553 = vmax.f32 %v1425, %v1429
      %v1554 = vmax.f32 %v1430, %v1434
      %v1555 = vmax.f32 %v1431, %v1435
      %v1556 = vmax.f32 %v1432, %v1436
      %v1557 = vmax.f32 %v1433, %v1437
      %v1558 = vmax.f32 %v1438, %v1442
      %v1559 = vmax.f32 %v1439, %v1443
      %v1560 = vmax.f32 %v1440, %v1444
      %v1561 = vmax.f32 %v1441, %v1445
      %v1562 = vmax.f32 %v1446, %v1450
      %v1563 = vmax.f32 %v1447, %v1451
      %v1564 = vmax.f32 %v1448, %v1452
      %v1565 = vmax.f32 %v1449, %v1453
      %v1566 = vmax.f32 %v1454, %v1458
      %v1567 = vmax.f32 %v1455, %v1459
      %v1568 = vmax.f32 %v1456, %v1460
      %v1569 = vmax.f32 %v1457, %v1461
      %v1570 = vmax.f32 %v1462, %v1466
      %v1571 = vmax.f32 %v1463, %v1467
      %v1572 = vmax.f32 %v1464, %v1468
      %v1573 = vmax.f32 %v1465, %v1469
      %v1574 = vmax.f32 %v1470, %v1474
      %v1575 = vmax.f32 %v1471, %v1475
      %v1576 = vmax.f32 %v1472, %v1476
      %v1577 = vmax.f32 %v1473, %v1477
      %v1578 = vmax.f32 %v1478, %v1482
      %v1579 = vmax.f32 %v1479, %v1483
      %v1580 = vmax.f32 %v1480, %v1484
      %v1581 = vmax.f32 %v1481, %v1485
      %v1582 = vmax.f32 %v1486, %v1490
      %v1583 = vmax.f32 %v1487, %v1491
      %v1584 = vmax.f32 %v1488, %v1492
      %v1585 = vmax.f32 %v1489, %v1493
      %v1586 = vmax.f32 %v1494, %v1498
      %v1587 = vmax.f32 %v1495, %v1499
      %v1588 = vmax.f32 %v1496, %v1500
      %v1589 = vmax.f32 %v1497, %v1501
      %v1590 = vmax.f32 %v1502, %v1506
      %v1591 = vmax.f32 %v1503, %v1507
      %v1592 = vmax.f32 %v1504, %v1508
      %v1593 = vmax.f32 %v1505, %v1509
      %v1594 = vmax.f32 %v1510, %v1514
      %v1595 = vmax.f32 %v1511, %v1515
      %v1596 = vmax.f32 %v1512, %v1516
      %v1597 = vmax.f32 %v1513, %v1517
      %v1598 = vmax.f32 %v1518, %v1522
      %v1599 = vmax.f32 %v1519, %v1523
      %v1600 = vmax.f32 %v1520, %v1524
      %v1601 = vmax.f32 %v1521, %v1525
      %v1602 = vmax.f32 %v1526, %v1530
      %v1603 = vmax.f32 %v1527, %v1531
      %v1604 = vmax.f32 %v1528, %v1532
      %v1605 = vmax.f32 %v1529, %v1533
      %v1606 = vmax.f32 %v1534, %v1538
      %v1607 = vmax.f32 %v1535, %v1539
      %v1608 = vmax.f32 %v1536, %v1540
      %v1609 = vmax.f32 %v1537, %v1541
      %v1610 = vmax.f32 %v1542, %v1546
      %v1611 = vmax.f32 %v1543, %v1547
      %v1612 = vmax.f32 %v1544, %v1548
      %v1613 = vmax.f32 %v1545, %v1549
      %1614 = vst [vmem:[#allocation2] sm:$0xff] %v1550
      %1615 = vst [vmem:[#allocation2 + $0x8] sm:$0xff] %v1551
      %1616 = vst [vmem:[#allocation2 + $0x10] sm:$0xff] %v1552
      %1617 = vst [vmem:[#allocation2 + $0x18] sm:$0xff] %v1553
      %1618 = vst [vmem:[#allocation2 + $0x20] sm:$0xff] %v1554
      %1619 = vst [vmem:[#allocation2 + $0x28] sm:$0xff] %v1555
      %1620 = vst [vmem:[#allocation2 + $0x30] sm:$0xff] %v1556
      %1621 = vst [vmem:[#allocation2 + $0x38] sm:$0xff] %v1557
      %1622 = vst [vmem:[#allocation2 + $0x40] sm:$0xff] %v1558
      %1623 = vst [vmem:[#allocation2 + $0x48] sm:$0xff] %v1559
      %1624 = vst [vmem:[#allocation2 + $0x50] sm:$0xff] %v1560
      %1625 = vst [vmem:[#allocation2 + $0x58] sm:$0xff] %v1561
      %1626 = vst [vmem:[#allocation2 + $0x60] sm:$0xff] %v1562
      %1627 = vst [vmem:[#allocation2 + $0x68] sm:$0xff] %v1563
      %1628 = vst [vmem:[#allocation2 + $0x70] sm:$0xff] %v1564
      %1629 = vst [vmem:[#allocation2 + $0x78] sm:$0xff] %v1565
      %1630 = vst [vmem:[#allocation2 + $0x80] sm:$0xff] %v1566
      %1631 = vst [vmem:[#allocation2 + $0x88] sm:$0xff] %v1567
      %1632 = vst [vmem:[#allocation2 + $0x90] sm:$0xff] %v1568
      %1633 = vst [vmem:[#allocation2 + $0x98] sm:$0xff] %v1569
      %1634 = vst [vmem:[#allocation2 + $0xa0] sm:$0xff] %v1570
      %1635 = vst [vmem:[#allocation2 + $0xa8] sm:$0xff] %v1571
      %1636 = vst [vmem:[#allocation2 + $0xb0] sm:$0xff] %v1572
      %1637 = vst [vmem:[#allocation2 + $0xb8] sm:$0xff] %v1573
      %1638 = vst [vmem:[#allocation2 + $0xc0] sm:$0xff] %v1574
      %1639 = vst [vmem:[#allocation2 + $0xc8] sm:$0xff] %v1575
      %1640 = vst [vmem:[#allocation2 + $0xd0] sm:$0xff] %v1576
      %1641 = vst [vmem:[#allocation2 + $0xd8] sm:$0xff] %v1577
      %1642 = vst [vmem:[#allocation2 + $0xe0] sm:$0xff] %v1578
      %1643 = vst [vmem:[#allocation2 + $0xe8] sm:$0xff] %v1579
      %1644 = vst [vmem:[#allocation2 + $0xf0] sm:$0xff] %v1580
      %1645 = vst [vmem:[#allocation2 + $0xf8] sm:$0xff] %v1581
      %1646 = vst [vmem:[#allocation2 + $0x100] sm:$0xff] %v1582
      %1647 = vst [vmem:[#allocation2 + $0x108] sm:$0xff] %v1583
      %1648 = vst [vmem:[#allocation2 + $0x110] sm:$0xff] %v1584
      %1649 = vst [vmem:[#allocation2 + $0x118] sm:$0xff] %v1585
      %1650 = vst [vmem:[#allocation2 + $0x120] sm:$0xff] %v1586
      %1651 = vst [vmem:[#allocation2 + $0x128] sm:$0xff] %v1587
      %1652 = vst [vmem:[#allocation2 + $0x130] sm:$0xff] %v1588
      %1653 = vst [vmem:[#allocation2 + $0x138] sm:$0xff] %v1589
      %1654 = vst [vmem:[#allocation2 + $0x140] sm:$0xff] %v1590
      %1655 = vst [vmem:[#allocation2 + $0x148] sm:$0xff] %v1591
      %1656 = vst [vmem:[#allocation2 + $0x150] sm:$0xff] %v1592
      %1657 = vst [vmem:[#allocation2 + $0x158] sm:$0xff] %v1593
      %1658 = vst [vmem:[#allocation2 + $0x160] sm:$0xff] %v1594
      %1659 = vst [vmem:[#allocation2 + $0x168] sm:$0xff] %v1595
      %1660 = vst [vmem:[#allocation2 + $0x170] sm:$0xff] %v1596
      %1661 = vst [vmem:[#allocation2 + $0x178] sm:$0xff] %v1597
      %1662 = vst [vmem:[#allocation2 + $0x180] sm:$0xff] %v1598
      %1663 = vst [vmem:[#allocation2 + $0x188] sm:$0xff] %v1599
      %1664 = vst [vmem:[#allocation2 + $0x190] sm:$0xff] %v1600
      %1665 = vst [vmem:[#allocation2 + $0x198] sm:$0xff] %v1601
      %1666 = vst [vmem:[#allocation2 + $0x1a0] sm:$0xff] %v1602
      %1667 = vst [vmem:[#allocation2 + $0x1a8] sm:$0xff] %v1603
      %1668 = vst [vmem:[#allocation2 + $0x1b0] sm:$0xff] %v1604
      %1669 = vst [vmem:[#allocation2 + $0x1b8] sm:$0xff] %v1605
      %1670 = vst [vmem:[#allocation2 + $0x1c0] sm:$0xff] %v1606
      %1671 = vst [vmem:[#allocation2 + $0x1c8] sm:$0xff] %v1607
      %1672 = vst [vmem:[#allocation2 + $0x1d0] sm:$0xff] %v1608
      %1673 = vst [vmem:[#allocation2 + $0x1d8] sm:$0xff] %v1609
      %1674 = vst [vmem:[#allocation2 + $0x1e0] sm:$0xff] %v1610
      %1675 = vst [vmem:[#allocation2 + $0x1e8] sm:$0xff] %v1611
      %1676 = vst [vmem:[#allocation2 + $0x1f0] sm:$0xff] %v1612
      %1677 = vst [vmem:[#allocation2 + $0x1f8] sm:$0xff] %v1613
      %v1678 = vld [vmem:[#allocation2] ss:$2 sm:$0xff]
      %s1679 = scalar_lea.vmem [#allocation2], 16
      %v1680 = vld [vmem:[%s1679] ss:$2 sm:$0xff]
      %s1681 = scalar_lea.vmem [#allocation2], 32
      %v1682 = vld [vmem:[%s1681] ss:$2 sm:$0xff]
      %s1683 = scalar_lea.vmem [#allocation2], 48
      %v1684 = vld [vmem:[%s1683] ss:$2 sm:$0xff]
      %s1685 = scalar_lea.vmem [#allocation2], 64
      %v1686 = vld [vmem:[%s1685] ss:$2 sm:$0xff]
      %s1687 = scalar_lea.vmem [#allocation2], 80
      %v1688 = vld [vmem:[%s1687] ss:$2 sm:$0xff]
      %s1689 = scalar_lea.vmem [#allocation2], 96
      %v1690 = vld [vmem:[%s1689] ss:$2 sm:$0xff]
      %s1691 = scalar_lea.vmem [#allocation2], 112
      %v1692 = vld [vmem:[%s1691] ss:$2 sm:$0xff]
      %s1693 = scalar_lea.vmem [#allocation2], 128
      %v1694 = vld [vmem:[%s1693] ss:$2 sm:$0xff]
      %s1695 = scalar_lea.vmem [#allocation2], 144
      %v1696 = vld [vmem:[%s1695] ss:$2 sm:$0xff]
      %s1697 = scalar_lea.vmem [#allocation2], 160
      %v1698 = vld [vmem:[%s1697] ss:$2 sm:$0xff]
      %s1699 = scalar_lea.vmem [#allocation2], 176
      %v1700 = vld [vmem:[%s1699] ss:$2 sm:$0xff]
      %s1701 = scalar_lea.vmem [#allocation2], 192
      %v1702 = vld [vmem:[%s1701] ss:$2 sm:$0xff]
      %s1703 = scalar_lea.vmem [#allocation2], 208
      %v1704 = vld [vmem:[%s1703] ss:$2 sm:$0xff]
      %s1705 = scalar_lea.vmem [#allocation2], 224
      %v1706 = vld [vmem:[%s1705] ss:$2 sm:$0xff]
      %s1707 = scalar_lea.vmem [#allocation2], 240
      %v1708 = vld [vmem:[%s1707] ss:$2 sm:$0xff]
      %s1709 = scalar_lea.vmem [#allocation2], 256
      %v1710 = vld [vmem:[%s1709] ss:$2 sm:$0xff]
      %s1711 = scalar_lea.vmem [#allocation2], 272
      %v1712 = vld [vmem:[%s1711] ss:$2 sm:$0xff]
      %s1713 = scalar_lea.vmem [#allocation2], 288
      %v1714 = vld [vmem:[%s1713] ss:$2 sm:$0xff]
      %s1715 = scalar_lea.vmem [#allocation2], 304
      %v1716 = vld [vmem:[%s1715] ss:$2 sm:$0xff]
      %s1717 = scalar_lea.vmem [#allocation2], 320
      %v1718 = vld [vmem:[%s1717] ss:$2 sm:$0xff]
      %s1719 = scalar_lea.vmem [#allocation2], 336
      %v1720 = vld [vmem:[%s1719] ss:$2 sm:$0xff]
      %s1721 = scalar_lea.vmem [#allocation2], 352
      %v1722 = vld [vmem:[%s1721] ss:$2 sm:$0xff]
      %s1723 = scalar_lea.vmem [#allocation2], 368
      %v1724 = vld [vmem:[%s1723] ss:$2 sm:$0xff]
      %s1725 = scalar_lea.vmem [#allocation2], 384
      %v1726 = vld [vmem:[%s1725] ss:$2 sm:$0xff]
      %s1727 = scalar_lea.vmem [#allocation2], 400
      %v1728 = vld [vmem:[%s1727] ss:$2 sm:$0xff]
      %s1729 = scalar_lea.vmem [#allocation2], 416
      %v1730 = vld [vmem:[%s1729] ss:$2 sm:$0xff]
      %s1731 = scalar_lea.vmem [#allocation2], 432
      %v1732 = vld [vmem:[%s1731] ss:$2 sm:$0xff]
      %s1733 = scalar_lea.vmem [#allocation2], 448
      %v1734 = vld [vmem:[%s1733] ss:$2 sm:$0xff]
      %s1735 = scalar_lea.vmem [#allocation2], 464
      %v1736 = vld [vmem:[%s1735] ss:$2 sm:$0xff]
      %s1737 = scalar_lea.vmem [#allocation2], 480
      %v1738 = vld [vmem:[%s1737] ss:$2 sm:$0xff]
      %s1739 = scalar_lea.vmem [#allocation2], 496
      %v1740 = vld [vmem:[%s1739] ss:$2 sm:$0xff]
      %s1741 = scalar_lea.vmem [#allocation2], 1
      %v1742 = vld [vmem:[%s1741] ss:$2 sm:$0xff]
      %s1743 = scalar_lea.vmem [#allocation2], 17
      %v1744 = vld [vmem:[%s1743] ss:$2 sm:$0xff]
      %s1745 = scalar_lea.vmem [#allocation2], 33
      %v1746 = vld [vmem:[%s1745] ss:$2 sm:$0xff]
      %s1747 = scalar_lea.vmem [#allocation2], 49
      %v1748 = vld [vmem:[%s1747] ss:$2 sm:$0xff]
      %s1749 = scalar_lea.vmem [#allocation2], 65
      %v1750 = vld [vmem:[%s1749] ss:$2 sm:$0xff]
      %s1751 = scalar_lea.vmem [#allocation2], 81
      %v1752 = vld [vmem:[%s1751] ss:$2 sm:$0xff]
      %s1753 = scalar_lea.vmem [#allocation2], 97
      %v1754 = vld [vmem:[%s1753] ss:$2 sm:$0xff]
      %s1755 = scalar_lea.vmem [#allocation2], 113
      %v1756 = vld [vmem:[%s1755] ss:$2 sm:$0xff]
      %s1757 = scalar_lea.vmem [#allocation2], 129
      %v1758 = vld [vmem:[%s1757] ss:$2 sm:$0xff]
      %s1759 = scalar_lea.vmem [#allocation2], 145
      %v1760 = vld [vmem:[%s1759] ss:$2 sm:$0xff]
      %s1761 = scalar_lea.vmem [#allocation2], 161
      %v1762 = vld [vmem:[%s1761] ss:$2 sm:$0xff]
      %s1763 = scalar_lea.vmem [#allocation2], 177
      %v1764 = vld [vmem:[%s1763] ss:$2 sm:$0xff]
      %s1765 = scalar_lea.vmem [#allocation2], 193
      %v1766 = vld [vmem:[%s1765] ss:$2 sm:$0xff]
      %s1767 = scalar_lea.vmem [#allocation2], 209
      %v1768 = vld [vmem:[%s1767] ss:$2 sm:$0xff]
      %s1769 = scalar_lea.vmem [#allocation2], 225
      %v1770 = vld [vmem:[%s1769] ss:$2 sm:$0xff]
      %s1771 = scalar_lea.vmem [#allocation2], 241
      %v1772 = vld [vmem:[%s1771] ss:$2 sm:$0xff]
      %s1773 = scalar_lea.vmem [#allocation2], 257
      %v1774 = vld [vmem:[%s1773] ss:$2 sm:$0xff]
      %s1775 = scalar_lea.vmem [#allocation2], 273
      %v1776 = vld [vmem:[%s1775] ss:$2 sm:$0xff]
      %s1777 = scalar_lea.vmem [#allocation2], 289
      %v1778 = vld [vmem:[%s1777] ss:$2 sm:$0xff]
      %s1779 = scalar_lea.vmem [#allocation2], 305
      %v1780 = vld [vmem:[%s1779] ss:$2 sm:$0xff]
      %s1781 = scalar_lea.vmem [#allocation2], 321
      %v1782 = vld [vmem:[%s1781] ss:$2 sm:$0xff]
      %s1783 = scalar_lea.vmem [#allocation2], 337
      %v1784 = vld [vmem:[%s1783] ss:$2 sm:$0xff]
      %s1785 = scalar_lea.vmem [#allocation2], 353
      %v1786 = vld [vmem:[%s1785] ss:$2 sm:$0xff]
      %s1787 = scalar_lea.vmem [#allocation2], 369
      %v1788 = vld [vmem:[%s1787] ss:$2 sm:$0xff]
      %s1789 = scalar_lea.vmem [#allocation2], 385
      %v1790 = vld [vmem:[%s1789] ss:$2 sm:$0xff]
      %s1791 = scalar_lea.vmem [#allocation2], 401
      %v1792 = vld [vmem:[%s1791] ss:$2 sm:$0xff]
      %s1793 = scalar_lea.vmem [#allocation2], 417
      %v1794 = vld [vmem:[%s1793] ss:$2 sm:$0xff]
      %s1795 = scalar_lea.vmem [#allocation2], 433
      %v1796 = vld [vmem:[%s1795] ss:$2 sm:$0xff]
      %s1797 = scalar_lea.vmem [#allocation2], 449
      %v1798 = vld [vmem:[%s1797] ss:$2 sm:$0xff]
      %s1799 = scalar_lea.vmem [#allocation2], 465
      %v1800 = vld [vmem:[%s1799] ss:$2 sm:$0xff]
      %s1801 = scalar_lea.vmem [#allocation2], 481
      %v1802 = vld [vmem:[%s1801] ss:$2 sm:$0xff]
      %s1803 = scalar_lea.vmem [#allocation2], 497
      %v1804 = vld [vmem:[%s1803] ss:$2 sm:$0xff]
      %v1805 = vmax.f32 %v1678, %v1742
      %v1806 = vmax.f32 %v1680, %v1744
      %v1807 = vmax.f32 %v1682, %v1746
      %v1808 = vmax.f32 %v1684, %v1748
      %v1809 = vmax.f32 %v1686, %v1750
      %v1810 = vmax.f32 %v1688, %v1752
      %v1811 = vmax.f32 %v1690, %v1754
      %v1812 = vmax.f32 %v1692, %v1756
      %v1813 = vmax.f32 %v1694, %v1758
      %v1814 = vmax.f32 %v1696, %v1760
      %v1815 = vmax.f32 %v1698, %v1762
      %v1816 = vmax.f32 %v1700, %v1764
      %v1817 = vmax.f32 %v1702, %v1766
      %v1818 = vmax.f32 %v1704, %v1768
      %v1819 = vmax.f32 %v1706, %v1770
      %v1820 = vmax.f32 %v1708, %v1772
      %v1821 = vmax.f32 %v1710, %v1774
      %v1822 = vmax.f32 %v1712, %v1776
      %v1823 = vmax.f32 %v1714, %v1778
      %v1824 = vmax.f32 %v1716, %v1780
      %v1825 = vmax.f32 %v1718, %v1782
      %v1826 = vmax.f32 %v1720, %v1784
      %v1827 = vmax.f32 %v1722, %v1786
      %v1828 = vmax.f32 %v1724, %v1788
      %v1829 = vmax.f32 %v1726, %v1790
      %v1830 = vmax.f32 %v1728, %v1792
      %v1831 = vmax.f32 %v1730, %v1794
      %v1832 = vmax.f32 %v1732, %v1796
      %v1833 = vmax.f32 %v1734, %v1798
      %v1834 = vmax.f32 %v1736, %v1800
      %v1835 = vmax.f32 %v1738, %v1802
      %v1836 = vmax.f32 %v1740, %v1804
      %v1837 = vpack.c.bf16 %v1806, %v1805
      %v1838 = vpack.c.bf16 %v1808, %v1807
      %v1839 = vpack.c.bf16 %v1810, %v1809
      %v1840 = vpack.c.bf16 %v1812, %v1811
      %v1841 = vpack.c.bf16 %v1814, %v1813
      %v1842 = vpack.c.bf16 %v1816, %v1815
      %v1843 = vpack.c.bf16 %v1818, %v1817
      %v1844 = vpack.c.bf16 %v1820, %v1819
      %v1845 = vpack.c.bf16 %v1822, %v1821
      %v1846 = vpack.c.bf16 %v1824, %v1823
      %v1847 = vpack.c.bf16 %v1826, %v1825
      %v1848 = vpack.c.bf16 %v1828, %v1827
      %v1849 = vpack.c.bf16 %v1830, %v1829
      %v1850 = vpack.c.bf16 %v1832, %v1831
      %v1851 = vpack.c.bf16 %v1834, %v1833
      %v1852 = vpack.c.bf16 %v1836, %v1835
      %v1869 = vunpack.c.l.b16 %v1837
      %v1870 = vunpack.c.h.b16 %v1837
      %v1871 = vunpack.c.l.b16 %v1838
      %v1872 = vunpack.c.h.b16 %v1838
      %v1873 = vunpack.c.l.b16 %v1839
      %v1874 = vunpack.c.h.b16 %v1839
      %v1875 = vunpack.c.l.b16 %v1840
      %v1876 = vunpack.c.h.b16 %v1840
      %v1877 = vunpack.c.l.b16 %v1841
      %v1878 = vunpack.c.h.b16 %v1841
      %v1879 = vunpack.c.l.b16 %v1842
      %v1880 = vunpack.c.h.b16 %v1842
      %v1881 = vunpack.c.l.b16 %v1843
      %v1882 = vunpack.c.h.b16 %v1843
      %v1883 = vunpack.c.l.b16 %v1844
      %v1884 = vunpack.c.h.b16 %v1844
      %v1885 = vunpack.c.l.b16 %v1845
      %v1886 = vunpack.c.h.b16 %v1845
      %v1887 = vunpack.c.l.b16 %v1846
      %v1888 = vunpack.c.h.b16 %v1846
      %v1889 = vunpack.c.l.b16 %v1847
      %v1890 = vunpack.c.h.b16 %v1847
      %v1891 = vunpack.c.l.b16 %v1848
      %v1892 = vunpack.c.h.b16 %v1848
      %v1893 = vunpack.c.l.b16 %v1849
      %v1894 = vunpack.c.h.b16 %v1849
      %v1895 = vunpack.c.l.b16 %v1850
      %v1896 = vunpack.c.h.b16 %v1850
      %v1897 = vunpack.c.l.b16 %v1851
      %v1898 = vunpack.c.h.b16 %v1851
      %v1899 = vunpack.c.l.b16 %v1852
      %v1900 = vunpack.c.h.b16 %v1852
      %v1901 = vpack.c.b16 %v1869, %v1869
      %v1902 = vpack.c.b16 %v1870, %v1870
      %v1903 = vpack.c.b16 %v1871, %v1871
      %v1904 = vpack.c.b16 %v1872, %v1872
      %v1905 = vpack.c.b16 %v1873, %v1873
      %v1906 = vpack.c.b16 %v1874, %v1874
      %v1907 = vpack.c.b16 %v1875, %v1875
      %v1908 = vpack.c.b16 %v1876, %v1876
      %v1909 = vpack.c.b16 %v1877, %v1877
      %v1910 = vpack.c.b16 %v1878, %v1878
      %v1911 = vpack.c.b16 %v1879, %v1879
      %v1912 = vpack.c.b16 %v1880, %v1880
      %v1913 = vpack.c.b16 %v1881, %v1881
      %v1914 = vpack.c.b16 %v1882, %v1882
      %v1915 = vpack.c.b16 %v1883, %v1883
      %v1916 = vpack.c.b16 %v1884, %v1884
      %v1917 = vpack.c.b16 %v1885, %v1885
      %v1918 = vpack.c.b16 %v1886, %v1886
      %v1919 = vpack.c.b16 %v1887, %v1887
      %v1920 = vpack.c.b16 %v1888, %v1888
      %v1921 = vpack.c.b16 %v1889, %v1889
      %v1922 = vpack.c.b16 %v1890, %v1890
      %v1923 = vpack.c.b16 %v1891, %v1891
      %v1924 = vpack.c.b16 %v1892, %v1892
      %v1925 = vpack.c.b16 %v1893, %v1893
      %v1926 = vpack.c.b16 %v1894, %v1894
      %v1927 = vpack.c.b16 %v1895, %v1895
      %v1928 = vpack.c.b16 %v1896, %v1896
      %v1929 = vpack.c.b16 %v1897, %v1897
      %v1930 = vpack.c.b16 %v1898, %v1898
      %v1931 = vpack.c.b16 %v1899, %v1899
      %v1932 = vpack.c.b16 %v1900, %v1900
      %1965 = vst [vmem:[%s210] sm:$0xf] %v1901
      %1966 = vst [vmem:[%s210 + $0x4] sm:$0xf] %v1902
      %1967 = vst [vmem:[%s210 + $0x8] sm:$0xf] %v1903
      %1968 = vst [vmem:[%s210 + $0xc] sm:$0xf] %v1904
      %1969 = vst [vmem:[%s210 + $0x10] sm:$0xf] %v1905
      %1970 = vst [vmem:[%s210 + $0x14] sm:$0xf] %v1906
      %1971 = vst [vmem:[%s210 + $0x18] sm:$0xf] %v1907
      %1972 = vst [vmem:[%s210 + $0x1c] sm:$0xf] %v1908
      %1973 = vst [vmem:[%s210 + $0x20] sm:$0xf] %v1909
      %1974 = vst [vmem:[%s210 + $0x24] sm:$0xf] %v1910
      %1975 = vst [vmem:[%s210 + $0x28] sm:$0xf] %v1911
      %1976 = vst [vmem:[%s210 + $0x2c] sm:$0xf] %v1912
      %1977 = vst [vmem:[%s210 + $0x30] sm:$0xf] %v1913
      %1978 = vst [vmem:[%s210 + $0x34] sm:$0xf] %v1914
      %1979 = vst [vmem:[%s210 + $0x38] sm:$0xf] %v1915
      %1980 = vst [vmem:[%s210 + $0x3c] sm:$0xf] %v1916
      %1981 = vst [vmem:[%s210 + $0x40] sm:$0xf] %v1917
      %1982 = vst [vmem:[%s210 + $0x44] sm:$0xf] %v1918
      %1983 = vst [vmem:[%s210 + $0x48] sm:$0xf] %v1919
      %1984 = vst [vmem:[%s210 + $0x4c] sm:$0xf] %v1920
      %1985 = vst [vmem:[%s210 + $0x50] sm:$0xf] %v1921
      %1986 = vst [vmem:[%s210 + $0x54] sm:$0xf] %v1922
      %1987 = vst [vmem:[%s210 + $0x58] sm:$0xf] %v1923
      %1988 = vst [vmem:[%s210 + $0x5c] sm:$0xf] %v1924
      %1989 = vst [vmem:[%s210 + $0x60] sm:$0xf] %v1925
      %1990 = vst [vmem:[%s210 + $0x64] sm:$0xf] %v1926
      %1991 = vst [vmem:[%s210 + $0x68] sm:$0xf] %v1927
      %1992 = vst [vmem:[%s210 + $0x6c] sm:$0xf] %v1928
      %1993 = vst [vmem:[%s210 + $0x70] sm:$0xf] %v1929
      %1994 = vst [vmem:[%s210 + $0x74] sm:$0xf] %v1930
      %1995 = vst [vmem:[%s210 + $0x78] sm:$0xf] %v1931
      %1996 = vst [vmem:[%s210 + $0x7c] sm:$0xf] %v1932
      %s1997 = smul.u32 16, %s19
      %p1998 = scmp.lt.s32.totalorder %s18, 1
      %s1999 = scalar_select %p1998, %s18, 1
      %p2000 = scmp.lt.s32.totalorder %s1997, 15
      %s2001 = scalar_select %p2000, %s1997, 15
      %s2002 = smul.addr %s2001, 2
      %s2003 = smul.addr %s1999, 32
      %s2004 = sadd.s32 %s2002, %s2003
      %s2005 = smul.addr %s2004, 4
      %s2006 = scalar_lea.vmem %s3, %s2005
      // Predicated region
      $region33: #{_lambda_.3} parent=31 // pred_check
        %p2007 = pneg %p116
      $region34: #{_lambda_.3} parent=31 // pred_check_branch
        %2009 = sbr.rel (%p2007) target = $region36
      $region35: #{_lambda_.3} parent=31 // pred_region
        %s2010 = smul.u32 16, %s19
      $region36: #{_lambda_.3} parent=31 // pred_fallthru
        _
    $region32: #{_lambda_.3} parent=5 // pred_fallthru
      _
    %p2011 = scmp.le.s32.totalorder 2, %s9
    // Predicated region
    $region37: #{_lambda_.3} parent=5 // pred_check
      %p2012 = pneg %p2011
    $region38: #{_lambda_.3} parent=5 // pred_check_branch
      %2014 = sbr.rel (%p2012) target = $region40
    $region39: #{_lambda_.3} parent=5 // pred_region
      %s2015 = ssub.s32 %s9, 2
      // Predicated region
      $region41: #{_lambda_.3} parent=39 // pred_check
        %p2016 = pneg %p122
      $region42: #{_lambda_.3} parent=39 // pred_check_branch
        %2018 = sbr.rel (%p2016) target = $region44
      $region43: #{_lambda_.3} parent=39 // pred_region
        %s2019 = smul.u32 16, %s21
        %p2020 = scmp.lt.s32.totalorder %s20, 1
        %s2021 = scalar_select %p2020, %s20, 1
        %p2022 = scmp.lt.s32.totalorder %s2019, 15
        %s2023 = scalar_select %p2022, %s2019, 15
        %s2024 = smul.addr %s2023, 2
        %s2025 = smul.addr %s2021, 32
        %s2026 = sadd.s32 %s2024, %s2025
        %s2027 = smul.addr %s2026, 4
        %s2028 = scalar_lea.vmem %s3, %s2027
      $region44: #{_lambda_.3} parent=39 // pred_fallthru
        _
    $region40: #{_lambda_.3} parent=5 // pred_fallthru
      _
  $region6: #{_lambda_.3} parent=0 // loop_footer
    %s13 = sadd.s32 1, %s9
  $region7: #{_lambda_.3} parent=0 // loop_footer_branch
    %8 = sbr.rel target = $region3
  $region8: #{_lambda_.3} parent=0 // loop_exit
    _

// kernel: _lambda_.5
$region0: #{_lambda_.5}
  #allocation0 [shape = 'u32[]', space=smem, size = 0x4, offset = 0x4, fixed_abs, tag = 'smem constant byte address 0x4 - core index']
  #allocation1 [shape = 'u32[144,128]{1,0:T(1,128)}', space=vmem, size = 0x12000, scoped, tag = 'internal scratch']
  %s0 = inlined_call_operand.vmem [shape: bf16[8,1024], index: 0, kind: input, shape index: {}]
  %s1 = inlined_call_operand.vmem [shape: bf16[1024,128], index: 1, kind: input, shape index: {}]
  %s2 = inlined_call_operand.vmem [shape: f32[1,128], index: 2, kind: input, shape index: {}]
  %s3 = inlined_call_operand.vmem [shape: f32[8,128], index: 3, kind: output, shape index: {}]
  %s4 = sld [smem:[#allocation0]]
  $region22: #{_lambda_.5} parent=0
    _
  %s6 = ssub.s32 1, %s4
  %s7 = scalar_select 0, %s6, %s4
  // Predicated region
  $region2: #{_lambda_.5} parent=0 // pred_check
    _
  $region3: #{_lambda_.5} parent=0 // pred_check_branch
    %9 = sbr.rel (0) target = $region5
  $region4: #{_lambda_.5} parent=0 // pred_region
    _
  $region5: #{_lambda_.5} parent=0 // pred_fallthru
    _
  // Predicated region
  $region6: #{_lambda_.5} parent=0 // pred_check
    _
  $region7: #{_lambda_.5} parent=0 // pred_check_branch
    %11 = sbr.rel (0) target = $region9
  $region8: #{_lambda_.5} parent=0 // pred_region
    _
  $region9: #{_lambda_.5} parent=0 // pred_fallthru
    _
  // Predicated region
  $region10: #{_lambda_.5} parent=0 // pred_check
    _
  $region11: #{_lambda_.5} parent=0 // pred_check_branch
    %13 = sbr.rel (0) target = $region13
  $region12: #{_lambda_.5} parent=0 // pred_region
    _
  $region13: #{_lambda_.5} parent=0 // pred_fallthru
    _
  %v15 = vld [vmem:[%s0] sm:$0xff]
  %v16 = vld [vmem:[%s0 + $0x8] sm:$0xff]
  %v17 = vld [vmem:[%s0 + $0x10] sm:$0xff]
  %v18 = vld [vmem:[%s0 + $0x18] sm:$0xff]
  %v19 = vld [vmem:[%s1] sm:$0xf]
  %v20 = vld [vmem:[%s1 + $0x4] sm:$0xf]
  %v21 = vld [vmem:[%s1 + $0x8] sm:$0xf]
  %v22 = vld [vmem:[%s1 + $0xc] sm:$0xf]
  %v23 = vld [vmem:[%s1 + $0x10] sm:$0xf]
  %v24 = vld [vmem:[%s1 + $0x14] sm:$0xf]
  %v25 = vld [vmem:[%s1 + $0x18] sm:$0xf]
  %v26 = vld [vmem:[%s1 + $0x1c] sm:$0xf]
  %v27 = vld [vmem:[%s1 + $0x20] sm:$0xf]
  %v28 = vld [vmem:[%s1 + $0x24] sm:$0xf]
  %v29 = vld [vmem:[%s1 + $0x28] sm:$0xf]
  %v30 = vld [vmem:[%s1 + $0x2c] sm:$0xf]
  %v31 = vld [vmem:[%s1 + $0x30] sm:$0xf]
  %v32 = vld [vmem:[%s1 + $0x34] sm:$0xf]
  %v33 = vld [vmem:[%s1 + $0x38] sm:$0xf]
  %v34 = vld [vmem:[%s1 + $0x3c] sm:$0xf]
  %v35 = vld [vmem:[%s1 + $0x40] sm:$0xf]
  %v36 = vld [vmem:[%s1 + $0x44] sm:$0xf]
  %v37 = vld [vmem:[%s1 + $0x48] sm:$0xf]
  %v38 = vld [vmem:[%s1 + $0x4c] sm:$0xf]
  %v39 = vld [vmem:[%s1 + $0x50] sm:$0xf]
  %v40 = vld [vmem:[%s1 + $0x54] sm:$0xf]
  %v41 = vld [vmem:[%s1 + $0x58] sm:$0xf]
  %v42 = vld [vmem:[%s1 + $0x5c] sm:$0xf]
  %v43 = vld [vmem:[%s1 + $0x60] sm:$0xf]
  %v44 = vld [vmem:[%s1 + $0x64] sm:$0xf]
  %v45 = vld [vmem:[%s1 + $0x68] sm:$0xf]
  %v46 = vld [vmem:[%s1 + $0x6c] sm:$0xf]
  %v47 = vld [vmem:[%s1 + $0x70] sm:$0xf]
  %v48 = vld [vmem:[%s1 + $0x74] sm:$0xf]
  %v49 = vld [vmem:[%s1 + $0x78] sm:$0xf]
  %v50 = vld [vmem:[%s1 + $0x7c] sm:$0xf]
  %v51 = vld [vmem:[%s1 + $0x80] sm:$0xf]
  %v52 = vld [vmem:[%s1 + $0x84] sm:$0xf]
  %v53 = vld [vmem:[%s1 + $0x88] sm:$0xf]
  %v54 = vld [vmem:[%s1 + $0x8c] sm:$0xf]
  %v55 = vld [vmem:[%s1 + $0x90] sm:$0xf]
  %v56 = vld [vmem:[%s1 + $0x94] sm:$0xf]
  %v57 = vld [vmem:[%s1 + $0x98] sm:$0xf]
  %v58 = vld [vmem:[%s1 + $0x9c] sm:$0xf]
  %v59 = vld [vmem:[%s1 + $0xa0] sm:$0xf]
  %v60 = vld [vmem:[%s1 + $0xa4] sm:$0xf]
  %v61 = vld [vmem:[%s1 + $0xa8] sm:$0xf]
  %v62 = vld [vmem:[%s1 + $0xac] sm:$0xf]
  %v63 = vld [vmem:[%s1 + $0xb0] sm:$0xf]
  %v64 = vld [vmem:[%s1 + $0xb4] sm:$0xf]
  %v65 = vld [vmem:[%s1 + $0xb8] sm:$0xf]
  %v66 = vld [vmem:[%s1 + $0xbc] sm:$0xf]
  %v67 = vld [vmem:[%s1 + $0xc0] sm:$0xf]
  %v68 = vld [vmem:[%s1 + $0xc4] sm:$0xf]
  %v69 = vld [vmem:[%s1 + $0xc8] sm:$0xf]
  %v70 = vld [vmem:[%s1 + $0xcc] sm:$0xf]
  %v71 = vld [vmem:[%s1 + $0xd0] sm:$0xf]
  %v72 = vld [vmem:[%s1 + $0xd4] sm:$0xf]
  %v73 = vld [vmem:[%s1 + $0xd8] sm:$0xf]
  %v74 = vld [vmem:[%s1 + $0xdc] sm:$0xf]
  %v75 = vld [vmem:[%s1 + $0xe0] sm:$0xf]
  %v76 = vld [vmem:[%s1 + $0xe4] sm:$0xf]
  %v77 = vld [vmem:[%s1 + $0xe8] sm:$0xf]
  %v78 = vld [vmem:[%s1 + $0xec] sm:$0xf]
  %v79 = vld [vmem:[%s1 + $0xf0] sm:$0xf]
  %v80 = vld [vmem:[%s1 + $0xf4] sm:$0xf]
  %v81 = vld [vmem:[%s1 + $0xf8] sm:$0xf]
  %v82 = vld [vmem:[%s1 + $0xfc] sm:$0xf]
  %v83 = vld [vmem:[%s1 + $0x100] sm:$0xf]
  %v84 = vld [vmem:[%s1 + $0x104] sm:$0xf]
  %v85 = vld [vmem:[%s1 + $0x108] sm:$0xf]
  %v86 = vld [vmem:[%s1 + $0x10c] sm:$0xf]
  %v87 = vld [vmem:[%s1 + $0x110] sm:$0xf]
  %v88 = vld [vmem:[%s1 + $0x114] sm:$0xf]
  %v89 = vld [vmem:[%s1 + $0x118] sm:$0xf]
  %v90 = vld [vmem:[%s1 + $0x11c] sm:$0xf]
  %v91 = vld [vmem:[%s1 + $0x120] sm:$0xf]
  %v92 = vld [vmem:[%s1 + $0x124] sm:$0xf]
  %v93 = vld [vmem:[%s1 + $0x128] sm:$0xf]
  %v94 = vld [vmem:[%s1 + $0x12c] sm:$0xf]
  %v95 = vld [vmem:[%s1 + $0x130] sm:$0xf]
  %v96 = vld [vmem:[%s1 + $0x134] sm:$0xf]
  %v97 = vld [vmem:[%s1 + $0x138] sm:$0xf]
  %v98 = vld [vmem:[%s1 + $0x13c] sm:$0xf]
  %v99 = vld [vmem:[%s1 + $0x140] sm:$0xf]
  %v100 = vld [vmem:[%s1 + $0x144] sm:$0xf]
  %v101 = vld [vmem:[%s1 + $0x148] sm:$0xf]
  %v102 = vld [vmem:[%s1 + $0x14c] sm:$0xf]
  %v103 = vld [vmem:[%s1 + $0x150] sm:$0xf]
  %v104 = vld [vmem:[%s1 + $0x154] sm:$0xf]
  %v105 = vld [vmem:[%s1 + $0x158] sm:$0xf]
  %v106 = vld [vmem:[%s1 + $0x15c] sm:$0xf]
  %v107 = vld [vmem:[%s1 + $0x160] sm:$0xf]
  %v108 = vld [vmem:[%s1 + $0x164] sm:$0xf]
  %v109 = vld [vmem:[%s1 + $0x168] sm:$0xf]
  %v110 = vld [vmem:[%s1 + $0x16c] sm:$0xf]
  %v111 = vld [vmem:[%s1 + $0x170] sm:$0xf]
  %v112 = vld [vmem:[%s1 + $0x174] sm:$0xf]
  %v113 = vld [vmem:[%s1 + $0x178] sm:$0xf]
  %v114 = vld [vmem:[%s1 + $0x17c] sm:$0xf]
  %v115 = vld [vmem:[%s1 + $0x180] sm:$0xf]
  %v116 = vld [vmem:[%s1 + $0x184] sm:$0xf]
  %v117 = vld [vmem:[%s1 + $0x188] sm:$0xf]
  %v118 = vld [vmem:[%s1 + $0x18c] sm:$0xf]
  %v119 = vld [vmem:[%s1 + $0x190] sm:$0xf]
  %v120 = vld [vmem:[%s1 + $0x194] sm:$0xf]
  %v121 = vld [vmem:[%s1 + $0x198] sm:$0xf]
  %v122 = vld [vmem:[%s1 + $0x19c] sm:$0xf]
  %v123 = vld [vmem:[%s1 + $0x1a0] sm:$0xf]
  %v124 = vld [vmem:[%s1 + $0x1a4] sm:$0xf]
  %v125 = vld [vmem:[%s1 + $0x1a8] sm:$0xf]
  %v126 = vld [vmem:[%s1 + $0x1ac] sm:$0xf]
  %v127 = vld [vmem:[%s1 + $0x1b0] sm:$0xf]
  %v128 = vld [vmem:[%s1 + $0x1b4] sm:$0xf]
  %v129 = vld [vmem:[%s1 + $0x1b8] sm:$0xf]
  %v130 = vld [vmem:[%s1 + $0x1bc] sm:$0xf]
  %v131 = vld [vmem:[%s1 + $0x1c0] sm:$0xf]
  %v132 = vld [vmem:[%s1 + $0x1c4] sm:$0xf]
  %v133 = vld [vmem:[%s1 + $0x1c8] sm:$0xf]
  %v134 = vld [vmem:[%s1 + $0x1cc] sm:$0xf]
  %v135 = vld [vmem:[%s1 + $0x1d0] sm:$0xf]
  %v136 = vld [vmem:[%s1 + $0x1d4] sm:$0xf]
  %v137 = vld [vmem:[%s1 + $0x1d8] sm:$0xf]
  %v138 = vld [vmem:[%s1 + $0x1dc] sm:$0xf]
  %v139 = vld [vmem:[%s1 + $0x1e0] sm:$0xf]
  %v140 = vld [vmem:[%s1 + $0x1e4] sm:$0xf]
  %v141 = vld [vmem:[%s1 + $0x1e8] sm:$0xf]
  %v142 = vld [vmem:[%s1 + $0x1ec] sm:$0xf]
  %v143 = vld [vmem:[%s1 + $0x1f0] sm:$0xf]
  %v144 = vld [vmem:[%s1 + $0x1f4] sm:$0xf]
  %v145 = vld [vmem:[%s1 + $0x1f8] sm:$0xf]
  %v146 = vld [vmem:[%s1 + $0x1fc] sm:$0xf]
  %v147 = vld [vmem:[%s2] sm:$0x1]
  %v149 = vlaneseq
  %v150 = vshrl.u32 %v149, 7
  %v151 = vsub.s32 0, %v150
  %v152 = vrot.slane %v147, %v151
  %v158 = vunpack.c.l.b16 %v15
  %v159 = vunpack.c.h.b16 %v15
  %v160 = vunpack.c.l.b16 %v16
  %v161 = vunpack.c.h.b16 %v16
  %v162 = vunpack.c.l.b16 %v17
  %v163 = vunpack.c.h.b16 %v17
  %v164 = vunpack.c.l.b16 %v18
  %v165 = vunpack.c.h.b16 %v18
  %v166 = vpack.c.b16 %v158, %v158
  %v167 = vpack.c.b16 %v159, %v159
  %v168 = vpack.c.b16 %v160, %v160
  %v169 = vpack.c.b16 %v161, %v161
  %v170 = vpack.c.b16 %v162, %v162
  %v171 = vpack.c.b16 %v163, %v163
  %v172 = vpack.c.b16 %v164, %v164
  %v173 = vpack.c.b16 %v165, %v165
  %v310 = vunpack.c.l.b16 %v19
  %v311 = vunpack.c.l.b16 %v20
  %v312 = vunpack.c.l.b16 %v21
  %v313 = vunpack.c.l.b16 %v22
  %v314 = vunpack.c.l.b16 %v23
  %v315 = vunpack.c.l.b16 %v24
  %v316 = vunpack.c.l.b16 %v25
  %v317 = vunpack.c.l.b16 %v26
  %v318 = vunpack.c.l.b16 %v27
  %v319 = vunpack.c.l.b16 %v28
  %v320 = vunpack.c.l.b16 %v29
  %v321 = vunpack.c.l.b16 %v30
  %v322 = vunpack.c.l.b16 %v31
  %v323 = vunpack.c.l.b16 %v32
  %v324 = vunpack.c.l.b16 %v33
  %v325 = vunpack.c.l.b16 %v34
  %v326 = vunpack.c.l.b16 %v35
  %v327 = vunpack.c.l.b16 %v36
  %v328 = vunpack.c.l.b16 %v37
  %v329 = vunpack.c.l.b16 %v38
  %v330 = vunpack.c.l.b16 %v39
  %v331 = vunpack.c.l.b16 %v40
  %v332 = vunpack.c.l.b16 %v41
  %v333 = vunpack.c.l.b16 %v42
  %v334 = vunpack.c.l.b16 %v43
  %v335 = vunpack.c.l.b16 %v44
  %v336 = vunpack.c.l.b16 %v45
  %v337 = vunpack.c.l.b16 %v46
  %v338 = vunpack.c.l.b16 %v47
  %v339 = vunpack.c.l.b16 %v48
  %v340 = vunpack.c.l.b16 %v49
  %v341 = vunpack.c.l.b16 %v50
  %v342 = vunpack.c.l.b16 %v51
  %v343 = vunpack.c.l.b16 %v52
  %v344 = vunpack.c.l.b16 %v53
  %v345 = vunpack.c.l.b16 %v54
  %v346 = vunpack.c.l.b16 %v55
  %v347 = vunpack.c.l.b16 %v56
  %v348 = vunpack.c.l.b16 %v57
  %v349 = vunpack.c.l.b16 %v58
  %v350 = vunpack.c.l.b16 %v59
  %v351 = vunpack.c.l.b16 %v60
  %v352 = vunpack.c.l.b16 %v61
  %v353 = vunpack.c.l.b16 %v62
  %v354 = vunpack.c.l.b16 %v63
  %v355 = vunpack.c.l.b16 %v64
  %v356 = vunpack.c.l.b16 %v65
  %v357 = vunpack.c.l.b16 %v66
  %v358 = vunpack.c.l.b16 %v67
  %v359 = vunpack.c.l.b16 %v68
  %v360 = vunpack.c.l.b16 %v69
  %v361 = vunpack.c.l.b16 %v70
  %v362 = vunpack.c.l.b16 %v71
  %v363 = vunpack.c.l.b16 %v72
  %v364 = vunpack.c.l.b16 %v73
  %v365 = vunpack.c.l.b16 %v74
  %v366 = vunpack.c.l.b16 %v75
  %v367 = vunpack.c.l.b16 %v76
  %v368 = vunpack.c.l.b16 %v77
  %v369 = vunpack.c.l.b16 %v78
  %v370 = vunpack.c.l.b16 %v79
  %v371 = vunpack.c.l.b16 %v80
  %v372 = vunpack.c.l.b16 %v81
  %v373 = vunpack.c.l.b16 %v82
  %v374 = vunpack.c.l.b16 %v83
  %v375 = vunpack.c.l.b16 %v84
  %v376 = vunpack.c.l.b16 %v85
  %v377 = vunpack.c.l.b16 %v86
  %v378 = vunpack.c.l.b16 %v87
  %v379 = vunpack.c.l.b16 %v88
  %v380 = vunpack.c.l.b16 %v89
  %v381 = vunpack.c.l.b16 %v90
  %v382 = vunpack.c.l.b16 %v91
  %v383 = vunpack.c.l.b16 %v92
  %v384 = vunpack.c.l.b16 %v93
  %v385 = vunpack.c.l.b16 %v94
  %v386 = vunpack.c.l.b16 %v95
  %v387 = vunpack.c.l.b16 %v96
  %v388 = vunpack.c.l.b16 %v97
  %v389 = vunpack.c.l.b16 %v98
  %v390 = vunpack.c.l.b16 %v99
  %v391 = vunpack.c.l.b16 %v100
  %v392 = vunpack.c.l.b16 %v101
  %v393 = vunpack.c.l.b16 %v102
  %v394 = vunpack.c.l.b16 %v103
  %v395 = vunpack.c.l.b16 %v104
  %v396 = vunpack.c.l.b16 %v105
  %v397 = vunpack.c.l.b16 %v106
  %v398 = vunpack.c.l.b16 %v107
  %v399 = vunpack.c.l.b16 %v108
  %v400 = vunpack.c.l.b16 %v109
  %v401 = vunpack.c.l.b16 %v110
  %v402 = vunpack.c.l.b16 %v111
  %v403 = vunpack.c.l.b16 %v112
  %v404 = vunpack.c.l.b16 %v113
  %v405 = vunpack.c.l.b16 %v114
  %v406 = vunpack.c.l.b16 %v115
  %v407 = vunpack.c.l.b16 %v116
  %v408 = vunpack.c.l.b16 %v117
  %v409 = vunpack.c.l.b16 %v118
  %v410 = vunpack.c.l.b16 %v119
  %v411 = vunpack.c.l.b16 %v120
  %v412 = vunpack.c.l.b16 %v121
  %v413 = vunpack.c.l.b16 %v122
  %v414 = vunpack.c.l.b16 %v123
  %v415 = vunpack.c.l.b16 %v124
  %v416 = vunpack.c.l.b16 %v125
  %v417 = vunpack.c.l.b16 %v126
  %v418 = vunpack.c.l.b16 %v127
  %v419 = vunpack.c.l.b16 %v128
  %v420 = vunpack.c.l.b16 %v129
  %v421 = vunpack.c.l.b16 %v130
  %v422 = vunpack.c.l.b16 %v131
  %v423 = vunpack.c.l.b16 %v132
  %v424 = vunpack.c.l.b16 %v133
  %v425 = vunpack.c.l.b16 %v134
  %v426 = vunpack.c.l.b16 %v135
  %v427 = vunpack.c.l.b16 %v136
  %v428 = vunpack.c.l.b16 %v137
  %v429 = vunpack.c.l.b16 %v138
  %v430 = vunpack.c.l.b16 %v139
  %v431 = vunpack.c.l.b16 %v140
  %v432 = vunpack.c.l.b16 %v141
  %v433 = vunpack.c.l.b16 %v142
  %v434 = vunpack.c.l.b16 %v143
  %v435 = vunpack.c.l.b16 %v144
  %v436 = vunpack.c.l.b16 %v145
  %v437 = vunpack.c.l.b16 %v146
  %v438 = vpack.c.b16 %v311, %v310
  %v439 = vpack.c.b16 %v313, %v312
  %v440 = vpack.c.b16 %v315, %v314
  %v441 = vpack.c.b16 %v317, %v316
  %v442 = vpack.c.b16 %v319, %v318
  %v443 = vpack.c.b16 %v321, %v320
  %v444 = vpack.c.b16 %v323, %v322
  %v445 = vpack.c.b16 %v325, %v324
  %v446 = vpack.c.b16 %v327, %v326
  %v447 = vpack.c.b16 %v329, %v328
  %v448 = vpack.c.b16 %v331, %v330
  %v449 = vpack.c.b16 %v333, %v332
  %v450 = vpack.c.b16 %v335, %v334
  %v451 = vpack.c.b16 %v337, %v336
  %v452 = vpack.c.b16 %v339, %v338
  %v453 = vpack.c.b16 %v341, %v340
  %v454 = vpack.c.b16 %v343, %v342
  %v455 = vpack.c.b16 %v345, %v344
  %v456 = vpack.c.b16 %v347, %v346
  %v457 = vpack.c.b16 %v349, %v348
  %v458 = vpack.c.b16 %v351, %v350
  %v459 = vpack.c.b16 %v353, %v352
  %v460 = vpack.c.b16 %v355, %v354
  %v461 = vpack.c.b16 %v357, %v356
  %v462 = vpack.c.b16 %v359, %v358
  %v463 = vpack.c.b16 %v361, %v360
  %v464 = vpack.c.b16 %v363, %v362
  %v465 = vpack.c.b16 %v365, %v364
  %v466 = vpack.c.b16 %v367, %v366
  %v467 = vpack.c.b16 %v369, %v368
  %v468 = vpack.c.b16 %v371, %v370
  %v469 = vpack.c.b16 %v373, %v372
  %v470 = vpack.c.b16 %v375, %v374
  %v471 = vpack.c.b16 %v377, %v376
  %v472 = vpack.c.b16 %v379, %v378
  %v473 = vpack.c.b16 %v381, %v380
  %v474 = vpack.c.b16 %v383, %v382
  %v475 = vpack.c.b16 %v385, %v384
  %v476 = vpack.c.b16 %v387, %v386
  %v477 = vpack.c.b16 %v389, %v388
  %v478 = vpack.c.b16 %v391, %v390
  %v479 = vpack.c.b16 %v393, %v392
  %v480 = vpack.c.b16 %v395, %v394
  %v481 = vpack.c.b16 %v397, %v396
  %v482 = vpack.c.b16 %v399, %v398
  %v483 = vpack.c.b16 %v401, %v400
  %v484 = vpack.c.b16 %v403, %v402
  %v485 = vpack.c.b16 %v405, %v404
  %v486 = vpack.c.b16 %v407, %v406
  %v487 = vpack.c.b16 %v409, %v408
  %v488 = vpack.c.b16 %v411, %v410
  %v489 = vpack.c.b16 %v413, %v412
  %v490 = vpack.c.b16 %v415, %v414
  %v491 = vpack.c.b16 %v417, %v416
  %v492 = vpack.c.b16 %v419, %v418
  %v493 = vpack.c.b16 %v421, %v420
  %v494 = vpack.c.b16 %v423, %v422
  %v495 = vpack.c.b16 %v425, %v424
  %v496 = vpack.c.b16 %v427, %v426
  %v497 = vpack.c.b16 %v429, %v428
  %v498 = vpack.c.b16 %v431, %v430
  %v499 = vpack.c.b16 %v433, %v432
  %v500 = vpack.c.b16 %v435, %v434
  %v501 = vpack.c.b16 %v437, %v436
  %566 = vmatprep.subr.bf16.mxu0 0
  %567 = vmatpush1.bf16.msra.mxu0 %v438
  %568 = vmatprep.subr.bf16.mxu0 0
  %569 = vmatpush1.bf16.msra.mxu0 %v439
  %570 = vmatprep.subr.bf16.mxu0 0
  %571 = vmatpush1.bf16.msra.mxu0 %v440
  %572 = vmatprep.subr.bf16.mxu0 0
  %573 = vmatpush1.bf16.msra.mxu0 %v441
  %574 = vmatprep.subr.bf16.mxu0 0
  %575 = vmatpush1.bf16.msra.mxu0 %v442
  %576 = vmatprep.subr.bf16.mxu0 0
  %577 = vmatpush1.bf16.msra.mxu0 %v443
  %578 = vmatprep.subr.bf16.mxu0 0
  %579 = vmatpush1.bf16.msra.mxu0 %v444
  %580 = vmatprep.subr.bf16.mxu0 0
  %581 = vmatpush1.bf16.msra.mxu0 %v445
  %582 = vmatprep.subr.bf16.mxu0 0
  %583 = vmatpush1.bf16.msra.mxu0 %v446
  %584 = vmatprep.subr.bf16.mxu0 0
  %585 = vmatpush1.bf16.msra.mxu0 %v447
  %586 = vmatprep.subr.bf16.mxu0 0
  %587 = vmatpush1.bf16.msra.mxu0 %v448
  %588 = vmatprep.subr.bf16.mxu0 0
  %589 = vmatpush1.bf16.msra.mxu0 %v449
  %590 = vmatprep.subr.bf16.mxu0 0
  %591 = vmatpush1.bf16.msra.mxu0 %v450
  %592 = vmatprep.subr.bf16.mxu0 0
  %593 = vmatpush1.bf16.msra.mxu0 %v451
  %594 = vmatprep.subr.bf16.mxu0 0
  %595 = vmatpush1.bf16.msra.mxu0 %v452
  %596 = vmatprep.subr.bf16.mxu0 0
  %597 = vmatpush1.bf16.msra.mxu0 %v453
  %598 = vmatprep.mubr.bf16.mxu0 %v167
  %599 = vmatmul.mubr.bf16.gmra.mrb[0].mxu0 %v166
  %v600 = vpop.f32.mrb[0].mxu0
  %v601 = vadd.f32 %v152, %v600
  %v602 = vpop.f32.mrb[0].mxu0
  %v603 = vpop.f32.mrb[0].mxu0
  %v604 = vpop.f32.mrb[0].mxu0
  %605 = vdwg.mxu0
  %606 = vmatprep.subr.bf16.mxu0 0
  %607 = vmatpush1.bf16.msra.mxu0 %v454
  %608 = vmatprep.subr.bf16.mxu0 0
  %609 = vmatpush1.bf16.msra.mxu0 %v455
  %610 = vmatprep.subr.bf16.mxu0 0
  %611 = vmatpush1.bf16.msra.mxu0 %v456
  %612 = vmatprep.subr.bf16.mxu0 0
  %613 = vmatpush1.bf16.msra.mxu0 %v457
  %614 = vmatprep.subr.bf16.mxu0 0
  %615 = vmatpush1.bf16.msra.mxu0 %v458
  %616 = vmatprep.subr.bf16.mxu0 0
  %617 = vmatpush1.bf16.msra.mxu0 %v459
  %618 = vmatprep.subr.bf16.mxu0 0
  %619 = vmatpush1.bf16.msra.mxu0 %v460
  %620 = vmatprep.subr.bf16.mxu0 0
  %621 = vmatpush1.bf16.msra.mxu0 %v461
  %622 = vmatprep.subr.bf16.mxu0 0
  %623 = vmatpush1.bf16.msra.mxu0 %v462
  %624 = vmatprep.subr.bf16.mxu0 0
  %625 = vmatpush1.bf16.msra.mxu0 %v463
  %626 = vmatprep.subr.bf16.mxu0 0
  %627 = vmatpush1.bf16.msra.mxu0 %v464
  %628 = vmatprep.subr.bf16.mxu0 0
  %629 = vmatpush1.bf16.msra.mxu0 %v465
  %630 = vmatprep.subr.bf16.mxu0 0
  %631 = vmatpush1.bf16.msra.mxu0 %v466
  %632 = vmatprep.subr.bf16.mxu0 0
  %633 = vmatpush1.bf16.msra.mxu0 %v467
  %634 = vmatprep.subr.bf16.mxu0 0
  %635 = vmatpush1.bf16.msra.mxu0 %v468
  %636 = vmatprep.subr.bf16.mxu0 0
  %637 = vmatpush1.bf16.msra.mxu0 %v469
  %638 = vmatprep.mubr.bf16.mxu0 %v169
  %639 = vmatmul.mubr.bf16.gmra.mrb[0].mxu0 %v168
  %v640 = vpop.f32.mrb[0].mxu0
  %v641 = vadd.f32 %v601, %v640
  %v642 = vpop.f32.mrb[0].mxu0
  %v643 = vpop.f32.mrb[0].mxu0
  %v644 = vpop.f32.mrb[0].mxu0
  %645 = vdwg.mxu0
  %646 = vmatprep.subr.bf16.mxu0 0
  %647 = vmatpush1.bf16.msra.mxu0 %v470
  %648 = vmatprep.subr.bf16.mxu0 0
  %649 = vmatpush1.bf16.msra.mxu0 %v471
  %650 = vmatprep.subr.bf16.mxu0 0
  %651 = vmatpush1.bf16.msra.mxu0 %v472
  %652 = vmatprep.subr.bf16.mxu0 0
  %653 = vmatpush1.bf16.msra.mxu0 %v473
  %654 = vmatprep.subr.bf16.mxu0 0
  %655 = vmatpush1.bf16.msra.mxu0 %v474
  %656 = vmatprep.subr.bf16.mxu0 0
  %657 = vmatpush1.bf16.msra.mxu0 %v475
  %658 = vmatprep.subr.bf16.mxu0 0
  %659 = vmatpush1.bf16.msra.mxu0 %v476
  %660 = vmatprep.subr.bf16.mxu0 0
  %661 = vmatpush1.bf16.msra.mxu0 %v477
  %662 = vmatprep.subr.bf16.mxu0 0
  %663 = vmatpush1.bf16.msra.mxu0 %v478
  %664 = vmatprep.subr.bf16.mxu0 0
  %665 = vmatpush1.bf16.msra.mxu0 %v479
  %666 = vmatprep.subr.bf16.mxu0 0
  %667 = vmatpush1.bf16.msra.mxu0 %v480
  %668 = vmatprep.subr.bf16.mxu0 0
  %669 = vmatpush1.bf16.msra.mxu0 %v481
  %670 = vmatprep.subr.bf16.mxu0 0
  %671 = vmatpush1.bf16.msra.mxu0 %v482
  %672 = vmatprep.subr.bf16.mxu0 0
  %673 = vmatpush1.bf16.msra.mxu0 %v483
  %674 = vmatprep.subr.bf16.mxu0 0
  %675 = vmatpush1.bf16.msra.mxu0 %v484
  %676 = vmatprep.subr.bf16.mxu0 0
  %677 = vmatpush1.bf16.msra.mxu0 %v485
  %678 = vmatprep.mubr.bf16.mxu0 %v171
  %679 = vmatmul.mubr.bf16.gmra.mrb[0].mxu0 %v170
  %v680 = vpop.f32.mrb[0].mxu0
  %v681 = vadd.f32 %v641, %v680
  %v682 = vpop.f32.mrb[0].mxu0
  %v683 = vpop.f32.mrb[0].mxu0
  %v684 = vpop.f32.mrb[0].mxu0
  %685 = vdwg.mxu0
  %686 = vmatprep.subr.bf16.mxu0 0
  %687 = vmatpush1.bf16.msra.mxu0 %v486
  %688 = vmatprep.subr.bf16.mxu0 0
  %689 = vmatpush1.bf16.msra.mxu0 %v487
  %690 = vmatprep.subr.bf16.mxu0 0
  %691 = vmatpush1.bf16.msra.mxu0 %v488
  %692 = vmatprep.subr.bf16.mxu0 0
  %693 = vmatpush1.bf16.msra.mxu0 %v489
  %694 = vmatprep.subr.bf16.mxu0 0
  %695 = vmatpush1.bf16.msra.mxu0 %v490
  %696 = vmatprep.subr.bf16.mxu0 0
  %697 = vmatpush1.bf16.msra.mxu0 %v491
  %698 = vmatprep.subr.bf16.mxu0 0
  %699 = vmatpush1.bf16.msra.mxu0 %v492
  %700 = vmatprep.subr.bf16.mxu0 0
  %701 = vmatpush1.bf16.msra.mxu0 %v493
  %702 = vmatprep.subr.bf16.mxu0 0
  %703 = vmatpush1.bf16.msra.mxu0 %v494
  %704 = vmatprep.subr.bf16.mxu0 0
  %705 = vmatpush1.bf16.msra.mxu0 %v495
  %706 = vmatprep.subr.bf16.mxu0 0
  %707 = vmatpush1.bf16.msra.mxu0 %v496
  %708 = vmatprep.subr.bf16.mxu0 0
  %709 = vmatpush1.bf16.msra.mxu0 %v497
  %710 = vmatprep.subr.bf16.mxu0 0
  %711 = vmatpush1.bf16.msra.mxu0 %v498
  %712 = vmatprep.subr.bf16.mxu0 0
  %713 = vmatpush1.bf16.msra.mxu0 %v499
  %714 = vmatprep.subr.bf16.mxu0 0
  %715 = vmatpush1.bf16.msra.mxu0 %v500
  %716 = vmatprep.subr.bf16.mxu0 0
  %717 = vmatpush1.bf16.msra.mxu0 %v501
  %718 = vmatprep.mubr.bf16.mxu0 %v173
  %719 = vmatmul.mubr.bf16.gmra.mrb[0].mxu0 %v172
  %v720 = vpop.f32.mrb[0].mxu0
  %v721 = vadd.f32 %v681, %v720
  %v722 = vpop.f32.mrb[0].mxu0
  %v723 = vpop.f32.mrb[0].mxu0
  %v724 = vpop.f32.mrb[0].mxu0
  %725 = vdwg.mxu0
  %726 = vst [vmem:[%s3] sm:$0xff] %v721
  // Predicated region
  $region14: #{_lambda_.5} parent=0 // pred_check
    _
  $region15: #{_lambda_.5} parent=0 // pred_check_branch
    %728 = sbr.rel (0) target = $region17
  $region16: #{_lambda_.5} parent=0 // pred_region
    _
  $region17: #{_lambda_.5} parent=0 // pred_fallthru
    _
  // Predicated region
  $region18: #{_lambda_.5} parent=0 // pred_check
    _
  $region19: #{_lambda_.5} parent=0 // pred_check_branch
    %730 = sbr.rel (0) target = $region21
  $region20: #{_lambda_.5} parent=0 // pred_region
    _
  $region21: #{_lambda_.5} parent=0 // pred_fallthru
    _

// kernel: _lambda_.4
$region0: #{_lambda_.4}
  #allocation0 [shape = 'u32[]', space=smem, size = 0x4, offset = 0x4, fixed_abs, tag = 'smem constant byte address 0x4 - core index']
  #allocation1 [shape = 'u32[144,128]{1,0:T(1,128)}', space=vmem, size = 0x12000, scoped, tag = 'internal scratch']
  #allocation2 [shape = 'bf16[256,1152]{1,0:T(16,128)(2,1)}', space=vmem, size = 0x90000, scoped, tag = 'scratch operand']
  #allocation3 [shape = 'f32[4,16,128]{2,1,0:T(8,128)}', space=vmem, size = 0x8000, scoped, tag = 'scratch operand']
  %s0 = inlined_call_operand.vmem [shape: bf16[2,18,18,128], index: 0, kind: input, shape index: {}]
  %s1 = inlined_call_operand.vmem [shape: bf16[1152,128], index: 1, kind: input, shape index: {}]
  %s2 = inlined_call_operand.vmem [shape: f32[1,128], index: 2, kind: input, shape index: {}]
  %s3 = inlined_call_operand.vmem [shape: bf16[2,256,128], index: 3, kind: output, shape index: {0}]
  %s4 = inlined_call_operand.vmem [shape: bf16[2,4,4,128], index: 4, kind: output, shape index: {1}]
  %5 = xla_tuple %s3, %s4
  %s6 = sld [smem:[#allocation0]]
  $region53: #{_lambda_.4} parent=0
    _
  %s8 = ssub.s32 1, %s6
  %s9 = scalar_select 0, %s8, %s6
  loop: start=0, step=1, limit=4
  $region2: #{_lambda_.4} parent=0 // loop_pre_header
    _
  $region3: #{_lambda_.4} parent=0 // loop_header
    %s11 = sphi 0, %s15
    %p12 = scmp.ge.s32.totalorder %s11, 4
    %s18 = sphi 0, %s30
    %s19 = sphi 0, %s26
    %s20 = sphi 0, %s18
    %s21 = sphi 0, %s19
    %s22 = sphi 0, %s20
    %s23 = sphi 0, %s21
    %s33 = sphi 0, %s35
    %s36 = sphi 0, %s33
    %s37 = sphi 0, %s36
    %s53 = sphi 0, %s37
    %s57 = sphi 0, %s57
    %s59 = sphi 0, %s57
    %s60 = sphi 0, %s59
    %s74 = sphi 0, %s60
    %s78 = sphi 0, %s78
    %s80 = sphi 0, %s78
    %s81 = sphi 0, %s80
    %s95 = sphi 0, %s81
    %s103 = sphi 0, %s105
    %s106 = sphi 0, %s103
    %s107 = sphi 0, %s106
    %s123 = sphi 0, %s107
    %s131 = sphi 0, %s133
    %s134 = sphi 0, %s131
    %s135 = sphi 0, %s134
    %s151 = sphi 0, %s135
  $region4: #{_lambda_.4} parent=0 // loop_header_branch
    %14 = sbr.rel (%p12) target = $region8
  $region5: #{_lambda_.4} parent=0 // loop_body
    %s16 = ssub.s32 %s11, 1
    %s17 = ssub.s32 %s11, 2
    %s24 = sadd.s32 1, %s19
    %p25 = scmp.ge.s32.totalorder %s24, 1
    %s26 = scalar_select %p25, 0, %s24
    %s27 = sadd.s32 1, %s18
    %s28 = scalar_select %p25, %s27, %s18
    %p29 = scmp.ge.s32.totalorder %s28, 2
    %s30 = scalar_select %p29, 0, %s28
    %s31 = ssub.s32 %s18, %s30
    %p32 = scmp.eq.s32.totalorder %s31, 0
    %s34 = sadd.s32 %s33, 1
    %s35 = scalar_select %p32, %s33, %s34
    %p38 = pneg %p32
    %p39 = scmp.eq.s32.totalorder %s11, 1
    %p40 = por %p38, %p39
    %p41 = scmp.ne.s32.totalorder %s33, %s36
    %p42 = scmp.eq.s32.totalorder %s11, 0
    %p43 = por %p41, %p42
    %p44 = scmp.ne.s32.totalorder %s33, %s36
    %p45 = scmp.eq.s32.totalorder %s16, 1
    %p46 = por %p44, %p45
    %p47 = scmp.ne.s32.totalorder %s36, %s37
    %p48 = scmp.eq.s32.totalorder %s16, 0
    %p49 = por %p47, %p48
    %p50 = scmp.ne.s32.totalorder %s36, %s37
    %p51 = scmp.eq.s32.totalorder %s17, 1
    %p52 = por %p50, %p51
    %p54 = scmp.ne.s32.totalorder %s37, %s53
    %p55 = scmp.eq.s32.totalorder %s17, 0
    %p56 = por %p54, %p55
    %s58 = sadd.s32 %s57, 1
    %p61 = scmp.eq.s32.totalorder %s11, 1
    %p62 = scmp.ne.s32.totalorder %s57, %s59
    %p63 = scmp.eq.s32.totalorder %s11, 0
    %p64 = por %p62, %p63
    %p65 = scmp.ne.s32.totalorder %s57, %s59
    %p66 = scmp.eq.s32.totalorder %s16, 1
    %p67 = por %p65, %p66
    %p68 = scmp.ne.s32.totalorder %s59, %s60
    %p69 = scmp.eq.s32.totalorder %s16, 0
    %p70 = por %p68, %p69
    %p71 = scmp.ne.s32.totalorder %s59, %s60
    %p72 = scmp.eq.s32.totalorder %s17, 1
    %p73 = por %p71, %p72
    %p75 = scmp.ne.s32.totalorder %s60, %s74
    %p76 = scmp.eq.s32.totalorder %s17, 0
    %p77 = por %p75, %p76
    %s79 = sadd.s32 %s78, 1
    %p82 = scmp.eq.s32.totalorder %s11, 1
    %p83 = scmp.ne.s32.totalorder %s78, %s80
    %p84 = scmp.eq.s32.totalorder %s11, 0
    %p85 = por %p83, %p84
    %p86 = scmp.ne.s32.totalorder %s78, %s80
    %p87 = scmp.eq.s32.totalorder %s16, 1
    %p88 = por %p86, %p87
    %p89 = scmp.ne.s32.totalorder %s80, %s81
    %p90 = scmp.eq.s32.totalorder %s16, 0
    %p91 = por %p89, %p90
    %p92 = scmp.ne.s32.totalorder %s80, %s81
    %p93 = scmp.eq.s32.totalorder %s17, 1
    %p94 = por %p92, %p93
    %p96 = scmp.ne.s32.totalorder %s81, %s95
    %p97 = scmp.eq.s32.totalorder %s17, 0
    %p98 = por %p96, %p97
    %s99 = ssub.s32 %s18, %s30
    %s100 = ssub.s32 %s19, %s26
    %s101 = sor.u32 %s99, %s100
    %p102 = scmp.eq.s32.totalorder %s101, 0
    %s104 = sadd.s32 %s103, 1
    %s105 = scalar_select %p102, %s103, %s104
    %p108 = pneg %p102
    %p109 = scmp.eq.s32.totalorder %s11, 1
    %p110 = por %p108, %p109
    %p111 = scmp.ne.s32.totalorder %s103, %s106
    %p112 = scmp.eq.s32.totalorder %s11, 0
    %p113 = por %p111, %p112
    %p114 = scmp.ne.s32.totalorder %s103, %s106
    %p115 = scmp.eq.s32.totalorder %s16, 1
    %p116 = por %p114, %p115
    %p117 = scmp.ne.s32.totalorder %s106, %s107
    %p118 = scmp.eq.s32.totalorder %s16, 0
    %p119 = por %p117, %p118
    %p120 = scmp.ne.s32.totalorder %s106, %s107
    %p121 = scmp.eq.s32.totalorder %s17, 1
    %p122 = por %p120, %p121
    %p124 = scmp.ne.s32.totalorder %s107, %s123
    %p125 = scmp.eq.s32.totalorder %s17, 0
    %p126 = por %p124, %p125
    %s127 = ssub.s32 %s18, %s30
    %s128 = ssub.s32 %s19, %s26
    %s129 = sor.u32 %s127, %s128
    %p130 = scmp.eq.s32.totalorder %s129, 0
    %s132 = sadd.s32 %s131, 1
    %s133 = scalar_select %p130, %s131, %s132
    %p136 = pneg %p130
    %p137 = scmp.eq.s32.totalorder %s11, 1
    %p138 = por %p136, %p137
    %p139 = scmp.ne.s32.totalorder %s131, %s134
    %p140 = scmp.eq.s32.totalorder %s11, 0
    %p141 = por %p139, %p140
    %p142 = scmp.ne.s32.totalorder %s131, %s134
    %p143 = scmp.eq.s32.totalorder %s16, 1
    %p144 = por %p142, %p143
    %p145 = scmp.ne.s32.totalorder %s134, %s135
    %p146 = scmp.eq.s32.totalorder %s16, 0
    %p147 = por %p145, %p146
    %p148 = scmp.ne.s32.totalorder %s134, %s135
    %p149 = scmp.eq.s32.totalorder %s17, 1
    %p150 = por %p148, %p149
    %p152 = scmp.ne.s32.totalorder %s135, %s151
    %p153 = scmp.eq.s32.totalorder %s17, 0
    %p154 = por %p152, %p153
    %p155 = scmp.le.s32.totalorder 1, %s11
    %p156 = scmp.lt.s32.totalorder %s11, 3
    %p157 = pnand %p155, %p156
    %p158 = pneg %p157
    // Predicated region
    $region9: #{_lambda_.4} parent=5 // pred_check
      _
    $region10: #{_lambda_.4} parent=5 // pred_check_branch
      %160 = sbr.rel (%p157) target = $region12
    $region11: #{_lambda_.4} parent=5 // pred_region
      %s161 = ssub.s32 %s11, 1
      // Predicated region
      $region13: #{_lambda_.4} parent=11 // pred_check
        %p162 = pneg %p70
      $region14: #{_lambda_.4} parent=11 // pred_check_branch
        %164 = sbr.rel (%p162) target = $region16
      $region15: #{_lambda_.4} parent=11 // pred_region
        _
      $region16: #{_lambda_.4} parent=11 // pred_fallthru
        _
      // Predicated region
      $region17: #{_lambda_.4} parent=11 // pred_check
        %p165 = pneg %p91
      $region18: #{_lambda_.4} parent=11 // pred_check_branch
        %167 = sbr.rel (%p165) target = $region20
      $region19: #{_lambda_.4} parent=11 // pred_region
        _
      $region20: #{_lambda_.4} parent=11 // pred_fallthru
        _
    $region12: #{_lambda_.4} parent=5 // pred_fallthru
      _
    %p168 = scmp.lt.s32.totalorder %s11, 2
    // Predicated region
    $region21: #{_lambda_.4} parent=5 // pred_check
      %p169 = pneg %p168
    $region22: #{_lambda_.4} parent=5 // pred_check_branch
      %171 = sbr.rel (%p169) target = $region24
    $region23: #{_lambda_.4} parent=5 // pred_region
      // Predicated region
      $region25: #{_lambda_.4} parent=23 // pred_check
        %p172 = pneg %p43
      $region26: #{_lambda_.4} parent=23 // pred_check_branch
        %174 = sbr.rel (%p172) target = $region28
      $region27: #{_lambda_.4} parent=23 // pred_region
        %p175 = scmp.lt.s32.totalorder %s18, 1
        %s176 = scalar_select %p175, %s18, 1
        %s177 = smul.addr %s176, 54
        %s178 = smul.addr %s177, 4
        %s179 = scalar_lea.vmem %s0, %s178
      $region28: #{_lambda_.4} parent=23 // pred_fallthru
        _
    $region24: #{_lambda_.4} parent=5 // pred_fallthru
      _
    %p180 = scmp.le.s32.totalorder 1, %s11
    %p181 = scmp.lt.s32.totalorder %s11, 3
    %p182 = pnand %p180, %p181
    %p183 = pneg %p182
    // Predicated region
    $region29: #{_lambda_.4} parent=5 // pred_check
      _
    $region30: #{_lambda_.4} parent=5 // pred_check_branch
      %185 = sbr.rel (%p182) target = $region32
    $region31: #{_lambda_.4} parent=5 // pred_region
      %s186 = ssub.s32 %s11, 1
      %p187 = scmp.lt.s32.totalorder %s20, 1
      %s188 = scalar_select %p187, %s20, 1
      %s189 = smul.addr %s188, 54
      %s190 = smul.addr %s189, 4
      %s191 = scalar_lea.vmem %s0, %s190
      %p192 = pneg %p49
      %p193 = pneg %p46
      %p194 = pneg %p70
      %p195 = pneg %p67
      %p196 = pneg %p91
      %p197 = pneg %p88
      %p198 = pneg %p119
      %p199 = pneg %p116
      %s200 = smul.u32 32, %s21
      %p201 = scmp.lt.s32.totalorder %s20, 1
      %s202 = scalar_select %p201, %s20, 1
      %p203 = scmp.lt.s32.totalorder %s200, 31
      %s204 = scalar_select %p203, %s200, 31
      %s205 = smul.addr %s202, 32
      %s206 = sadd.s32 %s204, %s205
      %s207 = smul.addr %s206, 4
      %s208 = scalar_lea.vmem %s3, %s207
      %p209 = pneg %p147
      %p210 = pneg %p144
      %s211 = smul.u32 4, %s21
      %p212 = scmp.lt.s32.totalorder %s20, 1
      %s213 = scalar_select %p212, %s20, 1
      %p214 = scmp.lt.s32.totalorder %s211, 3
      %s215 = scalar_select %p214, %s211, 3
      %s216 = smul.addr %s213, 4
      %s217 = sadd.s32 %s215, %s216
      %s218 = smul.addr %s217, 2
      %s219 = scalar_lea.vmem %s4, %s218
      %p220 = scmp.lt.s32.totalorder %s20, 1
      %s221 = scalar_select %p220, %s20, 1
      %s222 = smul.addr %s221, 54
      %s223 = smul.addr %s222, 4
      %s224 = scalar_lea.vmem %s0, %s223
      %s225 = smul.u32 32, %s21
      %p226 = scmp.lt.s32.totalorder %s20, 1
      %s227 = scalar_select %p226, %s20, 1
      %p228 = scmp.lt.s32.totalorder %s225, 31
      %s229 = scalar_select %p228, %s225, 31
      %s230 = smul.addr %s227, 32
      %s231 = sadd.s32 %s229, %s230
      %s232 = smul.addr %s231, 4
      %s233 = scalar_lea.vmem %s3, %s232
      %s234 = smul.u32 32, %s21
      %s235 = smul.u32 4, %s21
      %p236 = scmp.lt.s32.totalorder %s20, 1
      %s237 = scalar_select %p236, %s20, 1
      %p238 = scmp.lt.s32.totalorder %s235, 3
      %s239 = scalar_select %p238, %s235, 3
      %s240 = smul.addr %s237, 4
      %s241 = sadd.s32 %s239, %s240
      %s242 = smul.addr %s241, 2
      %s243 = scalar_lea.vmem %s4, %s242
      %s244 = smul.u32 4, %s21
      %s246 = smul.u32 %s21, 16
      %s247 = smul.u32 %s246, 3
      %s248 = smul.addr %s247, 4
      %s249 = scalar_lea.vmem %s224, %s248
      %v250 = vld [vmem:[%s249] sm:$0xf]
      %v251 = vld [vmem:[%s249 + $0x4] sm:$0xf]
      %v252 = vld [vmem:[%s249 + $0xc] sm:$0xf]
      %v253 = vld [vmem:[%s249 + $0x10] sm:$0xf]
      %v254 = vld [vmem:[%s249 + $0x18] sm:$0xf]
      %v255 = vld [vmem:[%s249 + $0x1c] sm:$0xf]
      %v256 = vld [vmem:[%s249 + $0x24] sm:$0xf]
      %v257 = vld [vmem:[%s249 + $0x28] sm:$0xf]
      %v258 = vld [vmem:[%s249 + $0x30] sm:$0xf]
      %v259 = vld [vmem:[%s249 + $0x34] sm:$0xf]
      %v260 = vld [vmem:[%s249 + $0x3c] sm:$0xf]
      %v261 = vld [vmem:[%s249 + $0x40] sm:$0xf]
      %v262 = vld [vmem:[%s249 + $0x48] sm:$0xf]
      %v263 = vld [vmem:[%s249 + $0x4c] sm:$0xf]
      %v264 = vld [vmem:[%s249 + $0x54] sm:$0xf]
      %v265 = vld [vmem:[%s249 + $0x58] sm:$0xf]
      %v266 = vld [vmem:[%s249 + $0x60] sm:$0xf]
      %v267 = vld [vmem:[%s249 + $0x64] sm:$0xf]
      %v268 = vld [vmem:[%s249 + $0x6c] sm:$0xf]
      %v269 = vld [vmem:[%s249 + $0x70] sm:$0xf]
      %v270 = vld [vmem:[%s249 + $0x78] sm:$0xf]
      %v271 = vld [vmem:[%s249 + $0x7c] sm:$0xf]
      %v272 = vld [vmem:[%s249 + $0x84] sm:$0xf]
      %v273 = vld [vmem:[%s249 + $0x88] sm:$0xf]
      %v274 = vld [vmem:[%s249 + $0x90] sm:$0xf]
      %v275 = vld [vmem:[%s249 + $0x94] sm:$0xf]
      %v276 = vld [vmem:[%s249 + $0x9c] sm:$0xf]
      %v277 = vld [vmem:[%s249 + $0xa0] sm:$0xf]
      %v278 = vld [vmem:[%s249 + $0xa8] sm:$0xf]
      %v279 = vld [vmem:[%s249 + $0xac] sm:$0xf]
      %v280 = vld [vmem:[%s249 + $0xb4] sm:$0xf]
      %v281 = vld [vmem:[%s249 + $0xb8] sm:$0xf]
      %v314 = vunpack.c.l.b16 %v250
      %v315 = vunpack.c.l.b16 %v251
      %v316 = vunpack.c.l.b16 %v252
      %v317 = vunpack.c.l.b16 %v253
      %v318 = vunpack.c.l.b16 %v254
      %v319 = vunpack.c.l.b16 %v255
      %v320 = vunpack.c.l.b16 %v256
      %v321 = vunpack.c.l.b16 %v257
      %v322 = vunpack.c.l.b16 %v258
      %v323 = vunpack.c.l.b16 %v259
      %v324 = vunpack.c.l.b16 %v260
      %v325 = vunpack.c.l.b16 %v261
      %v326 = vunpack.c.l.b16 %v262
      %v327 = vunpack.c.l.b16 %v263
      %v328 = vunpack.c.l.b16 %v264
      %v329 = vunpack.c.l.b16 %v265
      %v330 = vunpack.c.l.b16 %v266
      %v331 = vunpack.c.l.b16 %v267
      %v332 = vunpack.c.l.b16 %v268
      %v333 = vunpack.c.l.b16 %v269
      %v334 = vunpack.c.l.b16 %v270
      %v335 = vunpack.c.l.b16 %v271
      %v336 = vunpack.c.l.b16 %v272
      %v337 = vunpack.c.l.b16 %v273
      %v338 = vunpack.c.l.b16 %v274
      %v339 = vunpack.c.l.b16 %v275
      %v340 = vunpack.c.l.b16 %v276
      %v341 = vunpack.c.l.b16 %v277
      %v342 = vunpack.c.l.b16 %v278
      %v343 = vunpack.c.l.b16 %v279
      %v344 = vunpack.c.l.b16 %v280
      %v345 = vunpack.c.l.b16 %v281
      %v346 = vpack.c.b16 %v315, %v314
      %v347 = vpack.c.b16 %v317, %v316
      %v348 = vpack.c.b16 %v319, %v318
      %v349 = vpack.c.b16 %v321, %v320
      %v350 = vpack.c.b16 %v323, %v322
      %v351 = vpack.c.b16 %v325, %v324
      %v352 = vpack.c.b16 %v327, %v326
      %v353 = vpack.c.b16 %v329, %v328
      %v354 = vpack.c.b16 %v331, %v330
      %v355 = vpack.c.b16 %v333, %v332
      %v356 = vpack.c.b16 %v335, %v334
      %v357 = vpack.c.b16 %v337, %v336
      %v358 = vpack.c.b16 %v339, %v338
      %v359 = vpack.c.b16 %v341, %v340
      %v360 = vpack.c.b16 %v343, %v342
      %v361 = vpack.c.b16 %v345, %v344
      %378 = vst [vmem:[#allocation2] sm:$0xff] %v346
      %379 = vst [vmem:[#allocation2 + $0x48] sm:$0xff] %v347
      %380 = vst [vmem:[#allocation2 + $0x90] sm:$0xff] %v348
      %381 = vst [vmem:[#allocation2 + $0xd8] sm:$0xff] %v349
      %382 = vst [vmem:[#allocation2 + $0x120] sm:$0xff] %v350
      %383 = vst [vmem:[#allocation2 + $0x168] sm:$0xff] %v351
      %384 = vst [vmem:[#allocation2 + $0x1b0] sm:$0xff] %v352
      %385 = vst [vmem:[#allocation2 + $0x1f8] sm:$0xff] %v353
      %386 = vst [vmem:[#allocation2 + $0x240] sm:$0xff] %v354
      %387 = vst [vmem:[#allocation2 + $0x288] sm:$0xff] %v355
      %388 = vst [vmem:[#allocation2 + $0x2d0] sm:$0xff] %v356
      %389 = vst [vmem:[#allocation2 + $0x318] sm:$0xff] %v357
      %390 = vst [vmem:[#allocation2 + $0x360] sm:$0xff] %v358
      %391 = vst [vmem:[#allocation2 + $0x3a8] sm:$0xff] %v359
      %392 = vst [vmem:[#allocation2 + $0x3f0] sm:$0xff] %v360
      %393 = vst [vmem:[#allocation2 + $0x438] sm:$0xff] %v361
      %v394 = vld [vmem:[%s249] sm:$0xf]
      %v395 = vld [vmem:[%s249 + $0x4] sm:$0xf]
      %v396 = vld [vmem:[%s249 + $0x8] sm:$0x1]
      %v397 = vld [vmem:[%s249 + $0xc] sm:$0xf]
      %v398 = vld [vmem:[%s249 + $0x10] sm:$0xf]
      %v399 = vld [vmem:[%s249 + $0x14] sm:$0x1]
      %v400 = vld [vmem:[%s249 + $0x18] sm:$0xf]
      %v401 = vld [vmem:[%s249 + $0x1c] sm:$0xf]
      %v402 = vld [vmem:[%s249 + $0x20] sm:$0x1]
      %v403 = vld [vmem:[%s249 + $0x24] sm:$0xf]
      %v404 = vld [vmem:[%s249 + $0x28] sm:$0xf]
      %v405 = vld [vmem:[%s249 + $0x2c] sm:$0x1]
      %v406 = vld [vmem:[%s249 + $0x30] sm:$0xf]
      %v407 = vld [vmem:[%s249 + $0x34] sm:$0xf]
      %v408 = vld [vmem:[%s249 + $0x38] sm:$0x1]
      %v409 = vld [vmem:[%s249 + $0x3c] sm:$0xf]
      %v410 = vld [vmem:[%s249 + $0x40] sm:$0xf]
      %v411 = vld [vmem:[%s249 + $0x44] sm:$0x1]
      %v412 = vld [vmem:[%s249 + $0x48] sm:$0xf]
      %v413 = vld [vmem:[%s249 + $0x4c] sm:$0xf]
      %v414 = vld [vmem:[%s249 + $0x50] sm:$0x1]
      %v415 = vld [vmem:[%s249 + $0x54] sm:$0xf]
      %v416 = vld [vmem:[%s249 + $0x58] sm:$0xf]
      %v417 = vld [vmem:[%s249 + $0x5c] sm:$0x1]
      %v418 = vld [vmem:[%s249 + $0x60] sm:$0xf]
      %v419 = vld [vmem:[%s249 + $0x64] sm:$0xf]
      %v420 = vld [vmem:[%s249 + $0x68] sm:$0x1]
      %v421 = vld [vmem:[%s249 + $0x6c] sm:$0xf]
      %v422 = vld [vmem:[%s249 + $0x70] sm:$0xf]
      %v423 = vld [vmem:[%s249 + $0x74] sm:$0x1]
      %v424 = vld [vmem:[%s249 + $0x78] sm:$0xf]
      %v425 = vld [vmem:[%s249 + $0x7c] sm:$0xf]
      %v426 = vld [vmem:[%s249 + $0x80] sm:$0x1]
      %v427 = vld [vmem:[%s249 + $0x84] sm:$0xf]
      %v428 = vld [vmem:[%s249 + $0x88] sm:$0xf]
      %v429 = vld [vmem:[%s249 + $0x8c] sm:$0x1]
      %v430 = vld [vmem:[%s249 + $0x90] sm:$0xf]
      %v431 = vld [vmem:[%s249 + $0x94] sm:$0xf]
      %v432 = vld [vmem:[%s249 + $0x98] sm:$0x1]
      %v433 = vld [vmem:[%s249 + $0x9c] sm:$0xf]
      %v434 = vld [vmem:[%s249 + $0xa0] sm:$0xf]
      %v435 = vld [vmem:[%s249 + $0xa4] sm:$0x1]
      %v436 = vld [vmem:[%s249 + $0xa8] sm:$0xf]
      %v437 = vld [vmem:[%s249 + $0xac] sm:$0xf]
      %v438 = vld [vmem:[%s249 + $0xb0] sm:$0x1]
      %v439 = vld [vmem:[%s249 + $0xb4] sm:$0xf]
      %v440 = vld [vmem:[%s249 + $0xb8] sm:$0xf]
      %v441 = vld [vmem:[%s249 + $0xbc] sm:$0x1]
      %vm442 = vsmask.f32 3328
      %vm443 = vsmask.f32 7440
      %vm444 = vmor %vm442, %vm443
      %v446 = vshrl.u32 %v394, 16
      %v448 = vrot.slane %v446, 4
      %v449 = vshll.u32 %v394, 16
      %v451 = vrot.slane %v449, 5
      %v452 = vor.u32 %v448, %v451
      %v453 = vrot.slane %v452, 4
      %v455 = vshll.u32 %v395, 16
      %v457 = vrot.slane %v455, 5
      %v458 = vsel %vm444, %v453, %v457
      %v459 = vshrl.u32 %v395, 16
      %v461 = vrot.slane %v459, 4
      %v462 = vor.u32 %v461, %v457
      %v463 = vrot.slane %v462, 4
      %v465 = vshll.u32 %v396, 16
      %v467 = vrot.slane %v465, 5
      %v468 = vsel %vm444, %v463, %v467
      %v470 = vshrl.u32 %v397, 16
      %v472 = vrot.slane %v470, 4
      %v473 = vshll.u32 %v397, 16
      %v475 = vrot.slane %v473, 5
      %v476 = vor.u32 %v472, %v475
      %v477 = vrot.slane %v476, 4
      %v479 = vshll.u32 %v398, 16
      %v481 = vrot.slane %v479, 5
      %v482 = vsel %vm444, %v477, %v481
      %v483 = vshrl.u32 %v398, 16
      %v485 = vrot.slane %v483, 4
      %v486 = vor.u32 %v485, %v481
      %v487 = vrot.slane %v486, 4
      %v489 = vshll.u32 %v399, 16
      %v491 = vrot.slane %v489, 5
      %v492 = vsel %vm444, %v487, %v491
      %v494 = vshrl.u32 %v400, 16
      %v496 = vrot.slane %v494, 4
      %v497 = vshll.u32 %v400, 16
      %v499 = vrot.slane %v497, 5
      %v500 = vor.u32 %v496, %v499
      %v501 = vrot.slane %v500, 4
      %v503 = vshll.u32 %v401, 16
      %v505 = vrot.slane %v503, 5
      %v506 = vsel %vm444, %v501, %v505
      %v507 = vshrl.u32 %v401, 16
      %v509 = vrot.slane %v507, 4
      %v510 = vor.u32 %v509, %v505
      %v511 = vrot.slane %v510, 4
      %v513 = vshll.u32 %v402, 16
      %v515 = vrot.slane %v513, 5
      %v516 = vsel %vm444, %v511, %v515
      %v518 = vshrl.u32 %v403, 16
      %v520 = vrot.slane %v518, 4
      %v521 = vshll.u32 %v403, 16
      %v523 = vrot.slane %v521, 5
      %v524 = vor.u32 %v520, %v523
      %v525 = vrot.slane %v524, 4
      %v527 = vshll.u32 %v404, 16
      %v529 = vrot.slane %v527, 5
      %v530 = vsel %vm444, %v525, %v529
      %v531 = vshrl.u32 %v404, 16
      %v533 = vrot.slane %v531, 4
      %v534 = vor.u32 %v533, %v529
      %v535 = vrot.slane %v534, 4
      %v537 = vshll.u32 %v405, 16
      %v539 = vrot.slane %v537, 5
      %v540 = vsel %vm444, %v535, %v539
      %v542 = vshrl.u32 %v406, 16
      %v544 = vrot.slane %v542, 4
      %v545 = vshll.u32 %v406, 16
      %v547 = vrot.slane %v545, 5
      %v548 = vor.u32 %v544, %v547
      %v549 = vrot.slane %v548, 4
      %v551 = vshll.u32 %v407, 16
      %v553 = vrot.slane %v551, 5
      %v554 = vsel %vm444, %v549, %v553
      %v555 = vshrl.u32 %v407, 16
      %v557 = vrot.slane %v555, 4
      %v558 = vor.u32 %v557, %v553
      %v559 = vrot.slane %v558, 4
      %v561 = vshll.u32 %v408, 16
      %v563 = vrot.slane %v561, 5
      %v564 = vsel %vm444, %v559, %v563
      %v566 = vshrl.u32 %v409, 16
      %v568 = vrot.slane %v566, 4
      %v569 = vshll.u32 %v409, 16
      %v571 = vrot.slane %v569, 5
      %v572 = vor.u32 %v568, %v571
      %v573 = vrot.slane %v572, 4
      %v575 = vshll.u32 %v410, 16
      %v577 = vrot.slane %v575, 5
      %v578 = vsel %vm444, %v573, %v577
      %v579 = vshrl.u32 %v410, 16
      %v581 = vrot.slane %v579, 4
      %v582 = vor.u32 %v581, %v577
      %v583 = vrot.slane %v582, 4
      %v585 = vshll.u32 %v411, 16
      %v587 = vrot.slane %v585, 5
      %v588 = vsel %vm444, %v583, %v587
      %v590 = vshrl.u32 %v412, 16
      %v592 = vrot.slane %v590, 4
      %v593 = vshll.u32 %v412, 16
      %v595 = vrot.slane %v593, 5
      %v596 = vor.u32 %v592, %v595
      %v597 = vrot.slane %v596, 4
      %v599 = vshll.u32 %v413, 16
      %v601 = vrot.slane %v599, 5
      %v602 = vsel %vm444, %v597, %v601
      %v603 = vshrl.u32 %v413, 16
      %v605 = vrot.slane %v603, 4
      %v606 = vor.u32 %v605, %v601
      %v607 = vrot.slane %v606, 4
      %v609 = vshll.u32 %v414, 16
      %v611 = vrot.slane %v609, 5
      %v612 = vsel %vm444, %v607, %v611
      %v614 = vshrl.u32 %v415, 16
      %v616 = vrot.slane %v614, 4
      %v617 = vshll.u32 %v415, 16
      %v619 = vrot.slane %v617, 5
      %v620 = vor.u32 %v616, %v619
      %v621 = vrot.slane %v620, 4
      %v623 = vshll.u32 %v416, 16
      %v625 = vrot.slane %v623, 5
      %v626 = vsel %vm444, %v621, %v625
      %v627 = vshrl.u32 %v416, 16
      %v629 = vrot.slane %v627, 4
      %v630 = vor.u32 %v629, %v625
      %v631 = vrot.slane %v630, 4
      %v633 = vshll.u32 %v417, 16
      %v635 = vrot.slane %v633, 5
      %v636 = vsel %vm444, %v631, %v635
      %v638 = vshrl.u32 %v418, 16
      %v640 = vrot.slane %v638, 4
      %v641 = vshll.u32 %v418, 16
      %v643 = vrot.slane %v641, 5
      %v644 = vor.u32 %v640, %v643
      %v645 = vrot.slane %v644, 4
      %v647 = vshll.u32 %v419, 16
      %v649 = vrot.slane %v647, 5
      %v650 = vsel %vm444, %v645, %v649
      %v651 = vshrl.u32 %v419, 16
      %v653 = vrot.slane %v651, 4
      %v654 = vor.u32 %v653, %v649
      %v655 = vrot.slane %v654, 4
      %v657 = vshll.u32 %v420, 16
      %v659 = vrot.slane %v657, 5
      %v660 = vsel %vm444, %v655, %v659
      %v662 = vshrl.u32 %v421, 16
      %v664 = vrot.slane %v662, 4
      %v665 = vshll.u32 %v421, 16
      %v667 = vrot.slane %v665, 5
      %v668 = vor.u32 %v664, %v667
      %v669 = vrot.slane %v668, 4
      %v671 = vshll.u32 %v422, 16
      %v673 = vrot.slane %v671, 5
      %v674 = vsel %vm444, %v669, %v673
      %v675 = vshrl.u32 %v422, 16
      %v677 = vrot.slane %v675, 4
      %v678 = vor.u32 %v677, %v673
      %v679 = vrot.slane %v678, 4
      %v681 = vshll.u32 %v423, 16
      %v683 = vrot.slane %v681, 5
      %v684 = vsel %vm444, %v679, %v683
      %v686 = vshrl.u32 %v424, 16
      %v688 = vrot.slane %v686, 4
      %v689 = vshll.u32 %v424, 16
      %v691 = vrot.slane %v689, 5
      %v692 = vor.u32 %v688, %v691
      %v693 = vrot.slane %v692, 4
      %v695 = vshll.u32 %v425, 16
      %v697 = vrot.slane %v695, 5
      %v698 = vsel %vm444, %v693, %v697
      %v699 = vshrl.u32 %v425, 16
      %v701 = vrot.slane %v699, 4
      %v702 = vor.u32 %v701, %v697
      %v703 = vrot.slane %v702, 4
      %v705 = vshll.u32 %v426, 16
      %v707 = vrot.slane %v705, 5
      %v708 = vsel %vm444, %v703, %v707
      %v710 = vshrl.u32 %v427, 16
      %v712 = vrot.slane %v710, 4
      %v713 = vshll.u32 %v427, 16
      %v715 = vrot.slane %v713, 5
      %v716 = vor.u32 %v712, %v715
      %v717 = vrot.slane %v716, 4
      %v719 = vshll.u32 %v428, 16
      %v721 = vrot.slane %v719, 5
      %v722 = vsel %vm444, %v717, %v721
      %v723 = vshrl.u32 %v428, 16
      %v725 = vrot.slane %v723, 4
      %v726 = vor.u32 %v725, %v721
      %v727 = vrot.slane %v726, 4
      %v729 = vshll.u32 %v429, 16
      %v731 = vrot.slane %v729, 5
      %v732 = vsel %vm444, %v727, %v731
      %v734 = vshrl.u32 %v430, 16
      %v736 = vrot.slane %v734, 4
      %v737 = vshll.u32 %v430, 16
      %v739 = vrot.slane %v737, 5
      %v740 = vor.u32 %v736, %v739
      %v741 = vrot.slane %v740, 4
      %v743 = vshll.u32 %v431, 16
      %v745 = vrot.slane %v743, 5
      %v746 = vsel %vm444, %v741, %v745
      %v747 = vshrl.u32 %v431, 16
      %v749 = vrot.slane %v747, 4
      %v750 = vor.u32 %v749, %v745
      %v751 = vrot.slane %v750, 4
      %v753 = vshll.u32 %v432, 16
      %v755 = vrot.slane %v753, 5
      %v756 = vsel %vm444, %v751, %v755
      %v758 = vshrl.u32 %v433, 16
      %v760 = vrot.slane %v758, 4
      %v761 = vshll.u32 %v433, 16
      %v763 = vrot.slane %v761, 5
      %v764 = vor.u32 %v760, %v763
      %v765 = vrot.slane %v764, 4
      %v767 = vshll.u32 %v434, 16
      %v769 = vrot.slane %v767, 5
      %v770 = vsel %vm444, %v765, %v769
      %v771 = vshrl.u32 %v434, 16
      %v773 = vrot.slane %v771, 4
      %v774 = vor.u32 %v773, %v769
      %v775 = vrot.slane %v774, 4
      %v777 = vshll.u32 %v435, 16
      %v779 = vrot.slane %v777, 5
      %v780 = vsel %vm444, %v775, %v779
      %v782 = vshrl.u32 %v436, 16
      %v784 = vrot.slane %v782, 4
      %v785 = vshll.u32 %v436, 16
      %v787 = vrot.slane %v785, 5
      %v788 = vor.u32 %v784, %v787
      %v789 = vrot.slane %v788, 4
      %v791 = vshll.u32 %v437, 16
      %v793 = vrot.slane %v791, 5
      %v794 = vsel %vm444, %v789, %v793
      %v795 = vshrl.u32 %v437, 16
      %v797 = vrot.slane %v795, 4
      %v798 = vor.u32 %v797, %v793
      %v799 = vrot.slane %v798, 4
      %v801 = vshll.u32 %v438, 16
      %v803 = vrot.slane %v801, 5
      %v804 = vsel %vm444, %v799, %v803
      %v806 = vshrl.u32 %v439, 16
      %v808 = vrot.slane %v806, 4
      %v809 = vshll.u32 %v439, 16
      %v811 = vrot.slane %v809, 5
      %v812 = vor.u32 %v808, %v811
      %v813 = vrot.slane %v812, 4
      %v815 = vshll.u32 %v440, 16
      %v817 = vrot.slane %v815, 5
      %v818 = vsel %vm444, %v813, %v817
      %v819 = vshrl.u32 %v440, 16
      %v821 = vrot.slane %v819, 4
      %v822 = vor.u32 %v821, %v817
      %v823 = vrot.slane %v822, 4
      %v825 = vshll.u32 %v441, 16
      %v827 = vrot.slane %v825, 5
      %v828 = vsel %vm444, %v823, %v827
      %v829 = vunpack.c.l.b16 %v458
      %v830 = vunpack.c.l.b16 %v468
      %v831 = vunpack.c.l.b16 %v482
      %v832 = vunpack.c.l.b16 %v492
      %v833 = vunpack.c.l.b16 %v506
      %v834 = vunpack.c.l.b16 %v516
      %v835 = vunpack.c.l.b16 %v530
      %v836 = vunpack.c.l.b16 %v540
      %v837 = vunpack.c.l.b16 %v554
      %v838 = vunpack.c.l.b16 %v564
      %v839 = vunpack.c.l.b16 %v578
      %v840 = vunpack.c.l.b16 %v588
      %v841 = vunpack.c.l.b16 %v602
      %v842 = vunpack.c.l.b16 %v612
      %v843 = vunpack.c.l.b16 %v626
      %v844 = vunpack.c.l.b16 %v636
      %v845 = vunpack.c.l.b16 %v650
      %v846 = vunpack.c.l.b16 %v660
      %v847 = vunpack.c.l.b16 %v674
      %v848 = vunpack.c.l.b16 %v684
      %v849 = vunpack.c.l.b16 %v698
      %v850 = vunpack.c.l.b16 %v708
      %v851 = vunpack.c.l.b16 %v722
      %v852 = vunpack.c.l.b16 %v732
      %v853 = vunpack.c.l.b16 %v746
      %v854 = vunpack.c.l.b16 %v756
      %v855 = vunpack.c.l.b16 %v770
      %v856 = vunpack.c.l.b16 %v780
      %v857 = vunpack.c.l.b16 %v794
      %v858 = vunpack.c.l.b16 %v804
      %v859 = vunpack.c.l.b16 %v818
      %v860 = vunpack.c.l.b16 %v828
      %v861 = vpack.c.b16 %v830, %v829
      %v862 = vpack.c.b16 %v832, %v831
      %v863 = vpack.c.b16 %v834, %v833
      %v864 = vpack.c.b16 %v836, %v835
      %v865 = vpack.c.b16 %v838, %v837
      %v866 = vpack.c.b16 %v840, %v839
      %v867 = vpack.c.b16 %v842, %v841
      %v868 = vpack.c.b16 %v844, %v843
      %v869 = vpack.c.b16 %v846, %v845
      %v870 = vpack.c.b16 %v848, %v847
      %v871 = vpack.c.b16 %v850, %v849
      %v872 = vpack.c.b16 %v852, %v851
      %v873 = vpack.c.b16 %v854, %v853
      %v874 = vpack.c.b16 %v856, %v855
      %v875 = vpack.c.b16 %v858, %v857
      %v876 = vpack.c.b16 %v860, %v859
      %893 = vst [vmem:[#allocation2 + $0x8] sm:$0xff] %v861
      %894 = vst [vmem:[#allocation2 + $0x50] sm:$0xff] %v862
      %895 = vst [vmem:[#allocation2 + $0x98] sm:$0xff] %v863
      %896 = vst [vmem:[#allocation2 + $0xe0] sm:$0xff] %v864
      %897 = vst [vmem:[#allocation2 + $0x128] sm:$0xff] %v865
      %898 = vst [vmem:[#allocation2 + $0x170] sm:$0xff] %v866
      %899 = vst [vmem:[#allocation2 + $0x1b8] sm:$0xff] %v867
      %900 = vst [vmem:[#allocation2 + $0x200] sm:$0xff] %v868
      %901 = vst [vmem:[#allocation2 + $0x248] sm:$0xff] %v869
      %902 = vst [vmem:[#allocation2 + $0x290] sm:$0xff] %v870
      %903 = vst [vmem:[#allocation2 + $0x2d8] sm:$0xff] %v871
      %904 = vst [vmem:[#allocation2 + $0x320] sm:$0xff] %v872
      %905 = vst [vmem:[#allocation2 + $0x368] sm:$0xff] %v873
      %906 = vst [vmem:[#allocation2 + $0x3b0] sm:$0xff] %v874
      %907 = vst [vmem:[#allocation2 + $0x3f8] sm:$0xff] %v875
      %908 = vst [vmem:[#allocation2 + $0x440] sm:$0xff] %v876
      %v909 = vld [vmem:[%s249] sm:$0xe]
      %v910 = vld [vmem:[%s249 + $0x4] sm:$0xf]
      %v911 = vld [vmem:[%s249 + $0x8] sm:$0x1]
      %v912 = vld [vmem:[%s249 + $0xc] sm:$0xe]
      %v913 = vld [vmem:[%s249 + $0x10] sm:$0xf]
      %v914 = vld [vmem:[%s249 + $0x14] sm:$0x1]
      %v915 = vld [vmem:[%s249 + $0x18] sm:$0xe]
      %v916 = vld [vmem:[%s249 + $0x1c] sm:$0xf]
      %v917 = vld [vmem:[%s249 + $0x20] sm:$0x1]
      %v918 = vld [vmem:[%s249 + $0x24] sm:$0xe]
      %v919 = vld [vmem:[%s249 + $0x28] sm:$0xf]
      %v920 = vld [vmem:[%s249 + $0x2c] sm:$0x1]
      %v921 = vld [vmem:[%s249 + $0x30] sm:$0xe]
      %v922 = vld [vmem:[%s249 + $0x34] sm:$0xf]
      %v923 = vld [vmem:[%s249 + $0x38] sm:$0x1]
      %v924 = vld [vmem:[%s249 + $0x3c] sm:$0xe]
      %v925 = vld [vmem:[%s249 + $0x40] sm:$0xf]
      %v926 = vld [vmem:[%s249 + $0x44] sm:$0x1]
      %v927 = vld [vmem:[%s249 + $0x48] sm:$0xe]
      %v928 = vld [vmem:[%s249 + $0x4c] sm:$0xf]
      %v929 = vld [vmem:[%s249 + $0x50] sm:$0x1]
      %v930 = vld [vmem:[%s249 + $0x54] sm:$0xe]
      %v931 = vld [vmem:[%s249 + $0x58] sm:$0xf]
      %v932 = vld [vmem:[%s249 + $0x5c] sm:$0x1]
      %v933 = vld [vmem:[%s249 + $0x60] sm:$0xe]
      %v934 = vld [vmem:[%s249 + $0x64] sm:$0xf]
      %v935 = vld [vmem:[%s249 + $0x68] sm:$0x1]
      %v936 = vld [vmem:[%s249 + $0x6c] sm:$0xe]
      %v937 = vld [vmem:[%s249 + $0x70] sm:$0xf]
      %v938 = vld [vmem:[%s249 + $0x74] sm:$0x1]
      %v939 = vld [vmem:[%s249 + $0x78] sm:$0xe]
      %v940 = vld [vmem:[%s249 + $0x7c] sm:$0xf]
      %v941 = vld [vmem:[%s249 + $0x80] sm:$0x1]
      %v942 = vld [vmem:[%s249 + $0x84] sm:$0xe]
      %v943 = vld [vmem:[%s249 + $0x88] sm:$0xf]
      %v944 = vld [vmem:[%s249 + $0x8c] sm:$0x1]
      %v945 = vld [vmem:[%s249 + $0x90] sm:$0xe]
      %v946 = vld [vmem:[%s249 + $0x94] sm:$0xf]
      %v947 = vld [vmem:[%s249 + $0x98] sm:$0x1]
      %v948 = vld [vmem:[%s249 + $0x9c] sm:$0xe]
      %v949 = vld [vmem:[%s249 + $0xa0] sm:$0xf]
      %v950 = vld [vmem:[%s249 + $0xa4] sm:$0x1]
      %v951 = vld [vmem:[%s249 + $0xa8] sm:$0xe]
      %v952 = vld [vmem:[%s249 + $0xac] sm:$0xf]
      %v953 = vld [vmem:[%s249 + $0xb0] sm:$0x1]
      %v954 = vld [vmem:[%s249 + $0xb4] sm:$0xe]
      %v955 = vld [vmem:[%s249 + $0xb8] sm:$0xf]
      %v956 = vld [vmem:[%s249 + $0xbc] sm:$0x1]
      %vm1005 = vcmask 1042432
      %vm1006 = vcmask 1046532
      %vm1007 = vmor %vm1005, %vm1006
      %v1008 = vrot.slane %v909, 5
      %v1009 = vrot.slane %v1008, 4
      %v1010 = vrot.slane %v910, 5
      %v1011 = vsel %vm1007, %v1009, %v1010
      %v1012 = vrot.slane %v1010, 4
      %v1013 = vrot.slane %v911, 5
      %v1014 = vsel %vm1007, %v1012, %v1013
      %v1015 = vrot.slane %v912, 5
      %v1016 = vrot.slane %v1015, 4
      %v1017 = vrot.slane %v913, 5
      %v1018 = vsel %vm1007, %v1016, %v1017
      %v1019 = vrot.slane %v1017, 4
      %v1020 = vrot.slane %v914, 5
      %v1021 = vsel %vm1007, %v1019, %v1020
      %v1022 = vrot.slane %v915, 5
      %v1023 = vrot.slane %v1022, 4
      %v1024 = vrot.slane %v916, 5
      %v1025 = vsel %vm1007, %v1023, %v1024
      %v1026 = vrot.slane %v1024, 4
      %v1027 = vrot.slane %v917, 5
      %v1028 = vsel %vm1007, %v1026, %v1027
      %v1029 = vrot.slane %v918, 5
      %v1030 = vrot.slane %v1029, 4
      %v1031 = vrot.slane %v919, 5
      %v1032 = vsel %vm1007, %v1030, %v1031
      %v1033 = vrot.slane %v1031, 4
      %v1034 = vrot.slane %v920, 5
      %v1035 = vsel %vm1007, %v1033, %v1034
      %v1036 = vrot.slane %v921, 5
      %v1037 = vrot.slane %v1036, 4
      %v1038 = vrot.slane %v922, 5
      %v1039 = vsel %vm1007, %v1037, %v1038
      %v1040 = vrot.slane %v1038, 4
      %v1041 = vrot.slane %v923, 5
      %v1042 = vsel %vm1007, %v1040, %v1041
      %v1043 = vrot.slane %v924, 5
      %v1044 = vrot.slane %v1043, 4
      %v1045 = vrot.slane %v925, 5
      %v1046 = vsel %vm1007, %v1044, %v1045
      %v1047 = vrot.slane %v1045, 4
      %v1048 = vrot.slane %v926, 5
      %v1049 = vsel %vm1007, %v1047, %v1048
      %v1050 = vrot.slane %v927, 5
      %v1051 = vrot.slane %v1050, 4
      %v1052 = vrot.slane %v928, 5
      %v1053 = vsel %vm1007, %v1051, %v1052
      %v1054 = vrot.slane %v1052, 4
      %v1055 = vrot.slane %v929, 5
      %v1056 = vsel %vm1007, %v1054, %v1055
      %v1057 = vrot.slane %v930, 5
      %v1058 = vrot.slane %v1057, 4
      %v1059 = vrot.slane %v931, 5
      %v1060 = vsel %vm1007, %v1058, %v1059
      %v1061 = vrot.slane %v1059, 4
      %v1062 = vrot.slane %v932, 5
      %v1063 = vsel %vm1007, %v1061, %v1062
      %v1064 = vrot.slane %v933, 5
      %v1065 = vrot.slane %v1064, 4
      %v1066 = vrot.slane %v934, 5
      %v1067 = vsel %vm1007, %v1065, %v1066
      %v1068 = vrot.slane %v1066, 4
      %v1069 = vrot.slane %v935, 5
      %v1070 = vsel %vm1007, %v1068, %v1069
      %v1071 = vrot.slane %v936, 5
      %v1072 = vrot.slane %v1071, 4
      %v1073 = vrot.slane %v937, 5
      %v1074 = vsel %vm1007, %v1072, %v1073
      %v1075 = vrot.slane %v1073, 4
      %v1076 = vrot.slane %v938, 5
      %v1077 = vsel %vm1007, %v1075, %v1076
      %v1078 = vrot.slane %v939, 5
      %v1079 = vrot.slane %v1078, 4
      %v1080 = vrot.slane %v940, 5
      %v1081 = vsel %vm1007, %v1079, %v1080
      %v1082 = vrot.slane %v1080, 4
      %v1083 = vrot.slane %v941, 5
      %v1084 = vsel %vm1007, %v1082, %v1083
      %v1085 = vrot.slane %v942, 5
      %v1086 = vrot.slane %v1085, 4
      %v1087 = vrot.slane %v943, 5
      %v1088 = vsel %vm1007, %v1086, %v1087
      %v1089 = vrot.slane %v1087, 4
      %v1090 = vrot.slane %v944, 5
      %v1091 = vsel %vm1007, %v1089, %v1090
      %v1092 = vrot.slane %v945, 5
      %v1093 = vrot.slane %v1092, 4
      %v1094 = vrot.slane %v946, 5
      %v1095 = vsel %vm1007, %v1093, %v1094
      %v1096 = vrot.slane %v1094, 4
      %v1097 = vrot.slane %v947, 5
      %v1098 = vsel %vm1007, %v1096, %v1097
      %v1099 = vrot.slane %v948, 5
      %v1100 = vrot.slane %v1099, 4
      %v1101 = vrot.slane %v949, 5
      %v1102 = vsel %vm1007, %v1100, %v1101
      %v1103 = vrot.slane %v1101, 4
      %v1104 = vrot.slane %v950, 5
      %v1105 = vsel %vm1007, %v1103, %v1104
      %v1106 = vrot.slane %v951, 5
      %v1107 = vrot.slane %v1106, 4
      %v1108 = vrot.slane %v952, 5
      %v1109 = vsel %vm1007, %v1107, %v1108
      %v1110 = vrot.slane %v1108, 4
      %v1111 = vrot.slane %v953, 5
      %v1112 = vsel %vm1007, %v1110, %v1111
      %v1113 = vrot.slane %v954, 5
      %v1114 = vrot.slane %v1113, 4
      %v1115 = vrot.slane %v955, 5
      %v1116 = vsel %vm1007, %v1114, %v1115
      %v1117 = vrot.slane %v1115, 4
      %v1118 = vrot.slane %v956, 5
      %v1119 = vsel %vm1007, %v1117, %v1118
      %v1120 = vunpack.c.l.b16 %v1011
      %v1121 = vunpack.c.l.b16 %v1014
      %v1122 = vunpack.c.l.b16 %v1018
      %v1123 = vunpack.c.l.b16 %v1021
      %v1124 = vunpack.c.l.b16 %v1025
      %v1125 = vunpack.c.l.b16 %v1028
      %v1126 = vunpack.c.l.b16 %v1032
      %v1127 = vunpack.c.l.b16 %v1035
      %v1128 = vunpack.c.l.b16 %v1039
      %v1129 = vunpack.c.l.b16 %v1042
      %v1130 = vunpack.c.l.b16 %v1046
      %v1131 = vunpack.c.l.b16 %v1049
      %v1132 = vunpack.c.l.b16 %v1053
      %v1133 = vunpack.c.l.b16 %v1056
      %v1134 = vunpack.c.l.b16 %v1060
      %v1135 = vunpack.c.l.b16 %v1063
      %v1136 = vunpack.c.l.b16 %v1067
      %v1137 = vunpack.c.l.b16 %v1070
      %v1138 = vunpack.c.l.b16 %v1074
      %v1139 = vunpack.c.l.b16 %v1077
      %v1140 = vunpack.c.l.b16 %v1081
      %v1141 = vunpack.c.l.b16 %v1084
      %v1142 = vunpack.c.l.b16 %v1088
      %v1143 = vunpack.c.l.b16 %v1091
      %v1144 = vunpack.c.l.b16 %v1095
      %v1145 = vunpack.c.l.b16 %v1098
      %v1146 = vunpack.c.l.b16 %v1102
      %v1147 = vunpack.c.l.b16 %v1105
      %v1148 = vunpack.c.l.b16 %v1109
      %v1149 = vunpack.c.l.b16 %v1112
      %v1150 = vunpack.c.l.b16 %v1116
      %v1151 = vunpack.c.l.b16 %v1119
      %v1152 = vpack.c.b16 %v1121, %v1120
      %v1153 = vpack.c.b16 %v1123, %v1122
      %v1154 = vpack.c.b16 %v1125, %v1124
      %v1155 = vpack.c.b16 %v1127, %v1126
      %v1156 = vpack.c.b16 %v1129, %v1128
      %v1157 = vpack.c.b16 %v1131, %v1130
      %v1158 = vpack.c.b16 %v1133, %v1132
      %v1159 = vpack.c.b16 %v1135, %v1134
      %v1160 = vpack.c.b16 %v1137, %v1136
      %v1161 = vpack.c.b16 %v1139, %v1138
      %v1162 = vpack.c.b16 %v1141, %v1140
      %v1163 = vpack.c.b16 %v1143, %v1142
      %v1164 = vpack.c.b16 %v1145, %v1144
      %v1165 = vpack.c.b16 %v1147, %v1146
      %v1166 = vpack.c.b16 %v1149, %v1148
      %v1167 = vpack.c.b16 %v1151, %v1150
      %1184 = vst [vmem:[#allocation2 + $0x10] sm:$0xff] %v1152
      %1185 = vst [vmem:[#allocation2 + $0x58] sm:$0xff] %v1153
      %1186 = vst [vmem:[#allocation2 + $0xa0] sm:$0xff] %v1154
      %1187 = vst [vmem:[#allocation2 + $0xe8] sm:$0xff] %v1155
      %1188 = vst [vmem:[#allocation2 + $0x130] sm:$0xff] %v1156
      %1189 = vst [vmem:[#allocation2 + $0x178] sm:$0xff] %v1157
      %1190 = vst [vmem:[#allocation2 + $0x1c0] sm:$0xff] %v1158
      %1191 = vst [vmem:[#allocation2 + $0x208] sm:$0xff] %v1159
      %1192 = vst [vmem:[#allocation2 + $0x250] sm:$0xff] %v1160
      %1193 = vst [vmem:[#allocation2 + $0x298] sm:$0xff] %v1161
      %1194 = vst [vmem:[#allocation2 + $0x2e0] sm:$0xff] %v1162
      %1195 = vst [vmem:[#allocation2 + $0x328] sm:$0xff] %v1163
      %1196 = vst [vmem:[#allocation2 + $0x370] sm:$0xff] %v1164
      %1197 = vst [vmem:[#allocation2 + $0x3b8] sm:$0xff] %v1165
      %1198 = vst [vmem:[#allocation2 + $0x400] sm:$0xff] %v1166
      %1199 = vst [vmem:[#allocation2 + $0x448] sm:$0xff] %v1167
      %s1200 = sadd.s32 %s246, 1
      %s1201 = smul.u32 %s1200, 3
      %s1202 = smul.addr %s1201, 4
      %s1203 = scalar_lea.vmem %s224, %s1202
      %v1204 = vld [vmem:[%s1203] sm:$0xf]
      %v1205 = vld [vmem:[%s1203 + $0x4] sm:$0xf]
      %v1206 = vld [vmem:[%s1203 + $0xc] sm:$0xf]
      %v1207 = vld [vmem:[%s1203 + $0x10] sm:$0xf]
      %v1208 = vld [vmem:[%s1203 + $0x18] sm:$0xf]
      %v1209 = vld [vmem:[%s1203 + $0x1c] sm:$0xf]
      %v1210 = vld [vmem:[%s1203 + $0x24] sm:$0xf]
      %v1211 = vld [vmem:[%s1203 + $0x28] sm:$0xf]
      %v1212 = vld [vmem:[%s1203 + $0x30] sm:$0xf]
      %v1213 = vld [vmem:[%s1203 + $0x34] sm:$0xf]
      %v1214 = vld [vmem:[%s1203 + $0x3c] sm:$0xf]
      %v1215 = vld [vmem:[%s1203 + $0x40] sm:$0xf]
      %v1216 = vld [vmem:[%s1203 + $0x48] sm:$0xf]
      %v1217 = vld [vmem:[%s1203 + $0x4c] sm:$0xf]
      %v1218 = vld [vmem:[%s1203 + $0x54] sm:$0xf]
      %v1219 = vld [vmem:[%s1203 + $0x58] sm:$0xf]
      %v1220 = vld [vmem:[%s1203 + $0x60] sm:$0xf]
      %v1221 = vld [vmem:[%s1203 + $0x64] sm:$0xf]
      %v1222 = vld [vmem:[%s1203 + $0x6c] sm:$0xf]
      %v1223 = vld [vmem:[%s1203 + $0x70] sm:$0xf]
      %v1224 = vld [vmem:[%s1203 + $0x78] sm:$0xf]
      %v1225 = vld [vmem:[%s1203 + $0x7c] sm:$0xf]
      %v1226 = vld [vmem:[%s1203 + $0x84] sm:$0xf]
      %v1227 = vld [vmem:[%s1203 + $0x88] sm:$0xf]
      %v1228 = vld [vmem:[%s1203 + $0x90] sm:$0xf]
      %v1229 = vld [vmem:[%s1203 + $0x94] sm:$0xf]
      %v1230 = vld [vmem:[%s1203 + $0x9c] sm:$0xf]
      %v1231 = vld [vmem:[%s1203 + $0xa0] sm:$0xf]
      %v1232 = vld [vmem:[%s1203 + $0xa8] sm:$0xf]
      %v1233 = vld [vmem:[%s1203 + $0xac] sm:$0xf]
      %v1234 = vld [vmem:[%s1203 + $0xb4] sm:$0xf]
      %v1235 = vld [vmem:[%s1203 + $0xb8] sm:$0xf]
      %v1268 = vunpack.c.l.b16 %v1204
      %v1269 = vunpack.c.l.b16 %v1205
      %v1270 = vunpack.c.l.b16 %v1206
      %v1271 = vunpack.c.l.b16 %v1207
      %v1272 = vunpack.c.l.b16 %v1208
      %v1273 = vunpack.c.l.b16 %v1209
      %v1274 = vunpack.c.l.b16 %v1210
      %v1275 = vunpack.c.l.b16 %v1211
      %v1276 = vunpack.c.l.b16 %v1212
      %v1277 = vunpack.c.l.b16 %v1213
      %v1278 = vunpack.c.l.b16 %v1214
      %v1279 = vunpack.c.l.b16 %v1215
      %v1280 = vunpack.c.l.b16 %v1216
      %v1281 = vunpack.c.l.b16 %v1217
      %v1282 = vunpack.c.l.b16 %v1218
      %v1283 = vunpack.c.l.b16 %v1219
      %v1284 = vunpack.c.l.b16 %v1220
      %v1285 = vunpack.c.l.b16 %v1221
      %v1286 = vunpack.c.l.b16 %v1222
      %v1287 = vunpack.c.l.b16 %v1223
      %v1288 = vunpack.c.l.b16 %v1224
      %v1289 = vunpack.c.l.b16 %v1225
      %v1290 = vunpack.c.l.b16 %v1226
      %v1291 = vunpack.c.l.b16 %v1227
      %v1292 = vunpack.c.l.b16 %v1228
      %v1293 = vunpack.c.l.b16 %v1229
      %v1294 = vunpack.c.l.b16 %v1230
      %v1295 = vunpack.c.l.b16 %v1231
      %v1296 = vunpack.c.l.b16 %v1232
      %v1297 = vunpack.c.l.b16 %v1233
      %v1298 = vunpack.c.l.b16 %v1234
      %v1299 = vunpack.c.l.b16 %v1235
      %v1300 = vpack.c.b16 %v1269, %v1268
      %v1301 = vpack.c.b16 %v1271, %v1270
      %v1302 = vpack.c.b16 %v1273, %v1272
      %v1303 = vpack.c.b16 %v1275, %v1274
      %v1304 = vpack.c.b16 %v1277, %v1276
      %v1305 = vpack.c.b16 %v1279, %v1278
      %v1306 = vpack.c.b16 %v1281, %v1280
      %v1307 = vpack.c.b16 %v1283, %v1282
      %v1308 = vpack.c.b16 %v1285, %v1284
      %v1309 = vpack.c.b16 %v1287, %v1286
      %v1310 = vpack.c.b16 %v1289, %v1288
      %v1311 = vpack.c.b16 %v1291, %v1290
      %v1312 = vpack.c.b16 %v1293, %v1292
      %v1313 = vpack.c.b16 %v1295, %v1294
      %v1314 = vpack.c.b16 %v1297, %v1296
      %v1315 = vpack.c.b16 %v1299, %v1298
      %1332 = vst [vmem:[#allocation2 + $0x18] sm:$0xff] %v1300
      %1333 = vst [vmem:[#allocation2 + $0x60] sm:$0xff] %v1301
      %1334 = vst [vmem:[#allocation2 + $0xa8] sm:$0xff] %v1302
      %1335 = vst [vmem:[#allocation2 + $0xf0] sm:$0xff] %v1303
      %1336 = vst [vmem:[#allocation2 + $0x138] sm:$0xff] %v1304
      %1337 = vst [vmem:[#allocation2 + $0x180] sm:$0xff] %v1305
      %1338 = vst [vmem:[#allocation2 + $0x1c8] sm:$0xff] %v1306
      %1339 = vst [vmem:[#allocation2 + $0x210] sm:$0xff] %v1307
      %1340 = vst [vmem:[#allocation2 + $0x258] sm:$0xff] %v1308
      %1341 = vst [vmem:[#allocation2 + $0x2a0] sm:$0xff] %v1309
      %1342 = vst [vmem:[#allocation2 + $0x2e8] sm:$0xff] %v1310
      %1343 = vst [vmem:[#allocation2 + $0x330] sm:$0xff] %v1311
      %1344 = vst [vmem:[#allocation2 + $0x378] sm:$0xff] %v1312
      %1345 = vst [vmem:[#allocation2 + $0x3c0] sm:$0xff] %v1313
      %1346 = vst [vmem:[#allocation2 + $0x408] sm:$0xff] %v1314
      %1347 = vst [vmem:[#allocation2 + $0x450] sm:$0xff] %v1315
      %v1348 = vld [vmem:[%s1203] sm:$0xf]
      %v1349 = vld [vmem:[%s1203 + $0x4] sm:$0xf]
      %v1350 = vld [vmem:[%s1203 + $0x8] sm:$0x1]
      %v1351 = vld [vmem:[%s1203 + $0xc] sm:$0xf]
      %v1352 = vld [vmem:[%s1203 + $0x10] sm:$0xf]
      %v1353 = vld [vmem:[%s1203 + $0x14] sm:$0x1]
      %v1354 = vld [vmem:[%s1203 + $0x18] sm:$0xf]
      %v1355 = vld [vmem:[%s1203 + $0x1c] sm:$0xf]
      %v1356 = vld [vmem:[%s1203 + $0x20] sm:$0x1]
      %v1357 = vld [vmem:[%s1203 + $0x24] sm:$0xf]
      %v1358 = vld [vmem:[%s1203 + $0x28] sm:$0xf]
      %v1359 = vld [vmem:[%s1203 + $0x2c] sm:$0x1]
      %v1360 = vld [vmem:[%s1203 + $0x30] sm:$0xf]
      %v1361 = vld [vmem:[%s1203 + $0x34] sm:$0xf]
      %v1362 = vld [vmem:[%s1203 + $0x38] sm:$0x1]
      %v1363 = vld [vmem:[%s1203 + $0x3c] sm:$0xf]
      %v1364 = vld [vmem:[%s1203 + $0x40] sm:$0xf]
      %v1365 = vld [vmem:[%s1203 + $0x44] sm:$0x1]
      %v1366 = vld [vmem:[%s1203 + $0x48] sm:$0xf]
      %v1367 = vld [vmem:[%s1203 + $0x4c] sm:$0xf]
      %v1368 = vld [vmem:[%s1203 + $0x50] sm:$0x1]
      %v1369 = vld [vmem:[%s1203 + $0x54] sm:$0xf]
      %v1370 = vld [vmem:[%s1203 + $0x58] sm:$0xf]
      %v1371 = vld [vmem:[%s1203 + $0x5c] sm:$0x1]
      %v1372 = vld [vmem:[%s1203 + $0x60] sm:$0xf]
      %v1373 = vld [vmem:[%s1203 + $0x64] sm:$0xf]
      %v1374 = vld [vmem:[%s1203 + $0x68] sm:$0x1]
      %v1375 = vld [vmem:[%s1203 + $0x6c] sm:$0xf]
      %v1376 = vld [vmem:[%s1203 + $0x70] sm:$0xf]
      %v1377 = vld [vmem:[%s1203 + $0x74] sm:$0x1]
      %v1378 = vld [vmem:[%s1203 + $0x78] sm:$0xf]
      %v1379 = vld [vmem:[%s1203 + $0x7c] sm:$0xf]
      %v1380 = vld [vmem:[%s1203 + $0x80] sm:$0x1]
      %v1381 = vld [vmem:[%s1203 + $0x84] sm:$0xf]
      %v1382 = vld [vmem:[%s1203 + $0x88] sm:$0xf]
      %v1383 = vld [vmem:[%s1203 + $0x8c] sm:$0x1]
      %v1384 = vld [vmem:[%s1203 + $0x90] sm:$0xf]
      %v1385 = vld [vmem:[%s1203 + $0x94] sm:$0xf]
      %v1386 = vld [vmem:[%s1203 + $0x98] sm:$0x1]
      %v1387 = vld [vmem:[%s1203 + $0x9c] sm:$0xf]
      %v1388 = vld [vmem:[%s1203 + $0xa0] sm:$0xf]
      %v1389 = vld [vmem:[%s1203 + $0xa4] sm:$0x1]
      %v1390 = vld [vmem:[%s1203 + $0xa8] sm:$0xf]
      %v1391 = vld [vmem:[%s1203 + $0xac] sm:$0xf]
      %v1392 = vld [vmem:[%s1203 + $0xb0] sm:$0x1]
      %v1393 = vld [vmem:[%s1203 + $0xb4] sm:$0xf]
      %v1394 = vld [vmem:[%s1203 + $0xb8] sm:$0xf]
      %v1395 = vld [vmem:[%s1203 + $0xbc] sm:$0x1]
      %v1397 = vshrl.u32 %v1348, 16
      %v1399 = vrot.slane %v1397, 4
      %v1400 = vshll.u32 %v1348, 16
      %v1402 = vrot.slane %v1400, 5
      %v1403 = vor.u32 %v1399, %v1402
      %v1404 = vrot.slane %v1403, 4
      %v1406 = vshll.u32 %v1349, 16
      %v1408 = vrot.slane %v1406, 5
      %v1409 = vsel %vm444, %v1404, %v1408
      %v1410 = vshrl.u32 %v1349, 16
      %v1412 = vrot.slane %v1410, 4
      %v1413 = vor.u32 %v1412, %v1408
      %v1414 = vrot.slane %v1413, 4
      %v1416 = vshll.u32 %v1350, 16
      %v1418 = vrot.slane %v1416, 5
      %v1419 = vsel %vm444, %v1414, %v1418
      %v1421 = vshrl.u32 %v1351, 16
      %v1423 = vrot.slane %v1421, 4
      %v1424 = vshll.u32 %v1351, 16
      %v1426 = vrot.slane %v1424, 5
      %v1427 = vor.u32 %v1423, %v1426
      %v1428 = vrot.slane %v1427, 4
      %v1430 = vshll.u32 %v1352, 16
      %v1432 = vrot.slane %v1430, 5
      %v1433 = vsel %vm444, %v1428, %v1432
      %v1434 = vshrl.u32 %v1352, 16
      %v1436 = vrot.slane %v1434, 4
      %v1437 = vor.u32 %v1436, %v1432
      %v1438 = vrot.slane %v1437, 4
      %v1440 = vshll.u32 %v1353, 16
      %v1442 = vrot.slane %v1440, 5
      %v1443 = vsel %vm444, %v1438, %v1442
      %v1445 = vshrl.u32 %v1354, 16
      %v1447 = vrot.slane %v1445, 4
      %v1448 = vshll.u32 %v1354, 16
      %v1450 = vrot.slane %v1448, 5
      %v1451 = vor.u32 %v1447, %v1450
      %v1452 = vrot.slane %v1451, 4
      %v1454 = vshll.u32 %v1355, 16
      %v1456 = vrot.slane %v1454, 5
      %v1457 = vsel %vm444, %v1452, %v1456
      %v1458 = vshrl.u32 %v1355, 16
      %v1460 = vrot.slane %v1458, 4
      %v1461 = vor.u32 %v1460, %v1456
      %v1462 = vrot.slane %v1461, 4
      %v1464 = vshll.u32 %v1356, 16
      %v1466 = vrot.slane %v1464, 5
      %v1467 = vsel %vm444, %v1462, %v1466
      %v1469 = vshrl.u32 %v1357, 16
      %v1471 = vrot.slane %v1469, 4
      %v1472 = vshll.u32 %v1357, 16
      %v1474 = vrot.slane %v1472, 5
      %v1475 = vor.u32 %v1471, %v1474
      %v1476 = vrot.slane %v1475, 4
      %v1478 = vshll.u32 %v1358, 16
      %v1480 = vrot.slane %v1478, 5
      %v1481 = vsel %vm444, %v1476, %v1480
      %v1482 = vshrl.u32 %v1358, 16
      %v1484 = vrot.slane %v1482, 4
      %v1485 = vor.u32 %v1484, %v1480
      %v1486 = vrot.slane %v1485, 4
      %v1488 = vshll.u32 %v1359, 16
      %v1490 = vrot.slane %v1488, 5
      %v1491 = vsel %vm444, %v1486, %v1490
      %v1493 = vshrl.u32 %v1360, 16
      %v1495 = vrot.slane %v1493, 4
      %v1496 = vshll.u32 %v1360, 16
      %v1498 = vrot.slane %v1496, 5
      %v1499 = vor.u32 %v1495, %v1498
      %v1500 = vrot.slane %v1499, 4
      %v1502 = vshll.u32 %v1361, 16
      %v1504 = vrot.slane %v1502, 5
      %v1505 = vsel %vm444, %v1500, %v1504
      %v1506 = vshrl.u32 %v1361, 16
      %v1508 = vrot.slane %v1506, 4
      %v1509 = vor.u32 %v1508, %v1504
      %v1510 = vrot.slane %v1509, 4
      %v1512 = vshll.u32 %v1362, 16
      %v1514 = vrot.slane %v1512, 5
      %v1515 = vsel %vm444, %v1510, %v1514
      %v1517 = vshrl.u32 %v1363, 16
      %v1519 = vrot.slane %v1517, 4
      %v1520 = vshll.u32 %v1363, 16
      %v1522 = vrot.slane %v1520, 5
      %v1523 = vor.u32 %v1519, %v1522
      %v1524 = vrot.slane %v1523, 4
      %v1526 = vshll.u32 %v1364, 16
      %v1528 = vrot.slane %v1526, 5
      %v1529 = vsel %vm444, %v1524, %v1528
      %v1530 = vshrl.u32 %v1364, 16
      %v1532 = vrot.slane %v1530, 4
      %v1533 = vor.u32 %v1532, %v1528
      %v1534 = vrot.slane %v1533, 4
      %v1536 = vshll.u32 %v1365, 16
      %v1538 = vrot.slane %v1536, 5
      %v1539 = vsel %vm444, %v1534, %v1538
      %v1541 = vshrl.u32 %v1366, 16
      %v1543 = vrot.slane %v1541, 4
      %v1544 = vshll.u32 %v1366, 16
      %v1546 = vrot.slane %v1544, 5
      %v1547 = vor.u32 %v1543, %v1546
      %v1548 = vrot.slane %v1547, 4
      %v1550 = vshll.u32 %v1367, 16
      %v1552 = vrot.slane %v1550, 5
      %v1553 = vsel %vm444, %v1548, %v1552
      %v1554 = vshrl.u32 %v1367, 16
      %v1556 = vrot.slane %v1554, 4
      %v1557 = vor.u32 %v1556, %v1552
      %v1558 = vrot.slane %v1557, 4
      %v1560 = vshll.u32 %v1368, 16
      %v1562 = vrot.slane %v1560, 5
      %v1563 = vsel %vm444, %v1558, %v1562
      %v1565 = vshrl.u32 %v1369, 16
      %v1567 = vrot.slane %v1565, 4
      %v1568 = vshll.u32 %v1369, 16
      %v1570 = vrot.slane %v1568, 5
      %v1571 = vor.u32 %v1567, %v1570
      %v1572 = vrot.slane %v1571, 4
      %v1574 = vshll.u32 %v1370, 16
      %v1576 = vrot.slane %v1574, 5
      %v1577 = vsel %vm444, %v1572, %v1576
      %v1578 = vshrl.u32 %v1370, 16
      %v1580 = vrot.slane %v1578, 4
      %v1581 = vor.u32 %v1580, %v1576
      %v1582 = vrot.slane %v1581, 4
      %v1584 = vshll.u32 %v1371, 16
      %v1586 = vrot.slane %v1584, 5
      %v1587 = vsel %vm444, %v1582, %v1586
      %v1589 = vshrl.u32 %v1372, 16
      %v1591 = vrot.slane %v1589, 4
      %v1592 = vshll.u32 %v1372, 16
      %v1594 = vrot.slane %v1592, 5
      %v1595 = vor.u32 %v1591, %v1594
      %v1596 = vrot.slane %v1595, 4
      %v1598 = vshll.u32 %v1373, 16
      %v1600 = vrot.slane %v1598, 5
      %v1601 = vsel %vm444, %v1596, %v1600
      %v1602 = vshrl.u32 %v1373, 16
      %v1604 = vrot.slane %v1602, 4
      %v1605 = vor.u32 %v1604, %v1600
      %v1606 = vrot.slane %v1605, 4
      %v1608 = vshll.u32 %v1374, 16
      %v1610 = vrot.slane %v1608, 5
      %v1611 = vsel %vm444, %v1606, %v1610
      %v1613 = vshrl.u32 %v1375, 16
      %v1615 = vrot.slane %v1613, 4
      %v1616 = vshll.u32 %v1375, 16
      %v1618 = vrot.slane %v1616, 5
      %v1619 = vor.u32 %v1615, %v1618
      %v1620 = vrot.slane %v1619, 4
      %v1622 = vshll.u32 %v1376, 16
      %v1624 = vrot.slane %v1622, 5
      %v1625 = vsel %vm444, %v1620, %v1624
      %v1626 = vshrl.u32 %v1376, 16
      %v1628 = vrot.slane %v1626, 4
      %v1629 = vor.u32 %v1628, %v1624
      %v1630 = vrot.slane %v1629, 4
      %v1632 = vshll.u32 %v1377, 16
      %v1634 = vrot.slane %v1632, 5
      %v1635 = vsel %vm444, %v1630, %v1634
      %v1637 = vshrl.u32 %v1378, 16
      %v1639 = vrot.slane %v1637, 4
      %v1640 = vshll.u32 %v1378, 16
      %v1642 = vrot.slane %v1640, 5
      %v1643 = vor.u32 %v1639, %v1642
      %v1644 = vrot.slane %v1643, 4
      %v1646 = vshll.u32 %v1379, 16
      %v1648 = vrot.slane %v1646, 5
      %v1649 = vsel %vm444, %v1644, %v1648
      %v1650 = vshrl.u32 %v1379, 16
      %v1652 = vrot.slane %v1650, 4
      %v1653 = vor.u32 %v1652, %v1648
      %v1654 = vrot.slane %v1653, 4
      %v1656 = vshll.u32 %v1380, 16
      %v1658 = vrot.slane %v1656, 5
      %v1659 = vsel %vm444, %v1654, %v1658
      %v1661 = vshrl.u32 %v1381, 16
      %v1663 = vrot.slane %v1661, 4
      %v1664 = vshll.u32 %v1381, 16
      %v1666 = vrot.slane %v1664, 5
      %v1667 = vor.u32 %v1663, %v1666
      %v1668 = vrot.slane %v1667, 4
      %v1670 = vshll.u32 %v1382, 16
      %v1672 = vrot.slane %v1670, 5
      %v1673 = vsel %vm444, %v1668, %v1672
      %v1674 = vshrl.u32 %v1382, 16
      %v1676 = vrot.slane %v1674, 4
      %v1677 = vor.u32 %v1676, %v1672
      %v1678 = vrot.slane %v1677, 4
      %v1680 = vshll.u32 %v1383, 16
      %v1682 = vrot.slane %v1680, 5
      %v1683 = vsel %vm444, %v1678, %v1682
      %v1685 = vshrl.u32 %v1384, 16
      %v1687 = vrot.slane %v1685, 4
      %v1688 = vshll.u32 %v1384, 16
      %v1690 = vrot.slane %v1688, 5
      %v1691 = vor.u32 %v1687, %v1690
      %v1692 = vrot.slane %v1691, 4
      %v1694 = vshll.u32 %v1385, 16
      %v1696 = vrot.slane %v1694, 5
      %v1697 = vsel %vm444, %v1692, %v1696
      %v1698 = vshrl.u32 %v1385, 16
      %v1700 = vrot.slane %v1698, 4
      %v1701 = vor.u32 %v1700, %v1696
      %v1702 = vrot.slane %v1701, 4
      %v1704 = vshll.u32 %v1386, 16
      %v1706 = vrot.slane %v1704, 5
      %v1707 = vsel %vm444, %v1702, %v1706
      %v1709 = vshrl.u32 %v1387, 16
      %v1711 = vrot.slane %v1709, 4
      %v1712 = vshll.u32 %v1387, 16
      %v1714 = vrot.slane %v1712, 5
      %v1715 = vor.u32 %v1711, %v1714
      %v1716 = vrot.slane %v1715, 4
      %v1718 = vshll.u32 %v1388, 16
      %v1720 = vrot.slane %v1718, 5
      %v1721 = vsel %vm444, %v1716, %v1720
      %v1722 = vshrl.u32 %v1388, 16
      %v1724 = vrot.slane %v1722, 4
      %v1725 = vor.u32 %v1724, %v1720
      %v1726 = vrot.slane %v1725, 4
      %v1728 = vshll.u32 %v1389, 16
      %v1730 = vrot.slane %v1728, 5
      %v1731 = vsel %vm444, %v1726, %v1730
      %v1733 = vshrl.u32 %v1390, 16
      %v1735 = vrot.slane %v1733, 4
      %v1736 = vshll.u32 %v1390, 16
      %v1738 = vrot.slane %v1736, 5
      %v1739 = vor.u32 %v1735, %v1738
      %v1740 = vrot.slane %v1739, 4
      %v1742 = vshll.u32 %v1391, 16
      %v1744 = vrot.slane %v1742, 5
      %v1745 = vsel %vm444, %v1740, %v1744
      %v1746 = vshrl.u32 %v1391, 16
      %v1748 = vrot.slane %v1746, 4
      %v1749 = vor.u32 %v1748, %v1744
      %v1750 = vrot.slane %v1749, 4
      %v1752 = vshll.u32 %v1392, 16
      %v1754 = vrot.slane %v1752, 5
      %v1755 = vsel %vm444, %v1750, %v1754
      %v1757 = vshrl.u32 %v1393, 16
      %v1759 = vrot.slane %v1757, 4
      %v1760 = vshll.u32 %v1393, 16
      %v1762 = vrot.slane %v1760, 5
      %v1763 = vor.u32 %v1759, %v1762
      %v1764 = vrot.slane %v1763, 4
      %v1766 = vshll.u32 %v1394, 16
      %v1768 = vrot.slane %v1766, 5
      %v1769 = vsel %vm444, %v1764, %v1768
      %v1770 = vshrl.u32 %v1394, 16
      %v1772 = vrot.slane %v1770, 4
      %v1773 = vor.u32 %v1772, %v1768
      %v1774 = vrot.slane %v1773, 4
      %v1776 = vshll.u32 %v1395, 16
      %v1778 = vrot.slane %v1776, 5
      %v1779 = vsel %vm444, %v1774, %v1778
      %v1780 = vunpack.c.l.b16 %v1409
      %v1781 = vunpack.c.l.b16 %v1419
      %v1782 = vunpack.c.l.b16 %v1433
      %v1783 = vunpack.c.l.b16 %v1443
      %v1784 = vunpack.c.l.b16 %v1457
      %v1785 = vunpack.c.l.b16 %v1467
      %v1786 = vunpack.c.l.b16 %v1481
      %v1787 = vunpack.c.l.b16 %v1491
      %v1788 = vunpack.c.l.b16 %v1505
      %v1789 = vunpack.c.l.b16 %v1515
      %v1790 = vunpack.c.l.b16 %v1529
      %v1791 = vunpack.c.l.b16 %v1539
      %v1792 = vunpack.c.l.b16 %v1553
      %v1793 = vunpack.c.l.b16 %v1563
      %v1794 = vunpack.c.l.b16 %v1577
      %v1795 = vunpack.c.l.b16 %v1587
      %v1796 = vunpack.c.l.b16 %v1601
      %v1797 = vunpack.c.l.b16 %v1611
      %v1798 = vunpack.c.l.b16 %v1625
      %v1799 = vunpack.c.l.b16 %v1635
      %v1800 = vunpack.c.l.b16 %v1649
      %v1801 = vunpack.c.l.b16 %v1659
      %v1802 = vunpack.c.l.b16 %v1673
      %v1803 = vunpack.c.l.b16 %v1683
      %v1804 = vunpack.c.l.b16 %v1697
      %v1805 = vunpack.c.l.b16 %v1707
      %v1806 = vunpack.c.l.b16 %v1721
      %v1807 = vunpack.c.l.b16 %v1731
      %v1808 = vunpack.c.l.b16 %v1745
      %v1809 = vunpack.c.l.b16 %v1755
      %v1810 = vunpack.c.l.b16 %v1769
      %v1811 = vunpack.c.l.b16 %v1779
      %v1812 = vpack.c.b16 %v1781, %v1780
      %v1813 = vpack.c.b16 %v1783, %v1782
      %v1814 = vpack.c.b16 %v1785, %v1784
      %v1815 = vpack.c.b16 %v1787, %v1786
      %v1816 = vpack.c.b16 %v1789, %v1788
      %v1817 = vpack.c.b16 %v1791, %v1790
      %v1818 = vpack.c.b16 %v1793, %v1792
      %v1819 = vpack.c.b16 %v1795, %v1794
      %v1820 = vpack.c.b16 %v1797, %v1796
      %v1821 = vpack.c.b16 %v1799, %v1798
      %v1822 = vpack.c.b16 %v1801, %v1800
      %v1823 = vpack.c.b16 %v1803, %v1802
      %v1824 = vpack.c.b16 %v1805, %v1804
      %v1825 = vpack.c.b16 %v1807, %v1806
      %v1826 = vpack.c.b16 %v1809, %v1808
      %v1827 = vpack.c.b16 %v1811, %v1810
      %1844 = vst [vmem:[#allocation2 + $0x20] sm:$0xff] %v1812
      %1845 = vst [vmem:[#allocation2 + $0x68] sm:$0xff] %v1813
      %1846 = vst [vmem:[#allocation2 + $0xb0] sm:$0xff] %v1814
      %1847 = vst [vmem:[#allocation2 + $0xf8] sm:$0xff] %v1815
      %1848 = vst [vmem:[#allocation2 + $0x140] sm:$0xff] %v1816
      %1849 = vst [vmem:[#allocation2 + $0x188] sm:$0xff] %v1817
      %1850 = vst [vmem:[#allocation2 + $0x1d0] sm:$0xff] %v1818
      %1851 = vst [vmem:[#allocation2 + $0x218] sm:$0xff] %v1819
      %1852 = vst [vmem:[#allocation2 + $0x260] sm:$0xff] %v1820
      %1853 = vst [vmem:[#allocation2 + $0x2a8] sm:$0xff] %v1821
      %1854 = vst [vmem:[#allocation2 + $0x2f0] sm:$0xff] %v1822
      %1855 = vst [vmem:[#allocation2 + $0x338] sm:$0xff] %v1823
      %1856 = vst [vmem:[#allocation2 + $0x380] sm:$0xff] %v1824
      %1857 = vst [vmem:[#allocation2 + $0x3c8] sm:$0xff] %v1825
      %1858 = vst [vmem:[#allocation2 + $0x410] sm:$0xff] %v1826
      %1859 = vst [vmem:[#allocation2 + $0x458] sm:$0xff] %v1827
      %v1860 = vld [vmem:[%s1203] sm:$0xe]
      %v1861 = vld [vmem:[%s1203 + $0x4] sm:$0xf]
      %v1862 = vld [vmem:[%s1203 + $0x8] sm:$0x1]
      %v1863 = vld [vmem:[%s1203 + $0xc] sm:$0xe]
      %v1864 = vld [vmem:[%s1203 + $0x10] sm:$0xf]
      %v1865 = vld [vmem:[%s1203 + $0x14] sm:$0x1]
      %v1866 = vld [vmem:[%s1203 + $0x18] sm:$0xe]
      %v1867 = vld [vmem:[%s1203 + $0x1c] sm:$0xf]
      %v1868 = vld [vmem:[%s1203 + $0x20] sm:$0x1]
      %v1869 = vld [vmem:[%s1203 + $0x24] sm:$0xe]
      %v1870 = vld [vmem:[%s1203 + $0x28] sm:$0xf]
      %v1871 = vld [vmem:[%s1203 + $0x2c] sm:$0x1]
      %v1872 = vld [vmem:[%s1203 + $0x30] sm:$0xe]
      %v1873 = vld [vmem:[%s1203 + $0x34] sm:$0xf]
      %v1874 = vld [vmem:[%s1203 + $0x38] sm:$0x1]
      %v1875 = vld [vmem:[%s1203 + $0x3c] sm:$0xe]
      %v1876 = vld [vmem:[%s1203 + $0x40] sm:$0xf]
      %v1877 = vld [vmem:[%s1203 + $0x44] sm:$0x1]
      %v1878 = vld [vmem:[%s1203 + $0x48] sm:$0xe]
      %v1879 = vld [vmem:[%s1203 + $0x4c] sm:$0xf]
      %v1880 = vld [vmem:[%s1203 + $0x50] sm:$0x1]
      %v1881 = vld [vmem:[%s1203 + $0x54] sm:$0xe]
      %v1882 = vld [vmem:[%s1203 + $0x58] sm:$0xf]
      %v1883 = vld [vmem:[%s1203 + $0x5c] sm:$0x1]
      %v1884 = vld [vmem:[%s1203 + $0x60] sm:$0xe]
      %v1885 = vld [vmem:[%s1203 + $0x64] sm:$0xf]
      %v1886 = vld [vmem:[%s1203 + $0x68] sm:$0x1]
      %v1887 = vld [vmem:[%s1203 + $0x6c] sm:$0xe]
      %v1888 = vld [vmem:[%s1203 + $0x70] sm:$0xf]
      %v1889 = vld [vmem:[%s1203 + $0x74] sm:$0x1]
      %v1890 = vld [vmem:[%s1203 + $0x78] sm:$0xe]
      %v1891 = vld [vmem:[%s1203 + $0x7c] sm:$0xf]
      %v1892 = vld [vmem:[%s1203 + $0x80] sm:$0x1]
      %v1893 = vld [vmem:[%s1203 + $0x84] sm:$0xe]
      %v1894 = vld [vmem:[%s1203 + $0x88] sm:$0xf]
      %v1895 = vld [vmem:[%s1203 + $0x8c] sm:$0x1]
      %v1896 = vld [vmem:[%s1203 + $0x90] sm:$0xe]
      %v1897 = vld [vmem:[%s1203 + $0x94] sm:$0xf]
      %v1898 = vld [vmem:[%s1203 + $0x98] sm:$0x1]
      %v1899 = vld [vmem:[%s1203 + $0x9c] sm:$0xe]
      %v1900 = vld [vmem:[%s1203 + $0xa0] sm:$0xf]
      %v1901 = vld [vmem:[%s1203 + $0xa4] sm:$0x1]
      %v1902 = vld [vmem:[%s1203 + $0xa8] sm:$0xe]
      %v1903 = vld [vmem:[%s1203 + $0xac] sm:$0xf]
      %v1904 = vld [vmem:[%s1203 + $0xb0] sm:$0x1]
      %v1905 = vld [vmem:[%s1203 + $0xb4] sm:$0xe]
      %v1906 = vld [vmem:[%s1203 + $0xb8] sm:$0xf]
      %v1907 = vld [vmem:[%s1203 + $0xbc] sm:$0x1]
      %v1956 = vrot.slane %v1860, 5
      %v1957 = vrot.slane %v1956, 4
      %v1958 = vrot.slane %v1861, 5
      %v1959 = vsel %vm1007, %v1957, %v1958
      %v1960 = vrot.slane %v1958, 4
      %v1961 = vrot.slane %v1862, 5
      %v1962 = vsel %vm1007, %v1960, %v1961
      %v1963 = vrot.slane %v1863, 5
      %v1964 = vrot.slane %v1963, 4
      %v1965 = vrot.slane %v1864, 5
      %v1966 = vsel %vm1007, %v1964, %v1965
      %v1967 = vrot.slane %v1965, 4
      %v1968 = vrot.slane %v1865, 5
      %v1969 = vsel %vm1007, %v1967, %v1968
      %v1970 = vrot.slane %v1866, 5
      %v1971 = vrot.slane %v1970, 4
      %v1972 = vrot.slane %v1867, 5
      %v1973 = vsel %vm1007, %v1971, %v1972
      %v1974 = vrot.slane %v1972, 4
      %v1975 = vrot.slane %v1868, 5
      %v1976 = vsel %vm1007, %v1974, %v1975
      %v1977 = vrot.slane %v1869, 5
      %v1978 = vrot.slane %v1977, 4
      %v1979 = vrot.slane %v1870, 5
      %v1980 = vsel %vm1007, %v1978, %v1979
      %v1981 = vrot.slane %v1979, 4
      %v1982 = vrot.slane %v1871, 5
      %v1983 = vsel %vm1007, %v1981, %v1982
      %v1984 = vrot.slane %v1872, 5
      %v1985 = vrot.slane %v1984, 4
      %v1986 = vrot.slane %v1873, 5
      %v1987 = vsel %vm1007, %v1985, %v1986
      %v1988 = vrot.slane %v1986, 4
      %v1989 = vrot.slane %v1874, 5
      %v1990 = vsel %vm1007, %v1988, %v1989
      %v1991 = vrot.slane %v1875, 5
      %v1992 = vrot.slane %v1991, 4
      %v1993 = vrot.slane %v1876, 5
      %v1994 = vsel %vm1007, %v1992, %v1993
      %v1995 = vrot.slane %v1993, 4
      %v1996 = vrot.slane %v1877, 5
      %v1997 = vsel %vm1007, %v1995, %v1996
      %v1998 = vrot.slane %v1878, 5
      %v1999 = vrot.slane %v1998, 4
      %v2000 = vrot.slane %v1879, 5
      %v2001 = vsel %vm1007, %v1999, %v2000
      %v2002 = vrot.slane %v2000, 4
      %v2003 = vrot.slane %v1880, 5
      %v2004 = vsel %vm1007, %v2002, %v2003
      %v2005 = vrot.slane %v1881, 5
      %v2006 = vrot.slane %v2005, 4
      %v2007 = vrot.slane %v1882, 5
      %v2008 = vsel %vm1007, %v2006, %v2007
      %v2009 = vrot.slane %v2007, 4
      %v2010 = vrot.slane %v1883, 5
      %v2011 = vsel %vm1007, %v2009, %v2010
      %v2012 = vrot.slane %v1884, 5
      %v2013 = vrot.slane %v2012, 4
      %v2014 = vrot.slane %v1885, 5
      %v2015 = vsel %vm1007, %v2013, %v2014
      %v2016 = vrot.slane %v2014, 4
      %v2017 = vrot.slane %v1886, 5
      %v2018 = vsel %vm1007, %v2016, %v2017
      %v2019 = vrot.slane %v1887, 5
      %v2020 = vrot.slane %v2019, 4
      %v2021 = vrot.slane %v1888, 5
      %v2022 = vsel %vm1007, %v2020, %v2021
      %v2023 = vrot.slane %v2021, 4
      %v2024 = vrot.slane %v1889, 5
      %v2025 = vsel %vm1007, %v2023, %v2024
      %v2026 = vrot.slane %v1890, 5
      %v2027 = vrot.slane %v2026, 4
      %v2028 = vrot.slane %v1891, 5
      %v2029 = vsel %vm1007, %v2027, %v2028
      %v2030 = vrot.slane %v2028, 4
      %v2031 = vrot.slane %v1892, 5
      %v2032 = vsel %vm1007, %v2030, %v2031
      %v2033 = vrot.slane %v1893, 5
      %v2034 = vrot.slane %v2033, 4
      %v2035 = vrot.slane %v1894, 5
      %v2036 = vsel %vm1007, %v2034, %v2035
      %v2037 = vrot.slane %v2035, 4
      %v2038 = vrot.slane %v1895, 5
      %v2039 = vsel %vm1007, %v2037, %v2038
      %v2040 = vrot.slane %v1896, 5
      %v2041 = vrot.slane %v2040, 4
      %v2042 = vrot.slane %v1897, 5
      %v2043 = vsel %vm1007, %v2041, %v2042
      %v2044 = vrot.slane %v2042, 4
      %v2045 = vrot.slane %v1898, 5
      %v2046 = vsel %vm1007, %v2044, %v2045
      %v2047 = vrot.slane %v1899, 5
      %v2048 = vrot.slane %v2047, 4
      %v2049 = vrot.slane %v1900, 5
      %v2050 = vsel %vm1007, %v2048, %v2049
      %v2051 = vrot.slane %v2049, 4
      %v2052 = vrot.slane %v1901, 5
      %v2053 = vsel %vm1007, %v2051, %v2052
      %v2054 = vrot.slane %v1902, 5
      %v2055 = vrot.slane %v2054, 4
      %v2056 = vrot.slane %v1903, 5
      %v2057 = vsel %vm1007, %v2055, %v2056
      %v2058 = vrot.slane %v2056, 4
      %v2059 = vrot.slane %v1904, 5
      %v2060 = vsel %vm1007, %v2058, %v2059
      %v2061 = vrot.slane %v1905, 5
      %v2062 = vrot.slane %v2061, 4
      %v2063 = vrot.slane %v1906, 5
      %v2064 = vsel %vm1007, %v2062, %v2063
      %v2065 = vrot.slane %v2063, 4
      %v2066 = vrot.slane %v1907, 5
      %v2067 = vsel %vm1007, %v2065, %v2066
      %v2068 = vunpack.c.l.b16 %v1959
      %v2069 = vunpack.c.l.b16 %v1962
      %v2070 = vunpack.c.l.b16 %v1966
      %v2071 = vunpack.c.l.b16 %v1969
      %v2072 = vunpack.c.l.b16 %v1973
      %v2073 = vunpack.c.l.b16 %v1976
      %v2074 = vunpack.c.l.b16 %v1980
      %v2075 = vunpack.c.l.b16 %v1983
      %v2076 = vunpack.c.l.b16 %v1987
      %v2077 = vunpack.c.l.b16 %v1990
      %v2078 = vunpack.c.l.b16 %v1994
      %v2079 = vunpack.c.l.b16 %v1997
      %v2080 = vunpack.c.l.b16 %v2001
      %v2081 = vunpack.c.l.b16 %v2004
      %v2082 = vunpack.c.l.b16 %v2008
      %v2083 = vunpack.c.l.b16 %v2011
      %v2084 = vunpack.c.l.b16 %v2015
      %v2085 = vunpack.c.l.b16 %v2018
      %v2086 = vunpack.c.l.b16 %v2022
      %v2087 = vunpack.c.l.b16 %v2025
      %v2088 = vunpack.c.l.b16 %v2029
      %v2089 = vunpack.c.l.b16 %v2032
      %v2090 = vunpack.c.l.b16 %v2036
      %v2091 = vunpack.c.l.b16 %v2039
      %v2092 = vunpack.c.l.b16 %v2043
      %v2093 = vunpack.c.l.b16 %v2046
      %v2094 = vunpack.c.l.b16 %v2050
      %v2095 = vunpack.c.l.b16 %v2053
      %v2096 = vunpack.c.l.b16 %v2057
      %v2097 = vunpack.c.l.b16 %v2060
      %v2098 = vunpack.c.l.b16 %v2064
      %v2099 = vunpack.c.l.b16 %v2067
      %v2100 = vpack.c.b16 %v2069, %v2068
      %v2101 = vpack.c.b16 %v2071, %v2070
      %v2102 = vpack.c.b16 %v2073, %v2072
      %v2103 = vpack.c.b16 %v2075, %v2074
      %v2104 = vpack.c.b16 %v2077, %v2076
      %v2105 = vpack.c.b16 %v2079, %v2078
      %v2106 = vpack.c.b16 %v2081, %v2080
      %v2107 = vpack.c.b16 %v2083, %v2082
      %v2108 = vpack.c.b16 %v2085, %v2084
      %v2109 = vpack.c.b16 %v2087, %v2086
      %v2110 = vpack.c.b16 %v2089, %v2088
      %v2111 = vpack.c.b16 %v2091, %v2090
      %v2112 = vpack.c.b16 %v2093, %v2092
      %v2113 = vpack.c.b16 %v2095, %v2094
      %v2114 = vpack.c.b16 %v2097, %v2096
      %v2115 = vpack.c.b16 %v2099, %v2098
      %2132 = vst [vmem:[#allocation2 + $0x28] sm:$0xff] %v2100
      %2133 = vst [vmem:[#allocation2 + $0x70] sm:$0xff] %v2101
      %2134 = vst [vmem:[#allocation2 + $0xb8] sm:$0xff] %v2102
      %2135 = vst [vmem:[#allocation2 + $0x100] sm:$0xff] %v2103
      %2136 = vst [vmem:[#allocation2 + $0x148] sm:$0xff] %v2104
      %2137 = vst [vmem:[#allocation2 + $0x190] sm:$0xff] %v2105
      %2138 = vst [vmem:[#allocation2 + $0x1d8] sm:$0xff] %v2106
      %2139 = vst [vmem:[#allocation2 + $0x220] sm:$0xff] %v2107
      %2140 = vst [vmem:[#allocation2 + $0x268] sm:$0xff] %v2108
      %2141 = vst [vmem:[#allocation2 + $0x2b0] sm:$0xff] %v2109
      %2142 = vst [vmem:[#allocation2 + $0x2f8] sm:$0xff] %v2110
      %2143 = vst [vmem:[#allocation2 + $0x340] sm:$0xff] %v2111
      %2144 = vst [vmem:[#allocation2 + $0x388] sm:$0xff] %v2112
      %2145 = vst [vmem:[#allocation2 + $0x3d0] sm:$0xff] %v2113
      %2146 = vst [vmem:[#allocation2 + $0x418] sm:$0xff] %v2114
      %2147 = vst [vmem:[#allocation2 + $0x460] sm:$0xff] %v2115
      %s2148 = sadd.s32 %s246, 2
      %s2149 = smul.u32 %s2148, 3
      %s2150 = smul.addr %s2149, 4
      %s2151 = scalar_lea.vmem %s224, %s2150
      %v2152 = vld [vmem:[%s2151] sm:$0xf]
      %v2153 = vld [vmem:[%s2151 + $0x4] sm:$0xf]
      %v2154 = vld [vmem:[%s2151 + $0xc] sm:$0xf]
      %v2155 = vld [vmem:[%s2151 + $0x10] sm:$0xf]
      %v2156 = vld [vmem:[%s2151 + $0x18] sm:$0xf]
      %v2157 = vld [vmem:[%s2151 + $0x1c] sm:$0xf]
      %v2158 = vld [vmem:[%s2151 + $0x24] sm:$0xf]
      %v2159 = vld [vmem:[%s2151 + $0x28] sm:$0xf]
      %v2160 = vld [vmem:[%s2151 + $0x30] sm:$0xf]
      %v2161 = vld [vmem:[%s2151 + $0x34] sm:$0xf]
      %v2162 = vld [vmem:[%s2151 + $0x3c] sm:$0xf]
      %v2163 = vld [vmem:[%s2151 + $0x40] sm:$0xf]
      %v2164 = vld [vmem:[%s2151 + $0x48] sm:$0xf]
      %v2165 = vld [vmem:[%s2151 + $0x4c] sm:$0xf]
      %v2166 = vld [vmem:[%s2151 + $0x54] sm:$0xf]
      %v2167 = vld [vmem:[%s2151 + $0x58] sm:$0xf]
      %v2168 = vld [vmem:[%s2151 + $0x60] sm:$0xf]
      %v2169 = vld [vmem:[%s2151 + $0x64] sm:$0xf]
      %v2170 = vld [vmem:[%s2151 + $0x6c] sm:$0xf]
      %v2171 = vld [vmem:[%s2151 + $0x70] sm:$0xf]
      %v2172 = vld [vmem:[%s2151 + $0x78] sm:$0xf]
      %v2173 = vld [vmem:[%s2151 + $0x7c] sm:$0xf]
      %v2174 = vld [vmem:[%s2151 + $0x84] sm:$0xf]
      %v2175 = vld [vmem:[%s2151 + $0x88] sm:$0xf]
      %v2176 = vld [vmem:[%s2151 + $0x90] sm:$0xf]
      %v2177 = vld [vmem:[%s2151 + $0x94] sm:$0xf]
      %v2178 = vld [vmem:[%s2151 + $0x9c] sm:$0xf]
      %v2179 = vld [vmem:[%s2151 + $0xa0] sm:$0xf]
      %v2180 = vld [vmem:[%s2151 + $0xa8] sm:$0xf]
      %v2181 = vld [vmem:[%s2151 + $0xac] sm:$0xf]
      %v2182 = vld [vmem:[%s2151 + $0xb4] sm:$0xf]
      %v2183 = vld [vmem:[%s2151 + $0xb8] sm:$0xf]
      %v2216 = vunpack.c.l.b16 %v2152
      %v2217 = vunpack.c.l.b16 %v2153
      %v2218 = vunpack.c.l.b16 %v2154
      %v2219 = vunpack.c.l.b16 %v2155
      %v2220 = vunpack.c.l.b16 %v2156
      %v2221 = vunpack.c.l.b16 %v2157
      %v2222 = vunpack.c.l.b16 %v2158
      %v2223 = vunpack.c.l.b16 %v2159
      %v2224 = vunpack.c.l.b16 %v2160
      %v2225 = vunpack.c.l.b16 %v2161
      %v2226 = vunpack.c.l.b16 %v2162
      %v2227 = vunpack.c.l.b16 %v2163
      %v2228 = vunpack.c.l.b16 %v2164
      %v2229 = vunpack.c.l.b16 %v2165
      %v2230 = vunpack.c.l.b16 %v2166
      %v2231 = vunpack.c.l.b16 %v2167
      %v2232 = vunpack.c.l.b16 %v2168
      %v2233 = vunpack.c.l.b16 %v2169
      %v2234 = vunpack.c.l.b16 %v2170
      %v2235 = vunpack.c.l.b16 %v2171
      %v2236 = vunpack.c.l.b16 %v2172
      %v2237 = vunpack.c.l.b16 %v2173
      %v2238 = vunpack.c.l.b16 %v2174
      %v2239 = vunpack.c.l.b16 %v2175
      %v2240 = vunpack.c.l.b16 %v2176
      %v2241 = vunpack.c.l.b16 %v2177
      %v2242 = vunpack.c.l.b16 %v2178
      %v2243 = vunpack.c.l.b16 %v2179
      %v2244 = vunpack.c.l.b16 %v2180
      %v2245 = vunpack.c.l.b16 %v2181
      %v2246 = vunpack.c.l.b16 %v2182
      %v2247 = vunpack.c.l.b16 %v2183
      %v2248 = vpack.c.b16 %v2217, %v2216
      %v2249 = vpack.c.b16 %v2219, %v2218
      %v2250 = vpack.c.b16 %v2221, %v2220
      %v2251 = vpack.c.b16 %v2223, %v2222
      %v2252 = vpack.c.b16 %v2225, %v2224
      %v2253 = vpack.c.b16 %v2227, %v2226
      %v2254 = vpack.c.b16 %v2229, %v2228
      %v2255 = vpack.c.b16 %v2231, %v2230
      %v2256 = vpack.c.b16 %v2233, %v2232
      %v2257 = vpack.c.b16 %v2235, %v2234
      %v2258 = vpack.c.b16 %v2237, %v2236
      %v2259 = vpack.c.b16 %v2239, %v2238
      %v2260 = vpack.c.b16 %v2241, %v2240
      %v2261 = vpack.c.b16 %v2243, %v2242
      %v2262 = vpack.c.b16 %v2245, %v2244
      %v2263 = vpack.c.b16 %v2247, %v2246
      %2280 = vst [vmem:[#allocation2 + $0x30] sm:$0xff] %v2248
      %2281 = vst [vmem:[#allocation2 + $0x78] sm:$0xff] %v2249
      %2282 = vst [vmem:[#allocation2 + $0xc0] sm:$0xff] %v2250
      %2283 = vst [vmem:[#allocation2 + $0x108] sm:$0xff] %v2251
      %2284 = vst [vmem:[#allocation2 + $0x150] sm:$0xff] %v2252
      %2285 = vst [vmem:[#allocation2 + $0x198] sm:$0xff] %v2253
      %2286 = vst [vmem:[#allocation2 + $0x1e0] sm:$0xff] %v2254
      %2287 = vst [vmem:[#allocation2 + $0x228] sm:$0xff] %v2255
      %2288 = vst [vmem:[#allocation2 + $0x270] sm:$0xff] %v2256
      %2289 = vst [vmem:[#allocation2 + $0x2b8] sm:$0xff] %v2257
      %2290 = vst [vmem:[#allocation2 + $0x300] sm:$0xff] %v2258
      %2291 = vst [vmem:[#allocation2 + $0x348] sm:$0xff] %v2259
      %2292 = vst [vmem:[#allocation2 + $0x390] sm:$0xff] %v2260
      %2293 = vst [vmem:[#allocation2 + $0x3d8] sm:$0xff] %v2261
      %2294 = vst [vmem:[#allocation2 + $0x420] sm:$0xff] %v2262
      %2295 = vst [vmem:[#allocation2 + $0x468] sm:$0xff] %v2263
      %v2296 = vld [vmem:[%s2151] sm:$0xf]
      %v2297 = vld [vmem:[%s2151 + $0x4] sm:$0xf]
      %v2298 = vld [vmem:[%s2151 + $0x8] sm:$0x1]
      %v2299 = vld [vmem:[%s2151 + $0xc] sm:$0xf]
      %v2300 = vld [vmem:[%s2151 + $0x10] sm:$0xf]
      %v2301 = vld [vmem:[%s2151 + $0x14] sm:$0x1]
      %v2302 = vld [vmem:[%s2151 + $0x18] sm:$0xf]
      %v2303 = vld [vmem:[%s2151 + $0x1c] sm:$0xf]
      %v2304 = vld [vmem:[%s2151 + $0x20] sm:$0x1]
      %v2305 = vld [vmem:[%s2151 + $0x24] sm:$0xf]
      %v2306 = vld [vmem:[%s2151 + $0x28] sm:$0xf]
      %v2307 = vld [vmem:[%s2151 + $0x2c] sm:$0x1]
      %v2308 = vld [vmem:[%s2151 + $0x30] sm:$0xf]
      %v2309 = vld [vmem:[%s2151 + $0x34] sm:$0xf]
      %v2310 = vld [vmem:[%s2151 + $0x38] sm:$0x1]
      %v2311 = vld [vmem:[%s2151 + $0x3c] sm:$0xf]
      %v2312 = vld [vmem:[%s2151 + $0x40] sm:$0xf]
      %v2313 = vld [vmem:[%s2151 + $0x44] sm:$0x1]
      %v2314 = vld [vmem:[%s2151 + $0x48] sm:$0xf]
      %v2315 = vld [vmem:[%s2151 + $0x4c] sm:$0xf]
      %v2316 = vld [vmem:[%s2151 + $0x50] sm:$0x1]
      %v2317 = vld [vmem:[%s2151 + $0x54] sm:$0xf]
      %v2318 = vld [vmem:[%s2151 + $0x58] sm:$0xf]
      %v2319 = vld [vmem:[%s2151 + $0x5c] sm:$0x1]
      %v2320 = vld [vmem:[%s2151 + $0x60] sm:$0xf]
      %v2321 = vld [vmem:[%s2151 + $0x64] sm:$0xf]
      %v2322 = vld [vmem:[%s2151 + $0x68] sm:$0x1]
      %v2323 = vld [vmem:[%s2151 + $0x6c] sm:$0xf]
      %v2324 = vld [vmem:[%s2151 + $0x70] sm:$0xf]
      %v2325 = vld [vmem:[%s2151 + $0x74] sm:$0x1]
      %v2326 = vld [vmem:[%s2151 + $0x78] sm:$0xf]
      %v2327 = vld [vmem:[%s2151 + $0x7c] sm:$0xf]
      %v2328 = vld [vmem:[%s2151 + $0x80] sm:$0x1]
      %v2329 = vld [vmem:[%s2151 + $0x84] sm:$0xf]
      %v2330 = vld [vmem:[%s2151 + $0x88] sm:$0xf]
      %v2331 = vld [vmem:[%s2151 + $0x8c] sm:$0x1]
      %v2332 = vld [vmem:[%s2151 + $0x90] sm:$0xf]
      %v2333 = vld [vmem:[%s2151 + $0x94] sm:$0xf]
      %v2334 = vld [vmem:[%s2151 + $0x98] sm:$0x1]
      %v2335 = vld [vmem:[%s2151 + $0x9c] sm:$0xf]
      %v2336 = vld [vmem:[%s2151 + $0xa0] sm:$0xf]
      %v2337 = vld [vmem:[%s2151 + $0xa4] sm:$0x1]
      %v2338 = vld [vmem:[%s2151 + $0xa8] sm:$0xf]
      %v2339 = vld [vmem:[%s2151 + $0xac] sm:$0xf]
      %v2340 = vld [vmem:[%s2151 + $0xb0] sm:$0x1]
      %v2341 = vld [vmem:[%s2151 + $0xb4] sm:$0xf]
      %v2342 = vld [vmem:[%s2151 + $0xb8] sm:$0xf]
      %v2343 = vld [vmem:[%s2151 + $0xbc] sm:$0x1]
      %v2345 = vshrl.u32 %v2296, 16
      %v2347 = vrot.slane %v2345, 4
      %v2348 = vshll.u32 %v2296, 16
      %v2350 = vrot.slane %v2348, 5
      %v2351 = vor.u32 %v2347, %v2350
      %v2352 = vrot.slane %v2351, 4
      %v2354 = vshll.u32 %v2297, 16
      %v2356 = vrot.slane %v2354, 5
      %v2357 = vsel %vm444, %v2352, %v2356
      %v2358 = vshrl.u32 %v2297, 16
      %v2360 = vrot.slane %v2358, 4
      %v2361 = vor.u32 %v2360, %v2356
      %v2362 = vrot.slane %v2361, 4
      %v2364 = vshll.u32 %v2298, 16
      %v2366 = vrot.slane %v2364, 5
      %v2367 = vsel %vm444, %v2362, %v2366
      %v2369 = vshrl.u32 %v2299, 16
      %v2371 = vrot.slane %v2369, 4
      %v2372 = vshll.u32 %v2299, 16
      %v2374 = vrot.slane %v2372, 5
      %v2375 = vor.u32 %v2371, %v2374
      %v2376 = vrot.slane %v2375, 4
      %v2378 = vshll.u32 %v2300, 16
      %v2380 = vrot.slane %v2378, 5
      %v2381 = vsel %vm444, %v2376, %v2380
      %v2382 = vshrl.u32 %v2300, 16
      %v2384 = vrot.slane %v2382, 4
      %v2385 = vor.u32 %v2384, %v2380
      %v2386 = vrot.slane %v2385, 4
      %v2388 = vshll.u32 %v2301, 16
      %v2390 = vrot.slane %v2388, 5
      %v2391 = vsel %vm444, %v2386, %v2390
      %v2393 = vshrl.u32 %v2302, 16
      %v2395 = vrot.slane %v2393, 4
      %v2396 = vshll.u32 %v2302, 16
      %v2398 = vrot.slane %v2396, 5
      %v2399 = vor.u32 %v2395, %v2398
      %v2400 = vrot.slane %v2399, 4
      %v2402 = vshll.u32 %v2303, 16
      %v2404 = vrot.slane %v2402, 5
      %v2405 = vsel %vm444, %v2400, %v2404
      %v2406 = vshrl.u32 %v2303, 16
      %v2408 = vrot.slane %v2406, 4
      %v2409 = vor.u32 %v2408, %v2404
      %v2410 = vrot.slane %v2409, 4
      %v2412 = vshll.u32 %v2304, 16
      %v2414 = vrot.slane %v2412, 5
      %v2415 = vsel %vm444, %v2410, %v2414
      %v2417 = vshrl.u32 %v2305, 16
      %v2419 = vrot.slane %v2417, 4
      %v2420 = vshll.u32 %v2305, 16
      %v2422 = vrot.slane %v2420, 5
      %v2423 = vor.u32 %v2419, %v2422
      %v2424 = vrot.slane %v2423, 4
      %v2426 = vshll.u32 %v2306, 16
      %v2428 = vrot.slane %v2426, 5
      %v2429 = vsel %vm444, %v2424, %v2428
      %v2430 = vshrl.u32 %v2306, 16
      %v2432 = vrot.slane %v2430, 4
      %v2433 = vor.u32 %v2432, %v2428
      %v2434 = vrot.slane %v2433, 4
      %v2436 = vshll.u32 %v2307, 16
      %v2438 = vrot.slane %v2436, 5
      %v2439 = vsel %vm444, %v2434, %v2438
      %v2441 = vshrl.u32 %v2308, 16
      %v2443 = vrot.slane %v2441, 4
      %v2444 = vshll.u32 %v2308, 16
      %v2446 = vrot.slane %v2444, 5
      %v2447 = vor.u32 %v2443, %v2446
      %v2448 = vrot.slane %v2447, 4
      %v2450 = vshll.u32 %v2309, 16
      %v2452 = vrot.slane %v2450, 5
      %v2453 = vsel %vm444, %v2448, %v2452
      %v2454 = vshrl.u32 %v2309, 16
      %v2456 = vrot.slane %v2454, 4
      %v2457 = vor.u32 %v2456, %v2452
      %v2458 = vrot.slane %v2457, 4
      %v2460 = vshll.u32 %v2310, 16
      %v2462 = vrot.slane %v2460, 5
      %v2463 = vsel %vm444, %v2458, %v2462
      %v2465 = vshrl.u32 %v2311, 16
      %v2467 = vrot.slane %v2465, 4
      %v2468 = vshll.u32 %v2311, 16
      %v2470 = vrot.slane %v2468, 5
      %v2471 = vor.u32 %v2467, %v2470
      %v2472 = vrot.slane %v2471, 4
      %v2474 = vshll.u32 %v2312, 16
      %v2476 = vrot.slane %v2474, 5
      %v2477 = vsel %vm444, %v2472, %v2476
      %v2478 = vshrl.u32 %v2312, 16
      %v2480 = vrot.slane %v2478, 4
      %v2481 = vor.u32 %v2480, %v2476
      %v2482 = vrot.slane %v2481, 4
      %v2484 = vshll.u32 %v2313, 16
      %v2486 = vrot.slane %v2484, 5
      %v2487 = vsel %vm444, %v2482, %v2486
      %v2489 = vshrl.u32 %v2314, 16
      %v2491 = vrot.slane %v2489, 4
      %v2492 = vshll.u32 %v2314, 16
      %v2494 = vrot.slane %v2492, 5
      %v2495 = vor.u32 %v2491, %v2494
      %v2496 = vrot.slane %v2495, 4
      %v2498 = vshll.u32 %v2315, 16
      %v2500 = vrot.slane %v2498, 5
      %v2501 = vsel %vm444, %v2496, %v2500
      %v2502 = vshrl.u32 %v2315, 16
      %v2504 = vrot.slane %v2502, 4
      %v2505 = vor.u32 %v2504, %v2500
      %v2506 = vrot.slane %v2505, 4
      %v2508 = vshll.u32 %v2316, 16
      %v2510 = vrot.slane %v2508, 5
      %v2511 = vsel %vm444, %v2506, %v2510
      %v2513 = vshrl.u32 %v2317, 16
      %v2515 = vrot.slane %v2513, 4
      %v2516 = vshll.u32 %v2317, 16
      %v2518 = vrot.slane %v2516, 5
      %v2519 = vor.u32 %v2515, %v2518
      %v2520 = vrot.slane %v2519, 4
      %v2522 = vshll.u32 %v2318, 16
      %v2524 = vrot.slane %v2522, 5
      %v2525 = vsel %vm444, %v2520, %v2524
      %v2526 = vshrl.u32 %v2318, 16
      %v2528 = vrot.slane %v2526, 4
      %v2529 = vor.u32 %v2528, %v2524
      %v2530 = vrot.slane %v2529, 4
      %v2532 = vshll.u32 %v2319, 16
      %v2534 = vrot.slane %v2532, 5
      %v2535 = vsel %vm444, %v2530, %v2534
      %v2537 = vshrl.u32 %v2320, 16
      %v2539 = vrot.slane %v2537, 4
      %v2540 = vshll.u32 %v2320, 16
      %v2542 = vrot.slane %v2540, 5
      %v2543 = vor.u32 %v2539, %v2542
      %v2544 = vrot.slane %v2543, 4
      %v2546 = vshll.u32 %v2321, 16
      %v2548 = vrot.slane %v2546, 5
      %v2549 = vsel %vm444, %v2544, %v2548
      %v2550 = vshrl.u32 %v2321, 16
      %v2552 = vrot.slane %v2550, 4
      %v2553 = vor.u32 %v2552, %v2548
      %v2554 = vrot.slane %v2553, 4
      %v2556 = vshll.u32 %v2322, 16
      %v2558 = vrot.slane %v2556, 5
      %v2559 = vsel %vm444, %v2554, %v2558
      %v2561 = vshrl.u32 %v2323, 16
      %v2563 = vrot.slane %v2561, 4
      %v2564 = vshll.u32 %v2323, 16
      %v2566 = vrot.slane %v2564, 5
      %v2567 = vor.u32 %v2563, %v2566
      %v2568 = vrot.slane %v2567, 4
      %v2570 = vshll.u32 %v2324, 16
      %v2572 = vrot.slane %v2570, 5
      %v2573 = vsel %vm444, %v2568, %v2572
      %v2574 = vshrl.u32 %v2324, 16
      %v2576 = vrot.slane %v2574, 4
      %v2577 = vor.u32 %v2576, %v2572
      %v2578 = vrot.slane %v2577, 4
      %v2580 = vshll.u32 %v2325, 16
      %v2582 = vrot.slane %v2580, 5
      %v2583 = vsel %vm444, %v2578, %v2582
      %v2585 = vshrl.u32 %v2326, 16
      %v2587 = vrot.slane %v2585, 4
      %v2588 = vshll.u32 %v2326, 16
      %v2590 = vrot.slane %v2588, 5
      %v2591 = vor.u32 %v2587, %v2590
      %v2592 = vrot.slane %v2591, 4
      %v2594 = vshll.u32 %v2327, 16
      %v2596 = vrot.slane %v2594, 5
      %v2597 = vsel %vm444, %v2592, %v2596
      %v2598 = vshrl.u32 %v2327, 16
      %v2600 = vrot.slane %v2598, 4
      %v2601 = vor.u32 %v2600, %v2596
      %v2602 = vrot.slane %v2601, 4
      %v2604 = vshll.u32 %v2328, 16
      %v2606 = vrot.slane %v2604, 5
      %v2607 = vsel %vm444, %v2602, %v2606
      %v2609 = vshrl.u32 %v2329, 16
      %v2611 = vrot.slane %v2609, 4
      %v2612 = vshll.u32 %v2329, 16
      %v2614 = vrot.slane %v2612, 5
      %v2615 = vor.u32 %v2611, %v2614
      %v2616 = vrot.slane %v2615, 4
      %v2618 = vshll.u32 %v2330, 16
      %v2620 = vrot.slane %v2618, 5
      %v2621 = vsel %vm444, %v2616, %v2620
      %v2622 = vshrl.u32 %v2330, 16
      %v2624 = vrot.slane %v2622, 4
      %v2625 = vor.u32 %v2624, %v2620
      %v2626 = vrot.slane %v2625, 4
      %v2628 = vshll.u32 %v2331, 16
      %v2630 = vrot.slane %v2628, 5
      %v2631 = vsel %vm444, %v2626, %v2630
      %v2633 = vshrl.u32 %v2332, 16
      %v2635 = vrot.slane %v2633, 4
      %v2636 = vshll.u32 %v2332, 16
      %v2638 = vrot.slane %v2636, 5
      %v2639 = vor.u32 %v2635, %v2638
      %v2640 = vrot.slane %v2639, 4
      %v2642 = vshll.u32 %v2333, 16
      %v2644 = vrot.slane %v2642, 5
      %v2645 = vsel %vm444, %v2640, %v2644
      %v2646 = vshrl.u32 %v2333, 16
      %v2648 = vrot.slane %v2646, 4
      %v2649 = vor.u32 %v2648, %v2644
      %v2650 = vrot.slane %v2649, 4
      %v2652 = vshll.u32 %v2334, 16
      %v2654 = vrot.slane %v2652, 5
      %v2655 = vsel %vm444, %v2650, %v2654
      %v2657 = vshrl.u32 %v2335, 16
      %v2659 = vrot.slane %v2657, 4
      %v2660 = vshll.u32 %v2335, 16
      %v2662 = vrot.slane %v2660, 5
      %v2663 = vor.u32 %v2659, %v2662
      %v2664 = vrot.slane %v2663, 4
      %v2666 = vshll.u32 %v2336, 16
      %v2668 = vrot.slane %v2666, 5
      %v2669 = vsel %vm444, %v2664, %v2668
      %v2670 = vshrl.u32 %v2336, 16
      %v2672 = vrot.slane %v2670, 4
      %v2673 = vor.u32 %v2672, %v2668
      %v2674 = vrot.slane %v2673, 4
      %v2676 = vshll.u32 %v2337, 16
      %v2678 = vrot.slane %v2676, 5
      %v2679 = vsel %vm444, %v2674, %v2678
      %v2681 = vshrl.u32 %v2338, 16
      %v2683 = vrot.slane %v2681, 4
      %v2684 = vshll.u32 %v2338, 16
      %v2686 = vrot.slane %v2684, 5
      %v2687 = vor.u32 %v2683, %v2686
      %v2688 = vrot.slane %v2687, 4
      %v2690 = vshll.u32 %v2339, 16
      %v2692 = vrot.slane %v2690, 5
      %v2693 = vsel %vm444, %v2688, %v2692
      %v2694 = vshrl.u32 %v2339, 16
      %v2696 = vrot.slane %v2694, 4
      %v2697 = vor.u32 %v2696, %v2692
      %v2698 = vrot.slane %v2697, 4
      %v2700 = vshll.u32 %v2340, 16
      %v2702 = vrot.slane %v2700, 5
      %v2703 = vsel %vm444, %v2698, %v2702
      %v2705 = vshrl.u32 %v2341, 16
      %v2707 = vrot.slane %v2705, 4
      %v2708 = vshll.u32 %v2341, 16
      %v2710 = vrot.slane %v2708, 5
      %v2711 = vor.u32 %v2707, %v2710
      %v2712 = vrot.slane %v2711, 4
      %v2714 = vshll.u32 %v2342, 16
      %v2716 = vrot.slane %v2714, 5
      %v2717 = vsel %vm444, %v2712, %v2716
      %v2718 = vshrl.u32 %v2342, 16
      %v2720 = vrot.slane %v2718, 4
      %v2721 = vor.u32 %v2720, %v2716
      %v2722 = vrot.slane %v2721, 4
      %v2724 = vshll.u32 %v2343, 16
      %v2726 = vrot.slane %v2724, 5
      %v2727 = vsel %vm444, %v2722, %v2726
      %v2728 = vunpack.c.l.b16 %v2357
      %v2729 = vunpack.c.l.b16 %v2367
      %v2730 = vunpack.c.l.b16 %v2381
      %v2731 = vunpack.c.l.b16 %v2391
      %v2732 = vunpack.c.l.b16 %v2405
      %v2733 = vunpack.c.l.b16 %v2415
      %v2734 = vunpack.c.l.b16 %v2429
      %v2735 = vunpack.c.l.b16 %v2439
      %v2736 = vunpack.c.l.b16 %v2453
      %v2737 = vunpack.c.l.b16 %v2463
      %v2738 = vunpack.c.l.b16 %v2477
      %v2739 = vunpack.c.l.b16 %v2487
      %v2740 = vunpack.c.l.b16 %v2501
      %v2741 = vunpack.c.l.b16 %v2511
      %v2742 = vunpack.c.l.b16 %v2525
      %v2743 = vunpack.c.l.b16 %v2535
      %v2744 = vunpack.c.l.b16 %v2549
      %v2745 = vunpack.c.l.b16 %v2559
      %v2746 = vunpack.c.l.b16 %v2573
      %v2747 = vunpack.c.l.b16 %v2583
      %v2748 = vunpack.c.l.b16 %v2597
      %v2749 = vunpack.c.l.b16 %v2607
      %v2750 = vunpack.c.l.b16 %v2621
      %v2751 = vunpack.c.l.b16 %v2631
      %v2752 = vunpack.c.l.b16 %v2645
      %v2753 = vunpack.c.l.b16 %v2655
      %v2754 = vunpack.c.l.b16 %v2669
      %v2755 = vunpack.c.l.b16 %v2679
      %v2756 = vunpack.c.l.b16 %v2693
      %v2757 = vunpack.c.l.b16 %v2703
      %v2758 = vunpack.c.l.b16 %v2717
      %v2759 = vunpack.c.l.b16 %v2727
      %v2760 = vpack.c.b16 %v2729, %v2728
      %v2761 = vpack.c.b16 %v2731, %v2730
      %v2762 = vpack.c.b16 %v2733, %v2732
      %v2763 = vpack.c.b16 %v2735, %v2734
      %v2764 = vpack.c.b16 %v2737, %v2736
      %v2765 = vpack.c.b16 %v2739, %v2738
      %v2766 = vpack.c.b16 %v2741, %v2740
      %v2767 = vpack.c.b16 %v2743, %v2742
      %v2768 = vpack.c.b16 %v2745, %v2744
      %v2769 = vpack.c.b16 %v2747, %v2746
      %v2770 = vpack.c.b16 %v2749, %v2748
      %v2771 = vpack.c.b16 %v2751, %v2750
      %v2772 = vpack.c.b16 %v2753, %v2752
      %v2773 = vpack.c.b16 %v2755, %v2754
      %v2774 = vpack.c.b16 %v2757, %v2756
      %v2775 = vpack.c.b16 %v2759, %v2758
      %2792 = vst [vmem:[#allocation2 + $0x38] sm:$0xff] %v2760
      %2793 = vst [vmem:[#allocation2 + $0x80] sm:$0xff] %v2761
      %2794 = vst [vmem:[#allocation2 + $0xc8] sm:$0xff] %v2762
      %2795 = vst [vmem:[#allocation2 + $0x110] sm:$0xff] %v2763
      %2796 = vst [vmem:[#allocation2 + $0x158] sm:$0xff] %v2764
      %2797 = vst [vmem:[#allocation2 + $0x1a0] sm:$0xff] %v2765
      %2798 = vst [vmem:[#allocation2 + $0x1e8] sm:$0xff] %v2766
      %2799 = vst [vmem:[#allocation2 + $0x230] sm:$0xff] %v2767
      %2800 = vst [vmem:[#allocation2 + $0x278] sm:$0xff] %v2768
      %2801 = vst [vmem:[#allocation2 + $0x2c0] sm:$0xff] %v2769
      %2802 = vst [vmem:[#allocation2 + $0x308] sm:$0xff] %v2770
      %2803 = vst [vmem:[#allocation2 + $0x350] sm:$0xff] %v2771
      %2804 = vst [vmem:[#allocation2 + $0x398] sm:$0xff] %v2772
      %2805 = vst [vmem:[#allocation2 + $0x3e0] sm:$0xff] %v2773
      %2806 = vst [vmem:[#allocation2 + $0x428] sm:$0xff] %v2774
      %2807 = vst [vmem:[#allocation2 + $0x470] sm:$0xff] %v2775
      %v2808 = vld [vmem:[%s2151] sm:$0xe]
      %v2809 = vld [vmem:[%s2151 + $0x4] sm:$0xf]
      %v2810 = vld [vmem:[%s2151 + $0x8] sm:$0x1]
      %v2811 = vld [vmem:[%s2151 + $0xc] sm:$0xe]
      %v2812 = vld [vmem:[%s2151 + $0x10] sm:$0xf]
      %v2813 = vld [vmem:[%s2151 + $0x14] sm:$0x1]
      %v2814 = vld [vmem:[%s2151 + $0x18] sm:$0xe]
      %v2815 = vld [vmem:[%s2151 + $0x1c] sm:$0xf]
      %v2816 = vld [vmem:[%s2151 + $0x20] sm:$0x1]
      %v2817 = vld [vmem:[%s2151 + $0x24] sm:$0xe]
      %v2818 = vld [vmem:[%s2151 + $0x28] sm:$0xf]
      %v2819 = vld [vmem:[%s2151 + $0x2c] sm:$0x1]
      %v2820 = vld [vmem:[%s2151 + $0x30] sm:$0xe]
      %v2821 = vld [vmem:[%s2151 + $0x34] sm:$0xf]
      %v2822 = vld [vmem:[%s2151 + $0x38] sm:$0x1]
      %v2823 = vld [vmem:[%s2151 + $0x3c] sm:$0xe]
      %v2824 = vld [vmem:[%s2151 + $0x40] sm:$0xf]
      %v2825 = vld [vmem:[%s2151 + $0x44] sm:$0x1]
      %v2826 = vld [vmem:[%s2151 + $0x48] sm:$0xe]
      %v2827 = vld [vmem:[%s2151 + $0x4c] sm:$0xf]
      %v2828 = vld [vmem:[%s2151 + $0x50] sm:$0x1]
      %v2829 = vld [vmem:[%s2151 + $0x54] sm:$0xe]
      %v2830 = vld [vmem:[%s2151 + $0x58] sm:$0xf]
      %v2831 = vld [vmem:[%s2151 + $0x5c] sm:$0x1]
      %v2832 = vld [vmem:[%s2151 + $0x60] sm:$0xe]
      %v2833 = vld [vmem:[%s2151 + $0x64] sm:$0xf]
      %v2834 = vld [vmem:[%s2151 + $0x68] sm:$0x1]
      %v2835 = vld [vmem:[%s2151 + $0x6c] sm:$0xe]
      %v2836 = vld [vmem:[%s2151 + $0x70] sm:$0xf]
      %v2837 = vld [vmem:[%s2151 + $0x74] sm:$0x1]
      %v2838 = vld [vmem:[%s2151 + $0x78] sm:$0xe]
      %v2839 = vld [vmem:[%s2151 + $0x7c] sm:$0xf]
      %v2840 = vld [vmem:[%s2151 + $0x80] sm:$0x1]
      %v2841 = vld [vmem:[%s2151 + $0x84] sm:$0xe]
      %v2842 = vld [vmem:[%s2151 + $0x88] sm:$0xf]
      %v2843 = vld [vmem:[%s2151 + $0x8c] sm:$0x1]
      %v2844 = vld [vmem:[%s2151 + $0x90] sm:$0xe]
      %v2845 = vld [vmem:[%s2151 + $0x94] sm:$0xf]
      %v2846 = vld [vmem:[%s2151 + $0x98] sm:$0x1]
      %v2847 = vld [vmem:[%s2151 + $0x9c] sm:$0xe]
      %v2848 = vld [vmem:[%s2151 + $0xa0] sm:$0xf]
      %v2849 = vld [vmem:[%s2151 + $0xa4] sm:$0x1]
      %v2850 = vld [vmem:[%s2151 + $0xa8] sm:$0xe]
      %v2851 = vld [vmem:[%s2151 + $0xac] sm:$0xf]
      %v2852 = vld [vmem:[%s2151 + $0xb0] sm:$0x1]
      %v2853 = vld [vmem:[%s2151 + $0xb4] sm:$0xe]
      %v2854 = vld [vmem:[%s2151 + $0xb8] sm:$0xf]
      %v2855 = vld [vmem:[%s2151 + $0xbc] sm:$0x1]
      %v2904 = vrot.slane %v2808, 5
      %v2905 = vrot.slane %v2904, 4
      %v2906 = vrot.slane %v2809, 5
      %v2907 = vsel %vm1007, %v2905, %v2906
      %v2908 = vrot.slane %v2906, 4
      %v2909 = vrot.slane %v2810, 5
      %v2910 = vsel %vm1007, %v2908, %v2909
      %v2911 = vrot.slane %v2811, 5
      %v2912 = vrot.slane %v2911, 4
      %v2913 = vrot.slane %v2812, 5
      %v2914 = vsel %vm1007, %v2912, %v2913
      %v2915 = vrot.slane %v2913, 4
      %v2916 = vrot.slane %v2813, 5
      %v2917 = vsel %vm1007, %v2915, %v2916
      %v2918 = vrot.slane %v2814, 5
      %v2919 = vrot.slane %v2918, 4
      %v2920 = vrot.slane %v2815, 5
      %v2921 = vsel %vm1007, %v2919, %v2920
      %v2922 = vrot.slane %v2920, 4
      %v2923 = vrot.slane %v2816, 5
      %v2924 = vsel %vm1007, %v2922, %v2923
      %v2925 = vrot.slane %v2817, 5
      %v2926 = vrot.slane %v2925, 4
      %v2927 = vrot.slane %v2818, 5
      %v2928 = vsel %vm1007, %v2926, %v2927
      %v2929 = vrot.slane %v2927, 4
      %v2930 = vrot.slane %v2819, 5
      %v2931 = vsel %vm1007, %v2929, %v2930
      %v2932 = vrot.slane %v2820, 5
      %v2933 = vrot.slane %v2932, 4
      %v2934 = vrot.slane %v2821, 5
      %v2935 = vsel %vm1007, %v2933, %v2934
      %v2936 = vrot.slane %v2934, 4
      %v2937 = vrot.slane %v2822, 5
      %v2938 = vsel %vm1007, %v2936, %v2937
      %v2939 = vrot.slane %v2823, 5
      %v2940 = vrot.slane %v2939, 4
      %v2941 = vrot.slane %v2824, 5
      %v2942 = vsel %vm1007, %v2940, %v2941
      %v2943 = vrot.slane %v2941, 4
      %v2944 = vrot.slane %v2825, 5
      %v2945 = vsel %vm1007, %v2943, %v2944
      %v2946 = vrot.slane %v2826, 5
      %v2947 = vrot.slane %v2946, 4
      %v2948 = vrot.slane %v2827, 5
      %v2949 = vsel %vm1007, %v2947, %v2948
      %v2950 = vrot.slane %v2948, 4
      %v2951 = vrot.slane %v2828, 5
      %v2952 = vsel %vm1007, %v2950, %v2951
      %v2953 = vrot.slane %v2829, 5
      %v2954 = vrot.slane %v2953, 4
      %v2955 = vrot.slane %v2830, 5
      %v2956 = vsel %vm1007, %v2954, %v2955
      %v2957 = vrot.slane %v2955, 4
      %v2958 = vrot.slane %v2831, 5
      %v2959 = vsel %vm1007, %v2957, %v2958
      %v2960 = vrot.slane %v2832, 5
      %v2961 = vrot.slane %v2960, 4
      %v2962 = vrot.slane %v2833, 5
      %v2963 = vsel %vm1007, %v2961, %v2962
      %v2964 = vrot.slane %v2962, 4
      %v2965 = vrot.slane %v2834, 5
      %v2966 = vsel %vm1007, %v2964, %v2965
      %v2967 = vrot.slane %v2835, 5
      %v2968 = vrot.slane %v2967, 4
      %v2969 = vrot.slane %v2836, 5
      %v2970 = vsel %vm1007, %v2968, %v2969
      %v2971 = vrot.slane %v2969, 4
      %v2972 = vrot.slane %v2837, 5
      %v2973 = vsel %vm1007, %v2971, %v2972
      %v2974 = vrot.slane %v2838, 5
      %v2975 = vrot.slane %v2974, 4
      %v2976 = vrot.slane %v2839, 5
      %v2977 = vsel %vm1007, %v2975, %v2976
      %v2978 = vrot.slane %v2976, 4
      %v2979 = vrot.slane %v2840, 5
      %v2980 = vsel %vm1007, %v2978, %v2979
      %v2981 = vrot.slane %v2841, 5
      %v2982 = vrot.slane %v2981, 4
      %v2983 = vrot.slane %v2842, 5
      %v2984 = vsel %vm1007, %v2982, %v2983
      %v2985 = vrot.slane %v2983, 4
      %v2986 = vrot.slane %v2843, 5
      %v2987 = vsel %vm1007, %v2985, %v2986
      %v2988 = vrot.slane %v2844, 5
      %v2989 = vrot.slane %v2988, 4
      %v2990 = vrot.slane %v2845, 5
      %v2991 = vsel %vm1007, %v2989, %v2990
      %v2992 = vrot.slane %v2990, 4
      %v2993 = vrot.slane %v2846, 5
      %v2994 = vsel %vm1007, %v2992, %v2993
      %v2995 = vrot.slane %v2847, 5
      %v2996 = vrot.slane %v2995, 4
      %v2997 = vrot.slane %v2848, 5
      %v2998 = vsel %vm1007, %v2996, %v2997
      %v2999 = vrot.slane %v2997, 4
      %v3000 = vrot.slane %v2849, 5
      %v3001 = vsel %vm1007, %v2999, %v3000
      %v3002 = vrot.slane %v2850, 5
      %v3003 = vrot.slane %v3002, 4
      %v3004 = vrot.slane %v2851, 5
      %v3005 = vsel %vm1007, %v3003, %v3004
      %v3006 = vrot.slane %v3004, 4
      %v3007 = vrot.slane %v2852, 5
      %v3008 = vsel %vm1007, %v3006, %v3007
      %v3009 = vrot.slane %v2853, 5
      %v3010 = vrot.slane %v3009, 4
      %v3011 = vrot.slane %v2854, 5
      %v3012 = vsel %vm1007, %v3010, %v3011
      %v3013 = vrot.slane %v3011, 4
      %v3014 = vrot.slane %v2855, 5
      %v3015 = vsel %vm1007, %v3013, %v3014
      %v3016 = vunpack.c.l.b16 %v2907
      %v3017 = vunpack.c.l.b16 %v2910
      %v3018 = vunpack.c.l.b16 %v2914
      %v3019 = vunpack.c.l.b16 %v2917
      %v3020 = vunpack.c.l.b16 %v2921
      %v3021 = vunpack.c.l.b16 %v2924
      %v3022 = vunpack.c.l.b16 %v2928
      %v3023 = vunpack.c.l.b16 %v2931
      %v3024 = vunpack.c.l.b16 %v2935
      %v3025 = vunpack.c.l.b16 %v2938
      %v3026 = vunpack.c.l.b16 %v2942
      %v3027 = vunpack.c.l.b16 %v2945
      %v3028 = vunpack.c.l.b16 %v2949
      %v3029 = vunpack.c.l.b16 %v2952
      %v3030 = vunpack.c.l.b16 %v2956
      %v3031 = vunpack.c.l.b16 %v2959
      %v3032 = vunpack.c.l.b16 %v2963
      %v3033 = vunpack.c.l.b16 %v2966
      %v3034 = vunpack.c.l.b16 %v2970
      %v3035 = vunpack.c.l.b16 %v2973
      %v3036 = vunpack.c.l.b16 %v2977
      %v3037 = vunpack.c.l.b16 %v2980
      %v3038 = vunpack.c.l.b16 %v2984
      %v3039 = vunpack.c.l.b16 %v2987
      %v3040 = vunpack.c.l.b16 %v2991
      %v3041 = vunpack.c.l.b16 %v2994
      %v3042 = vunpack.c.l.b16 %v2998
      %v3043 = vunpack.c.l.b16 %v3001
      %v3044 = vunpack.c.l.b16 %v3005
      %v3045 = vunpack.c.l.b16 %v3008
      %v3046 = vunpack.c.l.b16 %v3012
      %v3047 = vunpack.c.l.b16 %v3015
      %v3048 = vpack.c.b16 %v3017, %v3016
      %v3049 = vpack.c.b16 %v3019, %v3018
      %v3050 = vpack.c.b16 %v3021, %v3020
      %v3051 = vpack.c.b16 %v3023, %v3022
      %v3052 = vpack.c.b16 %v3025, %v3024
      %v3053 = vpack.c.b16 %v3027, %v3026
      %v3054 = vpack.c.b16 %v3029, %v3028
      %v3055 = vpack.c.b16 %v3031, %v3030
      %v3056 = vpack.c.b16 %v3033, %v3032
      %v3057 = vpack.c.b16 %v3035, %v3034
      %v3058 = vpack.c.b16 %v3037, %v3036
      %v3059 = vpack.c.b16 %v3039, %v3038
      %v3060 = vpack.c.b16 %v3041, %v3040
      %v3061 = vpack.c.b16 %v3043, %v3042
      %v3062 = vpack.c.b16 %v3045, %v3044
      %v3063 = vpack.c.b16 %v3047, %v3046
      %3080 = vst [vmem:[#allocation2 + $0x40] sm:$0xff] %v3048
      %3081 = vst [vmem:[#allocation2 + $0x88] sm:$0xff] %v3049
      %3082 = vst [vmem:[#allocation2 + $0xd0] sm:$0xff] %v3050
      %3083 = vst [vmem:[#allocation2 + $0x118] sm:$0xff] %v3051
      %3084 = vst [vmem:[#allocation2 + $0x160] sm:$0xff] %v3052
      %3085 = vst [vmem:[#allocation2 + $0x1a8] sm:$0xff] %v3053
      %3086 = vst [vmem:[#allocation2 + $0x1f0] sm:$0xff] %v3054
      %3087 = vst [vmem:[#allocation2 + $0x238] sm:$0xff] %v3055
      %3088 = vst [vmem:[#allocation2 + $0x280] sm:$0xff] %v3056
      %3089 = vst [vmem:[#allocation2 + $0x2c8] sm:$0xff] %v3057
      %3090 = vst [vmem:[#allocation2 + $0x310] sm:$0xff] %v3058
      %3091 = vst [vmem:[#allocation2 + $0x358] sm:$0xff] %v3059
      %3092 = vst [vmem:[#allocation2 + $0x3a0] sm:$0xff] %v3060
      %3093 = vst [vmem:[#allocation2 + $0x3e8] sm:$0xff] %v3061
      %3094 = vst [vmem:[#allocation2 + $0x430] sm:$0xff] %v3062
      %3095 = vst [vmem:[#allocation2 + $0x478] sm:$0xff] %v3063
      %v3096 = vld [vmem:[#allocation2] sm:$0xff]
      %v3097 = vld [vmem:[#allocation2 + $0x8] sm:$0xff]
      %v3098 = vld [vmem:[#allocation2 + $0x10] sm:$0xff]
      %v3099 = vld [vmem:[#allocation2 + $0x18] sm:$0xff]
      %v3100 = vld [vmem:[#allocation2 + $0x20] sm:$0xff]
      %v3101 = vld [vmem:[#allocation2 + $0x28] sm:$0xff]
      %v3102 = vld [vmem:[#allocation2 + $0x30] sm:$0xff]
      %v3103 = vld [vmem:[#allocation2 + $0x38] sm:$0xff]
      %v3104 = vld [vmem:[#allocation2 + $0x40] sm:$0xff]
      %v3105 = vld [vmem:[#allocation2 + $0x48] sm:$0xff]
      %v3106 = vld [vmem:[#allocation2 + $0x50] sm:$0xff]
      %v3107 = vld [vmem:[#allocation2 + $0x58] sm:$0xff]
      %v3108 = vld [vmem:[#allocation2 + $0x60] sm:$0xff]
      %v3109 = vld [vmem:[#allocation2 + $0x68] sm:$0xff]
      %v3110 = vld [vmem:[#allocation2 + $0x70] sm:$0xff]
      %v3111 = vld [vmem:[#allocation2 + $0x78] sm:$0xff]
      %v3112 = vld [vmem:[#allocation2 + $0x80] sm:$0xff]
      %v3113 = vld [vmem:[#allocation2 + $0x88] sm:$0xff]
      %v3114 = vld [vmem:[#allocation2 + $0x90] sm:$0xff]
      %v3115 = vld [vmem:[#allocation2 + $0x98] sm:$0xff]
      %v3116 = vld [vmem:[#allocation2 + $0xa0] sm:$0xff]
      %v3117 = vld [vmem:[#allocation2 + $0xa8] sm:$0xff]
      %v3118 = vld [vmem:[#allocation2 + $0xb0] sm:$0xff]
      %v3119 = vld [vmem:[#allocation2 + $0xb8] sm:$0xff]
      %v3120 = vld [vmem:[#allocation2 + $0xc0] sm:$0xff]
      %v3121 = vld [vmem:[#allocation2 + $0xc8] sm:$0xff]
      %v3122 = vld [vmem:[#allocation2 + $0xd0] sm:$0xff]
      %v3123 = vld [vmem:[#allocation2 + $0xd8] sm:$0xff]
      %v3124 = vld [vmem:[#allocation2 + $0xe0] sm:$0xff]
      %v3125 = vld [vmem:[#allocation2 + $0xe8] sm:$0xff]
      %v3126 = vld [vmem:[#allocation2 + $0xf0] sm:$0xff]
      %v3127 = vld [vmem:[#allocation2 + $0xf8] sm:$0xff]
      %v3128 = vld [vmem:[#allocation2 + $0x100] sm:$0xff]
      %v3129 = vld [vmem:[#allocation2 + $0x108] sm:$0xff]
      %v3130 = vld [vmem:[#allocation2 + $0x110] sm:$0xff]
      %v3131 = vld [vmem:[#allocation2 + $0x118] sm:$0xff]
      %v3132 = vld [vmem:[#allocation2 + $0x120] sm:$0xff]
      %v3133 = vld [vmem:[#allocation2 + $0x128] sm:$0xff]
      %v3134 = vld [vmem:[#allocation2 + $0x130] sm:$0xff]
      %v3135 = vld [vmem:[#allocation2 + $0x138] sm:$0xff]
      %v3136 = vld [vmem:[#allocation2 + $0x140] sm:$0xff]
      %v3137 = vld [vmem:[#allocation2 + $0x148] sm:$0xff]
      %v3138 = vld [vmem:[#allocation2 + $0x150] sm:$0xff]
      %v3139 = vld [vmem:[#allocation2 + $0x158] sm:$0xff]
      %v3140 = vld [vmem:[#allocation2 + $0x160] sm:$0xff]
      %v3141 = vld [vmem:[#allocation2 + $0x168] sm:$0xff]
      %v3142 = vld [vmem:[#allocation2 + $0x170] sm:$0xff]
      %v3143 = vld [vmem:[#allocation2 + $0x178] sm:$0xff]
      %v3144 = vld [vmem:[#allocation2 + $0x180] sm:$0xff]
      %v3145 = vld [vmem:[#allocation2 + $0x188] sm:$0xff]
      %v3146 = vld [vmem:[#allocation2 + $0x190] sm:$0xff]
      %v3147 = vld [vmem:[#allocation2 + $0x198] sm:$0xff]
      %v3148 = vld [vmem:[#allocation2 + $0x1a0] sm:$0xff]
      %v3149 = vld [vmem:[#allocation2 + $0x1a8] sm:$0xff]
      %v3150 = vld [vmem:[#allocation2 + $0x1b0] sm:$0xff]
      %v3151 = vld [vmem:[#allocation2 + $0x1b8] sm:$0xff]
      %v3152 = vld [vmem:[#allocation2 + $0x1c0] sm:$0xff]
      %v3153 = vld [vmem:[#allocation2 + $0x1c8] sm:$0xff]
      %v3154 = vld [vmem:[#allocation2 + $0x1d0] sm:$0xff]
      %v3155 = vld [vmem:[#allocation2 + $0x1d8] sm:$0xff]
      %v3156 = vld [vmem:[#allocation2 + $0x1e0] sm:$0xff]
      %v3157 = vld [vmem:[#allocation2 + $0x1e8] sm:$0xff]
      %v3158 = vld [vmem:[#allocation2 + $0x1f0] sm:$0xff]
      %v3159 = vld [vmem:[#allocation2 + $0x1f8] sm:$0xff]
      %v3160 = vld [vmem:[#allocation2 + $0x200] sm:$0xff]
      %v3161 = vld [vmem:[#allocation2 + $0x208] sm:$0xff]
      %v3162 = vld [vmem:[#allocation2 + $0x210] sm:$0xff]
      %v3163 = vld [vmem:[#allocation2 + $0x218] sm:$0xff]
      %v3164 = vld [vmem:[#allocation2 + $0x220] sm:$0xff]
      %v3165 = vld [vmem:[#allocation2 + $0x228] sm:$0xff]
      %v3166 = vld [vmem:[#allocation2 + $0x230] sm:$0xff]
      %v3167 = vld [vmem:[#allocation2 + $0x238] sm:$0xff]
      %v3168 = vld [vmem:[#allocation2 + $0x240] sm:$0xff]
      %v3169 = vld [vmem:[#allocation2 + $0x248] sm:$0xff]
      %v3170 = vld [vmem:[#allocation2 + $0x250] sm:$0xff]
      %v3171 = vld [vmem:[#allocation2 + $0x258] sm:$0xff]
      %v3172 = vld [vmem:[#allocation2 + $0x260] sm:$0xff]
      %v3173 = vld [vmem:[#allocation2 + $0x268] sm:$0xff]
      %v3174 = vld [vmem:[#allocation2 + $0x270] sm:$0xff]
      %v3175 = vld [vmem:[#allocation2 + $0x278] sm:$0xff]
      %v3176 = vld [vmem:[#allocation2 + $0x280] sm:$0xff]
      %v3177 = vld [vmem:[#allocation2 + $0x288] sm:$0xff]
      %v3178 = vld [vmem:[#allocation2 + $0x290] sm:$0xff]
      %v3179 = vld [vmem:[#allocation2 + $0x298] sm:$0xff]
      %v3180 = vld [vmem:[#allocation2 + $0x2a0] sm:$0xff]
      %v3181 = vld [vmem:[#allocation2 + $0x2a8] sm:$0xff]
      %v3182 = vld [vmem:[#allocation2 + $0x2b0] sm:$0xff]
      %v3183 = vld [vmem:[#allocation2 + $0x2b8] sm:$0xff]
      %v3184 = vld [vmem:[#allocation2 + $0x2c0] sm:$0xff]
      %v3185 = vld [vmem:[#allocation2 + $0x2c8] sm:$0xff]
      %v3186 = vld [vmem:[#allocation2 + $0x2d0] sm:$0xff]
      %v3187 = vld [vmem:[#allocation2 + $0x2d8] sm:$0xff]
      %v3188 = vld [vmem:[#allocation2 + $0x2e0] sm:$0xff]
      %v3189 = vld [vmem:[#allocation2 + $0x2e8] sm:$0xff]
      %v3190 = vld [vmem:[#allocation2 + $0x2f0] sm:$0xff]
      %v3191 = vld [vmem:[#allocation2 + $0x2f8] sm:$0xff]
      %v3192 = vld [vmem:[#allocation2 + $0x300] sm:$0xff]
      %v3193 = vld [vmem:[#allocation2 + $0x308] sm:$0xff]
      %v3194 = vld [vmem:[#allocation2 + $0x310] sm:$0xff]
      %v3195 = vld [vmem:[#allocation2 + $0x318] sm:$0xff]
      %v3196 = vld [vmem:[#allocation2 + $0x320] sm:$0xff]
      %v3197 = vld [vmem:[#allocation2 + $0x328] sm:$0xff]
      %v3198 = vld [vmem:[#allocation2 + $0x330] sm:$0xff]
      %v3199 = vld [vmem:[#allocation2 + $0x338] sm:$0xff]
      %v3200 = vld [vmem:[#allocation2 + $0x340] sm:$0xff]
      %v3201 = vld [vmem:[#allocation2 + $0x348] sm:$0xff]
      %v3202 = vld [vmem:[#allocation2 + $0x350] sm:$0xff]
      %v3203 = vld [vmem:[#allocation2 + $0x358] sm:$0xff]
      %v3204 = vld [vmem:[#allocation2 + $0x360] sm:$0xff]
      %v3205 = vld [vmem:[#allocation2 + $0x368] sm:$0xff]
      %v3206 = vld [vmem:[#allocation2 + $0x370] sm:$0xff]
      %v3207 = vld [vmem:[#allocation2 + $0x378] sm:$0xff]
      %v3208 = vld [vmem:[#allocation2 + $0x380] sm:$0xff]
      %v3209 = vld [vmem:[#allocation2 + $0x388] sm:$0xff]
      %v3210 = vld [vmem:[#allocation2 + $0x390] sm:$0xff]
      %v3211 = vld [vmem:[#allocation2 + $0x398] sm:$0xff]
      %v3212 = vld [vmem:[#allocation2 + $0x3a0] sm:$0xff]
      %v3213 = vld [vmem:[#allocation2 + $0x3a8] sm:$0xff]
      %v3214 = vld [vmem:[#allocation2 + $0x3b0] sm:$0xff]
      %v3215 = vld [vmem:[#allocation2 + $0x3b8] sm:$0xff]
      %v3216 = vld [vmem:[#allocation2 + $0x3c0] sm:$0xff]
      %v3217 = vld [vmem:[#allocation2 + $0x3c8] sm:$0xff]
      %v3218 = vld [vmem:[#allocation2 + $0x3d0] sm:$0xff]
      %v3219 = vld [vmem:[#allocation2 + $0x3d8] sm:$0xff]
      %v3220 = vld [vmem:[#allocation2 + $0x3e0] sm:$0xff]
      %v3221 = vld [vmem:[#allocation2 + $0x3e8] sm:$0xff]
      %v3222 = vld [vmem:[#allocation2 + $0x3f0] sm:$0xff]
      %v3223 = vld [vmem:[#allocation2 + $0x3f8] sm:$0xff]
      %v3224 = vld [vmem:[#allocation2 + $0x400] sm:$0xff]
      %v3225 = vld [vmem:[#allocation2 + $0x408] sm:$0xff]
      %v3226 = vld [vmem:[#allocation2 + $0x410] sm:$0xff]
      %v3227 = vld [vmem:[#allocation2 + $0x418] sm:$0xff]
      %v3228 = vld [vmem:[#allocation2 + $0x420] sm:$0xff]
      %v3229 = vld [vmem:[#allocation2 + $0x428] sm:$0xff]
      %v3230 = vld [vmem:[#allocation2 + $0x430] sm:$0xff]
      %v3231 = vld [vmem:[#allocation2 + $0x438] sm:$0xff]
      %v3232 = vld [vmem:[#allocation2 + $0x440] sm:$0xff]
      %v3233 = vld [vmem:[#allocation2 + $0x448] sm:$0xff]
      %v3234 = vld [vmem:[#allocation2 + $0x450] sm:$0xff]
      %v3235 = vld [vmem:[#allocation2 + $0x458] sm:$0xff]
      %v3236 = vld [vmem:[#allocation2 + $0x460] sm:$0xff]
      %v3237 = vld [vmem:[#allocation2 + $0x468] sm:$0xff]
      %v3238 = vld [vmem:[#allocation2 + $0x470] sm:$0xff]
      %v3239 = vld [vmem:[#allocation2 + $0x478] sm:$0xff]
      %v3240 = vld [vmem:[%s1] sm:$0xf]
      %v3241 = vld [vmem:[%s1 + $0x4] sm:$0xf]
      %v3242 = vld [vmem:[%s1 + $0x8] sm:$0xf]
      %v3243 = vld [vmem:[%s1 + $0xc] sm:$0xf]
      %v3244 = vld [vmem:[%s1 + $0x10] sm:$0xf]
      %v3245 = vld [vmem:[%s1 + $0x14] sm:$0xf]
      %v3246 = vld [vmem:[%s1 + $0x18] sm:$0xf]
      %v3247 = vld [vmem:[%s1 + $0x1c] sm:$0xf]
      %v3248 = vld [vmem:[%s1 + $0x20] sm:$0xf]
      %v3249 = vld [vmem:[%s1 + $0x24] sm:$0xf]
      %v3250 = vld [vmem:[%s1 + $0x28] sm:$0xf]
      %v3251 = vld [vmem:[%s1 + $0x2c] sm:$0xf]
      %v3252 = vld [vmem:[%s1 + $0x30] sm:$0xf]
      %v3253 = vld [vmem:[%s1 + $0x34] sm:$0xf]
      %v3254 = vld [vmem:[%s1 + $0x38] sm:$0xf]
      %v3255 = vld [vmem:[%s1 + $0x3c] sm:$0xf]
      %v3256 = vld [vmem:[%s1 + $0x40] sm:$0xf]
      %v3257 = vld [vmem:[%s1 + $0x44] sm:$0xf]
      %v3258 = vld [vmem:[%s1 + $0x48] sm:$0xf]
      %v3259 = vld [vmem:[%s1 + $0x4c] sm:$0xf]
      %v3260 = vld [vmem:[%s1 + $0x50] sm:$0xf]
      %v3261 = vld [vmem:[%s1 + $0x54] sm:$0xf]
      %v3262 = vld [vmem:[%s1 + $0x58] sm:$0xf]
      %v3263 = vld [vmem:[%s1 + $0x5c] sm:$0xf]
      %v3264 = vld [vmem:[%s1 + $0x60] sm:$0xf]
      %v3265 = vld [vmem:[%s1 + $0x64] sm:$0xf]
      %v3266 = vld [vmem:[%s1 + $0x68] sm:$0xf]
      %v3267 = vld [vmem:[%s1 + $0x6c] sm:$0xf]
      %v3268 = vld [vmem:[%s1 + $0x70] sm:$0xf]
      %v3269 = vld [vmem:[%s1 + $0x74] sm:$0xf]
      %v3270 = vld [vmem:[%s1 + $0x78] sm:$0xf]
      %v3271 = vld [vmem:[%s1 + $0x7c] sm:$0xf]
      %v3272 = vld [vmem:[%s1 + $0x80] sm:$0xf]
      %v3273 = vld [vmem:[%s1 + $0x84] sm:$0xf]
      %v3274 = vld [vmem:[%s1 + $0x88] sm:$0xf]
      %v3275 = vld [vmem:[%s1 + $0x8c] sm:$0xf]
      %v3276 = vld [vmem:[%s1 + $0x90] sm:$0xf]
      %v3277 = vld [vmem:[%s1 + $0x94] sm:$0xf]
      %v3278 = vld [vmem:[%s1 + $0x98] sm:$0xf]
      %v3279 = vld [vmem:[%s1 + $0x9c] sm:$0xf]
      %v3280 = vld [vmem:[%s1 + $0xa0] sm:$0xf]
      %v3281 = vld [vmem:[%s1 + $0xa4] sm:$0xf]
      %v3282 = vld [vmem:[%s1 + $0xa8] sm:$0xf]
      %v3283 = vld [vmem:[%s1 + $0xac] sm:$0xf]
      %v3284 = vld [vmem:[%s1 + $0xb0] sm:$0xf]
      %v3285 = vld [vmem:[%s1 + $0xb4] sm:$0xf]
      %v3286 = vld [vmem:[%s1 + $0xb8] sm:$0xf]
      %v3287 = vld [vmem:[%s1 + $0xbc] sm:$0xf]
      %v3288 = vld [vmem:[%s1 + $0xc0] sm:$0xf]
      %v3289 = vld [vmem:[%s1 + $0xc4] sm:$0xf]
      %v3290 = vld [vmem:[%s1 + $0xc8] sm:$0xf]
      %v3291 = vld [vmem:[%s1 + $0xcc] sm:$0xf]
      %v3292 = vld [vmem:[%s1 + $0xd0] sm:$0xf]
      %v3293 = vld [vmem:[%s1 + $0xd4] sm:$0xf]
      %v3294 = vld [vmem:[%s1 + $0xd8] sm:$0xf]
      %v3295 = vld [vmem:[%s1 + $0xdc] sm:$0xf]
      %v3296 = vld [vmem:[%s1 + $0xe0] sm:$0xf]
      %v3297 = vld [vmem:[%s1 + $0xe4] sm:$0xf]
      %v3298 = vld [vmem:[%s1 + $0xe8] sm:$0xf]
      %v3299 = vld [vmem:[%s1 + $0xec] sm:$0xf]
      %v3300 = vld [vmem:[%s1 + $0xf0] sm:$0xf]
      %v3301 = vld [vmem:[%s1 + $0xf4] sm:$0xf]
      %v3302 = vld [vmem:[%s1 + $0xf8] sm:$0xf]
      %v3303 = vld [vmem:[%s1 + $0xfc] sm:$0xf]
      %v3304 = vld [vmem:[%s1 + $0x100] sm:$0xf]
      %v3305 = vld [vmem:[%s1 + $0x104] sm:$0xf]
      %v3306 = vld [vmem:[%s1 + $0x108] sm:$0xf]
      %v3307 = vld [vmem:[%s1 + $0x10c] sm:$0xf]
      %v3308 = vld [vmem:[%s1 + $0x110] sm:$0xf]
      %v3309 = vld [vmem:[%s1 + $0x114] sm:$0xf]
      %v3310 = vld [vmem:[%s1 + $0x118] sm:$0xf]
      %v3311 = vld [vmem:[%s1 + $0x11c] sm:$0xf]
      %v3312 = vld [vmem:[%s1 + $0x120] sm:$0xf]
      %v3313 = vld [vmem:[%s1 + $0x124] sm:$0xf]
      %v3314 = vld [vmem:[%s1 + $0x128] sm:$0xf]
      %v3315 = vld [vmem:[%s1 + $0x12c] sm:$0xf]
      %v3316 = vld [vmem:[%s1 + $0x130] sm:$0xf]
      %v3317 = vld [vmem:[%s1 + $0x134] sm:$0xf]
      %v3318 = vld [vmem:[%s1 + $0x138] sm:$0xf]
      %v3319 = vld [vmem:[%s1 + $0x13c] sm:$0xf]
      %v3320 = vld [vmem:[%s1 + $0x140] sm:$0xf]
      %v3321 = vld [vmem:[%s1 + $0x144] sm:$0xf]
      %v3322 = vld [vmem:[%s1 + $0x148] sm:$0xf]
      %v3323 = vld [vmem:[%s1 + $0x14c] sm:$0xf]
      %v3324 = vld [vmem:[%s1 + $0x150] sm:$0xf]
      %v3325 = vld [vmem:[%s1 + $0x154] sm:$0xf]
      %v3326 = vld [vmem:[%s1 + $0x158] sm:$0xf]
      %v3327 = vld [vmem:[%s1 + $0x15c] sm:$0xf]
      %v3328 = vld [vmem:[%s1 + $0x160] sm:$0xf]
      %v3329 = vld [vmem:[%s1 + $0x164] sm:$0xf]
      %v3330 = vld [vmem:[%s1 + $0x168] sm:$0xf]
      %v3331 = vld [vmem:[%s1 + $0x16c] sm:$0xf]
      %v3332 = vld [vmem:[%s1 + $0x170] sm:$0xf]
      %v3333 = vld [vmem:[%s1 + $0x174] sm:$0xf]
      %v3334 = vld [vmem:[%s1 + $0x178] sm:$0xf]
      %v3335 = vld [vmem:[%s1 + $0x17c] sm:$0xf]
      %v3336 = vld [vmem:[%s1 + $0x180] sm:$0xf]
      %v3337 = vld [vmem:[%s1 + $0x184] sm:$0xf]
      %v3338 = vld [vmem:[%s1 + $0x188] sm:$0xf]
      %v3339 = vld [vmem:[%s1 + $0x18c] sm:$0xf]
      %v3340 = vld [vmem:[%s1 + $0x190] sm:$0xf]
      %v3341 = vld [vmem:[%s1 + $0x194] sm:$0xf]
      %v3342 = vld [vmem:[%s1 + $0x198] sm:$0xf]
      %v3343 = vld [vmem:[%s1 + $0x19c] sm:$0xf]
      %v3344 = vld [vmem:[%s1 + $0x1a0] sm:$0xf]
      %v3345 = vld [vmem:[%s1 + $0x1a4] sm:$0xf]
      %v3346 = vld [vmem:[%s1 + $0x1a8] sm:$0xf]
      %v3347 = vld [vmem:[%s1 + $0x1ac] sm:$0xf]
      %v3348 = vld [vmem:[%s1 + $0x1b0] sm:$0xf]
      %v3349 = vld [vmem:[%s1 + $0x1b4] sm:$0xf]
      %v3350 = vld [vmem:[%s1 + $0x1b8] sm:$0xf]
      %v3351 = vld [vmem:[%s1 + $0x1bc] sm:$0xf]
      %v3352 = vld [vmem:[%s1 + $0x1c0] sm:$0xf]
      %v3353 = vld [vmem:[%s1 + $0x1c4] sm:$0xf]
      %v3354 = vld [vmem:[%s1 + $0x1c8] sm:$0xf]
      %v3355 = vld [vmem:[%s1 + $0x1cc] sm:$0xf]
      %v3356 = vld [vmem:[%s1 + $0x1d0] sm:$0xf]
      %v3357 = vld [vmem:[%s1 + $0x1d4] sm:$0xf]
      %v3358 = vld [vmem:[%s1 + $0x1d8] sm:$0xf]
      %v3359 = vld [vmem:[%s1 + $0x1dc] sm:$0xf]
      %v3360 = vld [vmem:[%s1 + $0x1e0] sm:$0xf]
      %v3361 = vld [vmem:[%s1 + $0x1e4] sm:$0xf]
      %v3362 = vld [vmem:[%s1 + $0x1e8] sm:$0xf]
      %v3363 = vld [vmem:[%s1 + $0x1ec] sm:$0xf]
      %v3364 = vld [vmem:[%s1 + $0x1f0] sm:$0xf]
      %v3365 = vld [vmem:[%s1 + $0x1f4] sm:$0xf]
      %v3366 = vld [vmem:[%s1 + $0x1f8] sm:$0xf]
      %v3367 = vld [vmem:[%s1 + $0x1fc] sm:$0xf]
      %v3368 = vld [vmem:[%s1 + $0x200] sm:$0xf]
      %v3369 = vld [vmem:[%s1 + $0x204] sm:$0xf]
      %v3370 = vld [vmem:[%s1 + $0x208] sm:$0xf]
      %v3371 = vld [vmem:[%s1 + $0x20c] sm:$0xf]
      %v3372 = vld [vmem:[%s1 + $0x210] sm:$0xf]
      %v3373 = vld [vmem:[%s1 + $0x214] sm:$0xf]
      %v3374 = vld [vmem:[%s1 + $0x218] sm:$0xf]
      %v3375 = vld [vmem:[%s1 + $0x21c] sm:$0xf]
      %v3376 = vld [vmem:[%s1 + $0x220] sm:$0xf]
      %v3377 = vld [vmem:[%s1 + $0x224] sm:$0xf]
      %v3378 = vld [vmem:[%s1 + $0x228] sm:$0xf]
      %v3379 = vld [vmem:[%s1 + $0x22c] sm:$0xf]
      %v3380 = vld [vmem:[%s1 + $0x230] sm:$0xf]
      %v3381 = vld [vmem:[%s1 + $0x234] sm:$0xf]
      %v3382 = vld [vmem:[%s1 + $0x238] sm:$0xf]
      %v3383 = vld [vmem:[%s1 + $0x23c] sm:$0xf]
      %v3384 = vld [vmem:[%s2] sm:$0x1]
      %v3386 = vlaneseq
      %v3387 = vshrl.u32 %v3386, 7
      %v3388 = vsub.s32 0, %v3387
      %v3389 = vrot.slane %v3384, %v3388
      %v3535 = vunpack.c.l.b16 %v3240
      %v3536 = vunpack.c.l.b16 %v3241
      %v3537 = vunpack.c.l.b16 %v3242
      %v3538 = vunpack.c.l.b16 %v3243
      %v3539 = vunpack.c.l.b16 %v3244
      %v3540 = vunpack.c.l.b16 %v3245
      %v3541 = vunpack.c.l.b16 %v3246
      %v3542 = vunpack.c.l.b16 %v3247
      %v3543 = vunpack.c.l.b16 %v3248
      %v3544 = vunpack.c.l.b16 %v3249
      %v3545 = vunpack.c.l.b16 %v3250
      %v3546 = vunpack.c.l.b16 %v3251
      %v3547 = vunpack.c.l.b16 %v3252
      %v3548 = vunpack.c.l.b16 %v3253
      %v3549 = vunpack.c.l.b16 %v3254
      %v3550 = vunpack.c.l.b16 %v3255
      %v3551 = vunpack.c.l.b16 %v3256
      %v3552 = vunpack.c.l.b16 %v3257
      %v3553 = vunpack.c.l.b16 %v3258
      %v3554 = vunpack.c.l.b16 %v3259
      %v3555 = vunpack.c.l.b16 %v3260
      %v3556 = vunpack.c.l.b16 %v3261
      %v3557 = vunpack.c.l.b16 %v3262
      %v3558 = vunpack.c.l.b16 %v3263
      %v3559 = vunpack.c.l.b16 %v3264
      %v3560 = vunpack.c.l.b16 %v3265
      %v3561 = vunpack.c.l.b16 %v3266
      %v3562 = vunpack.c.l.b16 %v3267
      %v3563 = vunpack.c.l.b16 %v3268
      %v3564 = vunpack.c.l.b16 %v3269
      %v3565 = vunpack.c.l.b16 %v3270
      %v3566 = vunpack.c.l.b16 %v3271
      %v3567 = vunpack.c.l.b16 %v3272
      %v3568 = vunpack.c.l.b16 %v3273
      %v3569 = vunpack.c.l.b16 %v3274
      %v3570 = vunpack.c.l.b16 %v3275
      %v3571 = vunpack.c.l.b16 %v3276
      %v3572 = vunpack.c.l.b16 %v3277
      %v3573 = vunpack.c.l.b16 %v3278
      %v3574 = vunpack.c.l.b16 %v3279
      %v3575 = vunpack.c.l.b16 %v3280
      %v3576 = vunpack.c.l.b16 %v3281
      %v3577 = vunpack.c.l.b16 %v3282
      %v3578 = vunpack.c.l.b16 %v3283
      %v3579 = vunpack.c.l.b16 %v3284
      %v3580 = vunpack.c.l.b16 %v3285
      %v3581 = vunpack.c.l.b16 %v3286
      %v3582 = vunpack.c.l.b16 %v3287
      %v3583 = vunpack.c.l.b16 %v3288
      %v3584 = vunpack.c.l.b16 %v3289
      %v3585 = vunpack.c.l.b16 %v3290
      %v3586 = vunpack.c.l.b16 %v3291
      %v3587 = vunpack.c.l.b16 %v3292
      %v3588 = vunpack.c.l.b16 %v3293
      %v3589 = vunpack.c.l.b16 %v3294
      %v3590 = vunpack.c.l.b16 %v3295
      %v3591 = vunpack.c.l.b16 %v3296
      %v3592 = vunpack.c.l.b16 %v3297
      %v3593 = vunpack.c.l.b16 %v3298
      %v3594 = vunpack.c.l.b16 %v3299
      %v3595 = vunpack.c.l.b16 %v3300
      %v3596 = vunpack.c.l.b16 %v3301
      %v3597 = vunpack.c.l.b16 %v3302
      %v3598 = vunpack.c.l.b16 %v3303
      %v3599 = vunpack.c.l.b16 %v3304
      %v3600 = vunpack.c.l.b16 %v3305
      %v3601 = vunpack.c.l.b16 %v3306
      %v3602 = vunpack.c.l.b16 %v3307
      %v3603 = vunpack.c.l.b16 %v3308
      %v3604 = vunpack.c.l.b16 %v3309
      %v3605 = vunpack.c.l.b16 %v3310
      %v3606 = vunpack.c.l.b16 %v3311
      %v3607 = vunpack.c.l.b16 %v3312
      %v3608 = vunpack.c.l.b16 %v3313
      %v3609 = vunpack.c.l.b16 %v3314
      %v3610 = vunpack.c.l.b16 %v3315
      %v3611 = vunpack.c.l.b16 %v3316
      %v3612 = vunpack.c.l.b16 %v3317
      %v3613 = vunpack.c.l.b16 %v3318
      %v3614 = vunpack.c.l.b16 %v3319
      %v3615 = vunpack.c.l.b16 %v3320
      %v3616 = vunpack.c.l.b16 %v3321
      %v3617 = vunpack.c.l.b16 %v3322
      %v3618 = vunpack.c.l.b16 %v3323
      %v3619 = vunpack.c.l.b16 %v3324
      %v3620 = vunpack.c.l.b16 %v3325
      %v3621 = vunpack.c.l.b16 %v3326
      %v3622 = vunpack.c.l.b16 %v3327
      %v3623 = vunpack.c.l.b16 %v3328
      %v3624 = vunpack.c.l.b16 %v3329
      %v3625 = vunpack.c.l.b16 %v3330
      %v3626 = vunpack.c.l.b16 %v3331
      %v3627 = vunpack.c.l.b16 %v3332
      %v3628 = vunpack.c.l.b16 %v3333
      %v3629 = vunpack.c.l.b16 %v3334
      %v3630 = vunpack.c.l.b16 %v3335
      %v3631 = vunpack.c.l.b16 %v3336
      %v3632 = vunpack.c.l.b16 %v3337
      %v3633 = vunpack.c.l.b16 %v3338
      %v3634 = vunpack.c.l.b16 %v3339
      %v3635 = vunpack.c.l.b16 %v3340
      %v3636 = vunpack.c.l.b16 %v3341
      %v3637 = vunpack.c.l.b16 %v3342
      %v3638 = vunpack.c.l.b16 %v3343
      %v3639 = vunpack.c.l.b16 %v3344
      %v3640 = vunpack.c.l.b16 %v3345
      %v3641 = vunpack.c.l.b16 %v3346
      %v3642 = vunpack.c.l.b16 %v3347
      %v3643 = vunpack.c.l.b16 %v3348
      %v3644 = vunpack.c.l.b16 %v3349
      %v3645 = vunpack.c.l.b16 %v3350
      %v3646 = vunpack.c.l.b16 %v3351
      %v3647 = vunpack.c.l.b16 %v3352
      %v3648 = vunpack.c.l.b16 %v3353
      %v3649 = vunpack.c.l.b16 %v3354
      %v3650 = vunpack.c.l.b16 %v3355
      %v3651 = vunpack.c.l.b16 %v3356
      %v3652 = vunpack.c.l.b16 %v3357
      %v3653 = vunpack.c.l.b16 %v3358
      %v3654 = vunpack.c.l.b16 %v3359
      %v3655 = vunpack.c.l.b16 %v3360
      %v3656 = vunpack.c.l.b16 %v3361
      %v3657 = vunpack.c.l.b16 %v3362
      %v3658 = vunpack.c.l.b16 %v3363
      %v3659 = vunpack.c.l.b16 %v3364
      %v3660 = vunpack.c.l.b16 %v3365
      %v3661 = vunpack.c.l.b16 %v3366
      %v3662 = vunpack.c.l.b16 %v3367
      %v3663 = vunpack.c.l.b16 %v3368
      %v3664 = vunpack.c.l.b16 %v3369
      %v3665 = vunpack.c.l.b16 %v3370
      %v3666 = vunpack.c.l.b16 %v3371
      %v3667 = vunpack.c.l.b16 %v3372
      %v3668 = vunpack.c.l.b16 %v3373
      %v3669 = vunpack.c.l.b16 %v3374
      %v3670 = vunpack.c.l.b16 %v3375
      %v3671 = vunpack.c.l.b16 %v3376
      %v3672 = vunpack.c.l.b16 %v3377
      %v3673 = vunpack.c.l.b16 %v3378
      %v3674 = vunpack.c.l.b16 %v3379
      %v3675 = vunpack.c.l.b16 %v3380
      %v3676 = vunpack.c.l.b16 %v3381
      %v3677 = vunpack.c.l.b16 %v3382
      %v3678 = vunpack.c.l.b16 %v3383
      %v3679 = vpack.c.b16 %v3536, %v3535
      %v3680 = vpack.c.b16 %v3538, %v3537
      %v3681 = vpack.c.b16 %v3540, %v3539
      %v3682 = vpack.c.b16 %v3542, %v3541
      %v3683 = vpack.c.b16 %v3544, %v3543
      %v3684 = vpack.c.b16 %v3546, %v3545
      %v3685 = vpack.c.b16 %v3548, %v3547
      %v3686 = vpack.c.b16 %v3550, %v3549
      %v3687 = vpack.c.b16 %v3552, %v3551
      %v3688 = vpack.c.b16 %v3554, %v3553
      %v3689 = vpack.c.b16 %v3556, %v3555
      %v3690 = vpack.c.b16 %v3558, %v3557
      %v3691 = vpack.c.b16 %v3560, %v3559
      %v3692 = vpack.c.b16 %v3562, %v3561
      %v3693 = vpack.c.b16 %v3564, %v3563
      %v3694 = vpack.c.b16 %v3566, %v3565
      %v3695 = vpack.c.b16 %v3568, %v3567
      %v3696 = vpack.c.b16 %v3570, %v3569
      %v3697 = vpack.c.b16 %v3572, %v3571
      %v3698 = vpack.c.b16 %v3574, %v3573
      %v3699 = vpack.c.b16 %v3576, %v3575
      %v3700 = vpack.c.b16 %v3578, %v3577
      %v3701 = vpack.c.b16 %v3580, %v3579
      %v3702 = vpack.c.b16 %v3582, %v3581
      %v3703 = vpack.c.b16 %v3584, %v3583
      %v3704 = vpack.c.b16 %v3586, %v3585
      %v3705 = vpack.c.b16 %v3588, %v3587
      %v3706 = vpack.c.b16 %v3590, %v3589
      %v3707 = vpack.c.b16 %v3592, %v3591
      %v3708 = vpack.c.b16 %v3594, %v3593
      %v3709 = vpack.c.b16 %v3596, %v3595
      %v3710 = vpack.c.b16 %v3598, %v3597
      %v3711 = vpack.c.b16 %v3600, %v3599
      %v3712 = vpack.c.b16 %v3602, %v3601
      %v3713 = vpack.c.b16 %v3604, %v3603
      %v3714 = vpack.c.b16 %v3606, %v3605
      %v3715 = vpack.c.b16 %v3608, %v3607
      %v3716 = vpack.c.b16 %v3610, %v3609
      %v3717 = vpack.c.b16 %v3612, %v3611
      %v3718 = vpack.c.b16 %v3614, %v3613
      %v3719 = vpack.c.b16 %v3616, %v3615
      %v3720 = vpack.c.b16 %v3618, %v3617
      %v3721 = vpack.c.b16 %v3620, %v3619
      %v3722 = vpack.c.b16 %v3622, %v3621
      %v3723 = vpack.c.b16 %v3624, %v3623
      %v3724 = vpack.c.b16 %v3626, %v3625
      %v3725 = vpack.c.b16 %v3628, %v3627
      %v3726 = vpack.c.b16 %v3630, %v3629
      %v3727 = vpack.c.b16 %v3632, %v3631
      %v3728 = vpack.c.b16 %v3634, %v3633
      %v3729 = vpack.c.b16 %v3636, %v3635
      %v3730 = vpack.c.b16 %v3638, %v3637
      %v3731 = vpack.c.b16 %v3640, %v3639
      %v3732 = vpack.c.b16 %v3642, %v3641
      %v3733 = vpack.c.b16 %v3644, %v3643
      %v3734 = vpack.c.b16 %v3646, %v3645
      %v3735 = vpack.c.b16 %v3648, %v3647
      %v3736 = vpack.c.b16 %v3650, %v3649
      %v3737 = vpack.c.b16 %v3652, %v3651
      %v3738 = vpack.c.b16 %v3654, %v3653
      %v3739 = vpack.c.b16 %v3656, %v3655
      %v3740 = vpack.c.b16 %v3658, %v3657
      %v3741 = vpack.c.b16 %v3660, %v3659
      %v3742 = vpack.c.b16 %v3662, %v3661
      %v3743 = vpack.c.b16 %v3664, %v3663
      %v3744 = vpack.c.b16 %v3666, %v3665
      %v3745 = vpack.c.b16 %v3668, %v3667
      %v3746 = vpack.c.b16 %v3670, %v3669
      %v3747 = vpack.c.b16 %v3672, %v3671
      %v3748 = vpack.c.b16 %v3674, %v3673
      %v3749 = vpack.c.b16 %v3676, %v3675
      %v3750 = vpack.c.b16 %v3678, %v3677
      %3823 = vmatprep.subr.bf16.mxu0 0
      %3824 = vmatpush1.bf16.msra.mxu0 %v3679
      %3825 = vmatprep.subr.bf16.mxu0 0
      %3826 = vmatpush1.bf16.msra.mxu0 %v3680
      %3827 = vmatprep.subr.bf16.mxu0 0
      %3828 = vmatpush1.bf16.msra.mxu0 %v3681
      %3829 = vmatprep.subr.bf16.mxu0 0
      %3830 = vmatpush1.bf16.msra.mxu0 %v3682
      %3831 = vmatprep.subr.bf16.mxu0 0
      %3832 = vmatpush1.bf16.msra.mxu0 %v3683
      %3833 = vmatprep.subr.bf16.mxu0 0
      %3834 = vmatpush1.bf16.msra.mxu0 %v3684
      %3835 = vmatprep.subr.bf16.mxu0 0
      %3836 = vmatpush1.bf16.msra.mxu0 %v3685
      %3837 = vmatprep.subr.bf16.mxu0 0
      %3838 = vmatpush1.bf16.msra.mxu0 %v3686
      %3839 = vmatprep.subr.bf16.mxu0 0
      %3840 = vmatpush1.bf16.msra.mxu0 %v3687
      %3841 = vmatprep.subr.bf16.mxu0 0
      %3842 = vmatpush1.bf16.msra.mxu0 %v3688
      %3843 = vmatprep.subr.bf16.mxu0 0
      %3844 = vmatpush1.bf16.msra.mxu0 %v3689
      %3845 = vmatprep.subr.bf16.mxu0 0
      %3846 = vmatpush1.bf16.msra.mxu0 %v3690
      %3847 = vmatprep.subr.bf16.mxu0 0
      %3848 = vmatpush1.bf16.msra.mxu0 %v3691
      %3849 = vmatprep.subr.bf16.mxu0 0
      %3850 = vmatpush1.bf16.msra.mxu0 %v3692
      %3851 = vmatprep.subr.bf16.mxu0 0
      %3852 = vmatpush1.bf16.msra.mxu0 %v3693
      %3853 = vmatprep.subr.bf16.mxu0 0
      %3854 = vmatpush1.bf16.msra.mxu0 %v3694
      %3855 = vmatprep.mubr.bf16.mxu0 %v3097
      %3856 = vmatmul.mubr.bf16.gmra.mrb[0].mxu0 %v3096
      %v3857 = vpop.f32.mrb[0].mxu0
      %v3858 = vadd.f32 %v3389, %v3857
      %v3859 = vpop.f32.mrb[0].mxu0
      %v3860 = vpop.f32.mrb[0].mxu0
      %v3861 = vadd.f32 %v3389, %v3860
      %v3862 = vpop.f32.mrb[0].mxu0
      %3863 = vmatprep.mubr.bf16.mxu0 %v3106
      %3864 = vmatmul.mubr.bf16.gmra.mrb[0].mxu0 %v3105
      %v3865 = vpop.f32.mrb[0].mxu0
      %v3866 = vadd.f32 %v3389, %v3865
      %v3867 = vpop.f32.mrb[0].mxu0
      %v3868 = vpop.f32.mrb[0].mxu0
      %v3869 = vadd.f32 %v3389, %v3868
      %v3870 = vpop.f32.mrb[0].mxu0
      %3871 = vmatprep.mubr.bf16.mxu0 %v3115
      %3872 = vmatmul.mubr.bf16.gmra.mrb[0].mxu0 %v3114
      %v3873 = vpop.f32.mrb[0].mxu0
      %v3874 = vadd.f32 %v3389, %v3873
      %v3875 = vpop.f32.mrb[0].mxu0
      %v3876 = vpop.f32.mrb[0].mxu0
      %v3877 = vadd.f32 %v3389, %v3876
      %v3878 = vpop.f32.mrb[0].mxu0
      %3879 = vmatprep.mubr.bf16.mxu0 %v3124
      %3880 = vmatmul.mubr.bf16.gmra.mrb[0].mxu0 %v3123
      %v3881 = vpop.f32.mrb[0].mxu0
      %v3882 = vadd.f32 %v3389, %v3881
      %v3883 = vpop.f32.mrb[0].mxu0
      %v3884 = vpop.f32.mrb[0].mxu0
      %v3885 = vadd.f32 %v3389, %v3884
      %v3886 = vpop.f32.mrb[0].mxu0
      %3887 = vmatprep.mubr.bf16.mxu0 %v3133
      %3888 = vmatmul.mubr.bf16.gmra.mrb[0].mxu0 %v3132
      %v3889 = vpop.f32.mrb[0].mxu0
      %v3890 = vadd.f32 %v3389, %v3889
      %v3891 = vpop.f32.mrb[0].mxu0
      %v3892 = vpop.f32.mrb[0].mxu0
      %v3893 = vadd.f32 %v3389, %v3892
      %v3894 = vpop.f32.mrb[0].mxu0
      %3895 = vmatprep.mubr.bf16.mxu0 %v3142
      %3896 = vmatmul.mubr.bf16.gmra.mrb[0].mxu0 %v3141
      %v3897 = vpop.f32.mrb[0].mxu0
      %v3898 = vadd.f32 %v3389, %v3897
      %v3899 = vpop.f32.mrb[0].mxu0
      %v3900 = vpop.f32.mrb[0].mxu0
      %v3901 = vadd.f32 %v3389, %v3900
      %v3902 = vpop.f32.mrb[0].mxu0
      %3903 = vmatprep.mubr.bf16.mxu0 %v3151
      %3904 = vmatmul.mubr.bf16.gmra.mrb[0].mxu0 %v3150
      %v3905 = vpop.f32.mrb[0].mxu0
      %v3906 = vadd.f32 %v3389, %v3905
      %v3907 = vpop.f32.mrb[0].mxu0
      %v3908 = vpop.f32.mrb[0].mxu0
      %v3909 = vadd.f32 %v3389, %v3908
      %v3910 = vpop.f32.mrb[0].mxu0
      %3911 = vmatprep.mubr.bf16.mxu0 %v3160
      %3912 = vmatmul.mubr.bf16.gmra.mrb[0].mxu0 %v3159
      %v3913 = vpop.f32.mrb[0].mxu0
      %v3914 = vadd.f32 %v3389, %v3913
      %v3915 = vpop.f32.mrb[0].mxu0
      %v3916 = vpop.f32.mrb[0].mxu0
      %v3917 = vadd.f32 %v3389, %v3916
      %v3918 = vpop.f32.mrb[0].mxu0
      %3919 = vmatprep.mubr.bf16.mxu0 %v3169
      %3920 = vmatmul.mubr.bf16.gmra.mrb[0].mxu0 %v3168
      %v3921 = vpop.f32.mrb[0].mxu0
      %v3922 = vadd.f32 %v3389, %v3921
      %v3923 = vpop.f32.mrb[0].mxu0
      %v3924 = vpop.f32.mrb[0].mxu0
      %v3925 = vadd.f32 %v3389, %v3924
      %v3926 = vpop.f32.mrb[0].mxu0
      %3927 = vmatprep.mubr.bf16.mxu0 %v3178
      %3928 = vmatmul.mubr.bf16.gmra.mrb[0].mxu0 %v3177
      %v3929 = vpop.f32.mrb[0].mxu0
      %v3930 = vadd.f32 %v3389, %v3929
      %v3931 = vpop.f32.mrb[0].mxu0
      %v3932 = vpop.f32.mrb[0].mxu0
      %v3933 = vadd.f32 %v3389, %v3932
      %v3934 = vpop.f32.mrb[0].mxu0
      %3935 = vmatprep.mubr.bf16.mxu0 %v3187
      %3936 = vmatmul.mubr.bf16.gmra.mrb[0].mxu0 %v3186
      %v3937 = vpop.f32.mrb[0].mxu0
      %v3938 = vadd.f32 %v3389, %v3937
      %v3939 = vpop.f32.mrb[0].mxu0
      %v3940 = vpop.f32.mrb[0].mxu0
      %v3941 = vadd.f32 %v3389, %v3940
      %v3942 = vpop.f32.mrb[0].mxu0
      %3943 = vmatprep.mubr.bf16.mxu0 %v3196
      %3944 = vmatmul.mubr.bf16.gmra.mrb[0].mxu0 %v3195
      %v3945 = vpop.f32.mrb[0].mxu0
      %v3946 = vadd.f32 %v3389, %v3945
      %v3947 = vpop.f32.mrb[0].mxu0
      %v3948 = vpop.f32.mrb[0].mxu0
      %v3949 = vadd.f32 %v3389, %v3948
      %v3950 = vpop.f32.mrb[0].mxu0
      %3951 = vmatprep.mubr.bf16.mxu0 %v3205
      %3952 = vmatmul.mubr.bf16.gmra.mrb[0].mxu0 %v3204
      %v3953 = vpop.f32.mrb[0].mxu0
      %v3954 = vadd.f32 %v3389, %v3953
      %v3955 = vpop.f32.mrb[0].mxu0
      %v3956 = vpop.f32.mrb[0].mxu0
      %v3957 = vadd.f32 %v3389, %v3956
      %v3958 = vpop.f32.mrb[0].mxu0
      %3959 = vmatprep.mubr.bf16.mxu0 %v3214
      %3960 = vmatmul.mubr.bf16.gmra.mrb[0].mxu0 %v3213
      %v3961 = vpop.f32.mrb[0].mxu0
      %v3962 = vadd.f32 %v3389, %v3961
      %v3963 = vpop.f32.mrb[0].mxu0
      %v3964 = vpop.f32.mrb[0].mxu0
      %v3965 = vadd.f32 %v3389, %v3964
      %v3966 = vpop.f32.mrb[0].mxu0
      %3967 = vmatprep.mubr.bf16.mxu0 %v3223
      %3968 = vmatmul.mubr.bf16.gmra.mrb[0].mxu0 %v3222
      %v3969 = vpop.f32.mrb[0].mxu0
      %v3970 = vadd.f32 %v3389, %v3969
      %v3971 = vpop.f32.mrb[0].mxu0
      %v3972 = vpop.f32.mrb[0].mxu0
      %v3973 = vadd.f32 %v3389, %v3972
      %v3974 = vpop.f32.mrb[0].mxu0
      %3975 = vmatprep.mubr.bf16.mxu0 %v3232
      %3976 = vmatmul.mubr.bf16.gmra.mrb[0].mxu0 %v3231
      %v3977 = vpop.f32.mrb[0].mxu0
      %v3978 = vadd.f32 %v3389, %v3977
      %v3979 = vpop.f32.mrb[0].mxu0
      %v3980 = vpop.f32.mrb[0].mxu0
      %v3981 = vadd.f32 %v3389, %v3980
      %v3982 = vpop.f32.mrb[0].mxu0
      %3983 = vdwg.mxu0
      %3984 = vmatprep.subr.bf16.mxu0 0
      %3985 = vmatpush1.bf16.msra.mxu0 %v3695
      %3986 = vmatprep.subr.bf16.mxu0 0
      %3987 = vmatpush1.bf16.msra.mxu0 %v3696
      %3988 = vmatprep.subr.bf16.mxu0 0
      %3989 = vmatpush1.bf16.msra.mxu0 %v3697
      %3990 = vmatprep.subr.bf16.mxu0 0
      %3991 = vmatpush1.bf16.msra.mxu0 %v3698
      %3992 = vmatprep.subr.bf16.mxu0 0
      %3993 = vmatpush1.bf16.msra.mxu0 %v3699
      %3994 = vmatprep.subr.bf16.mxu0 0
      %3995 = vmatpush1.bf16.msra.mxu0 %v3700
      %3996 = vmatprep.subr.bf16.mxu0 0
      %3997 = vmatpush1.bf16.msra.mxu0 %v3701
      %3998 = vmatprep.subr.bf16.mxu0 0
      %3999 = vmatpush1.bf16.msra.mxu0 %v3702
      %4000 = vmatprep.subr.bf16.mxu0 0
      %4001 = vmatpush1.bf16.msra.mxu0 %v3703
      %4002 = vmatprep.subr.bf16.mxu0 0
      %4003 = vmatpush1.bf16.msra.mxu0 %v3704
      %4004 = vmatprep.subr.bf16.mxu0 0
      %4005 = vmatpush1.bf16.msra.mxu0 %v3705
      %4006 = vmatprep.subr.bf16.mxu0 0
      %4007 = vmatpush1.bf16.msra.mxu0 %v3706
      %4008 = vmatprep.subr.bf16.mxu0 0
      %4009 = vmatpush1.bf16.msra.mxu0 %v3707
      %4010 = vmatprep.subr.bf16.mxu0 0
      %4011 = vmatpush1.bf16.msra.mxu0 %v3708
      %4012 = vmatprep.subr.bf16.mxu0 0
      %4013 = vmatpush1.bf16.msra.mxu0 %v3709
      %4014 = vmatprep.subr.bf16.mxu0 0
      %4015 = vmatpush1.bf16.msra.mxu0 %v3710
      %4016 = vmatprep.mubr.bf16.mxu0 %v3099
      %4017 = vmatmul.mubr.bf16.gmra.mrb[0].mxu0 %v3098
      %v4018 = vpop.f32.mrb[0].mxu0
      %v4019 = vadd.f32 %v3858, %v4018
      %v4020 = vpop.f32.mrb[0].mxu0
      %v4021 = vpop.f32.mrb[0].mxu0
      %v4022 = vadd.f32 %v3861, %v4021
      %v4023 = vpop.f32.mrb[0].mxu0
      %4024 = vmatprep.mubr.bf16.mxu0 %v3108
      %4025 = vmatmul.mubr.bf16.gmra.mrb[0].mxu0 %v3107
      %v4026 = vpop.f32.mrb[0].mxu0
      %v4027 = vadd.f32 %v3866, %v4026
      %v4028 = vpop.f32.mrb[0].mxu0
      %v4029 = vpop.f32.mrb[0].mxu0
      %v4030 = vadd.f32 %v3869, %v4029
      %v4031 = vpop.f32.mrb[0].mxu0
      %4032 = vmatprep.mubr.bf16.mxu0 %v3117
      %4033 = vmatmul.mubr.bf16.gmra.mrb[0].mxu0 %v3116
      %v4034 = vpop.f32.mrb[0].mxu0
      %v4035 = vadd.f32 %v3874, %v4034
      %v4036 = vpop.f32.mrb[0].mxu0
      %v4037 = vpop.f32.mrb[0].mxu0
      %v4038 = vadd.f32 %v3877, %v4037
      %v4039 = vpop.f32.mrb[0].mxu0
      %4040 = vmatprep.mubr.bf16.mxu0 %v3126
      %4041 = vmatmul.mubr.bf16.gmra.mrb[0].mxu0 %v3125
      %v4042 = vpop.f32.mrb[0].mxu0
      %v4043 = vadd.f32 %v3882, %v4042
      %v4044 = vpop.f32.mrb[0].mxu0
      %v4045 = vpop.f32.mrb[0].mxu0
      %v4046 = vadd.f32 %v3885, %v4045
      %v4047 = vpop.f32.mrb[0].mxu0
      %4048 = vmatprep.mubr.bf16.mxu0 %v3135
      %4049 = vmatmul.mubr.bf16.gmra.mrb[0].mxu0 %v3134
      %v4050 = vpop.f32.mrb[0].mxu0
      %v4051 = vadd.f32 %v3890, %v4050
      %v4052 = vpop.f32.mrb[0].mxu0
      %v4053 = vpop.f32.mrb[0].mxu0
      %v4054 = vadd.f32 %v3893, %v4053
      %v4055 = vpop.f32.mrb[0].mxu0
      %4056 = vmatprep.mubr.bf16.mxu0 %v3144
      %4057 = vmatmul.mubr.bf16.gmra.mrb[0].mxu0 %v3143
      %v4058 = vpop.f32.mrb[0].mxu0
      %v4059 = vadd.f32 %v3898, %v4058
      %v4060 = vpop.f32.mrb[0].mxu0
      %v4061 = vpop.f32.mrb[0].mxu0
      %v4062 = vadd.f32 %v3901, %v4061
      %v4063 = vpop.f32.mrb[0].mxu0
      %4064 = vmatprep.mubr.bf16.mxu0 %v3153
      %4065 = vmatmul.mubr.bf16.gmra.mrb[0].mxu0 %v3152
      %v4066 = vpop.f32.mrb[0].mxu0
      %v4067 = vadd.f32 %v3906, %v4066
      %v4068 = vpop.f32.mrb[0].mxu0
      %v4069 = vpop.f32.mrb[0].mxu0
      %v4070 = vadd.f32 %v3909, %v4069
      %v4071 = vpop.f32.mrb[0].mxu0
      %4072 = vmatprep.mubr.bf16.mxu0 %v3162
      %4073 = vmatmul.mubr.bf16.gmra.mrb[0].mxu0 %v3161
      %v4074 = vpop.f32.mrb[0].mxu0
      %v4075 = vadd.f32 %v3914, %v4074
      %v4076 = vpop.f32.mrb[0].mxu0
      %v4077 = vpop.f32.mrb[0].mxu0
      %v4078 = vadd.f32 %v3917, %v4077
      %v4079 = vpop.f32.mrb[0].mxu0
      %4080 = vmatprep.mubr.bf16.mxu0 %v3171
      %4081 = vmatmul.mubr.bf16.gmra.mrb[0].mxu0 %v3170
      %v4082 = vpop.f32.mrb[0].mxu0
      %v4083 = vadd.f32 %v3922, %v4082
      %v4084 = vpop.f32.mrb[0].mxu0
      %v4085 = vpop.f32.mrb[0].mxu0
      %v4086 = vadd.f32 %v3925, %v4085
      %v4087 = vpop.f32.mrb[0].mxu0
      %4088 = vmatprep.mubr.bf16.mxu0 %v3180
      %4089 = vmatmul.mubr.bf16.gmra.mrb[0].mxu0 %v3179
      %v4090 = vpop.f32.mrb[0].mxu0
      %v4091 = vadd.f32 %v3930, %v4090
      %v4092 = vpop.f32.mrb[0].mxu0
      %v4093 = vpop.f32.mrb[0].mxu0
      %v4094 = vadd.f32 %v3933, %v4093
      %v4095 = vpop.f32.mrb[0].mxu0
      %4096 = vmatprep.mubr.bf16.mxu0 %v3189
      %4097 = vmatmul.mubr.bf16.gmra.mrb[0].mxu0 %v3188
      %v4098 = vpop.f32.mrb[0].mxu0
      %v4099 = vadd.f32 %v3938, %v4098
      %v4100 = vpop.f32.mrb[0].mxu0
      %v4101 = vpop.f32.mrb[0].mxu0
      %v4102 = vadd.f32 %v3941, %v4101
      %v4103 = vpop.f32.mrb[0].mxu0
      %4104 = vmatprep.mubr.bf16.mxu0 %v3198
      %4105 = vmatmul.mubr.bf16.gmra.mrb[0].mxu0 %v3197
      %v4106 = vpop.f32.mrb[0].mxu0
      %v4107 = vadd.f32 %v3946, %v4106
      %v4108 = vpop.f32.mrb[0].mxu0
      %v4109 = vpop.f32.mrb[0].mxu0
      %v4110 = vadd.f32 %v3949, %v4109
      %v4111 = vpop.f32.mrb[0].mxu0
      %4112 = vmatprep.mubr.bf16.mxu0 %v3207
      %4113 = vmatmul.mubr.bf16.gmra.mrb[0].mxu0 %v3206
      %v4114 = vpop.f32.mrb[0].mxu0
      %v4115 = vadd.f32 %v3954, %v4114
      %v4116 = vpop.f32.mrb[0].mxu0
      %v4117 = vpop.f32.mrb[0].mxu0
      %v4118 = vadd.f32 %v3957, %v4117
      %v4119 = vpop.f32.mrb[0].mxu0
      %4120 = vmatprep.mubr.bf16.mxu0 %v3216
      %4121 = vmatmul.mubr.bf16.gmra.mrb[0].mxu0 %v3215
      %v4122 = vpop.f32.mrb[0].mxu0
      %v4123 = vadd.f32 %v3962, %v4122
      %v4124 = vpop.f32.mrb[0].mxu0
      %v4125 = vpop.f32.mrb[0].mxu0
      %v4126 = vadd.f32 %v3965, %v4125
      %v4127 = vpop.f32.mrb[0].mxu0
      %4128 = vmatprep.mubr.bf16.mxu0 %v3225
      %4129 = vmatmul.mubr.bf16.gmra.mrb[0].mxu0 %v3224
      %v4130 = vpop.f32.mrb[0].mxu0
      %v4131 = vadd.f32 %v3970, %v4130
      %v4132 = vpop.f32.mrb[0].mxu0
      %v4133 = vpop.f32.mrb[0].mxu0
      %v4134 = vadd.f32 %v3973, %v4133
      %v4135 = vpop.f32.mrb[0].mxu0
      %4136 = vmatprep.mubr.bf16.mxu0 %v3234
      %4137 = vmatmul.mubr.bf16.gmra.mrb[0].mxu0 %v3233
      %v4138 = vpop.f32.mrb[0].mxu0
      %v4139 = vadd.f32 %v3978, %v4138
      %v4140 = vpop.f32.mrb[0].mxu0
      %v4141 = vpop.f32.mrb[0].mxu0
      %v4142 = vadd.f32 %v3981, %v4141
      %v4143 = vpop.f32.mrb[0].mxu0
      %4144 = vdwg.mxu0
      %4145 = vmatprep.subr.bf16.mxu0 0
      %4146 = vmatpush1.bf16.msra.mxu0 %v3711
      %4147 = vmatprep.subr.bf16.mxu0 0
      %4148 = vmatpush1.bf16.msra.mxu0 %v3712
      %4149 = vmatprep.subr.bf16.mxu0 0
      %4150 = vmatpush1.bf16.msra.mxu0 %v3713
      %4151 = vmatprep.subr.bf16.mxu0 0
      %4152 = vmatpush1.bf16.msra.mxu0 %v3714
      %4153 = vmatprep.subr.bf16.mxu0 0
      %4154 = vmatpush1.bf16.msra.mxu0 %v3715
      %4155 = vmatprep.subr.bf16.mxu0 0
      %4156 = vmatpush1.bf16.msra.mxu0 %v3716
      %4157 = vmatprep.subr.bf16.mxu0 0
      %4158 = vmatpush1.bf16.msra.mxu0 %v3717
      %4159 = vmatprep.subr.bf16.mxu0 0
      %4160 = vmatpush1.bf16.msra.mxu0 %v3718
      %4161 = vmatprep.subr.bf16.mxu0 0
      %4162 = vmatpush1.bf16.msra.mxu0 %v3719
      %4163 = vmatprep.subr.bf16.mxu0 0
      %4164 = vmatpush1.bf16.msra.mxu0 %v3720
      %4165 = vmatprep.subr.bf16.mxu0 0
      %4166 = vmatpush1.bf16.msra.mxu0 %v3721
      %4167 = vmatprep.subr.bf16.mxu0 0
      %4168 = vmatpush1.bf16.msra.mxu0 %v3722
      %4169 = vmatprep.subr.bf16.mxu0 0
      %4170 = vmatpush1.bf16.msra.mxu0 %v3723
      %4171 = vmatprep.subr.bf16.mxu0 0
      %4172 = vmatpush1.bf16.msra.mxu0 %v3724
      %4173 = vmatprep.subr.bf16.mxu0 0
      %4174 = vmatpush1.bf16.msra.mxu0 %v3725
      %4175 = vmatprep.subr.bf16.mxu0 0
      %4176 = vmatpush1.bf16.msra.mxu0 %v3726
      %4177 = vmatprep.mubr.bf16.mxu0 %v3101
      %4178 = vmatmul.mubr.bf16.gmra.mrb[0].mxu0 %v3100
      %v4179 = vpop.f32.mrb[0].mxu0
      %v4180 = vadd.f32 %v4019, %v4179
      %v4181 = vpop.f32.mrb[0].mxu0
      %v4182 = vpop.f32.mrb[0].mxu0
      %v4183 = vadd.f32 %v4022, %v4182
      %v4184 = vpop.f32.mrb[0].mxu0
      %4185 = vmatprep.mubr.bf16.mxu0 %v3110
      %4186 = vmatmul.mubr.bf16.gmra.mrb[0].mxu0 %v3109
      %v4187 = vpop.f32.mrb[0].mxu0
      %v4188 = vadd.f32 %v4027, %v4187
      %v4189 = vpop.f32.mrb[0].mxu0
      %v4190 = vpop.f32.mrb[0].mxu0
      %v4191 = vadd.f32 %v4030, %v4190
      %v4192 = vpop.f32.mrb[0].mxu0
      %4193 = vmatprep.mubr.bf16.mxu0 %v3119
      %4194 = vmatmul.mubr.bf16.gmra.mrb[0].mxu0 %v3118
      %v4195 = vpop.f32.mrb[0].mxu0
      %v4196 = vadd.f32 %v4035, %v4195
      %v4197 = vpop.f32.mrb[0].mxu0
      %v4198 = vpop.f32.mrb[0].mxu0
      %v4199 = vadd.f32 %v4038, %v4198
      %v4200 = vpop.f32.mrb[0].mxu0
      %4201 = vmatprep.mubr.bf16.mxu0 %v3128
      %4202 = vmatmul.mubr.bf16.gmra.mrb[0].mxu0 %v3127
      %v4203 = vpop.f32.mrb[0].mxu0
      %v4204 = vadd.f32 %v4043, %v4203
      %v4205 = vpop.f32.mrb[0].mxu0
      %v4206 = vpop.f32.mrb[0].mxu0
      %v4207 = vadd.f32 %v4046, %v4206
      %v4208 = vpop.f32.mrb[0].mxu0
      %4209 = vmatprep.mubr.bf16.mxu0 %v3137
      %4210 = vmatmul.mubr.bf16.gmra.mrb[0].mxu0 %v3136
      %v4211 = vpop.f32.mrb[0].mxu0
      %v4212 = vadd.f32 %v4051, %v4211
      %v4213 = vpop.f32.mrb[0].mxu0
      %v4214 = vpop.f32.mrb[0].mxu0
      %v4215 = vadd.f32 %v4054, %v4214
      %v4216 = vpop.f32.mrb[0].mxu0
      %4217 = vmatprep.mubr.bf16.mxu0 %v3146
      %4218 = vmatmul.mubr.bf16.gmra.mrb[0].mxu0 %v3145
      %v4219 = vpop.f32.mrb[0].mxu0
      %v4220 = vadd.f32 %v4059, %v4219
      %v4221 = vpop.f32.mrb[0].mxu0
      %v4222 = vpop.f32.mrb[0].mxu0
      %v4223 = vadd.f32 %v4062, %v4222
      %v4224 = vpop.f32.mrb[0].mxu0
      %4225 = vmatprep.mubr.bf16.mxu0 %v3155
      %4226 = vmatmul.mubr.bf16.gmra.mrb[0].mxu0 %v3154
      %v4227 = vpop.f32.mrb[0].mxu0
      %v4228 = vadd.f32 %v4067, %v4227
      %v4229 = vpop.f32.mrb[0].mxu0
      %v4230 = vpop.f32.mrb[0].mxu0
      %v4231 = vadd.f32 %v4070, %v4230
      %v4232 = vpop.f32.mrb[0].mxu0
      %4233 = vmatprep.mubr.bf16.mxu0 %v3164
      %4234 = vmatmul.mubr.bf16.gmra.mrb[0].mxu0 %v3163
      %v4235 = vpop.f32.mrb[0].mxu0
      %v4236 = vadd.f32 %v4075, %v4235
      %v4237 = vpop.f32.mrb[0].mxu0
      %v4238 = vpop.f32.mrb[0].mxu0
      %v4239 = vadd.f32 %v4078, %v4238
      %v4240 = vpop.f32.mrb[0].mxu0
      %4241 = vmatprep.mubr.bf16.mxu0 %v3173
      %4242 = vmatmul.mubr.bf16.gmra.mrb[0].mxu0 %v3172
      %v4243 = vpop.f32.mrb[0].mxu0
      %v4244 = vadd.f32 %v4083, %v4243
      %v4245 = vpop.f32.mrb[0].mxu0
      %v4246 = vpop.f32.mrb[0].mxu0
      %v4247 = vadd.f32 %v4086, %v4246
      %v4248 = vpop.f32.mrb[0].mxu0
      %4249 = vmatprep.mubr.bf16.mxu0 %v3182
      %4250 = vmatmul.mubr.bf16.gmra.mrb[0].mxu0 %v3181
      %v4251 = vpop.f32.mrb[0].mxu0
      %v4252 = vadd.f32 %v4091, %v4251
      %v4253 = vpop.f32.mrb[0].mxu0
      %v4254 = vpop.f32.mrb[0].mxu0
      %v4255 = vadd.f32 %v4094, %v4254
      %v4256 = vpop.f32.mrb[0].mxu0
      %4257 = vmatprep.mubr.bf16.mxu0 %v3191
      %4258 = vmatmul.mubr.bf16.gmra.mrb[0].mxu0 %v3190
      %v4259 = vpop.f32.mrb[0].mxu0
      %v4260 = vadd.f32 %v4099, %v4259
      %v4261 = vpop.f32.mrb[0].mxu0
      %v4262 = vpop.f32.mrb[0].mxu0
      %v4263 = vadd.f32 %v4102, %v4262
      %v4264 = vpop.f32.mrb[0].mxu0
      %4265 = vmatprep.mubr.bf16.mxu0 %v3200
      %4266 = vmatmul.mubr.bf16.gmra.mrb[0].mxu0 %v3199
      %v4267 = vpop.f32.mrb[0].mxu0
      %v4268 = vadd.f32 %v4107, %v4267
      %v4269 = vpop.f32.mrb[0].mxu0
      %v4270 = vpop.f32.mrb[0].mxu0
      %v4271 = vadd.f32 %v4110, %v4270
      %v4272 = vpop.f32.mrb[0].mxu0
      %4273 = vmatprep.mubr.bf16.mxu0 %v3209
      %4274 = vmatmul.mubr.bf16.gmra.mrb[0].mxu0 %v3208
      %v4275 = vpop.f32.mrb[0].mxu0
      %v4276 = vadd.f32 %v4115, %v4275
      %v4277 = vpop.f32.mrb[0].mxu0
      %v4278 = vpop.f32.mrb[0].mxu0
      %v4279 = vadd.f32 %v4118, %v4278
      %v4280 = vpop.f32.mrb[0].mxu0
      %4281 = vmatprep.mubr.bf16.mxu0 %v3218
      %4282 = vmatmul.mubr.bf16.gmra.mrb[0].mxu0 %v3217
      %v4283 = vpop.f32.mrb[0].mxu0
      %v4284 = vadd.f32 %v4123, %v4283
      %v4285 = vpop.f32.mrb[0].mxu0
      %v4286 = vpop.f32.mrb[0].mxu0
      %v4287 = vadd.f32 %v4126, %v4286
      %v4288 = vpop.f32.mrb[0].mxu0
      %4289 = vmatprep.mubr.bf16.mxu0 %v3227
      %4290 = vmatmul.mubr.bf16.gmra.mrb[0].mxu0 %v3226
      %v4291 = vpop.f32.mrb[0].mxu0
      %v4292 = vadd.f32 %v4131, %v4291
      %v4293 = vpop.f32.mrb[0].mxu0
      %v4294 = vpop.f32.mrb[0].mxu0
      %v4295 = vadd.f32 %v4134, %v4294
      %v4296 = vpop.f32.mrb[0].mxu0
      %4297 = vmatprep.mubr.bf16.mxu0 %v3236
      %4298 = vmatmul.mubr.bf16.gmra.mrb[0].mxu0 %v3235
      %v4299 = vpop.f32.mrb[0].mxu0
      %v4300 = vadd.f32 %v4139, %v4299
      %v4301 = vpop.f32.mrb[0].mxu0
      %v4302 = vpop.f32.mrb[0].mxu0
      %v4303 = vadd.f32 %v4142, %v4302
      %v4304 = vpop.f32.mrb[0].mxu0
      %4305 = vdwg.mxu0
      %4306 = vmatprep.subr.bf16.mxu0 0
      %4307 = vmatpush1.bf16.msra.mxu0 %v3727
      %4308 = vmatprep.subr.bf16.mxu0 0
      %4309 = vmatpush1.bf16.msra.mxu0 %v3728
      %4310 = vmatprep.subr.bf16.mxu0 0
      %4311 = vmatpush1.bf16.msra.mxu0 %v3729
      %4312 = vmatprep.subr.bf16.mxu0 0
      %4313 = vmatpush1.bf16.msra.mxu0 %v3730
      %4314 = vmatprep.subr.bf16.mxu0 0
      %4315 = vmatpush1.bf16.msra.mxu0 %v3731
      %4316 = vmatprep.subr.bf16.mxu0 0
      %4317 = vmatpush1.bf16.msra.mxu0 %v3732
      %4318 = vmatprep.subr.bf16.mxu0 0
      %4319 = vmatpush1.bf16.msra.mxu0 %v3733
      %4320 = vmatprep.subr.bf16.mxu0 0
      %4321 = vmatpush1.bf16.msra.mxu0 %v3734
      %4322 = vmatprep.subr.bf16.mxu0 0
      %4323 = vmatpush1.bf16.msra.mxu0 %v3735
      %4324 = vmatprep.subr.bf16.mxu0 0
      %4325 = vmatpush1.bf16.msra.mxu0 %v3736
      %4326 = vmatprep.subr.bf16.mxu0 0
      %4327 = vmatpush1.bf16.msra.mxu0 %v3737
      %4328 = vmatprep.subr.bf16.mxu0 0
      %4329 = vmatpush1.bf16.msra.mxu0 %v3738
      %4330 = vmatprep.subr.bf16.mxu0 0
      %4331 = vmatpush1.bf16.msra.mxu0 %v3739
      %4332 = vmatprep.subr.bf16.mxu0 0
      %4333 = vmatpush1.bf16.msra.mxu0 %v3740
      %4334 = vmatprep.subr.bf16.mxu0 0
      %4335 = vmatpush1.bf16.msra.mxu0 %v3741
      %4336 = vmatprep.subr.bf16.mxu0 0
      %4337 = vmatpush1.bf16.msra.mxu0 %v3742
      %4338 = vmatprep.mubr.bf16.mxu0 %v3103
      %4339 = vmatmul.mubr.bf16.gmra.mrb[0].mxu0 %v3102
      %v4340 = vpop.f32.mrb[0].mxu0
      %v4341 = vadd.f32 %v4180, %v4340
      %v4342 = vpop.f32.mrb[0].mxu0
      %v4343 = vpop.f32.mrb[0].mxu0
      %v4344 = vadd.f32 %v4183, %v4343
      %v4345 = vpop.f32.mrb[0].mxu0
      %4346 = vmatprep.mubr.bf16.mxu0 %v3112
      %4347 = vmatmul.mubr.bf16.gmra.mrb[0].mxu0 %v3111
      %v4348 = vpop.f32.mrb[0].mxu0
      %v4349 = vadd.f32 %v4188, %v4348
      %v4350 = vpop.f32.mrb[0].mxu0
      %v4351 = vpop.f32.mrb[0].mxu0
      %v4352 = vadd.f32 %v4191, %v4351
      %v4353 = vpop.f32.mrb[0].mxu0
      %4354 = vmatprep.mubr.bf16.mxu0 %v3121
      %4355 = vmatmul.mubr.bf16.gmra.mrb[0].mxu0 %v3120
      %v4356 = vpop.f32.mrb[0].mxu0
      %v4357 = vadd.f32 %v4196, %v4356
      %v4358 = vpop.f32.mrb[0].mxu0
      %v4359 = vpop.f32.mrb[0].mxu0
      %v4360 = vadd.f32 %v4199, %v4359
      %v4361 = vpop.f32.mrb[0].mxu0
      %4362 = vmatprep.mubr.bf16.mxu0 %v3130
      %4363 = vmatmul.mubr.bf16.gmra.mrb[0].mxu0 %v3129
      %v4364 = vpop.f32.mrb[0].mxu0
      %v4365 = vadd.f32 %v4204, %v4364
      %v4366 = vpop.f32.mrb[0].mxu0
      %v4367 = vpop.f32.mrb[0].mxu0
      %v4368 = vadd.f32 %v4207, %v4367
      %v4369 = vpop.f32.mrb[0].mxu0
      %4370 = vmatprep.mubr.bf16.mxu0 %v3139
      %4371 = vmatmul.mubr.bf16.gmra.mrb[0].mxu0 %v3138
      %v4372 = vpop.f32.mrb[0].mxu0
      %v4373 = vadd.f32 %v4212, %v4372
      %v4374 = vpop.f32.mrb[0].mxu0
      %v4375 = vpop.f32.mrb[0].mxu0
      %v4376 = vadd.f32 %v4215, %v4375
      %v4377 = vpop.f32.mrb[0].mxu0
      %4378 = vmatprep.mubr.bf16.mxu0 %v3148
      %4379 = vmatmul.mubr.bf16.gmra.mrb[0].mxu0 %v3147
      %v4380 = vpop.f32.mrb[0].mxu0
      %v4381 = vadd.f32 %v4220, %v4380
      %v4382 = vpop.f32.mrb[0].mxu0
      %v4383 = vpop.f32.mrb[0].mxu0
      %v4384 = vadd.f32 %v4223, %v4383
      %v4385 = vpop.f32.mrb[0].mxu0
      %4386 = vmatprep.mubr.bf16.mxu0 %v3157
      %4387 = vmatmul.mubr.bf16.gmra.mrb[0].mxu0 %v3156
      %v4388 = vpop.f32.mrb[0].mxu0
      %v4389 = vadd.f32 %v4228, %v4388
      %v4390 = vpop.f32.mrb[0].mxu0
      %v4391 = vpop.f32.mrb[0].mxu0
      %v4392 = vadd.f32 %v4231, %v4391
      %v4393 = vpop.f32.mrb[0].mxu0
      %4394 = vmatprep.mubr.bf16.mxu0 %v3166
      %4395 = vmatmul.mubr.bf16.gmra.mrb[0].mxu0 %v3165
      %v4396 = vpop.f32.mrb[0].mxu0
      %v4397 = vadd.f32 %v4236, %v4396
      %v4398 = vpop.f32.mrb[0].mxu0
      %v4399 = vpop.f32.mrb[0].mxu0
      %v4400 = vadd.f32 %v4239, %v4399
      %v4401 = vpop.f32.mrb[0].mxu0
      %4402 = vmatprep.mubr.bf16.mxu0 %v3175
      %4403 = vmatmul.mubr.bf16.gmra.mrb[0].mxu0 %v3174
      %v4404 = vpop.f32.mrb[0].mxu0
      %v4405 = vadd.f32 %v4244, %v4404
      %v4406 = vpop.f32.mrb[0].mxu0
      %v4407 = vpop.f32.mrb[0].mxu0
      %v4408 = vadd.f32 %v4247, %v4407
      %v4409 = vpop.f32.mrb[0].mxu0
      %4410 = vmatprep.mubr.bf16.mxu0 %v3184
      %4411 = vmatmul.mubr.bf16.gmra.mrb[0].mxu0 %v3183
      %v4412 = vpop.f32.mrb[0].mxu0
      %v4413 = vadd.f32 %v4252, %v4412
      %v4414 = vpop.f32.mrb[0].mxu0
      %v4415 = vpop.f32.mrb[0].mxu0
      %v4416 = vadd.f32 %v4255, %v4415
      %v4417 = vpop.f32.mrb[0].mxu0
      %4418 = vmatprep.mubr.bf16.mxu0 %v3193
      %4419 = vmatmul.mubr.bf16.gmra.mrb[0].mxu0 %v3192
      %v4420 = vpop.f32.mrb[0].mxu0
      %v4421 = vadd.f32 %v4260, %v4420
      %v4422 = vpop.f32.mrb[0].mxu0
      %v4423 = vpop.f32.mrb[0].mxu0
      %v4424 = vadd.f32 %v4263, %v4423
      %v4425 = vpop.f32.mrb[0].mxu0
      %4426 = vmatprep.mubr.bf16.mxu0 %v3202
      %4427 = vmatmul.mubr.bf16.gmra.mrb[0].mxu0 %v3201
      %v4428 = vpop.f32.mrb[0].mxu0
      %v4429 = vadd.f32 %v4268, %v4428
      %v4430 = vpop.f32.mrb[0].mxu0
      %v4431 = vpop.f32.mrb[0].mxu0
      %v4432 = vadd.f32 %v4271, %v4431
      %v4433 = vpop.f32.mrb[0].mxu0
      %4434 = vmatprep.mubr.bf16.mxu0 %v3211
      %4435 = vmatmul.mubr.bf16.gmra.mrb[0].mxu0 %v3210
      %v4436 = vpop.f32.mrb[0].mxu0
      %v4437 = vadd.f32 %v4276, %v4436
      %v4438 = vpop.f32.mrb[0].mxu0
      %v4439 = vpop.f32.mrb[0].mxu0
      %v4440 = vadd.f32 %v4279, %v4439
      %v4441 = vpop.f32.mrb[0].mxu0
      %4442 = vmatprep.mubr.bf16.mxu0 %v3220
      %4443 = vmatmul.mubr.bf16.gmra.mrb[0].mxu0 %v3219
      %v4444 = vpop.f32.mrb[0].mxu0
      %v4445 = vadd.f32 %v4284, %v4444
      %v4446 = vpop.f32.mrb[0].mxu0
      %v4447 = vpop.f32.mrb[0].mxu0
      %v4448 = vadd.f32 %v4287, %v4447
      %v4449 = vpop.f32.mrb[0].mxu0
      %4450 = vmatprep.mubr.bf16.mxu0 %v3229
      %4451 = vmatmul.mubr.bf16.gmra.mrb[0].mxu0 %v3228
      %v4452 = vpop.f32.mrb[0].mxu0
      %v4453 = vadd.f32 %v4292, %v4452
      %v4454 = vpop.f32.mrb[0].mxu0
      %v4455 = vpop.f32.mrb[0].mxu0
      %v4456 = vadd.f32 %v4295, %v4455
      %v4457 = vpop.f32.mrb[0].mxu0
      %4458 = vmatprep.mubr.bf16.mxu0 %v3238
      %4459 = vmatmul.mubr.bf16.gmra.mrb[0].mxu0 %v3237
      %v4460 = vpop.f32.mrb[0].mxu0
      %v4461 = vadd.f32 %v4300, %v4460
      %v4462 = vpop.f32.mrb[0].mxu0
      %v4463 = vpop.f32.mrb[0].mxu0
      %v4464 = vadd.f32 %v4303, %v4463
      %v4465 = vpop.f32.mrb[0].mxu0
      %4466 = vdwg.mxu0
      %4467 = vmatprep.subr.bf16.mxu0 0
      %4468 = vmatpush1.bf16.msra.mxu0 %v3743
      %4469 = vmatprep.subr.bf16.mxu0 0
      %4470 = vmatpush1.bf16.msra.mxu0 %v3744
      %4471 = vmatprep.subr.bf16.mxu0 0
      %4472 = vmatpush1.bf16.msra.mxu0 %v3745
      %4473 = vmatprep.subr.bf16.mxu0 0
      %4474 = vmatpush1.bf16.msra.mxu0 %v3746
      %4475 = vmatprep.subr.bf16.mxu0 0
      %4476 = vmatpush1.bf16.msra.mxu0 %v3747
      %4477 = vmatprep.subr.bf16.mxu0 0
      %4478 = vmatpush1.bf16.msra.mxu0 %v3748
      %4479 = vmatprep.subr.bf16.mxu0 0
      %4480 = vmatpush1.bf16.msra.mxu0 %v3749
      %4481 = vmatprep.subr.bf16.mxu0 0
      %4482 = vmatpush1.bf16.msra.mxu0 %v3750
      %4483 = vmatprep.subr.bf16.mxu0 0
      %4484 = vmatpush1.bf16.msra.mxu0 0
      %4485 = vmatprep.subr.bf16.mxu0 0
      %4486 = vmatpush1.bf16.msra.mxu0 0
      %4487 = vmatprep.subr.bf16.mxu0 0
      %4488 = vmatpush1.bf16.msra.mxu0 0
      %4489 = vmatprep.subr.bf16.mxu0 0
      %4490 = vmatpush1.bf16.msra.mxu0 0
      %4491 = vmatprep.subr.bf16.mxu0 0
      %4492 = vmatpush1.bf16.msra.mxu0 0
      %4493 = vmatprep.subr.bf16.mxu0 0
      %4494 = vmatpush1.bf16.msra.mxu0 0
      %4495 = vmatprep.subr.bf16.mxu0 0
      %4496 = vmatpush1.bf16.msra.mxu0 0
      %4497 = vmatprep.subr.bf16.mxu0 0
      %4498 = vmatpush1.bf16.msra.mxu0 0
      %4499 = vmatprep.mubr.bf16.mxu0 0
      %4500 = vmatmul.mubr.bf16.gmra.mrb[0].mxu0 %v3104
      %v4501 = vpop.f32.mrb[0].mxu0
      %v4502 = vadd.f32 %v4341, %v4501
      %v4503 = vpop.f32.mrb[0].mxu0
      %v4504 = vpop.f32.mrb[0].mxu0
      %v4505 = vadd.f32 %v4344, %v4504
      %v4506 = vpop.f32.mrb[0].mxu0
      %4507 = vmatprep.mubr.bf16.mxu0 0
      %4508 = vmatmul.mubr.bf16.gmra.mrb[0].mxu0 %v3113
      %v4509 = vpop.f32.mrb[0].mxu0
      %v4510 = vadd.f32 %v4349, %v4509
      %v4511 = vpop.f32.mrb[0].mxu0
      %v4512 = vpop.f32.mrb[0].mxu0
      %v4513 = vadd.f32 %v4352, %v4512
      %v4514 = vpop.f32.mrb[0].mxu0
      %4515 = vmatprep.mubr.bf16.mxu0 0
      %4516 = vmatmul.mubr.bf16.gmra.mrb[0].mxu0 %v3122
      %v4517 = vpop.f32.mrb[0].mxu0
      %v4518 = vadd.f32 %v4357, %v4517
      %v4519 = vpop.f32.mrb[0].mxu0
      %v4520 = vpop.f32.mrb[0].mxu0
      %v4521 = vadd.f32 %v4360, %v4520
      %v4522 = vpop.f32.mrb[0].mxu0
      %4523 = vmatprep.mubr.bf16.mxu0 0
      %4524 = vmatmul.mubr.bf16.gmra.mrb[0].mxu0 %v3131
      %v4525 = vpop.f32.mrb[0].mxu0
      %v4526 = vadd.f32 %v4365, %v4525
      %v4527 = vpop.f32.mrb[0].mxu0
      %v4528 = vpop.f32.mrb[0].mxu0
      %v4529 = vadd.f32 %v4368, %v4528
      %v4530 = vpop.f32.mrb[0].mxu0
      %4531 = vmatprep.mubr.bf16.mxu0 0
      %4532 = vmatmul.mubr.bf16.gmra.mrb[0].mxu0 %v3140
      %v4533 = vpop.f32.mrb[0].mxu0
      %v4534 = vadd.f32 %v4373, %v4533
      %v4535 = vpop.f32.mrb[0].mxu0
      %v4536 = vpop.f32.mrb[0].mxu0
      %v4537 = vadd.f32 %v4376, %v4536
      %v4538 = vpop.f32.mrb[0].mxu0
      %4539 = vmatprep.mubr.bf16.mxu0 0
      %4540 = vmatmul.mubr.bf16.gmra.mrb[0].mxu0 %v3149
      %v4541 = vpop.f32.mrb[0].mxu0
      %v4542 = vadd.f32 %v4381, %v4541
      %v4543 = vpop.f32.mrb[0].mxu0
      %v4544 = vpop.f32.mrb[0].mxu0
      %v4545 = vadd.f32 %v4384, %v4544
      %v4546 = vpop.f32.mrb[0].mxu0
      %4547 = vmatprep.mubr.bf16.mxu0 0
      %4548 = vmatmul.mubr.bf16.gmra.mrb[0].mxu0 %v3158
      %v4549 = vpop.f32.mrb[0].mxu0
      %v4550 = vadd.f32 %v4389, %v4549
      %v4551 = vpop.f32.mrb[0].mxu0
      %v4552 = vpop.f32.mrb[0].mxu0
      %v4553 = vadd.f32 %v4392, %v4552
      %v4554 = vpop.f32.mrb[0].mxu0
      %4555 = vmatprep.mubr.bf16.mxu0 0
      %4556 = vmatmul.mubr.bf16.gmra.mrb[0].mxu0 %v3167
      %v4557 = vpop.f32.mrb[0].mxu0
      %v4558 = vadd.f32 %v4397, %v4557
      %v4559 = vpop.f32.mrb[0].mxu0
      %v4560 = vpop.f32.mrb[0].mxu0
      %v4561 = vadd.f32 %v4400, %v4560
      %v4562 = vpop.f32.mrb[0].mxu0
      %4563 = vmatprep.mubr.bf16.mxu0 0
      %4564 = vmatmul.mubr.bf16.gmra.mrb[0].mxu0 %v3176
      %v4565 = vpop.f32.mrb[0].mxu0
      %v4566 = vadd.f32 %v4405, %v4565
      %v4567 = vpop.f32.mrb[0].mxu0
      %v4568 = vpop.f32.mrb[0].mxu0
      %v4569 = vadd.f32 %v4408, %v4568
      %v4570 = vpop.f32.mrb[0].mxu0
      %4571 = vmatprep.mubr.bf16.mxu0 0
      %4572 = vmatmul.mubr.bf16.gmra.mrb[0].mxu0 %v3185
      %v4573 = vpop.f32.mrb[0].mxu0
      %v4574 = vadd.f32 %v4413, %v4573
      %v4575 = vpop.f32.mrb[0].mxu0
      %v4576 = vpop.f32.mrb[0].mxu0
      %v4577 = vadd.f32 %v4416, %v4576
      %v4578 = vpop.f32.mrb[0].mxu0
      %4579 = vmatprep.mubr.bf16.mxu0 0
      %4580 = vmatmul.mubr.bf16.gmra.mrb[0].mxu0 %v3194
      %v4581 = vpop.f32.mrb[0].mxu0
      %v4582 = vadd.f32 %v4421, %v4581
      %v4583 = vpop.f32.mrb[0].mxu0
      %v4584 = vpop.f32.mrb[0].mxu0
      %v4585 = vadd.f32 %v4424, %v4584
      %v4586 = vpop.f32.mrb[0].mxu0
      %4587 = vmatprep.mubr.bf16.mxu0 0
      %4588 = vmatmul.mubr.bf16.gmra.mrb[0].mxu0 %v3203
      %v4589 = vpop.f32.mrb[0].mxu0
      %v4590 = vadd.f32 %v4429, %v4589
      %v4591 = vpop.f32.mrb[0].mxu0
      %v4592 = vpop.f32.mrb[0].mxu0
      %v4593 = vadd.f32 %v4432, %v4592
      %v4594 = vpop.f32.mrb[0].mxu0
      %4595 = vmatprep.mubr.bf16.mxu0 0
      %4596 = vmatmul.mubr.bf16.gmra.mrb[0].mxu0 %v3212
      %v4597 = vpop.f32.mrb[0].mxu0
      %v4598 = vadd.f32 %v4437, %v4597
      %v4599 = vpop.f32.mrb[0].mxu0
      %v4600 = vpop.f32.mrb[0].mxu0
      %v4601 = vadd.f32 %v4440, %v4600
      %v4602 = vpop.f32.mrb[0].mxu0
      %4603 = vmatprep.mubr.bf16.mxu0 0
      %4604 = vmatmul.mubr.bf16.gmra.mrb[0].mxu0 %v3221
      %v4605 = vpop.f32.mrb[0].mxu0
      %v4606 = vadd.f32 %v4445, %v4605
      %v4607 = vpop.f32.mrb[0].mxu0
      %v4608 = vpop.f32.mrb[0].mxu0
      %v4609 = vadd.f32 %v4448, %v4608
      %v4610 = vpop.f32.mrb[0].mxu0
      %4611 = vmatprep.mubr.bf16.mxu0 0
      %4612 = vmatmul.mubr.bf16.gmra.mrb[0].mxu0 %v3230
      %v4613 = vpop.f32.mrb[0].mxu0
      %v4614 = vadd.f32 %v4453, %v4613
      %v4615 = vpop.f32.mrb[0].mxu0
      %v4616 = vpop.f32.mrb[0].mxu0
      %v4617 = vadd.f32 %v4456, %v4616
      %v4618 = vpop.f32.mrb[0].mxu0
      %4619 = vmatprep.mubr.bf16.mxu0 0
      %4620 = vmatmul.mubr.bf16.gmra.mrb[0].mxu0 %v3239
      %v4621 = vpop.f32.mrb[0].mxu0
      %v4622 = vadd.f32 %v4461, %v4621
      %v4623 = vpop.f32.mrb[0].mxu0
      %v4624 = vpop.f32.mrb[0].mxu0
      %v4625 = vadd.f32 %v4464, %v4624
      %v4626 = vpop.f32.mrb[0].mxu0
      %4627 = vdwg.mxu0
      %v4628 = vmax.f32 %v4502, 0.0
      %v4629 = vmax.f32 %v4505, 0.0
      %v4630 = vmax.f32 %v4510, 0.0
      %v4631 = vmax.f32 %v4513, 0.0
      %v4632 = vmax.f32 %v4518, 0.0
      %v4633 = vmax.f32 %v4521, 0.0
      %v4634 = vmax.f32 %v4526, 0.0
      %v4635 = vmax.f32 %v4529, 0.0
      %v4636 = vmax.f32 %v4534, 0.0
      %v4637 = vmax.f32 %v4537, 0.0
      %v4638 = vmax.f32 %v4542, 0.0
      %v4639 = vmax.f32 %v4545, 0.0
      %v4640 = vmax.f32 %v4550, 0.0
      %v4641 = vmax.f32 %v4553, 0.0
      %v4642 = vmax.f32 %v4558, 0.0
      %v4643 = vmax.f32 %v4561, 0.0
      %v4644 = vmax.f32 %v4566, 0.0
      %v4645 = vmax.f32 %v4569, 0.0
      %v4646 = vmax.f32 %v4574, 0.0
      %v4647 = vmax.f32 %v4577, 0.0
      %v4648 = vmax.f32 %v4582, 0.0
      %v4649 = vmax.f32 %v4585, 0.0
      %v4650 = vmax.f32 %v4590, 0.0
      %v4651 = vmax.f32 %v4593, 0.0
      %v4652 = vmax.f32 %v4598, 0.0
      %v4653 = vmax.f32 %v4601, 0.0
      %v4654 = vmax.f32 %v4606, 0.0
      %v4655 = vmax.f32 %v4609, 0.0
      %v4656 = vmax.f32 %v4614, 0.0
      %v4657 = vmax.f32 %v4617, 0.0
      %v4658 = vmax.f32 %v4622, 0.0
      %v4659 = vmax.f32 %v4625, 0.0
      %v4660 = vpack.c.bf16 %v4629, %v4628
      %v4661 = vpack.c.bf16 %v4631, %v4630
      %v4662 = vpack.c.bf16 %v4633, %v4632
      %v4663 = vpack.c.bf16 %v4635, %v4634
      %v4664 = vpack.c.bf16 %v4637, %v4636
      %v4665 = vpack.c.bf16 %v4639, %v4638
      %v4666 = vpack.c.bf16 %v4641, %v4640
      %v4667 = vpack.c.bf16 %v4643, %v4642
      %v4668 = vpack.c.bf16 %v4645, %v4644
      %v4669 = vpack.c.bf16 %v4647, %v4646
      %v4670 = vpack.c.bf16 %v4649, %v4648
      %v4671 = vpack.c.bf16 %v4651, %v4650
      %v4672 = vpack.c.bf16 %v4653, %v4652
      %v4673 = vpack.c.bf16 %v4655, %v4654
      %v4674 = vpack.c.bf16 %v4657, %v4656
      %v4675 = vpack.c.bf16 %v4659, %v4658
      %v4692 = vunpack.c.l.b16 %v4660
      %v4693 = vunpack.c.h.b16 %v4660
      %v4694 = vunpack.c.l.b16 %v4661
      %v4695 = vunpack.c.h.b16 %v4661
      %v4696 = vunpack.c.l.b16 %v4662
      %v4697 = vunpack.c.h.b16 %v4662
      %v4698 = vunpack.c.l.b16 %v4663
      %v4699 = vunpack.c.h.b16 %v4663
      %v4700 = vunpack.c.l.b16 %v4664
      %v4701 = vunpack.c.h.b16 %v4664
      %v4702 = vunpack.c.l.b16 %v4665
      %v4703 = vunpack.c.h.b16 %v4665
      %v4704 = vunpack.c.l.b16 %v4666
      %v4705 = vunpack.c.h.b16 %v4666
      %v4706 = vunpack.c.l.b16 %v4667
      %v4707 = vunpack.c.h.b16 %v4667
      %v4708 = vunpack.c.l.b16 %v4668
      %v4709 = vunpack.c.h.b16 %v4668
      %v4710 = vunpack.c.l.b16 %v4669
      %v4711 = vunpack.c.h.b16 %v4669
      %v4712 = vunpack.c.l.b16 %v4670
      %v4713 = vunpack.c.h.b16 %v4670
      %v4714 = vunpack.c.l.b16 %v4671
      %v4715 = vunpack.c.h.b16 %v4671
      %v4716 = vunpack.c.l.b16 %v4672
      %v4717 = vunpack.c.h.b16 %v4672
      %v4718 = vunpack.c.l.b16 %v4673
      %v4719 = vunpack.c.h.b16 %v4673
      %v4720 = vunpack.c.l.b16 %v4674
      %v4721 = vunpack.c.h.b16 %v4674
      %v4722 = vunpack.c.l.b16 %v4675
      %v4723 = vunpack.c.h.b16 %v4675
      %v4724 = vpack.c.b16 %v4692, %v4692
      %v4725 = vpack.c.b16 %v4693, %v4693
      %v4726 = vpack.c.b16 %v4694, %v4694
      %v4727 = vpack.c.b16 %v4695, %v4695
      %v4728 = vpack.c.b16 %v4696, %v4696
      %v4729 = vpack.c.b16 %v4697, %v4697
      %v4730 = vpack.c.b16 %v4698, %v4698
      %v4731 = vpack.c.b16 %v4699, %v4699
      %v4732 = vpack.c.b16 %v4700, %v4700
      %v4733 = vpack.c.b16 %v4701, %v4701
      %v4734 = vpack.c.b16 %v4702, %v4702
      %v4735 = vpack.c.b16 %v4703, %v4703
      %v4736 = vpack.c.b16 %v4704, %v4704
      %v4737 = vpack.c.b16 %v4705, %v4705
      %v4738 = vpack.c.b16 %v4706, %v4706
      %v4739 = vpack.c.b16 %v4707, %v4707
      %v4740 = vpack.c.b16 %v4708, %v4708
      %v4741 = vpack.c.b16 %v4709, %v4709
      %v4742 = vpack.c.b16 %v4710, %v4710
      %v4743 = vpack.c.b16 %v4711, %v4711
      %v4744 = vpack.c.b16 %v4712, %v4712
      %v4745 = vpack.c.b16 %v4713, %v4713
      %v4746 = vpack.c.b16 %v4714, %v4714
      %v4747 = vpack.c.b16 %v4715, %v4715
      %v4748 = vpack.c.b16 %v4716, %v4716
      %v4749 = vpack.c.b16 %v4717, %v4717
      %v4750 = vpack.c.b16 %v4718, %v4718
      %v4751 = vpack.c.b16 %v4719, %v4719
      %v4752 = vpack.c.b16 %v4720, %v4720
      %v4753 = vpack.c.b16 %v4721, %v4721
      %v4754 = vpack.c.b16 %v4722, %v4722
      %v4755 = vpack.c.b16 %v4723, %v4723
      %4788 = vst [vmem:[%s233] sm:$0xf] %v4724
      %4789 = vst [vmem:[%s233 + $0x4] sm:$0xf] %v4725
      %4790 = vst [vmem:[%s233 + $0x8] sm:$0xf] %v4726
      %4791 = vst [vmem:[%s233 + $0xc] sm:$0xf] %v4727
      %4792 = vst [vmem:[%s233 + $0x10] sm:$0xf] %v4728
      %4793 = vst [vmem:[%s233 + $0x14] sm:$0xf] %v4729
      %4794 = vst [vmem:[%s233 + $0x18] sm:$0xf] %v4730
      %4795 = vst [vmem:[%s233 + $0x1c] sm:$0xf] %v4731
      %4796 = vst [vmem:[%s233 + $0x20] sm:$0xf] %v4732
      %4797 = vst [vmem:[%s233 + $0x24] sm:$0xf] %v4733
      %4798 = vst [vmem:[%s233 + $0x28] sm:$0xf] %v4734
      %4799 = vst [vmem:[%s233 + $0x2c] sm:$0xf] %v4735
      %4800 = vst [vmem:[%s233 + $0x30] sm:$0xf] %v4736
      %4801 = vst [vmem:[%s233 + $0x34] sm:$0xf] %v4737
      %4802 = vst [vmem:[%s233 + $0x38] sm:$0xf] %v4738
      %4803 = vst [vmem:[%s233 + $0x3c] sm:$0xf] %v4739
      %4804 = vst [vmem:[%s233 + $0x40] sm:$0xf] %v4740
      %4805 = vst [vmem:[%s233 + $0x44] sm:$0xf] %v4741
      %4806 = vst [vmem:[%s233 + $0x48] sm:$0xf] %v4742
      %4807 = vst [vmem:[%s233 + $0x4c] sm:$0xf] %v4743
      %4808 = vst [vmem:[%s233 + $0x50] sm:$0xf] %v4744
      %4809 = vst [vmem:[%s233 + $0x54] sm:$0xf] %v4745
      %4810 = vst [vmem:[%s233 + $0x58] sm:$0xf] %v4746
      %4811 = vst [vmem:[%s233 + $0x5c] sm:$0xf] %v4747
      %4812 = vst [vmem:[%s233 + $0x60] sm:$0xf] %v4748
      %4813 = vst [vmem:[%s233 + $0x64] sm:$0xf] %v4749
      %4814 = vst [vmem:[%s233 + $0x68] sm:$0xf] %v4750
      %4815 = vst [vmem:[%s233 + $0x6c] sm:$0xf] %v4751
      %4816 = vst [vmem:[%s233 + $0x70] sm:$0xf] %v4752
      %4817 = vst [vmem:[%s233 + $0x74] sm:$0xf] %v4753
      %4818 = vst [vmem:[%s233 + $0x78] sm:$0xf] %v4754
      %4819 = vst [vmem:[%s233 + $0x7c] sm:$0xf] %v4755
      %v4820 = vadd.f32 %v4628, %v4630
      %v4821 = vadd.f32 %v4629, %v4631
      %v4822 = vadd.f32 %v4636, %v4638
      %v4823 = vadd.f32 %v4637, %v4639
      %v4824 = vadd.f32 %v4644, %v4646
      %v4825 = vadd.f32 %v4645, %v4647
      %v4826 = vadd.f32 %v4652, %v4654
      %v4827 = vadd.f32 %v4653, %v4655
      %v4828 = vadd.f32 %v4820, %v4632
      %v4829 = vadd.f32 %v4821, %v4633
      %v4830 = vadd.f32 %v4822, %v4640
      %v4831 = vadd.f32 %v4823, %v4641
      %v4832 = vadd.f32 %v4824, %v4648
      %v4833 = vadd.f32 %v4825, %v4649
      %v4834 = vadd.f32 %v4826, %v4656
      %v4835 = vadd.f32 %v4827, %v4657
      %v4836 = vadd.f32 %v4828, %v4634
      %v4837 = vadd.f32 %v4829, %v4635
      %v4838 = vadd.f32 %v4830, %v4642
      %v4839 = vadd.f32 %v4831, %v4643
      %v4840 = vadd.f32 %v4832, %v4650
      %v4841 = vadd.f32 %v4833, %v4651
      %v4842 = vadd.f32 %v4834, %v4658
      %v4843 = vadd.f32 %v4835, %v4659
      %4844 = vst [vmem:[#allocation3] sm:$0xff] %v4836
      %4845 = vst [vmem:[#allocation3 + $0x8] sm:$0xff] %v4837
      %4846 = vst [vmem:[#allocation3 + $0x10] sm:$0xff] %v4838
      %4847 = vst [vmem:[#allocation3 + $0x18] sm:$0xff] %v4839
      %4848 = vst [vmem:[#allocation3 + $0x20] sm:$0xff] %v4840
      %4849 = vst [vmem:[#allocation3 + $0x28] sm:$0xff] %v4841
      %4850 = vst [vmem:[#allocation3 + $0x30] sm:$0xff] %v4842
      %4851 = vst [vmem:[#allocation3 + $0x38] sm:$0xff] %v4843
      %v4852 = vld [vmem:[#allocation3] ss:$4 sm:$0xf]
      %s4853 = scalar_lea.vmem [#allocation3], 16
      %v4854 = vld [vmem:[%s4853] ss:$4 sm:$0xf]
      %s4855 = scalar_lea.vmem [#allocation3], 32
      %v4856 = vld [vmem:[%s4855] ss:$4 sm:$0xf]
      %s4857 = scalar_lea.vmem [#allocation3], 48
      %v4858 = vld [vmem:[%s4857] ss:$4 sm:$0xf]
      %s4859 = scalar_lea.vmem [#allocation3], 1
      %v4860 = vld [vmem:[%s4859] ss:$4 sm:$0xf]
      %s4861 = scalar_lea.vmem [#allocation3], 17
      %v4862 = vld [vmem:[%s4861] ss:$4 sm:$0xf]
      %s4863 = scalar_lea.vmem [#allocation3], 33
      %v4864 = vld [vmem:[%s4863] ss:$4 sm:$0xf]
      %s4865 = scalar_lea.vmem [#allocation3], 49
      %v4866 = vld [vmem:[%s4865] ss:$4 sm:$0xf]
      %v4867 = vadd.f32 %v4852, %v4860
      %v4868 = vadd.f32 %v4854, %v4862
      %v4869 = vadd.f32 %v4856, %v4864
      %v4870 = vadd.f32 %v4858, %v4866
      %s4871 = scalar_lea.vmem [#allocation3], 2
      %v4872 = vld [vmem:[%s4871] ss:$4 sm:$0xf]
      %s4873 = scalar_lea.vmem [#allocation3], 18
      %v4874 = vld [vmem:[%s4873] ss:$4 sm:$0xf]
      %s4875 = scalar_lea.vmem [#allocation3], 34
      %v4876 = vld [vmem:[%s4875] ss:$4 sm:$0xf]
      %s4877 = scalar_lea.vmem [#allocation3], 50
      %v4878 = vld [vmem:[%s4877] ss:$4 sm:$0xf]
      %v4879 = vadd.f32 %v4867, %v4872
      %v4880 = vadd.f32 %v4868, %v4874
      %v4881 = vadd.f32 %v4869, %v4876
      %v4882 = vadd.f32 %v4870, %v4878
      %s4883 = scalar_lea.vmem [#allocation3], 3
      %v4884 = vld [vmem:[%s4883] ss:$4 sm:$0xf]
      %s4885 = scalar_lea.vmem [#allocation3], 19
      %v4886 = vld [vmem:[%s4885] ss:$4 sm:$0xf]
      %s4887 = scalar_lea.vmem [#allocation3], 35
      %v4888 = vld [vmem:[%s4887] ss:$4 sm:$0xf]
      %s4889 = scalar_lea.vmem [#allocation3], 51
      %v4890 = vld [vmem:[%s4889] ss:$4 sm:$0xf]
      %v4891 = vadd.f32 %v4879, %v4884
      %v4892 = vadd.f32 %v4880, %v4886
      %v4893 = vadd.f32 %v4881, %v4888
      %v4894 = vadd.f32 %v4882, %v4890
      %v4895 = vmul.f32 %v4891, 0.0625
      %v4896 = vmul.f32 %v4892, 0.0625
      %v4897 = vmul.f32 %v4893, 0.0625
      %v4898 = vmul.f32 %v4894, 0.0625
      %v4899 = vpack.c.bf16 %v4895, %v4895
      %v4900 = vpack.c.bf16 %v4896, %v4896
      %v4901 = vpack.c.bf16 %v4897, %v4897
      %v4902 = vpack.c.bf16 %v4898, %v4898
      %4903 = vst [vmem:[%s243] sm:$0x3] %v4899
      %4904 = vst [vmem:[%s243 + $0x2] sm:$0x3] %v4900
      %4905 = vst [vmem:[%s243 + $0x4] sm:$0x3] %v4901
      %4906 = vst [vmem:[%s243 + $0x6] sm:$0x3] %v4902
      %s4907 = smul.u32 32, %s21
      %p4908 = scmp.lt.s32.totalorder %s20, 1
      %s4909 = scalar_select %p4908, %s20, 1
      %p4910 = scmp.lt.s32.totalorder %s4907, 31
      %s4911 = scalar_select %p4910, %s4907, 31
      %s4912 = smul.addr %s4909, 32
      %s4913 = sadd.s32 %s4911, %s4912
      %s4914 = smul.addr %s4913, 4
      %s4915 = scalar_lea.vmem %s3, %s4914
      %s4916 = smul.u32 4, %s21
      %p4917 = scmp.lt.s32.totalorder %s20, 1
      %s4918 = scalar_select %p4917, %s20, 1
      %p4919 = scmp.lt.s32.totalorder %s4916, 3
      %s4920 = scalar_select %p4919, %s4916, 3
      %s4921 = smul.addr %s4918, 4
      %s4922 = sadd.s32 %s4920, %s4921
      %s4923 = smul.addr %s4922, 2
      %s4924 = scalar_lea.vmem %s4, %s4923
      // Predicated region
      $region33: #{_lambda_.4} parent=31 // pred_check
        %p4925 = pneg %p116
      $region34: #{_lambda_.4} parent=31 // pred_check_branch
        %4927 = sbr.rel (%p4925) target = $region36
      $region35: #{_lambda_.4} parent=31 // pred_region
        %s4928 = smul.u32 32, %s21
      $region36: #{_lambda_.4} parent=31 // pred_fallthru
        _
      // Predicated region
      $region37: #{_lambda_.4} parent=31 // pred_check
        %p4929 = pneg %p144
      $region38: #{_lambda_.4} parent=31 // pred_check_branch
        %4931 = sbr.rel (%p4929) target = $region40
      $region39: #{_lambda_.4} parent=31 // pred_region
        %s4932 = smul.u32 4, %s21
      $region40: #{_lambda_.4} parent=31 // pred_fallthru
        _
    $region32: #{_lambda_.4} parent=5 // pred_fallthru
      _
    %p4933 = scmp.le.s32.totalorder 2, %s11
    // Predicated region
    $region41: #{_lambda_.4} parent=5 // pred_check
      %p4934 = pneg %p4933
    $region42: #{_lambda_.4} parent=5 // pred_check_branch
      %4936 = sbr.rel (%p4934) target = $region44
    $region43: #{_lambda_.4} parent=5 // pred_region
      %s4937 = ssub.s32 %s11, 2
      // Predicated region
      $region45: #{_lambda_.4} parent=43 // pred_check
        %p4938 = pneg %p122
      $region46: #{_lambda_.4} parent=43 // pred_check_branch
        %4940 = sbr.rel (%p4938) target = $region48
      $region47: #{_lambda_.4} parent=43 // pred_region
        %s4941 = smul.u32 32, %s23
        %p4942 = scmp.lt.s32.totalorder %s22, 1
        %s4943 = scalar_select %p4942, %s22, 1
        %p4944 = scmp.lt.s32.totalorder %s4941, 31
        %s4945 = scalar_select %p4944, %s4941, 31
        %s4946 = smul.addr %s4943, 32
        %s4947 = sadd.s32 %s4945, %s4946
        %s4948 = smul.addr %s4947, 4
        %s4949 = scalar_lea.vmem %s3, %s4948
      $region48: #{_lambda_.4} parent=43 // pred_fallthru
        _
      // Predicated region
      $region49: #{_lambda_.4} parent=43 // pred_check
        %p4950 = pneg %p150
      $region50: #{_lambda_.4} parent=43 // pred_check_branch
        %4952 = sbr.rel (%p4950) target = $region52
      $region51: #{_lambda_.4} parent=43 // pred_region
        %s4953 = smul.u32 4, %s23
        %p4954 = scmp.lt.s32.totalorder %s22, 1
        %s4955 = scalar_select %p4954, %s22, 1
        %p4956 = scmp.lt.s32.totalorder %s4953, 3
        %s4957 = scalar_select %p4956, %s4953, 3
        %s4958 = smul.addr %s4955, 4
        %s4959 = sadd.s32 %s4957, %s4958
        %s4960 = smul.addr %s4959, 2
        %s4961 = scalar_lea.vmem %s4, %s4960
      $region52: #{_lambda_.4} parent=43 // pred_fallthru
        _
    $region44: #{_lambda_.4} parent=5 // pred_fallthru
      _
  $region6: #{_lambda_.4} parent=0 // loop_footer
    %s15 = sadd.s32 1, %s11
  $region7: #{_lambda_.4} parent=0 // loop_footer_branch
    %10 = sbr.rel target = $region3
  $region8: #{_lambda_.4} parent=0 // loop_exit
    _

</llo_original>
